<compile_context>
chip_gen: v6e
topology: v6e:2x2x1
jax: 0.10.0
libtpu: 0.0.40
codegen_flags: <defaults>
</compile_context>

<pallas_src>
import numpy as np
import jax
import jax.numpy as jnp
from jax.experimental import pallas as pl
from jax.experimental.pallas import tpu as pltpu

NEG_SLOPE = 0.01  # F.leaky_relu default negative_slope


def _round_up(x, m):
    return ((x + m - 1) // m) * m


def _leaky(x):
    return jnp.where(x > 0, x, NEG_SLOPE * x)


# ----------------------------------------------------------------------------
# Pallas kernel 1: fused conv-as-matmul + bias + leaky_relu + 2x2 max-pool.
#   w: (Co_pad, K_pad) f32, p: (4, K_pad, N*Hp*Wp) f32 (one slab per pool
#   window offset), b: (Co_pad, 1) f32.
#   pool(leaky(conv + b)) == leaky(max_d(conv_d) + b) because the bias is
#   per-channel and leaky_relu is monotone non-decreasing.
# Single grid step, all operands VMEM-resident (< 1.1 MB).
# ----------------------------------------------------------------------------
def _conv_pool_kernel(w_ref, p_ref, b_ref, o_ref):
    y01 = jnp.maximum(
        jnp.dot(w_ref[...], p_ref[0], preferred_element_type=jnp.float32),
        jnp.dot(w_ref[...], p_ref[1], preferred_element_type=jnp.float32))
    y23 = jnp.maximum(
        jnp.dot(w_ref[...], p_ref[2], preferred_element_type=jnp.float32),
        jnp.dot(w_ref[...], p_ref[3], preferred_element_type=jnp.float32))
    y = jnp.maximum(y01, y23) + b_ref[...]          # (Co_pad, 1) lane-broadcast
    o_ref[...] = jnp.where(y > 0, y, NEG_SLOPE * y)


def _im2col_pool(x, Ci, k, k_pad):
    """x: (C, N, H, W) channel-major activation.  Returns
    P of shape (4, k_pad, N*Hp*Wp) with
    P[2*di+dj, (ci,kh,kw), (n,hp,wp)] = x[ci, n, 2*hp+di+kh, 2*wp+dj+kw].
    Row order (ci,kh,kw) matches PyTorch's w.reshape(Co, Ci*k*k)."""
    _, N, H, W = x.shape
    Hp, Wp = (H - k + 1) // 2, (W - k + 1) // 2
    rows = []
    for ci in range(Ci):
        for kh in range(k):
            for kw in range(k):
                win = x[ci, :, kh:kh + 2 * Hp, kw:kw + 2 * Wp]   # (N, 2Hp, 2Wp)
                rows.append(win.reshape(N, Hp, 2, Wp, 2))
    pat = jnp.stack(rows, axis=0)                # (K, N, Hp, 2, Wp, 2)
    pat = pat.transpose(3, 5, 0, 1, 2, 4)        # (di, dj, K, N, Hp, Wp)
    pat = pat.reshape(4, Ci * k * k, N * Hp * Wp)
    if k_pad > Ci * k * k:
        pat = jnp.pad(pat, ((0, 0), (0, k_pad - Ci * k * k), (0, 0)))
    return pat, Hp, Wp


def conv_pool_leaky(x_cnhw, w_mat, b_col, *, Ci, k):
    """x_cnhw: (C, N, H, W); w_mat (Co_pad, K_pad) pre-padded.
    Returns (Co_pad, N, Hp, Wp) channel-major (pad channels are zero)."""
    N = x_cnhw.shape[1]
    pat, Hp, Wp = _im2col_pool(x_cnhw, Ci, k, w_mat.shape[1])
    y = pl.pallas_call(
        _conv_pool_kernel,
        out_shape=jax.ShapeDtypeStruct((w_mat.shape[0], N * Hp * Wp), jnp.float32),
    )(w_mat, pat, b_col)
    return y.reshape(w_mat.shape[0], N, Hp, Wp)


# ----------------------------------------------------------------------------
# Pallas kernel 2: fused FC stack
#   out = fc4(leaky(fc3(leaky(fc2(leaky(fc1(x)))))))
# Grid axis j tiles fc1's output columns (tn=512, 4 steps) which is at the same
# time fc2's contraction axis (f32 accumulator scratch, P3 pattern).  fc1/fc2
# weights stream as bf16 blocks; fc3/fc4 weights are VMEM-resident.  The tail
# runs only on the last grid step (pl.when guard).
# ----------------------------------------------------------------------------
def _fc_stack_kernel(x_ref, w1_ref, b1_ref, w2_ref, b2_ref, w3_ref, b3_ref,
                     w4_ref, b4_ref, o_ref, acc_ref):
    j = pl.program_id(0)

    @pl.when(j == 0)
    def _():
        acc_ref[...] = jnp.zeros_like(acc_ref)

    # fc1 block: (Mp, K)bf16 x (K, tn)bf16 -> (Mp, tn) f32 accumulate.
    f5 = jnp.dot(x_ref[...], w1_ref[...],
                 preferred_element_type=jnp.float32) + b1_ref[...]
    f5 = jnp.where(f5 > 0, f5, NEG_SLOPE * f5)

    # fc2 partial contraction over this block of fc1 outputs (bf16 operands).
    acc_ref[...] += jnp.dot(f5.astype(jnp.bfloat16), w2_ref[...],
                            preferred_element_type=jnp.float32)

    # Tail (fc2 bias + leaky + fc3 + fc4): only on the final grid step.
    @pl.when(j == pl.num_programs(0) - 1)
    def _():
        h = acc_ref[...] + b2_ref[...]
        h = jnp.where(h > 0, h, NEG_SLOPE * h)
        h = jnp.dot(h.astype(jnp.bfloat16), w3_ref[...],
                    preferred_element_type=jnp.float32) + b3_ref[...]
        h = jnp.where(h > 0, h, NEG_SLOPE * h)
        o_ref[...] = jnp.dot(h.astype(jnp.bfloat16), w4_ref[...],
                             preferred_element_type=jnp.float32) + b4_ref[...]


def pallas_fc_stack(x, w1, b1, w2, b2, w3, b3, w4, b4, *, tn=512):
    """x: (Mp, 2704) bf16 (rows padded to mult. of 8); weights pre-padded,
    pre-transposed bf16; biases f32 row vectors."""
    Mp, K = x.shape
    Op1 = w1.shape[1]            # 2048 (padded fc1 out)
    Ot = w4.shape[1]             # 128  (padded final out)
    assert Op1 % tn == 0
    grid = (Op1 // tn,)
    return pl.pallas_call(
        _fc_stack_kernel,
        out_shape=jax.ShapeDtypeStruct((Mp, Ot), jnp.float32),
        grid_spec=pltpu.PrefetchScalarGridSpec(
            num_scalar_prefetch=0,
            grid=grid,
            in_specs=[pl.BlockSpec((Mp, K), lambda j: (0, 0)),     # x (bf16)
                      pl.BlockSpec((K, tn), lambda j: (0, j)),     # wf1 (bf16)
                      pl.BlockSpec((1, tn), lambda j: (0, j)),     # bf1 (f32)
                      pl.BlockSpec((tn, Ot), lambda j: (j, 0)),    # wf2 (bf16)
                      pl.BlockSpec((1, Ot), lambda j: (0, 0)),     # bf2
                      pl.BlockSpec((Ot, Ot), lambda j: (0, 0)),    # wf3 (bf16)
                      pl.BlockSpec((1, Ot), lambda j: (0, 0)),     # bf3
                      pl.BlockSpec((Ot, Ot), lambda j: (0, 0)),    # wf4 (bf16)
                      pl.BlockSpec((1, Ot), lambda j: (0, 0))],    # bf4
            out_specs=pl.BlockSpec((Mp, Ot), lambda j: (0, 0)),
            scratch_shapes=[pltpu.VMEM((Mp, Ot), jnp.float32)]),
        compiler_params=pltpu.CompilerParams(
            dimension_semantics=("arbitrary",),        # j is fc2's reduction
            # double-buffered working set ~6 MB; 16 MiB fits the v5e default
            # scoped limit and leaves headroom on v7x's 64 MiB VMEM.
            vmem_limit_bytes=16 * 1024 * 1024),
    )(x, w1, b1, w2, b2, w3, b3, w4, b4)


# ----------------------------------------------------------------------------
# One-time host-side parameter preparation (outside jit): conv weights to
# matmul form, FC weights transposed + zero-padded + cast to bf16.
# ----------------------------------------------------------------------------
def prepare_params(p):
    def pad2(a, r, c):
        return jnp.pad(a, ((0, r - a.shape[0]), (0, c - a.shape[1])))

    O1 = 2048                                     # padded fc1 out (mult of tn)

    return {
        # conv1: (6,1,5,5) -> (8,32); conv2: (16,6,5,5) -> (16,152)
        "w1m": pad2(p["w1"].reshape(6, 25).astype(jnp.float32), 8, 32),
        "b1c": jnp.pad(p["b1"].astype(jnp.float32), (0, 2)).reshape(8, 1),
        "w2m": pad2(p["w2"].reshape(16, 150).astype(jnp.float32), 16, 152),
        "b2c": p["b2"].astype(jnp.float32).reshape(16, 1),
        # fc1..fc4: transposed, zero-padded, bf16 (f32 accumulation in-kernel).
        "wf1_t": pad2(p["wf1"].T.astype(jnp.float32), 2704, O1).astype(jnp.bfloat16),
        "bf1_r": jnp.pad(p["bf1"].astype(jnp.float32), (0, O1 - 2000)).reshape(1, O1),
        "wf2_t": pad2(p["wf2"].T.astype(jnp.float32), O1, 128).astype(jnp.bfloat16),
        "bf2_r": jnp.pad(p["bf2"].astype(jnp.float32), (0, 8)).reshape(1, 128),
        "wf3_t": pad2(p["wf3"].T.astype(jnp.float32), 128, 128).astype(jnp.bfloat16),
        "bf3_r": jnp.pad(p["bf3"].astype(jnp.float32), (0, 44)).reshape(1, 128),
        "wf4_t": pad2(p["wf4"].T.astype(jnp.float32), 128, 128).astype(jnp.bfloat16),
        "bf4_r": jnp.pad(p["bf4"].astype(jnp.float32), (0, 119)).reshape(1, 128),
    }


# ----------------------------------------------------------------------------
# Net.forward (takes prepared params)
# ----------------------------------------------------------------------------
def net_forward(x, pp):
    N = x.shape[0]
    a0 = jnp.transpose(x, (1, 0, 2, 3))                          # (1, N, 64, 64)
    a1 = conv_pool_leaky(a0, pp["w1m"], pp["b1c"], Ci=1, k=5)    # (8, N, 30, 30)
    a2 = conv_pool_leaky(a1, pp["w2m"], pp["b2c"], Ci=6, k=5)    # (16, N, 13, 13)
    # PyTorch flatten order per sample: (C, H, W)
    flat = jnp.transpose(a2, (1, 0, 2, 3)).reshape(N, 16 * 13 * 13)   # (N, 2704)
    Mp = _round_up(max(N, 8), 8)
    flat = jnp.pad(flat, ((0, Mp - N), (0, 0))).astype(jnp.bfloat16)
    out = pallas_fc_stack(flat, pp["wf1_t"], pp["bf1_r"],
                          pp["wf2_t"], pp["bf2_r"],
                          pp["wf3_t"], pp["bf3_r"],
                          pp["wf4_t"], pp["bf4_r"])              # (Mp, 128) f32
    return out[:N, :9]


# ----------------------------------------------------------------------------
# Pure-JAX reference (f32, raw PyTorch-layout params)
# ----------------------------------------------------------------------------
def _ref_pool(x):
    N, C, H, W = x.shape
    return x.reshape(N, C, H // 2, 2, W // 2, 2).max(axis=(3, 5))


def reference_forward(x, p):
    dn = ("NCHW", "OIHW", "NCHW")
    c1 = _leaky(jax.lax.conv_general_dilated(x, p["w1"], (1, 1), "VALID",
                                             dimension_numbers=dn)
                + p["b1"][None, :, None, None])
    s2 = _ref_pool(c1)
    c3 = _leaky(jax.lax.conv_general_dilated(s2, p["w2"], (1, 1), "VALID",
                                             dimension_numbers=dn)
                + p["b2"][None, :, None, None])
    s4 = _ref_pool(c3)
    flat = s4.reshape(x.shape[0], -1)
    f5 = _leaky(flat @ p["wf1"].T + p["bf1"])
    f6 = _leaky(f5 @ p["wf2"].T + p["bf2"])
    f7 = _leaky(f6 @ p["wf3"].T + p["bf3"])
    return f7 @ p["wf4"].T + p["bf4"]


# ----------------------------------------------------------------------------
# Deterministic parameter init (PyTorch-like U(-1/sqrt(fan_in), 1/sqrt(fan_in)))
# ----------------------------------------------------------------------------
def init_params(key):
    ks = jax.random.split(key, 12)

    def u(k, shape, fan_in):
        bound = 1.0 / float(np.sqrt(fan_in))
        return jax.random.uniform(k, shape, jnp.float32, -bound, bound)

    return {
        "w1": u(ks[0], (6, 1, 5, 5), 25),     "b1": u(ks[1], (6,), 25),
        "w2": u(ks[2], (16, 6, 5, 5), 150),   "b2": u(ks[3], (16,), 150),
        "wf1": u(ks[4], (2000, 2704), 2704),  "bf1": u(ks[5], (2000,), 2704),
        "wf2": u(ks[6], (120, 2000), 2000),   "bf2": u(ks[7], (120,), 2000),
        "wf3": u(ks[8], (84, 120), 120),      "bf3": u(ks[9], (84,), 120),
        "wf4": u(ks[10], (9, 84), 84),        "bf4": u(ks[11], (9,), 84),
    }


if __name__ == "__main__":
    key = jax.random.PRNGKey(0)
    pkey, xkey = jax.random.split(key)
    params = init_params(pkey)
    prepped = prepare_params(params)        # one-time, outside jit
    # Input shape forced by fc1 (2704 = 16*13*13): (N, 1, 64, 64). Batch = 2.
    x = jax.random.normal(xkey, (2, 1, 64, 64), dtype=jnp.float32)

    fwd = jax.jit(net_forward)
    out = jax.block_until_ready(fwd(x, prepped))
    assert out.shape == (2, 9) and out.dtype == jnp.float32

    ref = reference_forward(x, params)
    # bf16 FC weights/activations with f32 accumulation -> ~1e-2 level parity.
    np.testing.assert_allclose(np.asarray(out), np.asarray(ref),
                               rtol=2e-2, atol=2e-2)
    print("KERNEL_OK")
</pallas_src>

<mosaic_0001>
module attributes {stable_mosaic.version = 11 : i64} {
  func.func @_conv_pool_kernel(%arg0: memref<8x32xf32, #tpu.memory_space<vmem>>, %arg1: memref<4x32x1800xf32, #tpu.memory_space<vmem>>, %arg2: memref<8x1xf32, #tpu.memory_space<vmem>>, %arg3: memref<8x1800xf32, #tpu.memory_space<vmem>>) attributes {dimension_semantics = [], scalar_prefetch = 0 : i64, scratch_operands = 0 : i64, tpu.core_type = #tpu.core_type<tc>} {
    %c0 = arith.constant 0 : index
    %c0_0 = arith.constant 0 : index
    %0 = vector.load %arg0[%c0, %c0_0] : memref<8x32xf32, #tpu.memory_space<vmem>>, vector<8x32xf32>
    %c0_1 = arith.constant 0 : index
    %c0_2 = arith.constant 0 : index
    %c0_3 = arith.constant 0 : index
    %1 = vector.load %arg1[%c0_1, %c0_2, %c0_3] : memref<4x32x1800xf32, #tpu.memory_space<vmem>>, vector<1x32x1800xf32>
    %2 = vector.shape_cast %1 : vector<1x32x1800xf32> to vector<32x1800xf32>
    %cst = arith.constant dense<0.000000e+00> : vector<8x1800xf32>
    %3 = tpu.matmul %0, %2, %cst {dimension_numbers = #tpu.dot_dimension_numbers<[1], [0], [0], [1], [0, 0, 1, 1], [], []>} : vector<8x32xf32>, vector<32x1800xf32>, vector<8x1800xf32> -> vector<8x1800xf32>
    %c0_4 = arith.constant 0 : index
    %c0_5 = arith.constant 0 : index
    %4 = vector.load %arg0[%c0_4, %c0_5] : memref<8x32xf32, #tpu.memory_space<vmem>>, vector<8x32xf32>
    %c1 = arith.constant 1 : index
    %c0_6 = arith.constant 0 : index
    %c0_7 = arith.constant 0 : index
    %5 = vector.load %arg1[%c1, %c0_6, %c0_7] : memref<4x32x1800xf32, #tpu.memory_space<vmem>>, vector<1x32x1800xf32>
    %6 = vector.shape_cast %5 : vector<1x32x1800xf32> to vector<32x1800xf32>
    %cst_8 = arith.constant dense<0.000000e+00> : vector<8x1800xf32>
    %7 = tpu.matmul %4, %6, %cst_8 {dimension_numbers = #tpu.dot_dimension_numbers<[1], [0], [0], [1], [0, 0, 1, 1], [], []>} : vector<8x32xf32>, vector<32x1800xf32>, vector<8x1800xf32> -> vector<8x1800xf32>
    %8 = arith.maximumf %3, %7 : vector<8x1800xf32>
    %c0_9 = arith.constant 0 : index
    %c0_10 = arith.constant 0 : index
    %9 = vector.load %arg0[%c0_9, %c0_10] : memref<8x32xf32, #tpu.memory_space<vmem>>, vector<8x32xf32>
    %c2 = arith.constant 2 : index
    %c0_11 = arith.constant 0 : index
    %c0_12 = arith.constant 0 : index
    %10 = vector.load %arg1[%c2, %c0_11, %c0_12] : memref<4x32x1800xf32, #tpu.memory_space<vmem>>, vector<1x32x1800xf32>
    %11 = vector.shape_cast %10 : vector<1x32x1800xf32> to vector<32x1800xf32>
    %cst_13 = arith.constant dense<0.000000e+00> : vector<8x1800xf32>
    %12 = tpu.matmul %9, %11, %cst_13 {dimension_numbers = #tpu.dot_dimension_numbers<[1], [0], [0], [1], [0, 0, 1, 1], [], []>} : vector<8x32xf32>, vector<32x1800xf32>, vector<8x1800xf32> -> vector<8x1800xf32>
    %c0_14 = arith.constant 0 : index
    %c0_15 = arith.constant 0 : index
    %13 = vector.load %arg0[%c0_14, %c0_15] : memref<8x32xf32, #tpu.memory_space<vmem>>, vector<8x32xf32>
    %c3 = arith.constant 3 : index
    %c0_16 = arith.constant 0 : index
    %c0_17 = arith.constant 0 : index
    %14 = vector.load %arg1[%c3, %c0_16, %c0_17] : memref<4x32x1800xf32, #tpu.memory_space<vmem>>, vector<1x32x1800xf32>
    %15 = vector.shape_cast %14 : vector<1x32x1800xf32> to vector<32x1800xf32>
    %cst_18 = arith.constant dense<0.000000e+00> : vector<8x1800xf32>
    %16 = tpu.matmul %13, %15, %cst_18 {dimension_numbers = #tpu.dot_dimension_numbers<[1], [0], [0], [1], [0, 0, 1, 1], [], []>} : vector<8x32xf32>, vector<32x1800xf32>, vector<8x1800xf32> -> vector<8x1800xf32>
    %17 = arith.maximumf %12, %16 : vector<8x1800xf32>
    %18 = arith.maximumf %8, %17 : vector<8x1800xf32>
    %c0_19 = arith.constant 0 : index
    %c0_20 = arith.constant 0 : index
    %19 = vector.load %arg2[%c0_19, %c0_20] : memref<8x1xf32, #tpu.memory_space<vmem>>, vector<8x1xf32>
    %20 = vector.broadcast %19 : vector<8x1xf32> to vector<8x1800xf32>
    %21 = arith.addf %18, %20 : vector<8x1800xf32>
    %cst_21 = arith.constant 0.000000e+00 : f32
    %22 = vector.broadcast %cst_21 : f32 to vector<8x1800xf32>
    %23 = arith.cmpf ogt, %21, %22 : vector<8x1800xf32>
    %cst_22 = arith.constant 0.00999999977 : f32
    %24 = vector.broadcast %cst_22 : f32 to vector<8x1800xf32>
    %25 = arith.mulf %24, %21 : vector<8x1800xf32>
    %26 = arith.select %23, %21, %25 : vector<8x1800xi1>, vector<8x1800xf32>
    %c0_23 = arith.constant 0 : index
    %c0_24 = arith.constant 0 : index
    %27 = vector.load %arg3[%c0_23, %c0_24] : memref<8x1800xf32, #tpu.memory_space<vmem>>, vector<8x1800xf32>
    tpu.vector_store %arg3[%c0_23, %c0_24], %26 {strides = array<i32>} : memref<8x1800xf32, #tpu.memory_space<vmem>>, vector<8x1800xf32>,
    return
  }
}

module attributes {stable_mosaic.version = 11 : i64} {
  func.func @_conv_pool_kernel(%arg0: memref<16x152xf32, #tpu.memory_space<vmem>>, %arg1: memref<4x152x338xf32, #tpu.memory_space<vmem>>, %arg2: memref<16x1xf32, #tpu.memory_space<vmem>>, %arg3: memref<16x338xf32, #tpu.memory_space<vmem>>) attributes {dimension_semantics = [], scalar_prefetch = 0 : i64, scratch_operands = 0 : i64, tpu.core_type = #tpu.core_type<tc>} {
    %c0 = arith.constant 0 : index
    %c0_0 = arith.constant 0 : index
    %0 = vector.load %arg0[%c0, %c0_0] : memref<16x152xf32, #tpu.memory_space<vmem>>, vector<16x152xf32>
    %c0_1 = arith.constant 0 : index
    %c0_2 = arith.constant 0 : index
    %c0_3 = arith.constant 0 : index
    %1 = vector.load %arg1[%c0_1, %c0_2, %c0_3] : memref<4x152x338xf32, #tpu.memory_space<vmem>>, vector<1x152x338xf32>
    %2 = vector.shape_cast %1 : vector<1x152x338xf32> to vector<152x338xf32>
    %cst = arith.constant dense<0.000000e+00> : vector<16x338xf32>
    %3 = tpu.matmul %0, %2, %cst {dimension_numbers = #tpu.dot_dimension_numbers<[1], [0], [0], [1], [0, 0, 1, 1], [], []>} : vector<16x152xf32>, vector<152x338xf32>, vector<16x338xf32> -> vector<16x338xf32>
    %c0_4 = arith.constant 0 : index
    %c0_5 = arith.constant 0 : index
    %4 = vector.load %arg0[%c0_4, %c0_5] : memref<16x152xf32, #tpu.memory_space<vmem>>, vector<16x152xf32>
    %c1 = arith.constant 1 : index
    %c0_6 = arith.constant 0 : index
    %c0_7 = arith.constant 0 : index
    %5 = vector.load %arg1[%c1, %c0_6, %c0_7] : memref<4x152x338xf32, #tpu.memory_space<vmem>>, vector<1x152x338xf32>
    %6 = vector.shape_cast %5 : vector<1x152x338xf32> to vector<152x338xf32>
    %cst_8 = arith.constant dense<0.000000e+00> : vector<16x338xf32>
    %7 = tpu.matmul %4, %6, %cst_8 {dimension_numbers = #tpu.dot_dimension_numbers<[1], [0], [0], [1], [0, 0, 1, 1], [], []>} : vector<16x152xf32>, vector<152x338xf32>, vector<16x338xf32> -> vector<16x338xf32>
    %8 = arith.maximumf %3, %7 : vector<16x338xf32>
    %c0_9 = arith.constant 0 : index
    %c0_10 = arith.constant 0 : index
    %9 = vector.load %arg0[%c0_9, %c0_10] : memref<16x152xf32, #tpu.memory_space<vmem>>, vector<16x152xf32>
    %c2 = arith.constant 2 : index
    %c0_11 = arith.constant 0 : index
    %c0_12 = arith.constant 0 : index
    %10 = vector.load %arg1[%c2, %c0_11, %c0_12] : memref<4x152x338xf32, #tpu.memory_space<vmem>>, vector<1x152x338xf32>
    %11 = vector.shape_cast %10 : vector<1x152x338xf32> to vector<152x338xf32>
    %cst_13 = arith.constant dense<0.000000e+00> : vector<16x338xf32>
    %12 = tpu.matmul %9, %11, %cst_13 {dimension_numbers = #tpu.dot_dimension_numbers<[1], [0], [0], [1], [0, 0, 1, 1], [], []>} : vector<16x152xf32>, vector<152x338xf32>, vector<16x338xf32> -> vector<16x338xf32>
    %c0_14 = arith.constant 0 : index
    %c0_15 = arith.constant 0 : index
    %13 = vector.load %arg0[%c0_14, %c0_15] : memref<16x152xf32, #tpu.memory_space<vmem>>, vector<16x152xf32>
    %c3 = arith.constant 3 : index
    %c0_16 = arith.constant 0 : index
    %c0_17 = arith.constant 0 : index
    %14 = vector.load %arg1[%c3, %c0_16, %c0_17] : memref<4x152x338xf32, #tpu.memory_space<vmem>>, vector<1x152x338xf32>
    %15 = vector.shape_cast %14 : vector<1x152x338xf32> to vector<152x338xf32>
    %cst_18 = arith.constant dense<0.000000e+00> : vector<16x338xf32>
    %16 = tpu.matmul %13, %15, %cst_18 {dimension_numbers = #tpu.dot_dimension_numbers<[1], [0], [0], [1], [0, 0, 1, 1], [], []>} : vector<16x152xf32>, vector<152x338xf32>, vector<16x338xf32> -> vector<16x338xf32>
    %17 = arith.maximumf %12, %16 : vector<16x338xf32>
    %18 = arith.maximumf %8, %17 : vector<16x338xf32>
    %c0_19 = arith.constant 0 : index
    %c0_20 = arith.constant 0 : index
    %19 = vector.load %arg2[%c0_19, %c0_20] : memref<16x1xf32, #tpu.memory_space<vmem>>, vector<16x1xf32>
    %20 = vector.broadcast %19 : vector<16x1xf32> to vector<16x338xf32>
    %21 = arith.addf %18, %20 : vector<16x338xf32>
    %cst_21 = arith.constant 0.000000e+00 : f32
    %22 = vector.broadcast %cst_21 : f32 to vector<16x338xf32>
    %23 = arith.cmpf ogt, %21, %22 : vector<16x338xf32>
    %cst_22 = arith.constant 0.00999999977 : f32
    %24 = vector.broadcast %cst_22 : f32 to vector<16x338xf32>
    %25 = arith.mulf %24, %21 : vector<16x338xf32>
    %26 = arith.select %23, %21, %25 : vector<16x338xi1>, vector<16x338xf32>
    %c0_23 = arith.constant 0 : index
    %c0_24 = arith.constant 0 : index
    %27 = vector.load %arg3[%c0_23, %c0_24] : memref<16x338xf32, #tpu.memory_space<vmem>>, vector<16x338xf32>
    tpu.vector_store %arg3[%c0_23, %c0_24], %26 {strides = array<i32>} : memref<16x338xf32, #tpu.memory_space<vmem>>, vector<16x338xf32>,
    return
  }
}

module attributes {stable_mosaic.version = 11 : i64} {
  func.func @_fc_stack_kernel(%arg0: i32, %arg1: memref<8x2704xbf16, #tpu.memory_space<vmem>>, %arg2: memref<2704x512xbf16, #tpu.memory_space<vmem>>, %arg3: memref<1x512xf32, #tpu.memory_space<vmem>>, %arg4: memref<512x128xbf16, #tpu.memory_space<vmem>>, %arg5: memref<1x128xf32, #tpu.memory_space<vmem>>, %arg6: memref<128x128xbf16, #tpu.memory_space<vmem>>, %arg7: memref<1x128xf32, #tpu.memory_space<vmem>>, %arg8: memref<128x128xbf16, #tpu.memory_space<vmem>>, %arg9: memref<1x128xf32, #tpu.memory_space<vmem>>, %arg10: memref<8x128xf32, #tpu.memory_space<vmem>>, %arg11: memref<8x128xf32, #tpu.memory_space<vmem>>) attributes {dimension_semantics = [#tpu.dimension_semantics<arbitrary>], iteration_bounds = array<i64: 4>, scalar_prefetch = 0 : i64, scratch_operands = 1 : i64, tpu.core_type = #tpu.core_type<tc>, window_params = [{pipeline_mode = #tpu.pipeline_mode<synchronous>, transform_indices = @transform_0, window_bounds = array<i64: 8, 2704>}, {transform_indices = @transform_1, window_bounds = array<i64: 2704, 512>}, {transform_indices = @transform_2, window_bounds = array<i64: 1, 512>}, {transform_indices = @transform_3, window_bounds = array<i64: 512, 128>}, {pipeline_mode = #tpu.pipeline_mode<synchronous>, transform_indices = @transform_4, window_bounds = array<i64: 1, 128>}, {pipeline_mode = #tpu.pipeline_mode<synchronous>, transform_indices = @transform_5, window_bounds = array<i64: 128, 128>}, {pipeline_mode = #tpu.pipeline_mode<synchronous>, transform_indices = @transform_6, window_bounds = array<i64: 1, 128>}, {pipeline_mode = #tpu.pipeline_mode<synchronous>, transform_indices = @transform_7, window_bounds = array<i64: 128, 128>}, {pipeline_mode = #tpu.pipeline_mode<synchronous>, transform_indices = @transform_8, window_bounds = array<i64: 1, 128>}, {pipeline_mode = #tpu.pipeline_mode<synchronous>, transform_indices = @transform_9, window_bounds = array<i64: 8, 128>}]} {
    %c0_i32 = arith.constant 0 : i32
    %0 = arith.cmpi eq, %arg0, %c0_i32 : i32
    %1 = arith.extui %0 : i1 to i32
    %c0_i32_0 = arith.constant 0 : i32
    %2 = arith.cmpi ne, %1, %c0_i32_0 : i32
    scf.if %2 {
      %cst_16 = arith.constant 0.000000e+00 : f32
      %23 = vector.broadcast %cst_16 : f32 to vector<8x128xf32>
      %c0_17 = arith.constant 0 : index
      %c0_18 = arith.constant 0 : index
      %24 = vector.load %arg11[%c0_17, %c0_18] : memref<8x128xf32, #tpu.memory_space<vmem>>, vector<8x128xf32>
      tpu.vector_store %arg11[%c0_17, %c0_18], %23 {strides = array<i32>} : memref<8x128xf32, #tpu.memory_space<vmem>>, vector<8x128xf32>,
    } else {
    }
    %c0 = arith.constant 0 : index
    %c0_1 = arith.constant 0 : index
    %3 = vector.load %arg1[%c0, %c0_1] : memref<8x2704xbf16, #tpu.memory_space<vmem>>, vector<8x2704xbf16>
    %c0_2 = arith.constant 0 : index
    %c0_3 = arith.constant 0 : index
    %4 = vector.load %arg2[%c0_2, %c0_3] : memref<2704x512xbf16, #tpu.memory_space<vmem>>, vector<2704x512xbf16>
    %cst = arith.constant dense<0.000000e+00> : vector<8x512xf32>
    %5 = tpu.matmul %3, %4, %cst {dimension_numbers = #tpu.dot_dimension_numbers<[1], [0], [0], [1], [0, 0, 1, 1], [], []>} : vector<8x2704xbf16>, vector<2704x512xbf16>, vector<8x512xf32> -> vector<8x512xf32>
    %c0_4 = arith.constant 0 : index
    %c0_5 = arith.constant 0 : index
    %6 = vector.load %arg3[%c0_4, %c0_5] : memref<1x512xf32, #tpu.memory_space<vmem>>, vector<1x512xf32>
    %7 = vector.broadcast %6 : vector<1x512xf32> to vector<8x512xf32>
    %8 = arith.addf %5, %7 : vector<8x512xf32>
    %cst_6 = arith.constant 0.000000e+00 : f32
    %9 = vector.broadcast %cst_6 : f32 to vector<8x512xf32>
    %10 = arith.cmpf ogt, %8, %9 : vector<8x512xf32>
    %cst_7 = arith.constant 0.00999999977 : f32
    %11 = vector.broadcast %cst_7 : f32 to vector<8x512xf32>
    %12 = arith.mulf %11, %8 : vector<8x512xf32>
    %13 = arith.select %10, %8, %12 : vector<8x512xi1>, vector<8x512xf32>
    %c0_8 = arith.constant 0 : index
    %c0_9 = arith.constant 0 : index
    %14 = vector.load %arg11[%c0_8, %c0_9] : memref<8x128xf32, #tpu.memory_space<vmem>>, vector<8x128xf32>
    %15 = arith.truncf %13 : vector<8x512xf32> to vector<8x512xbf16>
    %c0_10 = arith.constant 0 : index
    %c0_11 = arith.constant 0 : index
    %16 = vector.load %arg4[%c0_10, %c0_11] : memref<512x128xbf16, #tpu.memory_space<vmem>>, vector<512x128xbf16>
    %cst_12 = arith.constant dense<0.000000e+00> : vector<8x128xf32>
    %17 = tpu.matmul %15, %16, %cst_12 {dimension_numbers = #tpu.dot_dimension_numbers<[1], [0], [0], [1], [0, 0, 1, 1], [], []>} : vector<8x512xbf16>, vector<512x128xbf16>, vector<8x128xf32> -> vector<8x128xf32>
    %18 = arith.addf %14, %17 : vector<8x128xf32>
    %c0_13 = arith.constant 0 : index
    %c0_14 = arith.constant 0 : index
    %19 = vector.load %arg11[%c0_13, %c0_14] : memref<8x128xf32, #tpu.memory_space<vmem>>, vector<8x128xf32>
    tpu.vector_store %arg11[%c0_13, %c0_14], %18 {strides = array<i32>} : memref<8x128xf32, #tpu.memory_space<vmem>>, vector<8x128xf32>,
    %c3_i32 = arith.constant 3 : i32
    %20 = arith.cmpi eq, %arg0, %c3_i32 : i32
    %21 = arith.extui %20 : i1 to i32
    %c0_i32_15 = arith.constant 0 : i32
    %22 = arith.cmpi ne, %21, %c0_i32_15 : i32
    scf.if %22 {
      %c0_16 = arith.constant 0 : index
      %c0_17 = arith.constant 0 : index
      %23 = vector.load %arg11[%c0_16, %c0_17] : memref<8x128xf32, #tpu.memory_space<vmem>>, vector<8x128xf32>
      %c0_18 = arith.constant 0 : index
      %c0_19 = arith.constant 0 : index
      %24 = vector.load %arg5[%c0_18, %c0_19] : memref<1x128xf32, #tpu.memory_space<vmem>>, vector<1x128xf32>
      %25 = vector.broadcast %24 : vector<1x128xf32> to vector<8x128xf32>
      %26 = arith.addf %23, %25 : vector<8x128xf32>
      %cst_20 = arith.constant 0.000000e+00 : f32
      %27 = vector.broadcast %cst_20 : f32 to vector<8x128xf32>
      %28 = arith.cmpf ogt, %26, %27 : vector<8x128xf32>
      %cst_21 = arith.constant 0.00999999977 : f32
      %29 = vector.broadcast %cst_21 : f32 to vector<8x128xf32>
      %30 = arith.mulf %29, %26 : vector<8x128xf32>
      %31 = arith.select %28, %26, %30 : vector<8x128xi1>, vector<8x128xf32>
      %32 = arith.truncf %31 : vector<8x128xf32> to vector<8x128xbf16>
      %c0_22 = arith.constant 0 : index
      %c0_23 = arith.constant 0 : index
      %33 = vector.load %arg6[%c0_22, %c0_23] : memref<128x128xbf16, #tpu.memory_space<vmem>>, vector<128x128xbf16>
      %cst_24 = arith.constant dense<0.000000e+00> : vector<8x128xf32>
      %34 = tpu.matmul %32, %33, %cst_24 {dimension_numbers = #tpu.dot_dimension_numbers<[1], [0], [0], [1], [0, 0, 1, 1], [], []>} : vector<8x128xbf16>, vector<128x128xbf16>, vector<8x128xf32> -> vector<8x128xf32>
      %c0_25 = arith.constant 0 : index
      %c0_26 = arith.constant 0 : index
      %35 = vector.load %arg7[%c0_25, %c0_26] : memref<1x128xf32, #tpu.memory_space<vmem>>, vector<1x128xf32>
      %36 = vector.broadcast %35 : vector<1x128xf32> to vector<8x128xf32>
      %37 = arith.addf %34, %36 : vector<8x128xf32>
      %cst_27 = arith.constant 0.000000e+00 : f32
      %38 = vector.broadcast %cst_27 : f32 to vector<8x128xf32>
      %39 = arith.cmpf ogt, %37, %38 : vector<8x128xf32>
      %cst_28 = arith.constant 0.00999999977 : f32
      %40 = vector.broadcast %cst_28 : f32 to vector<8x128xf32>
      %41 = arith.mulf %40, %37 : vector<8x128xf32>
      %42 = arith.select %39, %37, %41 : vector<8x128xi1>, vector<8x128xf32>
      %43 = arith.truncf %42 : vector<8x128xf32> to vector<8x128xbf16>
      %c0_29 = arith.constant 0 : index
      %c0_30 = arith.constant 0 : index
      %44 = vector.load %arg8[%c0_29, %c0_30] : memref<128x128xbf16, #tpu.memory_space<vmem>>, vector<128x128xbf16>
      %cst_31 = arith.constant dense<0.000000e+00> : vector<8x128xf32>
      %45 = tpu.matmul %43, %44, %cst_31 {dimension_numbers = #tpu.dot_dimension_numbers<[1], [0], [0], [1], [0, 0, 1, 1], [], []>} : vector<8x128xbf16>, vector<128x128xbf16>, vector<8x128xf32> -> vector<8x128xf32>
      %c0_32 = arith.constant 0 : index
      %c0_33 = arith.constant 0 : index
      %46 = vector.load %arg9[%c0_32, %c0_33] : memref<1x128xf32, #tpu.memory_space<vmem>>, vector<1x128xf32>
      %47 = vector.broadcast %46 : vector<1x128xf32> to vector<8x128xf32>
      %48 = arith.addf %45, %47 : vector<8x128xf32>
      %c0_34 = arith.constant 0 : index
      %c0_35 = arith.constant 0 : index
      %49 = vector.load %arg10[%c0_34, %c0_35] : memref<8x128xf32, #tpu.memory_space<vmem>>, vector<8x128xf32>
      tpu.vector_store %arg10[%c0_34, %c0_35], %48 {strides = array<i32>} : memref<8x128xf32, #tpu.memory_space<vmem>>, vector<8x128xf32>,
    } else {
    }
    return
  }
  func.func @transform_0(%arg0: i32) -> (i32, i32) {
    %c0_i32 = arith.constant 0 : i32
    %c0_i32_0 = arith.constant 0 : i32
    %c0_i32_1 = arith.constant 0 : i32
    return %c0_i32, %c0_i32_0 : i32, i32
  }
  func.func @transform_1(%arg0: i32) -> (i32, i32) {
    %c0_i32 = arith.constant 0 : i32
    %c0_i32_0 = arith.constant 0 : i32
    return %c0_i32, %arg0 : i32, i32
  }
  func.func @transform_2(%arg0: i32) -> (i32, i32) {
    %c0_i32 = arith.constant 0 : i32
    %c0_i32_0 = arith.constant 0 : i32
    return %c0_i32, %arg0 : i32, i32
  }
  func.func @transform_3(%arg0: i32) -> (i32, i32) {
    %c0_i32 = arith.constant 0 : i32
    %c0_i32_0 = arith.constant 0 : i32
    return %arg0, %c0_i32 : i32, i32
  }
  func.func @transform_4(%arg0: i32) -> (i32, i32) {
    %c0_i32 = arith.constant 0 : i32
    %c0_i32_0 = arith.constant 0 : i32
    %c0_i32_1 = arith.constant 0 : i32
    return %c0_i32, %c0_i32_0 : i32, i32
  }
  func.func @transform_5(%arg0: i32) -> (i32, i32) {
    %c0_i32 = arith.constant 0 : i32
    %c0_i32_0 = arith.constant 0 : i32
    %c0_i32_1 = arith.constant 0 : i32
    return %c0_i32, %c0_i32_0 : i32, i32
  }
  func.func @transform_6(%arg0: i32) -> (i32, i32) {
    %c0_i32 = arith.constant 0 : i32
    %c0_i32_0 = arith.constant 0 : i32
    %c0_i32_1 = arith.constant 0 : i32
    return %c0_i32, %c0_i32_0 : i32, i32
  }
  func.func @transform_7(%arg0: i32) -> (i32, i32) {
    %c0_i32 = arith.constant 0 : i32
    %c0_i32_0 = arith.constant 0 : i32
    %c0_i32_1 = arith.constant 0 : i32
    return %c0_i32, %c0_i32_0 : i32, i32
  }
  func.func @transform_8(%arg0: i32) -> (i32, i32) {
    %c0_i32 = arith.constant 0 : i32
    %c0_i32_0 = arith.constant 0 : i32
    %c0_i32_1 = arith.constant 0 : i32
    return %c0_i32, %c0_i32_0 : i32, i32
  }
  func.func @transform_9(%arg0: i32) -> (i32, i32) {
    %c0_i32 = arith.constant 0 : i32
    %c0_i32_0 = arith.constant 0 : i32
    %c0_i32_1 = arith.constant 0 : i32
    return %c0_i32, %c0_i32_0 : i32, i32
  }
}

</mosaic_0001>

<llo_original>
// kernel: net_forward.3
$region0: #{net_forward.3}
  #allocation0 [shape = 'u32[]', space=smem, size = 0x4, offset = 0x4, fixed_abs, tag = 'smem constant byte address 0x4 - core index']
  #allocation1 [shape = 'u32[144,128]{1,0:T(1,128)}', space=vmem, size = 0x12000, scoped, tag = 'internal scratch']
  %s0 = inlined_call_operand.vmem [shape: f32[8,32], index: 0, kind: input, shape index: {}]
  %s1 = inlined_call_operand.vmem [shape: f32[4,32,1800], index: 1, kind: input, shape index: {}]
  %s2 = inlined_call_operand.vmem [shape: f32[8,1], index: 2, kind: input, shape index: {}]
  %s3 = inlined_call_operand.vmem [shape: f32[8,1800], index: 3, kind: output, shape index: {}]
  %s4 = sld [smem:[#allocation0]]
  $region22: #{net_forward.3} parent=0
    _
  %s6 = ssub.s32 1, %s4
  %s7 = scalar_select 0, %s6, %s4
  // Predicated region
  $region2: #{net_forward.3} parent=0 // pred_check
    _
  $region3: #{net_forward.3} parent=0 // pred_check_branch
    %9 = sbr.rel (0) target = $region5
  $region4: #{net_forward.3} parent=0 // pred_region
    _
  $region5: #{net_forward.3} parent=0 // pred_fallthru
    _
  // Predicated region
  $region6: #{net_forward.3} parent=0 // pred_check
    _
  $region7: #{net_forward.3} parent=0 // pred_check_branch
    %11 = sbr.rel (0) target = $region9
  $region8: #{net_forward.3} parent=0 // pred_region
    _
  $region9: #{net_forward.3} parent=0 // pred_fallthru
    _
  // Predicated region
  $region10: #{net_forward.3} parent=0 // pred_check
    _
  $region11: #{net_forward.3} parent=0 // pred_check_branch
    %13 = sbr.rel (0) target = $region13
  $region12: #{net_forward.3} parent=0 // pred_region
    _
  $region13: #{net_forward.3} parent=0 // pred_fallthru
    _
  %v14 = vld [vmem:[%s0] sm:$0xff]
  %v15 = vld [vmem:[%s1] sm:$0xff]
  %v16 = vld [vmem:[%s1 + $0x8] sm:$0xff]
  %v17 = vld [vmem:[%s1 + $0x10] sm:$0xff]
  %v18 = vld [vmem:[%s1 + $0x18] sm:$0xff]
  %v19 = vld [vmem:[%s1 + $0x20] sm:$0xff]
  %v20 = vld [vmem:[%s1 + $0x28] sm:$0xff]
  %v21 = vld [vmem:[%s1 + $0x30] sm:$0xff]
  %v22 = vld [vmem:[%s1 + $0x38] sm:$0xff]
  %v23 = vld [vmem:[%s1 + $0x40] sm:$0xff]
  %v24 = vld [vmem:[%s1 + $0x48] sm:$0xff]
  %v25 = vld [vmem:[%s1 + $0x50] sm:$0xff]
  %v26 = vld [vmem:[%s1 + $0x58] sm:$0xff]
  %v27 = vld [vmem:[%s1 + $0x60] sm:$0xff]
  %v28 = vld [vmem:[%s1 + $0x68] sm:$0xff]
  %v29 = vld [vmem:[%s1 + $0x70] sm:$0xff]
  %v30 = vld [vmem:[%s1 + $0x78] sm:$0xff]
  %v31 = vld [vmem:[%s1 + $0x80] sm:$0xff]
  %v32 = vld [vmem:[%s1 + $0x88] sm:$0xff]
  %v33 = vld [vmem:[%s1 + $0x90] sm:$0xff]
  %v34 = vld [vmem:[%s1 + $0x98] sm:$0xff]
  %v35 = vld [vmem:[%s1 + $0xa0] sm:$0xff]
  %v36 = vld [vmem:[%s1 + $0xa8] sm:$0xff]
  %v37 = vld [vmem:[%s1 + $0xb0] sm:$0xff]
  %v38 = vld [vmem:[%s1 + $0xb8] sm:$0xff]
  %v39 = vld [vmem:[%s1 + $0xc0] sm:$0xff]
  %v40 = vld [vmem:[%s1 + $0xc8] sm:$0xff]
  %v41 = vld [vmem:[%s1 + $0xd0] sm:$0xff]
  %v42 = vld [vmem:[%s1 + $0xd8] sm:$0xff]
  %v43 = vld [vmem:[%s1 + $0xe0] sm:$0xff]
  %v44 = vld [vmem:[%s1 + $0xe8] sm:$0xff]
  %v45 = vld [vmem:[%s1 + $0xf0] sm:$0xff]
  %v46 = vld [vmem:[%s1 + $0xf8] sm:$0xff]
  %v47 = vld [vmem:[%s1 + $0x100] sm:$0xff]
  %v48 = vld [vmem:[%s1 + $0x108] sm:$0xff]
  %v49 = vld [vmem:[%s1 + $0x110] sm:$0xff]
  %v50 = vld [vmem:[%s1 + $0x118] sm:$0xff]
  %v51 = vld [vmem:[%s1 + $0x120] sm:$0xff]
  %v52 = vld [vmem:[%s1 + $0x128] sm:$0xff]
  %v53 = vld [vmem:[%s1 + $0x130] sm:$0xff]
  %v54 = vld [vmem:[%s1 + $0x138] sm:$0xff]
  %v55 = vld [vmem:[%s1 + $0x140] sm:$0xff]
  %v56 = vld [vmem:[%s1 + $0x148] sm:$0xff]
  %v57 = vld [vmem:[%s1 + $0x150] sm:$0xff]
  %v58 = vld [vmem:[%s1 + $0x158] sm:$0xff]
  %v59 = vld [vmem:[%s1 + $0x160] sm:$0xff]
  %v60 = vld [vmem:[%s1 + $0x168] sm:$0xff]
  %v61 = vld [vmem:[%s1 + $0x170] sm:$0xff]
  %v62 = vld [vmem:[%s1 + $0x178] sm:$0xff]
  %v63 = vld [vmem:[%s1 + $0x180] sm:$0xff]
  %v64 = vld [vmem:[%s1 + $0x188] sm:$0xff]
  %v65 = vld [vmem:[%s1 + $0x190] sm:$0xff]
  %v66 = vld [vmem:[%s1 + $0x198] sm:$0xff]
  %v67 = vld [vmem:[%s1 + $0x1a0] sm:$0xff]
  %v68 = vld [vmem:[%s1 + $0x1a8] sm:$0xff]
  %v69 = vld [vmem:[%s1 + $0x1b0] sm:$0xff]
  %v70 = vld [vmem:[%s1 + $0x1b8] sm:$0xff]
  %v71 = vld [vmem:[%s1 + $0x1c0] sm:$0xff]
  %v72 = vld [vmem:[%s1 + $0x1c8] sm:$0xff]
  %v73 = vld [vmem:[%s1 + $0x1d0] sm:$0xff]
  %v74 = vld [vmem:[%s1 + $0x1d8] sm:$0xff]
  %vm75 = vcmask 261120
  %v77 = vsel %vm75, %v14, 0
  %79 = vmatprep.subr.mxu0 0.0
  %80 = vmatpush1.msra.mxu0 0.0
  %81 = vmatprep.subr.mxu0 0.0
  %82 = vmatpush1.msra.mxu0 0.0
  %83 = vmatprep.subr.mxu0 0.0
  %84 = vmatpush1.msra.mxu0 0.0
  %85 = vmatprep.subr.mxu0 0.0
  %86 = vmatpush1.msra.mxu0 0.0
  %87 = vmatprep.subr.mxu0 0.0
  %88 = vmatpush1.msra.mxu0 0.0
  %89 = vmatprep.subr.mxu0 0.0
  %90 = vmatpush1.msra.mxu0 0.0
  %91 = vmatprep.subr.mxu0 0.0
  %92 = vmatpush1.msra.mxu0 0.0
  %93 = vmatprep.subr.mxu0 0.0
  %94 = vmatpush1.msra.mxu0 0.0
  %95 = vmatprep.subr.mxu0 0.0
  %96 = vmatpush1.msra.mxu0 0.0
  %97 = vmatprep.subr.mxu0 0.0
  %98 = vmatpush1.msra.mxu0 0.0
  %99 = vmatprep.subr.mxu0 0.0
  %100 = vmatpush1.msra.mxu0 0.0
  %101 = vmatprep.subr.mxu0 0.0
  %102 = vmatpush1.msra.mxu0 0.0
  %103 = vmatprep.subr.mxu0 %v61
  %104 = vmatpush1.msra.mxu0 %v60
  %105 = vmatprep.subr.mxu0 %v46
  %106 = vmatpush1.msra.mxu0 %v45
  %107 = vmatprep.subr.mxu0 %v31
  %108 = vmatpush1.msra.mxu0 %v30
  %109 = vmatprep.subr.mxu0 %v16
  %110 = vmatpush1.msra.mxu0 %v15
  %111 = vmatprep.subr.mxu0 0.0
  %112 = vmatpush2.msra.mxu0 0.0
  %113 = vmatprep.subr.mxu0 0.0
  %114 = vmatpush2.msra.mxu0 0.0
  %115 = vmatprep.subr.mxu0 0.0
  %116 = vmatpush2.msra.mxu0 0.0
  %117 = vmatprep.subr.mxu0 0.0
  %118 = vmatpush2.msra.mxu0 0.0
  %119 = vmatprep.subr.mxu0 0.0
  %120 = vmatpush2.msra.mxu0 0.0
  %121 = vmatprep.subr.mxu0 0.0
  %122 = vmatpush2.msra.mxu0 0.0
  %123 = vmatprep.subr.mxu0 0.0
  %124 = vmatpush2.msra.mxu0 0.0
  %125 = vmatprep.subr.mxu0 0.0
  %126 = vmatpush2.msra.mxu0 0.0
  %127 = vmatprep.subr.mxu0 0.0
  %128 = vmatpush2.msra.mxu0 0.0
  %129 = vmatprep.subr.mxu0 0.0
  %130 = vmatpush2.msra.mxu0 0.0
  %131 = vmatprep.subr.mxu0 0.0
  %132 = vmatpush2.msra.mxu0 0.0
  %133 = vmatprep.subr.mxu0 0.0
  %134 = vmatpush2.msra.mxu0 0.0
  %135 = vmatprep.subr.mxu0 0.0
  %136 = vmatpush2.msra.mxu0 0.0
  %137 = vmatprep.subr.mxu0 0.0
  %138 = vmatpush2.msra.mxu0 0.0
  %139 = vmatprep.subr.mxu0 0.0
  %140 = vmatpush2.msra.mxu0 0.0
  %141 = vmatprep.subr.mxu0 0.0
  %142 = vmatpush2.msra.mxu0 0.0
  %143 = vmatprep.mubr.f32.mxu0 0.0
  %144 = vmatmul.mubr.f32.gmra.mxu0 %v77
  %v145 = vpop.f32.mrf.mxu0
  %v146 = vadd.f32 0.0, %v145
  %v147 = vpop.f32.mrf.mxu0
  %v148 = vadd.f32 0.0, %v147
  %149 = vdwg.mxu0
  %150 = vmatprep.subr.mxu0 0.0
  %151 = vmatpush1.msra.mxu0 0.0
  %152 = vmatprep.subr.mxu0 0.0
  %153 = vmatpush1.msra.mxu0 0.0
  %154 = vmatprep.subr.mxu0 0.0
  %155 = vmatpush1.msra.mxu0 0.0
  %156 = vmatprep.subr.mxu0 0.0
  %157 = vmatpush1.msra.mxu0 0.0
  %158 = vmatprep.subr.mxu0 0.0
  %159 = vmatpush1.msra.mxu0 0.0
  %160 = vmatprep.subr.mxu0 0.0
  %161 = vmatpush1.msra.mxu0 0.0
  %162 = vmatprep.subr.mxu0 0.0
  %163 = vmatpush1.msra.mxu0 0.0
  %164 = vmatprep.subr.mxu0 0.0
  %165 = vmatpush1.msra.mxu0 0.0
  %166 = vmatprep.subr.mxu0 0.0
  %167 = vmatpush1.msra.mxu0 0.0
  %168 = vmatprep.subr.mxu0 0.0
  %169 = vmatpush1.msra.mxu0 0.0
  %170 = vmatprep.subr.mxu0 0.0
  %171 = vmatpush1.msra.mxu0 0.0
  %172 = vmatprep.subr.mxu0 0.0
  %173 = vmatpush1.msra.mxu0 0.0
  %174 = vmatprep.subr.mxu0 %v63
  %175 = vmatpush1.msra.mxu0 %v62
  %176 = vmatprep.subr.mxu0 %v48
  %177 = vmatpush1.msra.mxu0 %v47
  %178 = vmatprep.subr.mxu0 %v33
  %179 = vmatpush1.msra.mxu0 %v32
  %180 = vmatprep.subr.mxu0 %v18
  %181 = vmatpush1.msra.mxu0 %v17
  %182 = vmatprep.subr.mxu0 0.0
  %183 = vmatpush2.msra.mxu0 0.0
  %184 = vmatprep.subr.mxu0 0.0
  %185 = vmatpush2.msra.mxu0 0.0
  %186 = vmatprep.subr.mxu0 0.0
  %187 = vmatpush2.msra.mxu0 0.0
  %188 = vmatprep.subr.mxu0 0.0
  %189 = vmatpush2.msra.mxu0 0.0
  %190 = vmatprep.subr.mxu0 0.0
  %191 = vmatpush2.msra.mxu0 0.0
  %192 = vmatprep.subr.mxu0 0.0
  %193 = vmatpush2.msra.mxu0 0.0
  %194 = vmatprep.subr.mxu0 0.0
  %195 = vmatpush2.msra.mxu0 0.0
  %196 = vmatprep.subr.mxu0 0.0
  %197 = vmatpush2.msra.mxu0 0.0
  %198 = vmatprep.subr.mxu0 0.0
  %199 = vmatpush2.msra.mxu0 0.0
  %200 = vmatprep.subr.mxu0 0.0
  %201 = vmatpush2.msra.mxu0 0.0
  %202 = vmatprep.subr.mxu0 0.0
  %203 = vmatpush2.msra.mxu0 0.0
  %204 = vmatprep.subr.mxu0 0.0
  %205 = vmatpush2.msra.mxu0 0.0
  %206 = vmatprep.subr.mxu0 0.0
  %207 = vmatpush2.msra.mxu0 0.0
  %208 = vmatprep.subr.mxu0 0.0
  %209 = vmatpush2.msra.mxu0 0.0
  %210 = vmatprep.subr.mxu0 0.0
  %211 = vmatpush2.msra.mxu0 0.0
  %212 = vmatprep.subr.mxu0 0.0
  %213 = vmatpush2.msra.mxu0 0.0
  %214 = vmatprep.mubr.f32.mxu0 0.0
  %215 = vmatmul.mubr.f32.gmra.mxu0 %v77
  %v216 = vpop.f32.mrf.mxu0
  %v217 = vadd.f32 0.0, %v216
  %v218 = vpop.f32.mrf.mxu0
  %v219 = vadd.f32 0.0, %v218
  %220 = vdwg.mxu0
  %221 = vmatprep.subr.mxu0 0.0
  %222 = vmatpush1.msra.mxu0 0.0
  %223 = vmatprep.subr.mxu0 0.0
  %224 = vmatpush1.msra.mxu0 0.0
  %225 = vmatprep.subr.mxu0 0.0
  %226 = vmatpush1.msra.mxu0 0.0
  %227 = vmatprep.subr.mxu0 0.0
  %228 = vmatpush1.msra.mxu0 0.0
  %229 = vmatprep.subr.mxu0 0.0
  %230 = vmatpush1.msra.mxu0 0.0
  %231 = vmatprep.subr.mxu0 0.0
  %232 = vmatpush1.msra.mxu0 0.0
  %233 = vmatprep.subr.mxu0 0.0
  %234 = vmatpush1.msra.mxu0 0.0
  %235 = vmatprep.subr.mxu0 0.0
  %236 = vmatpush1.msra.mxu0 0.0
  %237 = vmatprep.subr.mxu0 0.0
  %238 = vmatpush1.msra.mxu0 0.0
  %239 = vmatprep.subr.mxu0 0.0
  %240 = vmatpush1.msra.mxu0 0.0
  %241 = vmatprep.subr.mxu0 0.0
  %242 = vmatpush1.msra.mxu0 0.0
  %243 = vmatprep.subr.mxu0 0.0
  %244 = vmatpush1.msra.mxu0 0.0
  %245 = vmatprep.subr.mxu0 %v65
  %246 = vmatpush1.msra.mxu0 %v64
  %247 = vmatprep.subr.mxu0 %v50
  %248 = vmatpush1.msra.mxu0 %v49
  %249 = vmatprep.subr.mxu0 %v35
  %250 = vmatpush1.msra.mxu0 %v34
  %251 = vmatprep.subr.mxu0 %v20
  %252 = vmatpush1.msra.mxu0 %v19
  %253 = vmatprep.subr.mxu0 0.0
  %254 = vmatpush2.msra.mxu0 0.0
  %255 = vmatprep.subr.mxu0 0.0
  %256 = vmatpush2.msra.mxu0 0.0
  %257 = vmatprep.subr.mxu0 0.0
  %258 = vmatpush2.msra.mxu0 0.0
  %259 = vmatprep.subr.mxu0 0.0
  %260 = vmatpush2.msra.mxu0 0.0
  %261 = vmatprep.subr.mxu0 0.0
  %262 = vmatpush2.msra.mxu0 0.0
  %263 = vmatprep.subr.mxu0 0.0
  %264 = vmatpush2.msra.mxu0 0.0
  %265 = vmatprep.subr.mxu0 0.0
  %266 = vmatpush2.msra.mxu0 0.0
  %267 = vmatprep.subr.mxu0 0.0
  %268 = vmatpush2.msra.mxu0 0.0
  %269 = vmatprep.subr.mxu0 0.0
  %270 = vmatpush2.msra.mxu0 0.0
  %271 = vmatprep.subr.mxu0 0.0
  %272 = vmatpush2.msra.mxu0 0.0
  %273 = vmatprep.subr.mxu0 0.0
  %274 = vmatpush2.msra.mxu0 0.0
  %275 = vmatprep.subr.mxu0 0.0
  %276 = vmatpush2.msra.mxu0 0.0
  %277 = vmatprep.subr.mxu0 0.0
  %278 = vmatpush2.msra.mxu0 0.0
  %279 = vmatprep.subr.mxu0 0.0
  %280 = vmatpush2.msra.mxu0 0.0
  %281 = vmatprep.subr.mxu0 0.0
  %282 = vmatpush2.msra.mxu0 0.0
  %283 = vmatprep.subr.mxu0 0.0
  %284 = vmatpush2.msra.mxu0 0.0
  %285 = vmatprep.mubr.f32.mxu0 0.0
  %286 = vmatmul.mubr.f32.gmra.mxu0 %v77
  %v287 = vpop.f32.mrf.mxu0
  %v288 = vadd.f32 0.0, %v287
  %v289 = vpop.f32.mrf.mxu0
  %v290 = vadd.f32 0.0, %v289
  %291 = vdwg.mxu0
  %292 = vmatprep.subr.mxu0 0.0
  %293 = vmatpush1.msra.mxu0 0.0
  %294 = vmatprep.subr.mxu0 0.0
  %295 = vmatpush1.msra.mxu0 0.0
  %296 = vmatprep.subr.mxu0 0.0
  %297 = vmatpush1.msra.mxu0 0.0
  %298 = vmatprep.subr.mxu0 0.0
  %299 = vmatpush1.msra.mxu0 0.0
  %300 = vmatprep.subr.mxu0 0.0
  %301 = vmatpush1.msra.mxu0 0.0
  %302 = vmatprep.subr.mxu0 0.0
  %303 = vmatpush1.msra.mxu0 0.0
  %304 = vmatprep.subr.mxu0 0.0
  %305 = vmatpush1.msra.mxu0 0.0
  %306 = vmatprep.subr.mxu0 0.0
  %307 = vmatpush1.msra.mxu0 0.0
  %308 = vmatprep.subr.mxu0 0.0
  %309 = vmatpush1.msra.mxu0 0.0
  %310 = vmatprep.subr.mxu0 0.0
  %311 = vmatpush1.msra.mxu0 0.0
  %312 = vmatprep.subr.mxu0 0.0
  %313 = vmatpush1.msra.mxu0 0.0
  %314 = vmatprep.subr.mxu0 0.0
  %315 = vmatpush1.msra.mxu0 0.0
  %316 = vmatprep.subr.mxu0 %v67
  %317 = vmatpush1.msra.mxu0 %v66
  %318 = vmatprep.subr.mxu0 %v52
  %319 = vmatpush1.msra.mxu0 %v51
  %320 = vmatprep.subr.mxu0 %v37
  %321 = vmatpush1.msra.mxu0 %v36
  %322 = vmatprep.subr.mxu0 %v22
  %323 = vmatpush1.msra.mxu0 %v21
  %324 = vmatprep.subr.mxu0 0.0
  %325 = vmatpush2.msra.mxu0 0.0
  %326 = vmatprep.subr.mxu0 0.0
  %327 = vmatpush2.msra.mxu0 0.0
  %328 = vmatprep.subr.mxu0 0.0
  %329 = vmatpush2.msra.mxu0 0.0
  %330 = vmatprep.subr.mxu0 0.0
  %331 = vmatpush2.msra.mxu0 0.0
  %332 = vmatprep.subr.mxu0 0.0
  %333 = vmatpush2.msra.mxu0 0.0
  %334 = vmatprep.subr.mxu0 0.0
  %335 = vmatpush2.msra.mxu0 0.0
  %336 = vmatprep.subr.mxu0 0.0
  %337 = vmatpush2.msra.mxu0 0.0
  %338 = vmatprep.subr.mxu0 0.0
  %339 = vmatpush2.msra.mxu0 0.0
  %340 = vmatprep.subr.mxu0 0.0
  %341 = vmatpush2.msra.mxu0 0.0
  %342 = vmatprep.subr.mxu0 0.0
  %343 = vmatpush2.msra.mxu0 0.0
  %344 = vmatprep.subr.mxu0 0.0
  %345 = vmatpush2.msra.mxu0 0.0
  %346 = vmatprep.subr.mxu0 0.0
  %347 = vmatpush2.msra.mxu0 0.0
  %348 = vmatprep.subr.mxu0 0.0
  %349 = vmatpush2.msra.mxu0 0.0
  %350 = vmatprep.subr.mxu0 0.0
  %351 = vmatpush2.msra.mxu0 0.0
  %352 = vmatprep.subr.mxu0 0.0
  %353 = vmatpush2.msra.mxu0 0.0
  %354 = vmatprep.subr.mxu0 0.0
  %355 = vmatpush2.msra.mxu0 0.0
  %356 = vmatprep.mubr.f32.mxu0 0.0
  %357 = vmatmul.mubr.f32.gmra.mxu0 %v77
  %v358 = vpop.f32.mrf.mxu0
  %v359 = vadd.f32 0.0, %v358
  %v360 = vpop.f32.mrf.mxu0
  %v361 = vadd.f32 0.0, %v360
  %362 = vdwg.mxu0
  %363 = vmatprep.subr.mxu0 0.0
  %364 = vmatpush1.msra.mxu0 0.0
  %365 = vmatprep.subr.mxu0 0.0
  %366 = vmatpush1.msra.mxu0 0.0
  %367 = vmatprep.subr.mxu0 0.0
  %368 = vmatpush1.msra.mxu0 0.0
  %369 = vmatprep.subr.mxu0 0.0
  %370 = vmatpush1.msra.mxu0 0.0
  %371 = vmatprep.subr.mxu0 0.0
  %372 = vmatpush1.msra.mxu0 0.0
  %373 = vmatprep.subr.mxu0 0.0
  %374 = vmatpush1.msra.mxu0 0.0
  %375 = vmatprep.subr.mxu0 0.0
  %376 = vmatpush1.msra.mxu0 0.0
  %377 = vmatprep.subr.mxu0 0.0
  %378 = vmatpush1.msra.mxu0 0.0
  %379 = vmatprep.subr.mxu0 0.0
  %380 = vmatpush1.msra.mxu0 0.0
  %381 = vmatprep.subr.mxu0 0.0
  %382 = vmatpush1.msra.mxu0 0.0
  %383 = vmatprep.subr.mxu0 0.0
  %384 = vmatpush1.msra.mxu0 0.0
  %385 = vmatprep.subr.mxu0 0.0
  %386 = vmatpush1.msra.mxu0 0.0
  %387 = vmatprep.subr.mxu0 %v69
  %388 = vmatpush1.msra.mxu0 %v68
  %389 = vmatprep.subr.mxu0 %v54
  %390 = vmatpush1.msra.mxu0 %v53
  %391 = vmatprep.subr.mxu0 %v39
  %392 = vmatpush1.msra.mxu0 %v38
  %393 = vmatprep.subr.mxu0 %v24
  %394 = vmatpush1.msra.mxu0 %v23
  %395 = vmatprep.subr.mxu0 0.0
  %396 = vmatpush2.msra.mxu0 0.0
  %397 = vmatprep.subr.mxu0 0.0
  %398 = vmatpush2.msra.mxu0 0.0
  %399 = vmatprep.subr.mxu0 0.0
  %400 = vmatpush2.msra.mxu0 0.0
  %401 = vmatprep.subr.mxu0 0.0
  %402 = vmatpush2.msra.mxu0 0.0
  %403 = vmatprep.subr.mxu0 0.0
  %404 = vmatpush2.msra.mxu0 0.0
  %405 = vmatprep.subr.mxu0 0.0
  %406 = vmatpush2.msra.mxu0 0.0
  %407 = vmatprep.subr.mxu0 0.0
  %408 = vmatpush2.msra.mxu0 0.0
  %409 = vmatprep.subr.mxu0 0.0
  %410 = vmatpush2.msra.mxu0 0.0
  %411 = vmatprep.subr.mxu0 0.0
  %412 = vmatpush2.msra.mxu0 0.0
  %413 = vmatprep.subr.mxu0 0.0
  %414 = vmatpush2.msra.mxu0 0.0
  %415 = vmatprep.subr.mxu0 0.0
  %416 = vmatpush2.msra.mxu0 0.0
  %417 = vmatprep.subr.mxu0 0.0
  %418 = vmatpush2.msra.mxu0 0.0
  %419 = vmatprep.subr.mxu0 0.0
  %420 = vmatpush2.msra.mxu0 0.0
  %421 = vmatprep.subr.mxu0 0.0
  %422 = vmatpush2.msra.mxu0 0.0
  %423 = vmatprep.subr.mxu0 0.0
  %424 = vmatpush2.msra.mxu0 0.0
  %425 = vmatprep.subr.mxu0 0.0
  %426 = vmatpush2.msra.mxu0 0.0
  %427 = vmatprep.mubr.f32.mxu0 0.0
  %428 = vmatmul.mubr.f32.gmra.mxu0 %v77
  %v429 = vpop.f32.mrf.mxu0
  %v430 = vadd.f32 0.0, %v429
  %v431 = vpop.f32.mrf.mxu0
  %v432 = vadd.f32 0.0, %v431
  %433 = vdwg.mxu0
  %434 = vmatprep.subr.mxu0 0.0
  %435 = vmatpush1.msra.mxu0 0.0
  %436 = vmatprep.subr.mxu0 0.0
  %437 = vmatpush1.msra.mxu0 0.0
  %438 = vmatprep.subr.mxu0 0.0
  %439 = vmatpush1.msra.mxu0 0.0
  %440 = vmatprep.subr.mxu0 0.0
  %441 = vmatpush1.msra.mxu0 0.0
  %442 = vmatprep.subr.mxu0 0.0
  %443 = vmatpush1.msra.mxu0 0.0
  %444 = vmatprep.subr.mxu0 0.0
  %445 = vmatpush1.msra.mxu0 0.0
  %446 = vmatprep.subr.mxu0 0.0
  %447 = vmatpush1.msra.mxu0 0.0
  %448 = vmatprep.subr.mxu0 0.0
  %449 = vmatpush1.msra.mxu0 0.0
  %450 = vmatprep.subr.mxu0 0.0
  %451 = vmatpush1.msra.mxu0 0.0
  %452 = vmatprep.subr.mxu0 0.0
  %453 = vmatpush1.msra.mxu0 0.0
  %454 = vmatprep.subr.mxu0 0.0
  %455 = vmatpush1.msra.mxu0 0.0
  %456 = vmatprep.subr.mxu0 0.0
  %457 = vmatpush1.msra.mxu0 0.0
  %458 = vmatprep.subr.mxu0 %v71
  %459 = vmatpush1.msra.mxu0 %v70
  %460 = vmatprep.subr.mxu0 %v56
  %461 = vmatpush1.msra.mxu0 %v55
  %462 = vmatprep.subr.mxu0 %v41
  %463 = vmatpush1.msra.mxu0 %v40
  %464 = vmatprep.subr.mxu0 %v26
  %465 = vmatpush1.msra.mxu0 %v25
  %466 = vmatprep.subr.mxu0 0.0
  %467 = vmatpush2.msra.mxu0 0.0
  %468 = vmatprep.subr.mxu0 0.0
  %469 = vmatpush2.msra.mxu0 0.0
  %470 = vmatprep.subr.mxu0 0.0
  %471 = vmatpush2.msra.mxu0 0.0
  %472 = vmatprep.subr.mxu0 0.0
  %473 = vmatpush2.msra.mxu0 0.0
  %474 = vmatprep.subr.mxu0 0.0
  %475 = vmatpush2.msra.mxu0 0.0
  %476 = vmatprep.subr.mxu0 0.0
  %477 = vmatpush2.msra.mxu0 0.0
  %478 = vmatprep.subr.mxu0 0.0
  %479 = vmatpush2.msra.mxu0 0.0
  %480 = vmatprep.subr.mxu0 0.0
  %481 = vmatpush2.msra.mxu0 0.0
  %482 = vmatprep.subr.mxu0 0.0
  %483 = vmatpush2.msra.mxu0 0.0
  %484 = vmatprep.subr.mxu0 0.0
  %485 = vmatpush2.msra.mxu0 0.0
  %486 = vmatprep.subr.mxu0 0.0
  %487 = vmatpush2.msra.mxu0 0.0
  %488 = vmatprep.subr.mxu0 0.0
  %489 = vmatpush2.msra.mxu0 0.0
  %490 = vmatprep.subr.mxu0 0.0
  %491 = vmatpush2.msra.mxu0 0.0
  %492 = vmatprep.subr.mxu0 0.0
  %493 = vmatpush2.msra.mxu0 0.0
  %494 = vmatprep.subr.mxu0 0.0
  %495 = vmatpush2.msra.mxu0 0.0
  %496 = vmatprep.subr.mxu0 0.0
  %497 = vmatpush2.msra.mxu0 0.0
  %498 = vmatprep.mubr.f32.mxu0 0.0
  %499 = vmatmul.mubr.f32.gmra.mxu0 %v77
  %v500 = vpop.f32.mrf.mxu0
  %v501 = vadd.f32 0.0, %v500
  %v502 = vpop.f32.mrf.mxu0
  %v503 = vadd.f32 0.0, %v502
  %504 = vdwg.mxu0
  %505 = vmatprep.subr.mxu0 0.0
  %506 = vmatpush1.msra.mxu0 0.0
  %507 = vmatprep.subr.mxu0 0.0
  %508 = vmatpush1.msra.mxu0 0.0
  %509 = vmatprep.subr.mxu0 0.0
  %510 = vmatpush1.msra.mxu0 0.0
  %511 = vmatprep.subr.mxu0 0.0
  %512 = vmatpush1.msra.mxu0 0.0
  %513 = vmatprep.subr.mxu0 0.0
  %514 = vmatpush1.msra.mxu0 0.0
  %515 = vmatprep.subr.mxu0 0.0
  %516 = vmatpush1.msra.mxu0 0.0
  %517 = vmatprep.subr.mxu0 0.0
  %518 = vmatpush1.msra.mxu0 0.0
  %519 = vmatprep.subr.mxu0 0.0
  %520 = vmatpush1.msra.mxu0 0.0
  %521 = vmatprep.subr.mxu0 0.0
  %522 = vmatpush1.msra.mxu0 0.0
  %523 = vmatprep.subr.mxu0 0.0
  %524 = vmatpush1.msra.mxu0 0.0
  %525 = vmatprep.subr.mxu0 0.0
  %526 = vmatpush1.msra.mxu0 0.0
  %527 = vmatprep.subr.mxu0 0.0
  %528 = vmatpush1.msra.mxu0 0.0
  %529 = vmatprep.subr.mxu0 %v73
  %530 = vmatpush1.msra.mxu0 %v72
  %531 = vmatprep.subr.mxu0 %v58
  %532 = vmatpush1.msra.mxu0 %v57
  %533 = vmatprep.subr.mxu0 %v43
  %534 = vmatpush1.msra.mxu0 %v42
  %535 = vmatprep.subr.mxu0 %v28
  %536 = vmatpush1.msra.mxu0 %v27
  %537 = vmatprep.subr.mxu0 0.0
  %538 = vmatpush2.msra.mxu0 0.0
  %539 = vmatprep.subr.mxu0 0.0
  %540 = vmatpush2.msra.mxu0 0.0
  %541 = vmatprep.subr.mxu0 0.0
  %542 = vmatpush2.msra.mxu0 0.0
  %543 = vmatprep.subr.mxu0 0.0
  %544 = vmatpush2.msra.mxu0 0.0
  %545 = vmatprep.subr.mxu0 0.0
  %546 = vmatpush2.msra.mxu0 0.0
  %547 = vmatprep.subr.mxu0 0.0
  %548 = vmatpush2.msra.mxu0 0.0
  %549 = vmatprep.subr.mxu0 0.0
  %550 = vmatpush2.msra.mxu0 0.0
  %551 = vmatprep.subr.mxu0 0.0
  %552 = vmatpush2.msra.mxu0 0.0
  %553 = vmatprep.subr.mxu0 0.0
  %554 = vmatpush2.msra.mxu0 0.0
  %555 = vmatprep.subr.mxu0 0.0
  %556 = vmatpush2.msra.mxu0 0.0
  %557 = vmatprep.subr.mxu0 0.0
  %558 = vmatpush2.msra.mxu0 0.0
  %559 = vmatprep.subr.mxu0 0.0
  %560 = vmatpush2.msra.mxu0 0.0
  %561 = vmatprep.subr.mxu0 0.0
  %562 = vmatpush2.msra.mxu0 0.0
  %563 = vmatprep.subr.mxu0 0.0
  %564 = vmatpush2.msra.mxu0 0.0
  %565 = vmatprep.subr.mxu0 0.0
  %566 = vmatpush2.msra.mxu0 0.0
  %567 = vmatprep.subr.mxu0 0.0
  %568 = vmatpush2.msra.mxu0 0.0
  %569 = vmatprep.mubr.f32.mxu0 0.0
  %570 = vmatmul.mubr.f32.gmra.mxu0 %v77
  %v571 = vpop.f32.mrf.mxu0
  %v572 = vadd.f32 0.0, %v571
  %v573 = vpop.f32.mrf.mxu0
  %v574 = vadd.f32 0.0, %v573
  %575 = vdwg.mxu0
  %576 = vmatprep.subr.mxu0 0.0
  %577 = vmatpush1.msra.mxu0 0.0
  %578 = vmatprep.subr.mxu0 0.0
  %579 = vmatpush1.msra.mxu0 0.0
  %580 = vmatprep.subr.mxu0 0.0
  %581 = vmatpush1.msra.mxu0 0.0
  %582 = vmatprep.subr.mxu0 0.0
  %583 = vmatpush1.msra.mxu0 0.0
  %584 = vmatprep.subr.mxu0 0.0
  %585 = vmatpush1.msra.mxu0 0.0
  %586 = vmatprep.subr.mxu0 0.0
  %587 = vmatpush1.msra.mxu0 0.0
  %588 = vmatprep.subr.mxu0 0.0
  %589 = vmatpush1.msra.mxu0 0.0
  %590 = vmatprep.subr.mxu0 0.0
  %591 = vmatpush1.msra.mxu0 0.0
  %592 = vmatprep.subr.mxu0 0.0
  %593 = vmatpush1.msra.mxu0 0.0
  %594 = vmatprep.subr.mxu0 0.0
  %595 = vmatpush1.msra.mxu0 0.0
  %596 = vmatprep.subr.mxu0 0.0
  %597 = vmatpush1.msra.mxu0 0.0
  %598 = vmatprep.subr.mxu0 0.0
  %599 = vmatpush1.msra.mxu0 0.0
  %600 = vmatprep.subr.mxu0 0.0
  %601 = vmatpush1.msra.mxu0 %v74
  %602 = vmatprep.subr.mxu0 0.0
  %603 = vmatpush1.msra.mxu0 %v59
  %604 = vmatprep.subr.mxu0 0.0
  %605 = vmatpush1.msra.mxu0 %v44
  %606 = vmatprep.subr.mxu0 0.0
  %607 = vmatpush1.msra.mxu0 %v29
  %608 = vmatprep.subr.mxu0 0.0
  %609 = vmatpush2.msra.mxu0 0.0
  %610 = vmatprep.subr.mxu0 0.0
  %611 = vmatpush2.msra.mxu0 0.0
  %612 = vmatprep.subr.mxu0 0.0
  %613 = vmatpush2.msra.mxu0 0.0
  %614 = vmatprep.subr.mxu0 0.0
  %615 = vmatpush2.msra.mxu0 0.0
  %616 = vmatprep.subr.mxu0 0.0
  %617 = vmatpush2.msra.mxu0 0.0
  %618 = vmatprep.subr.mxu0 0.0
  %619 = vmatpush2.msra.mxu0 0.0
  %620 = vmatprep.subr.mxu0 0.0
  %621 = vmatpush2.msra.mxu0 0.0
  %622 = vmatprep.subr.mxu0 0.0
  %623 = vmatpush2.msra.mxu0 0.0
  %624 = vmatprep.subr.mxu0 0.0
  %625 = vmatpush2.msra.mxu0 0.0
  %626 = vmatprep.subr.mxu0 0.0
  %627 = vmatpush2.msra.mxu0 0.0
  %628 = vmatprep.subr.mxu0 0.0
  %629 = vmatpush2.msra.mxu0 0.0
  %630 = vmatprep.subr.mxu0 0.0
  %631 = vmatpush2.msra.mxu0 0.0
  %632 = vmatprep.subr.mxu0 0.0
  %633 = vmatpush2.msra.mxu0 0.0
  %634 = vmatprep.subr.mxu0 0.0
  %635 = vmatpush2.msra.mxu0 0.0
  %636 = vmatprep.subr.mxu0 0.0
  %637 = vmatpush2.msra.mxu0 0.0
  %638 = vmatprep.subr.mxu0 0.0
  %639 = vmatpush2.msra.mxu0 0.0
  %640 = vmatprep.mubr.f32.mxu0 0.0
  %641 = vmatmul.mubr.f32.gmra.mxu0 %v77
  %v642 = vpop.f32.mrf.mxu0
  %v643 = vadd.f32 0.0, %v642
  %v644 = vpop.f32.mrf.mxu0
  %645 = vdwg.mxu0
  %s646 = scalar_lea.vmem %s1, 480
  %v647 = vld [vmem:[%s646] sm:$0xff]
  %v648 = vld [vmem:[%s646 + $0x8] sm:$0xff]
  %v649 = vld [vmem:[%s646 + $0x10] sm:$0xff]
  %v650 = vld [vmem:[%s646 + $0x18] sm:$0xff]
  %v651 = vld [vmem:[%s646 + $0x20] sm:$0xff]
  %v652 = vld [vmem:[%s646 + $0x28] sm:$0xff]
  %v653 = vld [vmem:[%s646 + $0x30] sm:$0xff]
  %v654 = vld [vmem:[%s646 + $0x38] sm:$0xff]
  %v655 = vld [vmem:[%s646 + $0x40] sm:$0xff]
  %v656 = vld [vmem:[%s646 + $0x48] sm:$0xff]
  %v657 = vld [vmem:[%s646 + $0x50] sm:$0xff]
  %v658 = vld [vmem:[%s646 + $0x58] sm:$0xff]
  %v659 = vld [vmem:[%s646 + $0x60] sm:$0xff]
  %v660 = vld [vmem:[%s646 + $0x68] sm:$0xff]
  %v661 = vld [vmem:[%s646 + $0x70] sm:$0xff]
  %v662 = vld [vmem:[%s646 + $0x78] sm:$0xff]
  %v663 = vld [vmem:[%s646 + $0x80] sm:$0xff]
  %v664 = vld [vmem:[%s646 + $0x88] sm:$0xff]
  %v665 = vld [vmem:[%s646 + $0x90] sm:$0xff]
  %v666 = vld [vmem:[%s646 + $0x98] sm:$0xff]
  %v667 = vld [vmem:[%s646 + $0xa0] sm:$0xff]
  %v668 = vld [vmem:[%s646 + $0xa8] sm:$0xff]
  %v669 = vld [vmem:[%s646 + $0xb0] sm:$0xff]
  %v670 = vld [vmem:[%s646 + $0xb8] sm:$0xff]
  %v671 = vld [vmem:[%s646 + $0xc0] sm:$0xff]
  %v672 = vld [vmem:[%s646 + $0xc8] sm:$0xff]
  %v673 = vld [vmem:[%s646 + $0xd0] sm:$0xff]
  %v674 = vld [vmem:[%s646 + $0xd8] sm:$0xff]
  %v675 = vld [vmem:[%s646 + $0xe0] sm:$0xff]
  %v676 = vld [vmem:[%s646 + $0xe8] sm:$0xff]
  %v677 = vld [vmem:[%s646 + $0xf0] sm:$0xff]
  %v678 = vld [vmem:[%s646 + $0xf8] sm:$0xff]
  %v679 = vld [vmem:[%s646 + $0x100] sm:$0xff]
  %v680 = vld [vmem:[%s646 + $0x108] sm:$0xff]
  %v681 = vld [vmem:[%s646 + $0x110] sm:$0xff]
  %v682 = vld [vmem:[%s646 + $0x118] sm:$0xff]
  %v683 = vld [vmem:[%s646 + $0x120] sm:$0xff]
  %v684 = vld [vmem:[%s646 + $0x128] sm:$0xff]
  %v685 = vld [vmem:[%s646 + $0x130] sm:$0xff]
  %v686 = vld [vmem:[%s646 + $0x138] sm:$0xff]
  %v687 = vld [vmem:[%s646 + $0x140] sm:$0xff]
  %v688 = vld [vmem:[%s646 + $0x148] sm:$0xff]
  %v689 = vld [vmem:[%s646 + $0x150] sm:$0xff]
  %v690 = vld [vmem:[%s646 + $0x158] sm:$0xff]
  %v691 = vld [vmem:[%s646 + $0x160] sm:$0xff]
  %v692 = vld [vmem:[%s646 + $0x168] sm:$0xff]
  %v693 = vld [vmem:[%s646 + $0x170] sm:$0xff]
  %v694 = vld [vmem:[%s646 + $0x178] sm:$0xff]
  %v695 = vld [vmem:[%s646 + $0x180] sm:$0xff]
  %v696 = vld [vmem:[%s646 + $0x188] sm:$0xff]
  %v697 = vld [vmem:[%s646 + $0x190] sm:$0xff]
  %v698 = vld [vmem:[%s646 + $0x198] sm:$0xff]
  %v699 = vld [vmem:[%s646 + $0x1a0] sm:$0xff]
  %v700 = vld [vmem:[%s646 + $0x1a8] sm:$0xff]
  %v701 = vld [vmem:[%s646 + $0x1b0] sm:$0xff]
  %v702 = vld [vmem:[%s646 + $0x1b8] sm:$0xff]
  %v703 = vld [vmem:[%s646 + $0x1c0] sm:$0xff]
  %v704 = vld [vmem:[%s646 + $0x1c8] sm:$0xff]
  %v705 = vld [vmem:[%s646 + $0x1d0] sm:$0xff]
  %v706 = vld [vmem:[%s646 + $0x1d8] sm:$0xff]
  %707 = vmatprep.subr.mxu0 0.0
  %708 = vmatpush1.msra.mxu0 0.0
  %709 = vmatprep.subr.mxu0 0.0
  %710 = vmatpush1.msra.mxu0 0.0
  %711 = vmatprep.subr.mxu0 0.0
  %712 = vmatpush1.msra.mxu0 0.0
  %713 = vmatprep.subr.mxu0 0.0
  %714 = vmatpush1.msra.mxu0 0.0
  %715 = vmatprep.subr.mxu0 0.0
  %716 = vmatpush1.msra.mxu0 0.0
  %717 = vmatprep.subr.mxu0 0.0
  %718 = vmatpush1.msra.mxu0 0.0
  %719 = vmatprep.subr.mxu0 0.0
  %720 = vmatpush1.msra.mxu0 0.0
  %721 = vmatprep.subr.mxu0 0.0
  %722 = vmatpush1.msra.mxu0 0.0
  %723 = vmatprep.subr.mxu0 0.0
  %724 = vmatpush1.msra.mxu0 0.0
  %725 = vmatprep.subr.mxu0 0.0
  %726 = vmatpush1.msra.mxu0 0.0
  %727 = vmatprep.subr.mxu0 0.0
  %728 = vmatpush1.msra.mxu0 0.0
  %729 = vmatprep.subr.mxu0 0.0
  %730 = vmatpush1.msra.mxu0 0.0
  %731 = vmatprep.subr.mxu0 %v693
  %732 = vmatpush1.msra.mxu0 %v692
  %733 = vmatprep.subr.mxu0 %v678
  %734 = vmatpush1.msra.mxu0 %v677
  %735 = vmatprep.subr.mxu0 %v663
  %736 = vmatpush1.msra.mxu0 %v662
  %737 = vmatprep.subr.mxu0 %v648
  %738 = vmatpush1.msra.mxu0 %v647
  %739 = vmatprep.subr.mxu0 0.0
  %740 = vmatpush2.msra.mxu0 0.0
  %741 = vmatprep.subr.mxu0 0.0
  %742 = vmatpush2.msra.mxu0 0.0
  %743 = vmatprep.subr.mxu0 0.0
  %744 = vmatpush2.msra.mxu0 0.0
  %745 = vmatprep.subr.mxu0 0.0
  %746 = vmatpush2.msra.mxu0 0.0
  %747 = vmatprep.subr.mxu0 0.0
  %748 = vmatpush2.msra.mxu0 0.0
  %749 = vmatprep.subr.mxu0 0.0
  %750 = vmatpush2.msra.mxu0 0.0
  %751 = vmatprep.subr.mxu0 0.0
  %752 = vmatpush2.msra.mxu0 0.0
  %753 = vmatprep.subr.mxu0 0.0
  %754 = vmatpush2.msra.mxu0 0.0
  %755 = vmatprep.subr.mxu0 0.0
  %756 = vmatpush2.msra.mxu0 0.0
  %757 = vmatprep.subr.mxu0 0.0
  %758 = vmatpush2.msra.mxu0 0.0
  %759 = vmatprep.subr.mxu0 0.0
  %760 = vmatpush2.msra.mxu0 0.0
  %761 = vmatprep.subr.mxu0 0.0
  %762 = vmatpush2.msra.mxu0 0.0
  %763 = vmatprep.subr.mxu0 0.0
  %764 = vmatpush2.msra.mxu0 0.0
  %765 = vmatprep.subr.mxu0 0.0
  %766 = vmatpush2.msra.mxu0 0.0
  %767 = vmatprep.subr.mxu0 0.0
  %768 = vmatpush2.msra.mxu0 0.0
  %769 = vmatprep.subr.mxu0 0.0
  %770 = vmatpush2.msra.mxu0 0.0
  %771 = vmatprep.mubr.f32.mxu0 0.0
  %772 = vmatmul.mubr.f32.gmra.mxu0 %v77
  %v773 = vpop.f32.mrf.mxu0
  %v774 = vadd.f32 0.0, %v773
  %v775 = vpop.f32.mrf.mxu0
  %v776 = vadd.f32 0.0, %v775
  %777 = vdwg.mxu0
  %778 = vmatprep.subr.mxu0 0.0
  %779 = vmatpush1.msra.mxu0 0.0
  %780 = vmatprep.subr.mxu0 0.0
  %781 = vmatpush1.msra.mxu0 0.0
  %782 = vmatprep.subr.mxu0 0.0
  %783 = vmatpush1.msra.mxu0 0.0
  %784 = vmatprep.subr.mxu0 0.0
  %785 = vmatpush1.msra.mxu0 0.0
  %786 = vmatprep.subr.mxu0 0.0
  %787 = vmatpush1.msra.mxu0 0.0
  %788 = vmatprep.subr.mxu0 0.0
  %789 = vmatpush1.msra.mxu0 0.0
  %790 = vmatprep.subr.mxu0 0.0
  %791 = vmatpush1.msra.mxu0 0.0
  %792 = vmatprep.subr.mxu0 0.0
  %793 = vmatpush1.msra.mxu0 0.0
  %794 = vmatprep.subr.mxu0 0.0
  %795 = vmatpush1.msra.mxu0 0.0
  %796 = vmatprep.subr.mxu0 0.0
  %797 = vmatpush1.msra.mxu0 0.0
  %798 = vmatprep.subr.mxu0 0.0
  %799 = vmatpush1.msra.mxu0 0.0
  %800 = vmatprep.subr.mxu0 0.0
  %801 = vmatpush1.msra.mxu0 0.0
  %802 = vmatprep.subr.mxu0 %v695
  %803 = vmatpush1.msra.mxu0 %v694
  %804 = vmatprep.subr.mxu0 %v680
  %805 = vmatpush1.msra.mxu0 %v679
  %806 = vmatprep.subr.mxu0 %v665
  %807 = vmatpush1.msra.mxu0 %v664
  %808 = vmatprep.subr.mxu0 %v650
  %809 = vmatpush1.msra.mxu0 %v649
  %810 = vmatprep.subr.mxu0 0.0
  %811 = vmatpush2.msra.mxu0 0.0
  %812 = vmatprep.subr.mxu0 0.0
  %813 = vmatpush2.msra.mxu0 0.0
  %814 = vmatprep.subr.mxu0 0.0
  %815 = vmatpush2.msra.mxu0 0.0
  %816 = vmatprep.subr.mxu0 0.0
  %817 = vmatpush2.msra.mxu0 0.0
  %818 = vmatprep.subr.mxu0 0.0
  %819 = vmatpush2.msra.mxu0 0.0
  %820 = vmatprep.subr.mxu0 0.0
  %821 = vmatpush2.msra.mxu0 0.0
  %822 = vmatprep.subr.mxu0 0.0
  %823 = vmatpush2.msra.mxu0 0.0
  %824 = vmatprep.subr.mxu0 0.0
  %825 = vmatpush2.msra.mxu0 0.0
  %826 = vmatprep.subr.mxu0 0.0
  %827 = vmatpush2.msra.mxu0 0.0
  %828 = vmatprep.subr.mxu0 0.0
  %829 = vmatpush2.msra.mxu0 0.0
  %830 = vmatprep.subr.mxu0 0.0
  %831 = vmatpush2.msra.mxu0 0.0
  %832 = vmatprep.subr.mxu0 0.0
  %833 = vmatpush2.msra.mxu0 0.0
  %834 = vmatprep.subr.mxu0 0.0
  %835 = vmatpush2.msra.mxu0 0.0
  %836 = vmatprep.subr.mxu0 0.0
  %837 = vmatpush2.msra.mxu0 0.0
  %838 = vmatprep.subr.mxu0 0.0
  %839 = vmatpush2.msra.mxu0 0.0
  %840 = vmatprep.subr.mxu0 0.0
  %841 = vmatpush2.msra.mxu0 0.0
  %842 = vmatprep.mubr.f32.mxu0 0.0
  %843 = vmatmul.mubr.f32.gmra.mxu0 %v77
  %v844 = vpop.f32.mrf.mxu0
  %v845 = vadd.f32 0.0, %v844
  %v846 = vpop.f32.mrf.mxu0
  %v847 = vadd.f32 0.0, %v846
  %848 = vdwg.mxu0
  %849 = vmatprep.subr.mxu0 0.0
  %850 = vmatpush1.msra.mxu0 0.0
  %851 = vmatprep.subr.mxu0 0.0
  %852 = vmatpush1.msra.mxu0 0.0
  %853 = vmatprep.subr.mxu0 0.0
  %854 = vmatpush1.msra.mxu0 0.0
  %855 = vmatprep.subr.mxu0 0.0
  %856 = vmatpush1.msra.mxu0 0.0
  %857 = vmatprep.subr.mxu0 0.0
  %858 = vmatpush1.msra.mxu0 0.0
  %859 = vmatprep.subr.mxu0 0.0
  %860 = vmatpush1.msra.mxu0 0.0
  %861 = vmatprep.subr.mxu0 0.0
  %862 = vmatpush1.msra.mxu0 0.0
  %863 = vmatprep.subr.mxu0 0.0
  %864 = vmatpush1.msra.mxu0 0.0
  %865 = vmatprep.subr.mxu0 0.0
  %866 = vmatpush1.msra.mxu0 0.0
  %867 = vmatprep.subr.mxu0 0.0
  %868 = vmatpush1.msra.mxu0 0.0
  %869 = vmatprep.subr.mxu0 0.0
  %870 = vmatpush1.msra.mxu0 0.0
  %871 = vmatprep.subr.mxu0 0.0
  %872 = vmatpush1.msra.mxu0 0.0
  %873 = vmatprep.subr.mxu0 %v697
  %874 = vmatpush1.msra.mxu0 %v696
  %875 = vmatprep.subr.mxu0 %v682
  %876 = vmatpush1.msra.mxu0 %v681
  %877 = vmatprep.subr.mxu0 %v667
  %878 = vmatpush1.msra.mxu0 %v666
  %879 = vmatprep.subr.mxu0 %v652
  %880 = vmatpush1.msra.mxu0 %v651
  %881 = vmatprep.subr.mxu0 0.0
  %882 = vmatpush2.msra.mxu0 0.0
  %883 = vmatprep.subr.mxu0 0.0
  %884 = vmatpush2.msra.mxu0 0.0
  %885 = vmatprep.subr.mxu0 0.0
  %886 = vmatpush2.msra.mxu0 0.0
  %887 = vmatprep.subr.mxu0 0.0
  %888 = vmatpush2.msra.mxu0 0.0
  %889 = vmatprep.subr.mxu0 0.0
  %890 = vmatpush2.msra.mxu0 0.0
  %891 = vmatprep.subr.mxu0 0.0
  %892 = vmatpush2.msra.mxu0 0.0
  %893 = vmatprep.subr.mxu0 0.0
  %894 = vmatpush2.msra.mxu0 0.0
  %895 = vmatprep.subr.mxu0 0.0
  %896 = vmatpush2.msra.mxu0 0.0
  %897 = vmatprep.subr.mxu0 0.0
  %898 = vmatpush2.msra.mxu0 0.0
  %899 = vmatprep.subr.mxu0 0.0
  %900 = vmatpush2.msra.mxu0 0.0
  %901 = vmatprep.subr.mxu0 0.0
  %902 = vmatpush2.msra.mxu0 0.0
  %903 = vmatprep.subr.mxu0 0.0
  %904 = vmatpush2.msra.mxu0 0.0
  %905 = vmatprep.subr.mxu0 0.0
  %906 = vmatpush2.msra.mxu0 0.0
  %907 = vmatprep.subr.mxu0 0.0
  %908 = vmatpush2.msra.mxu0 0.0
  %909 = vmatprep.subr.mxu0 0.0
  %910 = vmatpush2.msra.mxu0 0.0
  %911 = vmatprep.subr.mxu0 0.0
  %912 = vmatpush2.msra.mxu0 0.0
  %913 = vmatprep.mubr.f32.mxu0 0.0
  %914 = vmatmul.mubr.f32.gmra.mxu0 %v77
  %v915 = vpop.f32.mrf.mxu0
  %v916 = vadd.f32 0.0, %v915
  %v917 = vpop.f32.mrf.mxu0
  %v918 = vadd.f32 0.0, %v917
  %919 = vdwg.mxu0
  %920 = vmatprep.subr.mxu0 0.0
  %921 = vmatpush1.msra.mxu0 0.0
  %922 = vmatprep.subr.mxu0 0.0
  %923 = vmatpush1.msra.mxu0 0.0
  %924 = vmatprep.subr.mxu0 0.0
  %925 = vmatpush1.msra.mxu0 0.0
  %926 = vmatprep.subr.mxu0 0.0
  %927 = vmatpush1.msra.mxu0 0.0
  %928 = vmatprep.subr.mxu0 0.0
  %929 = vmatpush1.msra.mxu0 0.0
  %930 = vmatprep.subr.mxu0 0.0
  %931 = vmatpush1.msra.mxu0 0.0
  %932 = vmatprep.subr.mxu0 0.0
  %933 = vmatpush1.msra.mxu0 0.0
  %934 = vmatprep.subr.mxu0 0.0
  %935 = vmatpush1.msra.mxu0 0.0
  %936 = vmatprep.subr.mxu0 0.0
  %937 = vmatpush1.msra.mxu0 0.0
  %938 = vmatprep.subr.mxu0 0.0
  %939 = vmatpush1.msra.mxu0 0.0
  %940 = vmatprep.subr.mxu0 0.0
  %941 = vmatpush1.msra.mxu0 0.0
  %942 = vmatprep.subr.mxu0 0.0
  %943 = vmatpush1.msra.mxu0 0.0
  %944 = vmatprep.subr.mxu0 %v699
  %945 = vmatpush1.msra.mxu0 %v698
  %946 = vmatprep.subr.mxu0 %v684
  %947 = vmatpush1.msra.mxu0 %v683
  %948 = vmatprep.subr.mxu0 %v669
  %949 = vmatpush1.msra.mxu0 %v668
  %950 = vmatprep.subr.mxu0 %v654
  %951 = vmatpush1.msra.mxu0 %v653
  %952 = vmatprep.subr.mxu0 0.0
  %953 = vmatpush2.msra.mxu0 0.0
  %954 = vmatprep.subr.mxu0 0.0
  %955 = vmatpush2.msra.mxu0 0.0
  %956 = vmatprep.subr.mxu0 0.0
  %957 = vmatpush2.msra.mxu0 0.0
  %958 = vmatprep.subr.mxu0 0.0
  %959 = vmatpush2.msra.mxu0 0.0
  %960 = vmatprep.subr.mxu0 0.0
  %961 = vmatpush2.msra.mxu0 0.0
  %962 = vmatprep.subr.mxu0 0.0
  %963 = vmatpush2.msra.mxu0 0.0
  %964 = vmatprep.subr.mxu0 0.0
  %965 = vmatpush2.msra.mxu0 0.0
  %966 = vmatprep.subr.mxu0 0.0
  %967 = vmatpush2.msra.mxu0 0.0
  %968 = vmatprep.subr.mxu0 0.0
  %969 = vmatpush2.msra.mxu0 0.0
  %970 = vmatprep.subr.mxu0 0.0
  %971 = vmatpush2.msra.mxu0 0.0
  %972 = vmatprep.subr.mxu0 0.0
  %973 = vmatpush2.msra.mxu0 0.0
  %974 = vmatprep.subr.mxu0 0.0
  %975 = vmatpush2.msra.mxu0 0.0
  %976 = vmatprep.subr.mxu0 0.0
  %977 = vmatpush2.msra.mxu0 0.0
  %978 = vmatprep.subr.mxu0 0.0
  %979 = vmatpush2.msra.mxu0 0.0
  %980 = vmatprep.subr.mxu0 0.0
  %981 = vmatpush2.msra.mxu0 0.0
  %982 = vmatprep.subr.mxu0 0.0
  %983 = vmatpush2.msra.mxu0 0.0
  %984 = vmatprep.mubr.f32.mxu0 0.0
  %985 = vmatmul.mubr.f32.gmra.mxu0 %v77
  %v986 = vpop.f32.mrf.mxu0
  %v987 = vadd.f32 0.0, %v986
  %v988 = vpop.f32.mrf.mxu0
  %v989 = vadd.f32 0.0, %v988
  %990 = vdwg.mxu0
  %991 = vmatprep.subr.mxu0 0.0
  %992 = vmatpush1.msra.mxu0 0.0
  %993 = vmatprep.subr.mxu0 0.0
  %994 = vmatpush1.msra.mxu0 0.0
  %995 = vmatprep.subr.mxu0 0.0
  %996 = vmatpush1.msra.mxu0 0.0
  %997 = vmatprep.subr.mxu0 0.0
  %998 = vmatpush1.msra.mxu0 0.0
  %999 = vmatprep.subr.mxu0 0.0
  %1000 = vmatpush1.msra.mxu0 0.0
  %1001 = vmatprep.subr.mxu0 0.0
  %1002 = vmatpush1.msra.mxu0 0.0
  %1003 = vmatprep.subr.mxu0 0.0
  %1004 = vmatpush1.msra.mxu0 0.0
  %1005 = vmatprep.subr.mxu0 0.0
  %1006 = vmatpush1.msra.mxu0 0.0
  %1007 = vmatprep.subr.mxu0 0.0
  %1008 = vmatpush1.msra.mxu0 0.0
  %1009 = vmatprep.subr.mxu0 0.0
  %1010 = vmatpush1.msra.mxu0 0.0
  %1011 = vmatprep.subr.mxu0 0.0
  %1012 = vmatpush1.msra.mxu0 0.0
  %1013 = vmatprep.subr.mxu0 0.0
  %1014 = vmatpush1.msra.mxu0 0.0
  %1015 = vmatprep.subr.mxu0 %v701
  %1016 = vmatpush1.msra.mxu0 %v700
  %1017 = vmatprep.subr.mxu0 %v686
  %1018 = vmatpush1.msra.mxu0 %v685
  %1019 = vmatprep.subr.mxu0 %v671
  %1020 = vmatpush1.msra.mxu0 %v670
  %1021 = vmatprep.subr.mxu0 %v656
  %1022 = vmatpush1.msra.mxu0 %v655
  %1023 = vmatprep.subr.mxu0 0.0
  %1024 = vmatpush2.msra.mxu0 0.0
  %1025 = vmatprep.subr.mxu0 0.0
  %1026 = vmatpush2.msra.mxu0 0.0
  %1027 = vmatprep.subr.mxu0 0.0
  %1028 = vmatpush2.msra.mxu0 0.0
  %1029 = vmatprep.subr.mxu0 0.0
  %1030 = vmatpush2.msra.mxu0 0.0
  %1031 = vmatprep.subr.mxu0 0.0
  %1032 = vmatpush2.msra.mxu0 0.0
  %1033 = vmatprep.subr.mxu0 0.0
  %1034 = vmatpush2.msra.mxu0 0.0
  %1035 = vmatprep.subr.mxu0 0.0
  %1036 = vmatpush2.msra.mxu0 0.0
  %1037 = vmatprep.subr.mxu0 0.0
  %1038 = vmatpush2.msra.mxu0 0.0
  %1039 = vmatprep.subr.mxu0 0.0
  %1040 = vmatpush2.msra.mxu0 0.0
  %1041 = vmatprep.subr.mxu0 0.0
  %1042 = vmatpush2.msra.mxu0 0.0
  %1043 = vmatprep.subr.mxu0 0.0
  %1044 = vmatpush2.msra.mxu0 0.0
  %1045 = vmatprep.subr.mxu0 0.0
  %1046 = vmatpush2.msra.mxu0 0.0
  %1047 = vmatprep.subr.mxu0 0.0
  %1048 = vmatpush2.msra.mxu0 0.0
  %1049 = vmatprep.subr.mxu0 0.0
  %1050 = vmatpush2.msra.mxu0 0.0
  %1051 = vmatprep.subr.mxu0 0.0
  %1052 = vmatpush2.msra.mxu0 0.0
  %1053 = vmatprep.subr.mxu0 0.0
  %1054 = vmatpush2.msra.mxu0 0.0
  %1055 = vmatprep.mubr.f32.mxu0 0.0
  %1056 = vmatmul.mubr.f32.gmra.mxu0 %v77
  %v1057 = vpop.f32.mrf.mxu0
  %v1058 = vadd.f32 0.0, %v1057
  %v1059 = vpop.f32.mrf.mxu0
  %v1060 = vadd.f32 0.0, %v1059
  %1061 = vdwg.mxu0
  %1062 = vmatprep.subr.mxu0 0.0
  %1063 = vmatpush1.msra.mxu0 0.0
  %1064 = vmatprep.subr.mxu0 0.0
  %1065 = vmatpush1.msra.mxu0 0.0
  %1066 = vmatprep.subr.mxu0 0.0
  %1067 = vmatpush1.msra.mxu0 0.0
  %1068 = vmatprep.subr.mxu0 0.0
  %1069 = vmatpush1.msra.mxu0 0.0
  %1070 = vmatprep.subr.mxu0 0.0
  %1071 = vmatpush1.msra.mxu0 0.0
  %1072 = vmatprep.subr.mxu0 0.0
  %1073 = vmatpush1.msra.mxu0 0.0
  %1074 = vmatprep.subr.mxu0 0.0
  %1075 = vmatpush1.msra.mxu0 0.0
  %1076 = vmatprep.subr.mxu0 0.0
  %1077 = vmatpush1.msra.mxu0 0.0
  %1078 = vmatprep.subr.mxu0 0.0
  %1079 = vmatpush1.msra.mxu0 0.0
  %1080 = vmatprep.subr.mxu0 0.0
  %1081 = vmatpush1.msra.mxu0 0.0
  %1082 = vmatprep.subr.mxu0 0.0
  %1083 = vmatpush1.msra.mxu0 0.0
  %1084 = vmatprep.subr.mxu0 0.0
  %1085 = vmatpush1.msra.mxu0 0.0
  %1086 = vmatprep.subr.mxu0 %v703
  %1087 = vmatpush1.msra.mxu0 %v702
  %1088 = vmatprep.subr.mxu0 %v688
  %1089 = vmatpush1.msra.mxu0 %v687
  %1090 = vmatprep.subr.mxu0 %v673
  %1091 = vmatpush1.msra.mxu0 %v672
  %1092 = vmatprep.subr.mxu0 %v658
  %1093 = vmatpush1.msra.mxu0 %v657
  %1094 = vmatprep.subr.mxu0 0.0
  %1095 = vmatpush2.msra.mxu0 0.0
  %1096 = vmatprep.subr.mxu0 0.0
  %1097 = vmatpush2.msra.mxu0 0.0
  %1098 = vmatprep.subr.mxu0 0.0
  %1099 = vmatpush2.msra.mxu0 0.0
  %1100 = vmatprep.subr.mxu0 0.0
  %1101 = vmatpush2.msra.mxu0 0.0
  %1102 = vmatprep.subr.mxu0 0.0
  %1103 = vmatpush2.msra.mxu0 0.0
  %1104 = vmatprep.subr.mxu0 0.0
  %1105 = vmatpush2.msra.mxu0 0.0
  %1106 = vmatprep.subr.mxu0 0.0
  %1107 = vmatpush2.msra.mxu0 0.0
  %1108 = vmatprep.subr.mxu0 0.0
  %1109 = vmatpush2.msra.mxu0 0.0
  %1110 = vmatprep.subr.mxu0 0.0
  %1111 = vmatpush2.msra.mxu0 0.0
  %1112 = vmatprep.subr.mxu0 0.0
  %1113 = vmatpush2.msra.mxu0 0.0
  %1114 = vmatprep.subr.mxu0 0.0
  %1115 = vmatpush2.msra.mxu0 0.0
  %1116 = vmatprep.subr.mxu0 0.0
  %1117 = vmatpush2.msra.mxu0 0.0
  %1118 = vmatprep.subr.mxu0 0.0
  %1119 = vmatpush2.msra.mxu0 0.0
  %1120 = vmatprep.subr.mxu0 0.0
  %1121 = vmatpush2.msra.mxu0 0.0
  %1122 = vmatprep.subr.mxu0 0.0
  %1123 = vmatpush2.msra.mxu0 0.0
  %1124 = vmatprep.subr.mxu0 0.0
  %1125 = vmatpush2.msra.mxu0 0.0
  %1126 = vmatprep.mubr.f32.mxu0 0.0
  %1127 = vmatmul.mubr.f32.gmra.mxu0 %v77
  %v1128 = vpop.f32.mrf.mxu0
  %v1129 = vadd.f32 0.0, %v1128
  %v1130 = vpop.f32.mrf.mxu0
  %v1131 = vadd.f32 0.0, %v1130
  %1132 = vdwg.mxu0
  %1133 = vmatprep.subr.mxu0 0.0
  %1134 = vmatpush1.msra.mxu0 0.0
  %1135 = vmatprep.subr.mxu0 0.0
  %1136 = vmatpush1.msra.mxu0 0.0
  %1137 = vmatprep.subr.mxu0 0.0
  %1138 = vmatpush1.msra.mxu0 0.0
  %1139 = vmatprep.subr.mxu0 0.0
  %1140 = vmatpush1.msra.mxu0 0.0
  %1141 = vmatprep.subr.mxu0 0.0
  %1142 = vmatpush1.msra.mxu0 0.0
  %1143 = vmatprep.subr.mxu0 0.0
  %1144 = vmatpush1.msra.mxu0 0.0
  %1145 = vmatprep.subr.mxu0 0.0
  %1146 = vmatpush1.msra.mxu0 0.0
  %1147 = vmatprep.subr.mxu0 0.0
  %1148 = vmatpush1.msra.mxu0 0.0
  %1149 = vmatprep.subr.mxu0 0.0
  %1150 = vmatpush1.msra.mxu0 0.0
  %1151 = vmatprep.subr.mxu0 0.0
  %1152 = vmatpush1.msra.mxu0 0.0
  %1153 = vmatprep.subr.mxu0 0.0
  %1154 = vmatpush1.msra.mxu0 0.0
  %1155 = vmatprep.subr.mxu0 0.0
  %1156 = vmatpush1.msra.mxu0 0.0
  %1157 = vmatprep.subr.mxu0 %v705
  %1158 = vmatpush1.msra.mxu0 %v704
  %1159 = vmatprep.subr.mxu0 %v690
  %1160 = vmatpush1.msra.mxu0 %v689
  %1161 = vmatprep.subr.mxu0 %v675
  %1162 = vmatpush1.msra.mxu0 %v674
  %1163 = vmatprep.subr.mxu0 %v660
  %1164 = vmatpush1.msra.mxu0 %v659
  %1165 = vmatprep.subr.mxu0 0.0
  %1166 = vmatpush2.msra.mxu0 0.0
  %1167 = vmatprep.subr.mxu0 0.0
  %1168 = vmatpush2.msra.mxu0 0.0
  %1169 = vmatprep.subr.mxu0 0.0
  %1170 = vmatpush2.msra.mxu0 0.0
  %1171 = vmatprep.subr.mxu0 0.0
  %1172 = vmatpush2.msra.mxu0 0.0
  %1173 = vmatprep.subr.mxu0 0.0
  %1174 = vmatpush2.msra.mxu0 0.0
  %1175 = vmatprep.subr.mxu0 0.0
  %1176 = vmatpush2.msra.mxu0 0.0
  %1177 = vmatprep.subr.mxu0 0.0
  %1178 = vmatpush2.msra.mxu0 0.0
  %1179 = vmatprep.subr.mxu0 0.0
  %1180 = vmatpush2.msra.mxu0 0.0
  %1181 = vmatprep.subr.mxu0 0.0
  %1182 = vmatpush2.msra.mxu0 0.0
  %1183 = vmatprep.subr.mxu0 0.0
  %1184 = vmatpush2.msra.mxu0 0.0
  %1185 = vmatprep.subr.mxu0 0.0
  %1186 = vmatpush2.msra.mxu0 0.0
  %1187 = vmatprep.subr.mxu0 0.0
  %1188 = vmatpush2.msra.mxu0 0.0
  %1189 = vmatprep.subr.mxu0 0.0
  %1190 = vmatpush2.msra.mxu0 0.0
  %1191 = vmatprep.subr.mxu0 0.0
  %1192 = vmatpush2.msra.mxu0 0.0
  %1193 = vmatprep.subr.mxu0 0.0
  %1194 = vmatpush2.msra.mxu0 0.0
  %1195 = vmatprep.subr.mxu0 0.0
  %1196 = vmatpush2.msra.mxu0 0.0
  %1197 = vmatprep.mubr.f32.mxu0 0.0
  %1198 = vmatmul.mubr.f32.gmra.mxu0 %v77
  %v1199 = vpop.f32.mrf.mxu0
  %v1200 = vadd.f32 0.0, %v1199
  %v1201 = vpop.f32.mrf.mxu0
  %v1202 = vadd.f32 0.0, %v1201
  %1203 = vdwg.mxu0
  %1204 = vmatprep.subr.mxu0 0.0
  %1205 = vmatpush1.msra.mxu0 0.0
  %1206 = vmatprep.subr.mxu0 0.0
  %1207 = vmatpush1.msra.mxu0 0.0
  %1208 = vmatprep.subr.mxu0 0.0
  %1209 = vmatpush1.msra.mxu0 0.0
  %1210 = vmatprep.subr.mxu0 0.0
  %1211 = vmatpush1.msra.mxu0 0.0
  %1212 = vmatprep.subr.mxu0 0.0
  %1213 = vmatpush1.msra.mxu0 0.0
  %1214 = vmatprep.subr.mxu0 0.0
  %1215 = vmatpush1.msra.mxu0 0.0
  %1216 = vmatprep.subr.mxu0 0.0
  %1217 = vmatpush1.msra.mxu0 0.0
  %1218 = vmatprep.subr.mxu0 0.0
  %1219 = vmatpush1.msra.mxu0 0.0
  %1220 = vmatprep.subr.mxu0 0.0
  %1221 = vmatpush1.msra.mxu0 0.0
  %1222 = vmatprep.subr.mxu0 0.0
  %1223 = vmatpush1.msra.mxu0 0.0
  %1224 = vmatprep.subr.mxu0 0.0
  %1225 = vmatpush1.msra.mxu0 0.0
  %1226 = vmatprep.subr.mxu0 0.0
  %1227 = vmatpush1.msra.mxu0 0.0
  %1228 = vmatprep.subr.mxu0 0.0
  %1229 = vmatpush1.msra.mxu0 %v706
  %1230 = vmatprep.subr.mxu0 0.0
  %1231 = vmatpush1.msra.mxu0 %v691
  %1232 = vmatprep.subr.mxu0 0.0
  %1233 = vmatpush1.msra.mxu0 %v676
  %1234 = vmatprep.subr.mxu0 0.0
  %1235 = vmatpush1.msra.mxu0 %v661
  %1236 = vmatprep.subr.mxu0 0.0
  %1237 = vmatpush2.msra.mxu0 0.0
  %1238 = vmatprep.subr.mxu0 0.0
  %1239 = vmatpush2.msra.mxu0 0.0
  %1240 = vmatprep.subr.mxu0 0.0
  %1241 = vmatpush2.msra.mxu0 0.0
  %1242 = vmatprep.subr.mxu0 0.0
  %1243 = vmatpush2.msra.mxu0 0.0
  %1244 = vmatprep.subr.mxu0 0.0
  %1245 = vmatpush2.msra.mxu0 0.0
  %1246 = vmatprep.subr.mxu0 0.0
  %1247 = vmatpush2.msra.mxu0 0.0
  %1248 = vmatprep.subr.mxu0 0.0
  %1249 = vmatpush2.msra.mxu0 0.0
  %1250 = vmatprep.subr.mxu0 0.0
  %1251 = vmatpush2.msra.mxu0 0.0
  %1252 = vmatprep.subr.mxu0 0.0
  %1253 = vmatpush2.msra.mxu0 0.0
  %1254 = vmatprep.subr.mxu0 0.0
  %1255 = vmatpush2.msra.mxu0 0.0
  %1256 = vmatprep.subr.mxu0 0.0
  %1257 = vmatpush2.msra.mxu0 0.0
  %1258 = vmatprep.subr.mxu0 0.0
  %1259 = vmatpush2.msra.mxu0 0.0
  %1260 = vmatprep.subr.mxu0 0.0
  %1261 = vmatpush2.msra.mxu0 0.0
  %1262 = vmatprep.subr.mxu0 0.0
  %1263 = vmatpush2.msra.mxu0 0.0
  %1264 = vmatprep.subr.mxu0 0.0
  %1265 = vmatpush2.msra.mxu0 0.0
  %1266 = vmatprep.subr.mxu0 0.0
  %1267 = vmatpush2.msra.mxu0 0.0
  %1268 = vmatprep.mubr.f32.mxu0 0.0
  %1269 = vmatmul.mubr.f32.gmra.mxu0 %v77
  %v1270 = vpop.f32.mrf.mxu0
  %v1271 = vadd.f32 0.0, %v1270
  %v1272 = vpop.f32.mrf.mxu0
  %1273 = vdwg.mxu0
  %v1274 = vmax.f32 %v146, %v774
  %v1275 = vmax.f32 %v148, %v776
  %v1276 = vmax.f32 %v217, %v845
  %v1277 = vmax.f32 %v219, %v847
  %v1278 = vmax.f32 %v288, %v916
  %v1279 = vmax.f32 %v290, %v918
  %v1280 = vmax.f32 %v359, %v987
  %v1281 = vmax.f32 %v361, %v989
  %v1282 = vmax.f32 %v430, %v1058
  %v1283 = vmax.f32 %v432, %v1060
  %v1284 = vmax.f32 %v501, %v1129
  %v1285 = vmax.f32 %v503, %v1131
  %v1286 = vmax.f32 %v572, %v1200
  %v1287 = vmax.f32 %v574, %v1202
  %v1288 = vmax.f32 %v643, %v1271
  %s1289 = scalar_lea.vmem %s1, 960
  %v1290 = vld [vmem:[%s1289] sm:$0xff]
  %v1291 = vld [vmem:[%s1289 + $0x8] sm:$0xff]
  %v1292 = vld [vmem:[%s1289 + $0x10] sm:$0xff]
  %v1293 = vld [vmem:[%s1289 + $0x18] sm:$0xff]
  %v1294 = vld [vmem:[%s1289 + $0x20] sm:$0xff]
  %v1295 = vld [vmem:[%s1289 + $0x28] sm:$0xff]
  %v1296 = vld [vmem:[%s1289 + $0x30] sm:$0xff]
  %v1297 = vld [vmem:[%s1289 + $0x38] sm:$0xff]
  %v1298 = vld [vmem:[%s1289 + $0x40] sm:$0xff]
  %v1299 = vld [vmem:[%s1289 + $0x48] sm:$0xff]
  %v1300 = vld [vmem:[%s1289 + $0x50] sm:$0xff]
  %v1301 = vld [vmem:[%s1289 + $0x58] sm:$0xff]
  %v1302 = vld [vmem:[%s1289 + $0x60] sm:$0xff]
  %v1303 = vld [vmem:[%s1289 + $0x68] sm:$0xff]
  %v1304 = vld [vmem:[%s1289 + $0x70] sm:$0xff]
  %v1305 = vld [vmem:[%s1289 + $0x78] sm:$0xff]
  %v1306 = vld [vmem:[%s1289 + $0x80] sm:$0xff]
  %v1307 = vld [vmem:[%s1289 + $0x88] sm:$0xff]
  %v1308 = vld [vmem:[%s1289 + $0x90] sm:$0xff]
  %v1309 = vld [vmem:[%s1289 + $0x98] sm:$0xff]
  %v1310 = vld [vmem:[%s1289 + $0xa0] sm:$0xff]
  %v1311 = vld [vmem:[%s1289 + $0xa8] sm:$0xff]
  %v1312 = vld [vmem:[%s1289 + $0xb0] sm:$0xff]
  %v1313 = vld [vmem:[%s1289 + $0xb8] sm:$0xff]
  %v1314 = vld [vmem:[%s1289 + $0xc0] sm:$0xff]
  %v1315 = vld [vmem:[%s1289 + $0xc8] sm:$0xff]
  %v1316 = vld [vmem:[%s1289 + $0xd0] sm:$0xff]
  %v1317 = vld [vmem:[%s1289 + $0xd8] sm:$0xff]
  %v1318 = vld [vmem:[%s1289 + $0xe0] sm:$0xff]
  %v1319 = vld [vmem:[%s1289 + $0xe8] sm:$0xff]
  %v1320 = vld [vmem:[%s1289 + $0xf0] sm:$0xff]
  %v1321 = vld [vmem:[%s1289 + $0xf8] sm:$0xff]
  %v1322 = vld [vmem:[%s1289 + $0x100] sm:$0xff]
  %v1323 = vld [vmem:[%s1289 + $0x108] sm:$0xff]
  %v1324 = vld [vmem:[%s1289 + $0x110] sm:$0xff]
  %v1325 = vld [vmem:[%s1289 + $0x118] sm:$0xff]
  %v1326 = vld [vmem:[%s1289 + $0x120] sm:$0xff]
  %v1327 = vld [vmem:[%s1289 + $0x128] sm:$0xff]
  %v1328 = vld [vmem:[%s1289 + $0x130] sm:$0xff]
  %v1329 = vld [vmem:[%s1289 + $0x138] sm:$0xff]
  %v1330 = vld [vmem:[%s1289 + $0x140] sm:$0xff]
  %v1331 = vld [vmem:[%s1289 + $0x148] sm:$0xff]
  %v1332 = vld [vmem:[%s1289 + $0x150] sm:$0xff]
  %v1333 = vld [vmem:[%s1289 + $0x158] sm:$0xff]
  %v1334 = vld [vmem:[%s1289 + $0x160] sm:$0xff]
  %v1335 = vld [vmem:[%s1289 + $0x168] sm:$0xff]
  %v1336 = vld [vmem:[%s1289 + $0x170] sm:$0xff]
  %v1337 = vld [vmem:[%s1289 + $0x178] sm:$0xff]
  %v1338 = vld [vmem:[%s1289 + $0x180] sm:$0xff]
  %v1339 = vld [vmem:[%s1289 + $0x188] sm:$0xff]
  %v1340 = vld [vmem:[%s1289 + $0x190] sm:$0xff]
  %v1341 = vld [vmem:[%s1289 + $0x198] sm:$0xff]
  %v1342 = vld [vmem:[%s1289 + $0x1a0] sm:$0xff]
  %v1343 = vld [vmem:[%s1289 + $0x1a8] sm:$0xff]
  %v1344 = vld [vmem:[%s1289 + $0x1b0] sm:$0xff]
  %v1345 = vld [vmem:[%s1289 + $0x1b8] sm:$0xff]
  %v1346 = vld [vmem:[%s1289 + $0x1c0] sm:$0xff]
  %v1347 = vld [vmem:[%s1289 + $0x1c8] sm:$0xff]
  %v1348 = vld [vmem:[%s1289 + $0x1d0] sm:$0xff]
  %v1349 = vld [vmem:[%s1289 + $0x1d8] sm:$0xff]
  %1350 = vmatprep.subr.mxu0 0.0
  %1351 = vmatpush1.msra.mxu0 0.0
  %1352 = vmatprep.subr.mxu0 0.0
  %1353 = vmatpush1.msra.mxu0 0.0
  %1354 = vmatprep.subr.mxu0 0.0
  %1355 = vmatpush1.msra.mxu0 0.0
  %1356 = vmatprep.subr.mxu0 0.0
  %1357 = vmatpush1.msra.mxu0 0.0
  %1358 = vmatprep.subr.mxu0 0.0
  %1359 = vmatpush1.msra.mxu0 0.0
  %1360 = vmatprep.subr.mxu0 0.0
  %1361 = vmatpush1.msra.mxu0 0.0
  %1362 = vmatprep.subr.mxu0 0.0
  %1363 = vmatpush1.msra.mxu0 0.0
  %1364 = vmatprep.subr.mxu0 0.0
  %1365 = vmatpush1.msra.mxu0 0.0
  %1366 = vmatprep.subr.mxu0 0.0
  %1367 = vmatpush1.msra.mxu0 0.0
  %1368 = vmatprep.subr.mxu0 0.0
  %1369 = vmatpush1.msra.mxu0 0.0
  %1370 = vmatprep.subr.mxu0 0.0
  %1371 = vmatpush1.msra.mxu0 0.0
  %1372 = vmatprep.subr.mxu0 0.0
  %1373 = vmatpush1.msra.mxu0 0.0
  %1374 = vmatprep.subr.mxu0 %v1336
  %1375 = vmatpush1.msra.mxu0 %v1335
  %1376 = vmatprep.subr.mxu0 %v1321
  %1377 = vmatpush1.msra.mxu0 %v1320
  %1378 = vmatprep.subr.mxu0 %v1306
  %1379 = vmatpush1.msra.mxu0 %v1305
  %1380 = vmatprep.subr.mxu0 %v1291
  %1381 = vmatpush1.msra.mxu0 %v1290
  %1382 = vmatprep.subr.mxu0 0.0
  %1383 = vmatpush2.msra.mxu0 0.0
  %1384 = vmatprep.subr.mxu0 0.0
  %1385 = vmatpush2.msra.mxu0 0.0
  %1386 = vmatprep.subr.mxu0 0.0
  %1387 = vmatpush2.msra.mxu0 0.0
  %1388 = vmatprep.subr.mxu0 0.0
  %1389 = vmatpush2.msra.mxu0 0.0
  %1390 = vmatprep.subr.mxu0 0.0
  %1391 = vmatpush2.msra.mxu0 0.0
  %1392 = vmatprep.subr.mxu0 0.0
  %1393 = vmatpush2.msra.mxu0 0.0
  %1394 = vmatprep.subr.mxu0 0.0
  %1395 = vmatpush2.msra.mxu0 0.0
  %1396 = vmatprep.subr.mxu0 0.0
  %1397 = vmatpush2.msra.mxu0 0.0
  %1398 = vmatprep.subr.mxu0 0.0
  %1399 = vmatpush2.msra.mxu0 0.0
  %1400 = vmatprep.subr.mxu0 0.0
  %1401 = vmatpush2.msra.mxu0 0.0
  %1402 = vmatprep.subr.mxu0 0.0
  %1403 = vmatpush2.msra.mxu0 0.0
  %1404 = vmatprep.subr.mxu0 0.0
  %1405 = vmatpush2.msra.mxu0 0.0
  %1406 = vmatprep.subr.mxu0 0.0
  %1407 = vmatpush2.msra.mxu0 0.0
  %1408 = vmatprep.subr.mxu0 0.0
  %1409 = vmatpush2.msra.mxu0 0.0
  %1410 = vmatprep.subr.mxu0 0.0
  %1411 = vmatpush2.msra.mxu0 0.0
  %1412 = vmatprep.subr.mxu0 0.0
  %1413 = vmatpush2.msra.mxu0 0.0
  %1414 = vmatprep.mubr.f32.mxu0 0.0
  %1415 = vmatmul.mubr.f32.gmra.mxu0 %v77
  %v1416 = vpop.f32.mrf.mxu0
  %v1417 = vadd.f32 0.0, %v1416
  %v1418 = vpop.f32.mrf.mxu0
  %v1419 = vadd.f32 0.0, %v1418
  %1420 = vdwg.mxu0
  %1421 = vmatprep.subr.mxu0 0.0
  %1422 = vmatpush1.msra.mxu0 0.0
  %1423 = vmatprep.subr.mxu0 0.0
  %1424 = vmatpush1.msra.mxu0 0.0
  %1425 = vmatprep.subr.mxu0 0.0
  %1426 = vmatpush1.msra.mxu0 0.0
  %1427 = vmatprep.subr.mxu0 0.0
  %1428 = vmatpush1.msra.mxu0 0.0
  %1429 = vmatprep.subr.mxu0 0.0
  %1430 = vmatpush1.msra.mxu0 0.0
  %1431 = vmatprep.subr.mxu0 0.0
  %1432 = vmatpush1.msra.mxu0 0.0
  %1433 = vmatprep.subr.mxu0 0.0
  %1434 = vmatpush1.msra.mxu0 0.0
  %1435 = vmatprep.subr.mxu0 0.0
  %1436 = vmatpush1.msra.mxu0 0.0
  %1437 = vmatprep.subr.mxu0 0.0
  %1438 = vmatpush1.msra.mxu0 0.0
  %1439 = vmatprep.subr.mxu0 0.0
  %1440 = vmatpush1.msra.mxu0 0.0
  %1441 = vmatprep.subr.mxu0 0.0
  %1442 = vmatpush1.msra.mxu0 0.0
  %1443 = vmatprep.subr.mxu0 0.0
  %1444 = vmatpush1.msra.mxu0 0.0
  %1445 = vmatprep.subr.mxu0 %v1338
  %1446 = vmatpush1.msra.mxu0 %v1337
  %1447 = vmatprep.subr.mxu0 %v1323
  %1448 = vmatpush1.msra.mxu0 %v1322
  %1449 = vmatprep.subr.mxu0 %v1308
  %1450 = vmatpush1.msra.mxu0 %v1307
  %1451 = vmatprep.subr.mxu0 %v1293
  %1452 = vmatpush1.msra.mxu0 %v1292
  %1453 = vmatprep.subr.mxu0 0.0
  %1454 = vmatpush2.msra.mxu0 0.0
  %1455 = vmatprep.subr.mxu0 0.0
  %1456 = vmatpush2.msra.mxu0 0.0
  %1457 = vmatprep.subr.mxu0 0.0
  %1458 = vmatpush2.msra.mxu0 0.0
  %1459 = vmatprep.subr.mxu0 0.0
  %1460 = vmatpush2.msra.mxu0 0.0
  %1461 = vmatprep.subr.mxu0 0.0
  %1462 = vmatpush2.msra.mxu0 0.0
  %1463 = vmatprep.subr.mxu0 0.0
  %1464 = vmatpush2.msra.mxu0 0.0
  %1465 = vmatprep.subr.mxu0 0.0
  %1466 = vmatpush2.msra.mxu0 0.0
  %1467 = vmatprep.subr.mxu0 0.0
  %1468 = vmatpush2.msra.mxu0 0.0
  %1469 = vmatprep.subr.mxu0 0.0
  %1470 = vmatpush2.msra.mxu0 0.0
  %1471 = vmatprep.subr.mxu0 0.0
  %1472 = vmatpush2.msra.mxu0 0.0
  %1473 = vmatprep.subr.mxu0 0.0
  %1474 = vmatpush2.msra.mxu0 0.0
  %1475 = vmatprep.subr.mxu0 0.0
  %1476 = vmatpush2.msra.mxu0 0.0
  %1477 = vmatprep.subr.mxu0 0.0
  %1478 = vmatpush2.msra.mxu0 0.0
  %1479 = vmatprep.subr.mxu0 0.0
  %1480 = vmatpush2.msra.mxu0 0.0
  %1481 = vmatprep.subr.mxu0 0.0
  %1482 = vmatpush2.msra.mxu0 0.0
  %1483 = vmatprep.subr.mxu0 0.0
  %1484 = vmatpush2.msra.mxu0 0.0
  %1485 = vmatprep.mubr.f32.mxu0 0.0
  %1486 = vmatmul.mubr.f32.gmra.mxu0 %v77
  %v1487 = vpop.f32.mrf.mxu0
  %v1488 = vadd.f32 0.0, %v1487
  %v1489 = vpop.f32.mrf.mxu0
  %v1490 = vadd.f32 0.0, %v1489
  %1491 = vdwg.mxu0
  %1492 = vmatprep.subr.mxu0 0.0
  %1493 = vmatpush1.msra.mxu0 0.0
  %1494 = vmatprep.subr.mxu0 0.0
  %1495 = vmatpush1.msra.mxu0 0.0
  %1496 = vmatprep.subr.mxu0 0.0
  %1497 = vmatpush1.msra.mxu0 0.0
  %1498 = vmatprep.subr.mxu0 0.0
  %1499 = vmatpush1.msra.mxu0 0.0
  %1500 = vmatprep.subr.mxu0 0.0
  %1501 = vmatpush1.msra.mxu0 0.0
  %1502 = vmatprep.subr.mxu0 0.0
  %1503 = vmatpush1.msra.mxu0 0.0
  %1504 = vmatprep.subr.mxu0 0.0
  %1505 = vmatpush1.msra.mxu0 0.0
  %1506 = vmatprep.subr.mxu0 0.0
  %1507 = vmatpush1.msra.mxu0 0.0
  %1508 = vmatprep.subr.mxu0 0.0
  %1509 = vmatpush1.msra.mxu0 0.0
  %1510 = vmatprep.subr.mxu0 0.0
  %1511 = vmatpush1.msra.mxu0 0.0
  %1512 = vmatprep.subr.mxu0 0.0
  %1513 = vmatpush1.msra.mxu0 0.0
  %1514 = vmatprep.subr.mxu0 0.0
  %1515 = vmatpush1.msra.mxu0 0.0
  %1516 = vmatprep.subr.mxu0 %v1340
  %1517 = vmatpush1.msra.mxu0 %v1339
  %1518 = vmatprep.subr.mxu0 %v1325
  %1519 = vmatpush1.msra.mxu0 %v1324
  %1520 = vmatprep.subr.mxu0 %v1310
  %1521 = vmatpush1.msra.mxu0 %v1309
  %1522 = vmatprep.subr.mxu0 %v1295
  %1523 = vmatpush1.msra.mxu0 %v1294
  %1524 = vmatprep.subr.mxu0 0.0
  %1525 = vmatpush2.msra.mxu0 0.0
  %1526 = vmatprep.subr.mxu0 0.0
  %1527 = vmatpush2.msra.mxu0 0.0
  %1528 = vmatprep.subr.mxu0 0.0
  %1529 = vmatpush2.msra.mxu0 0.0
  %1530 = vmatprep.subr.mxu0 0.0
  %1531 = vmatpush2.msra.mxu0 0.0
  %1532 = vmatprep.subr.mxu0 0.0
  %1533 = vmatpush2.msra.mxu0 0.0
  %1534 = vmatprep.subr.mxu0 0.0
  %1535 = vmatpush2.msra.mxu0 0.0
  %1536 = vmatprep.subr.mxu0 0.0
  %1537 = vmatpush2.msra.mxu0 0.0
  %1538 = vmatprep.subr.mxu0 0.0
  %1539 = vmatpush2.msra.mxu0 0.0
  %1540 = vmatprep.subr.mxu0 0.0
  %1541 = vmatpush2.msra.mxu0 0.0
  %1542 = vmatprep.subr.mxu0 0.0
  %1543 = vmatpush2.msra.mxu0 0.0
  %1544 = vmatprep.subr.mxu0 0.0
  %1545 = vmatpush2.msra.mxu0 0.0
  %1546 = vmatprep.subr.mxu0 0.0
  %1547 = vmatpush2.msra.mxu0 0.0
  %1548 = vmatprep.subr.mxu0 0.0
  %1549 = vmatpush2.msra.mxu0 0.0
  %1550 = vmatprep.subr.mxu0 0.0
  %1551 = vmatpush2.msra.mxu0 0.0
  %1552 = vmatprep.subr.mxu0 0.0
  %1553 = vmatpush2.msra.mxu0 0.0
  %1554 = vmatprep.subr.mxu0 0.0
  %1555 = vmatpush2.msra.mxu0 0.0
  %1556 = vmatprep.mubr.f32.mxu0 0.0
  %1557 = vmatmul.mubr.f32.gmra.mxu0 %v77
  %v1558 = vpop.f32.mrf.mxu0
  %v1559 = vadd.f32 0.0, %v1558
  %v1560 = vpop.f32.mrf.mxu0
  %v1561 = vadd.f32 0.0, %v1560
  %1562 = vdwg.mxu0
  %1563 = vmatprep.subr.mxu0 0.0
  %1564 = vmatpush1.msra.mxu0 0.0
  %1565 = vmatprep.subr.mxu0 0.0
  %1566 = vmatpush1.msra.mxu0 0.0
  %1567 = vmatprep.subr.mxu0 0.0
  %1568 = vmatpush1.msra.mxu0 0.0
  %1569 = vmatprep.subr.mxu0 0.0
  %1570 = vmatpush1.msra.mxu0 0.0
  %1571 = vmatprep.subr.mxu0 0.0
  %1572 = vmatpush1.msra.mxu0 0.0
  %1573 = vmatprep.subr.mxu0 0.0
  %1574 = vmatpush1.msra.mxu0 0.0
  %1575 = vmatprep.subr.mxu0 0.0
  %1576 = vmatpush1.msra.mxu0 0.0
  %1577 = vmatprep.subr.mxu0 0.0
  %1578 = vmatpush1.msra.mxu0 0.0
  %1579 = vmatprep.subr.mxu0 0.0
  %1580 = vmatpush1.msra.mxu0 0.0
  %1581 = vmatprep.subr.mxu0 0.0
  %1582 = vmatpush1.msra.mxu0 0.0
  %1583 = vmatprep.subr.mxu0 0.0
  %1584 = vmatpush1.msra.mxu0 0.0
  %1585 = vmatprep.subr.mxu0 0.0
  %1586 = vmatpush1.msra.mxu0 0.0
  %1587 = vmatprep.subr.mxu0 %v1342
  %1588 = vmatpush1.msra.mxu0 %v1341
  %1589 = vmatprep.subr.mxu0 %v1327
  %1590 = vmatpush1.msra.mxu0 %v1326
  %1591 = vmatprep.subr.mxu0 %v1312
  %1592 = vmatpush1.msra.mxu0 %v1311
  %1593 = vmatprep.subr.mxu0 %v1297
  %1594 = vmatpush1.msra.mxu0 %v1296
  %1595 = vmatprep.subr.mxu0 0.0
  %1596 = vmatpush2.msra.mxu0 0.0
  %1597 = vmatprep.subr.mxu0 0.0
  %1598 = vmatpush2.msra.mxu0 0.0
  %1599 = vmatprep.subr.mxu0 0.0
  %1600 = vmatpush2.msra.mxu0 0.0
  %1601 = vmatprep.subr.mxu0 0.0
  %1602 = vmatpush2.msra.mxu0 0.0
  %1603 = vmatprep.subr.mxu0 0.0
  %1604 = vmatpush2.msra.mxu0 0.0
  %1605 = vmatprep.subr.mxu0 0.0
  %1606 = vmatpush2.msra.mxu0 0.0
  %1607 = vmatprep.subr.mxu0 0.0
  %1608 = vmatpush2.msra.mxu0 0.0
  %1609 = vmatprep.subr.mxu0 0.0
  %1610 = vmatpush2.msra.mxu0 0.0
  %1611 = vmatprep.subr.mxu0 0.0
  %1612 = vmatpush2.msra.mxu0 0.0
  %1613 = vmatprep.subr.mxu0 0.0
  %1614 = vmatpush2.msra.mxu0 0.0
  %1615 = vmatprep.subr.mxu0 0.0
  %1616 = vmatpush2.msra.mxu0 0.0
  %1617 = vmatprep.subr.mxu0 0.0
  %1618 = vmatpush2.msra.mxu0 0.0
  %1619 = vmatprep.subr.mxu0 0.0
  %1620 = vmatpush2.msra.mxu0 0.0
  %1621 = vmatprep.subr.mxu0 0.0
  %1622 = vmatpush2.msra.mxu0 0.0
  %1623 = vmatprep.subr.mxu0 0.0
  %1624 = vmatpush2.msra.mxu0 0.0
  %1625 = vmatprep.subr.mxu0 0.0
  %1626 = vmatpush2.msra.mxu0 0.0
  %1627 = vmatprep.mubr.f32.mxu0 0.0
  %1628 = vmatmul.mubr.f32.gmra.mxu0 %v77
  %v1629 = vpop.f32.mrf.mxu0
  %v1630 = vadd.f32 0.0, %v1629
  %v1631 = vpop.f32.mrf.mxu0
  %v1632 = vadd.f32 0.0, %v1631
  %1633 = vdwg.mxu0
  %1634 = vmatprep.subr.mxu0 0.0
  %1635 = vmatpush1.msra.mxu0 0.0
  %1636 = vmatprep.subr.mxu0 0.0
  %1637 = vmatpush1.msra.mxu0 0.0
  %1638 = vmatprep.subr.mxu0 0.0
  %1639 = vmatpush1.msra.mxu0 0.0
  %1640 = vmatprep.subr.mxu0 0.0
  %1641 = vmatpush1.msra.mxu0 0.0
  %1642 = vmatprep.subr.mxu0 0.0
  %1643 = vmatpush1.msra.mxu0 0.0
  %1644 = vmatprep.subr.mxu0 0.0
  %1645 = vmatpush1.msra.mxu0 0.0
  %1646 = vmatprep.subr.mxu0 0.0
  %1647 = vmatpush1.msra.mxu0 0.0
  %1648 = vmatprep.subr.mxu0 0.0
  %1649 = vmatpush1.msra.mxu0 0.0
  %1650 = vmatprep.subr.mxu0 0.0
  %1651 = vmatpush1.msra.mxu0 0.0
  %1652 = vmatprep.subr.mxu0 0.0
  %1653 = vmatpush1.msra.mxu0 0.0
  %1654 = vmatprep.subr.mxu0 0.0
  %1655 = vmatpush1.msra.mxu0 0.0
  %1656 = vmatprep.subr.mxu0 0.0
  %1657 = vmatpush1.msra.mxu0 0.0
  %1658 = vmatprep.subr.mxu0 %v1344
  %1659 = vmatpush1.msra.mxu0 %v1343
  %1660 = vmatprep.subr.mxu0 %v1329
  %1661 = vmatpush1.msra.mxu0 %v1328
  %1662 = vmatprep.subr.mxu0 %v1314
  %1663 = vmatpush1.msra.mxu0 %v1313
  %1664 = vmatprep.subr.mxu0 %v1299
  %1665 = vmatpush1.msra.mxu0 %v1298
  %1666 = vmatprep.subr.mxu0 0.0
  %1667 = vmatpush2.msra.mxu0 0.0
  %1668 = vmatprep.subr.mxu0 0.0
  %1669 = vmatpush2.msra.mxu0 0.0
  %1670 = vmatprep.subr.mxu0 0.0
  %1671 = vmatpush2.msra.mxu0 0.0
  %1672 = vmatprep.subr.mxu0 0.0
  %1673 = vmatpush2.msra.mxu0 0.0
  %1674 = vmatprep.subr.mxu0 0.0
  %1675 = vmatpush2.msra.mxu0 0.0
  %1676 = vmatprep.subr.mxu0 0.0
  %1677 = vmatpush2.msra.mxu0 0.0
  %1678 = vmatprep.subr.mxu0 0.0
  %1679 = vmatpush2.msra.mxu0 0.0
  %1680 = vmatprep.subr.mxu0 0.0
  %1681 = vmatpush2.msra.mxu0 0.0
  %1682 = vmatprep.subr.mxu0 0.0
  %1683 = vmatpush2.msra.mxu0 0.0
  %1684 = vmatprep.subr.mxu0 0.0
  %1685 = vmatpush2.msra.mxu0 0.0
  %1686 = vmatprep.subr.mxu0 0.0
  %1687 = vmatpush2.msra.mxu0 0.0
  %1688 = vmatprep.subr.mxu0 0.0
  %1689 = vmatpush2.msra.mxu0 0.0
  %1690 = vmatprep.subr.mxu0 0.0
  %1691 = vmatpush2.msra.mxu0 0.0
  %1692 = vmatprep.subr.mxu0 0.0
  %1693 = vmatpush2.msra.mxu0 0.0
  %1694 = vmatprep.subr.mxu0 0.0
  %1695 = vmatpush2.msra.mxu0 0.0
  %1696 = vmatprep.subr.mxu0 0.0
  %1697 = vmatpush2.msra.mxu0 0.0
  %1698 = vmatprep.mubr.f32.mxu0 0.0
  %1699 = vmatmul.mubr.f32.gmra.mxu0 %v77
  %v1700 = vpop.f32.mrf.mxu0
  %v1701 = vadd.f32 0.0, %v1700
  %v1702 = vpop.f32.mrf.mxu0
  %v1703 = vadd.f32 0.0, %v1702
  %1704 = vdwg.mxu0
  %1705 = vmatprep.subr.mxu0 0.0
  %1706 = vmatpush1.msra.mxu0 0.0
  %1707 = vmatprep.subr.mxu0 0.0
  %1708 = vmatpush1.msra.mxu0 0.0
  %1709 = vmatprep.subr.mxu0 0.0
  %1710 = vmatpush1.msra.mxu0 0.0
  %1711 = vmatprep.subr.mxu0 0.0
  %1712 = vmatpush1.msra.mxu0 0.0
  %1713 = vmatprep.subr.mxu0 0.0
  %1714 = vmatpush1.msra.mxu0 0.0
  %1715 = vmatprep.subr.mxu0 0.0
  %1716 = vmatpush1.msra.mxu0 0.0
  %1717 = vmatprep.subr.mxu0 0.0
  %1718 = vmatpush1.msra.mxu0 0.0
  %1719 = vmatprep.subr.mxu0 0.0
  %1720 = vmatpush1.msra.mxu0 0.0
  %1721 = vmatprep.subr.mxu0 0.0
  %1722 = vmatpush1.msra.mxu0 0.0
  %1723 = vmatprep.subr.mxu0 0.0
  %1724 = vmatpush1.msra.mxu0 0.0
  %1725 = vmatprep.subr.mxu0 0.0
  %1726 = vmatpush1.msra.mxu0 0.0
  %1727 = vmatprep.subr.mxu0 0.0
  %1728 = vmatpush1.msra.mxu0 0.0
  %1729 = vmatprep.subr.mxu0 %v1346
  %1730 = vmatpush1.msra.mxu0 %v1345
  %1731 = vmatprep.subr.mxu0 %v1331
  %1732 = vmatpush1.msra.mxu0 %v1330
  %1733 = vmatprep.subr.mxu0 %v1316
  %1734 = vmatpush1.msra.mxu0 %v1315
  %1735 = vmatprep.subr.mxu0 %v1301
  %1736 = vmatpush1.msra.mxu0 %v1300
  %1737 = vmatprep.subr.mxu0 0.0
  %1738 = vmatpush2.msra.mxu0 0.0
  %1739 = vmatprep.subr.mxu0 0.0
  %1740 = vmatpush2.msra.mxu0 0.0
  %1741 = vmatprep.subr.mxu0 0.0
  %1742 = vmatpush2.msra.mxu0 0.0
  %1743 = vmatprep.subr.mxu0 0.0
  %1744 = vmatpush2.msra.mxu0 0.0
  %1745 = vmatprep.subr.mxu0 0.0
  %1746 = vmatpush2.msra.mxu0 0.0
  %1747 = vmatprep.subr.mxu0 0.0
  %1748 = vmatpush2.msra.mxu0 0.0
  %1749 = vmatprep.subr.mxu0 0.0
  %1750 = vmatpush2.msra.mxu0 0.0
  %1751 = vmatprep.subr.mxu0 0.0
  %1752 = vmatpush2.msra.mxu0 0.0
  %1753 = vmatprep.subr.mxu0 0.0
  %1754 = vmatpush2.msra.mxu0 0.0
  %1755 = vmatprep.subr.mxu0 0.0
  %1756 = vmatpush2.msra.mxu0 0.0
  %1757 = vmatprep.subr.mxu0 0.0
  %1758 = vmatpush2.msra.mxu0 0.0
  %1759 = vmatprep.subr.mxu0 0.0
  %1760 = vmatpush2.msra.mxu0 0.0
  %1761 = vmatprep.subr.mxu0 0.0
  %1762 = vmatpush2.msra.mxu0 0.0
  %1763 = vmatprep.subr.mxu0 0.0
  %1764 = vmatpush2.msra.mxu0 0.0
  %1765 = vmatprep.subr.mxu0 0.0
  %1766 = vmatpush2.msra.mxu0 0.0
  %1767 = vmatprep.subr.mxu0 0.0
  %1768 = vmatpush2.msra.mxu0 0.0
  %1769 = vmatprep.mubr.f32.mxu0 0.0
  %1770 = vmatmul.mubr.f32.gmra.mxu0 %v77
  %v1771 = vpop.f32.mrf.mxu0
  %v1772 = vadd.f32 0.0, %v1771
  %v1773 = vpop.f32.mrf.mxu0
  %v1774 = vadd.f32 0.0, %v1773
  %1775 = vdwg.mxu0
  %1776 = vmatprep.subr.mxu0 0.0
  %1777 = vmatpush1.msra.mxu0 0.0
  %1778 = vmatprep.subr.mxu0 0.0
  %1779 = vmatpush1.msra.mxu0 0.0
  %1780 = vmatprep.subr.mxu0 0.0
  %1781 = vmatpush1.msra.mxu0 0.0
  %1782 = vmatprep.subr.mxu0 0.0
  %1783 = vmatpush1.msra.mxu0 0.0
  %1784 = vmatprep.subr.mxu0 0.0
  %1785 = vmatpush1.msra.mxu0 0.0
  %1786 = vmatprep.subr.mxu0 0.0
  %1787 = vmatpush1.msra.mxu0 0.0
  %1788 = vmatprep.subr.mxu0 0.0
  %1789 = vmatpush1.msra.mxu0 0.0
  %1790 = vmatprep.subr.mxu0 0.0
  %1791 = vmatpush1.msra.mxu0 0.0
  %1792 = vmatprep.subr.mxu0 0.0
  %1793 = vmatpush1.msra.mxu0 0.0
  %1794 = vmatprep.subr.mxu0 0.0
  %1795 = vmatpush1.msra.mxu0 0.0
  %1796 = vmatprep.subr.mxu0 0.0
  %1797 = vmatpush1.msra.mxu0 0.0
  %1798 = vmatprep.subr.mxu0 0.0
  %1799 = vmatpush1.msra.mxu0 0.0
  %1800 = vmatprep.subr.mxu0 %v1348
  %1801 = vmatpush1.msra.mxu0 %v1347
  %1802 = vmatprep.subr.mxu0 %v1333
  %1803 = vmatpush1.msra.mxu0 %v1332
  %1804 = vmatprep.subr.mxu0 %v1318
  %1805 = vmatpush1.msra.mxu0 %v1317
  %1806 = vmatprep.subr.mxu0 %v1303
  %1807 = vmatpush1.msra.mxu0 %v1302
  %1808 = vmatprep.subr.mxu0 0.0
  %1809 = vmatpush2.msra.mxu0 0.0
  %1810 = vmatprep.subr.mxu0 0.0
  %1811 = vmatpush2.msra.mxu0 0.0
  %1812 = vmatprep.subr.mxu0 0.0
  %1813 = vmatpush2.msra.mxu0 0.0
  %1814 = vmatprep.subr.mxu0 0.0
  %1815 = vmatpush2.msra.mxu0 0.0
  %1816 = vmatprep.subr.mxu0 0.0
  %1817 = vmatpush2.msra.mxu0 0.0
  %1818 = vmatprep.subr.mxu0 0.0
  %1819 = vmatpush2.msra.mxu0 0.0
  %1820 = vmatprep.subr.mxu0 0.0
  %1821 = vmatpush2.msra.mxu0 0.0
  %1822 = vmatprep.subr.mxu0 0.0
  %1823 = vmatpush2.msra.mxu0 0.0
  %1824 = vmatprep.subr.mxu0 0.0
  %1825 = vmatpush2.msra.mxu0 0.0
  %1826 = vmatprep.subr.mxu0 0.0
  %1827 = vmatpush2.msra.mxu0 0.0
  %1828 = vmatprep.subr.mxu0 0.0
  %1829 = vmatpush2.msra.mxu0 0.0
  %1830 = vmatprep.subr.mxu0 0.0
  %1831 = vmatpush2.msra.mxu0 0.0
  %1832 = vmatprep.subr.mxu0 0.0
  %1833 = vmatpush2.msra.mxu0 0.0
  %1834 = vmatprep.subr.mxu0 0.0
  %1835 = vmatpush2.msra.mxu0 0.0
  %1836 = vmatprep.subr.mxu0 0.0
  %1837 = vmatpush2.msra.mxu0 0.0
  %1838 = vmatprep.subr.mxu0 0.0
  %1839 = vmatpush2.msra.mxu0 0.0
  %1840 = vmatprep.mubr.f32.mxu0 0.0
  %1841 = vmatmul.mubr.f32.gmra.mxu0 %v77
  %v1842 = vpop.f32.mrf.mxu0
  %v1843 = vadd.f32 0.0, %v1842
  %v1844 = vpop.f32.mrf.mxu0
  %v1845 = vadd.f32 0.0, %v1844
  %1846 = vdwg.mxu0
  %1847 = vmatprep.subr.mxu0 0.0
  %1848 = vmatpush1.msra.mxu0 0.0
  %1849 = vmatprep.subr.mxu0 0.0
  %1850 = vmatpush1.msra.mxu0 0.0
  %1851 = vmatprep.subr.mxu0 0.0
  %1852 = vmatpush1.msra.mxu0 0.0
  %1853 = vmatprep.subr.mxu0 0.0
  %1854 = vmatpush1.msra.mxu0 0.0
  %1855 = vmatprep.subr.mxu0 0.0
  %1856 = vmatpush1.msra.mxu0 0.0
  %1857 = vmatprep.subr.mxu0 0.0
  %1858 = vmatpush1.msra.mxu0 0.0
  %1859 = vmatprep.subr.mxu0 0.0
  %1860 = vmatpush1.msra.mxu0 0.0
  %1861 = vmatprep.subr.mxu0 0.0
  %1862 = vmatpush1.msra.mxu0 0.0
  %1863 = vmatprep.subr.mxu0 0.0
  %1864 = vmatpush1.msra.mxu0 0.0
  %1865 = vmatprep.subr.mxu0 0.0
  %1866 = vmatpush1.msra.mxu0 0.0
  %1867 = vmatprep.subr.mxu0 0.0
  %1868 = vmatpush1.msra.mxu0 0.0
  %1869 = vmatprep.subr.mxu0 0.0
  %1870 = vmatpush1.msra.mxu0 0.0
  %1871 = vmatprep.subr.mxu0 0.0
  %1872 = vmatpush1.msra.mxu0 %v1349
  %1873 = vmatprep.subr.mxu0 0.0
  %1874 = vmatpush1.msra.mxu0 %v1334
  %1875 = vmatprep.subr.mxu0 0.0
  %1876 = vmatpush1.msra.mxu0 %v1319
  %1877 = vmatprep.subr.mxu0 0.0
  %1878 = vmatpush1.msra.mxu0 %v1304
  %1879 = vmatprep.subr.mxu0 0.0
  %1880 = vmatpush2.msra.mxu0 0.0
  %1881 = vmatprep.subr.mxu0 0.0
  %1882 = vmatpush2.msra.mxu0 0.0
  %1883 = vmatprep.subr.mxu0 0.0
  %1884 = vmatpush2.msra.mxu0 0.0
  %1885 = vmatprep.subr.mxu0 0.0
  %1886 = vmatpush2.msra.mxu0 0.0
  %1887 = vmatprep.subr.mxu0 0.0
  %1888 = vmatpush2.msra.mxu0 0.0
  %1889 = vmatprep.subr.mxu0 0.0
  %1890 = vmatpush2.msra.mxu0 0.0
  %1891 = vmatprep.subr.mxu0 0.0
  %1892 = vmatpush2.msra.mxu0 0.0
  %1893 = vmatprep.subr.mxu0 0.0
  %1894 = vmatpush2.msra.mxu0 0.0
  %1895 = vmatprep.subr.mxu0 0.0
  %1896 = vmatpush2.msra.mxu0 0.0
  %1897 = vmatprep.subr.mxu0 0.0
  %1898 = vmatpush2.msra.mxu0 0.0
  %1899 = vmatprep.subr.mxu0 0.0
  %1900 = vmatpush2.msra.mxu0 0.0
  %1901 = vmatprep.subr.mxu0 0.0
  %1902 = vmatpush2.msra.mxu0 0.0
  %1903 = vmatprep.subr.mxu0 0.0
  %1904 = vmatpush2.msra.mxu0 0.0
  %1905 = vmatprep.subr.mxu0 0.0
  %1906 = vmatpush2.msra.mxu0 0.0
  %1907 = vmatprep.subr.mxu0 0.0
  %1908 = vmatpush2.msra.mxu0 0.0
  %1909 = vmatprep.subr.mxu0 0.0
  %1910 = vmatpush2.msra.mxu0 0.0
  %1911 = vmatprep.mubr.f32.mxu0 0.0
  %1912 = vmatmul.mubr.f32.gmra.mxu0 %v77
  %v1913 = vpop.f32.mrf.mxu0
  %v1914 = vadd.f32 0.0, %v1913
  %v1915 = vpop.f32.mrf.mxu0
  %1916 = vdwg.mxu0
  %s1917 = scalar_lea.vmem %s1, 1440
  %v1918 = vld [vmem:[%s1917] sm:$0xff]
  %v1919 = vld [vmem:[%s1917 + $0x8] sm:$0xff]
  %v1920 = vld [vmem:[%s1917 + $0x10] sm:$0xff]
  %v1921 = vld [vmem:[%s1917 + $0x18] sm:$0xff]
  %v1922 = vld [vmem:[%s1917 + $0x20] sm:$0xff]
  %v1923 = vld [vmem:[%s1917 + $0x28] sm:$0xff]
  %v1924 = vld [vmem:[%s1917 + $0x30] sm:$0xff]
  %v1925 = vld [vmem:[%s1917 + $0x38] sm:$0xff]
  %v1926 = vld [vmem:[%s1917 + $0x40] sm:$0xff]
  %v1927 = vld [vmem:[%s1917 + $0x48] sm:$0xff]
  %v1928 = vld [vmem:[%s1917 + $0x50] sm:$0xff]
  %v1929 = vld [vmem:[%s1917 + $0x58] sm:$0xff]
  %v1930 = vld [vmem:[%s1917 + $0x60] sm:$0xff]
  %v1931 = vld [vmem:[%s1917 + $0x68] sm:$0xff]
  %v1932 = vld [vmem:[%s1917 + $0x70] sm:$0xff]
  %v1933 = vld [vmem:[%s1917 + $0x78] sm:$0xff]
  %v1934 = vld [vmem:[%s1917 + $0x80] sm:$0xff]
  %v1935 = vld [vmem:[%s1917 + $0x88] sm:$0xff]
  %v1936 = vld [vmem:[%s1917 + $0x90] sm:$0xff]
  %v1937 = vld [vmem:[%s1917 + $0x98] sm:$0xff]
  %v1938 = vld [vmem:[%s1917 + $0xa0] sm:$0xff]
  %v1939 = vld [vmem:[%s1917 + $0xa8] sm:$0xff]
  %v1940 = vld [vmem:[%s1917 + $0xb0] sm:$0xff]
  %v1941 = vld [vmem:[%s1917 + $0xb8] sm:$0xff]
  %v1942 = vld [vmem:[%s1917 + $0xc0] sm:$0xff]
  %v1943 = vld [vmem:[%s1917 + $0xc8] sm:$0xff]
  %v1944 = vld [vmem:[%s1917 + $0xd0] sm:$0xff]
  %v1945 = vld [vmem:[%s1917 + $0xd8] sm:$0xff]
  %v1946 = vld [vmem:[%s1917 + $0xe0] sm:$0xff]
  %v1947 = vld [vmem:[%s1917 + $0xe8] sm:$0xff]
  %v1948 = vld [vmem:[%s1917 + $0xf0] sm:$0xff]
  %v1949 = vld [vmem:[%s1917 + $0xf8] sm:$0xff]
  %v1950 = vld [vmem:[%s1917 + $0x100] sm:$0xff]
  %v1951 = vld [vmem:[%s1917 + $0x108] sm:$0xff]
  %v1952 = vld [vmem:[%s1917 + $0x110] sm:$0xff]
  %v1953 = vld [vmem:[%s1917 + $0x118] sm:$0xff]
  %v1954 = vld [vmem:[%s1917 + $0x120] sm:$0xff]
  %v1955 = vld [vmem:[%s1917 + $0x128] sm:$0xff]
  %v1956 = vld [vmem:[%s1917 + $0x130] sm:$0xff]
  %v1957 = vld [vmem:[%s1917 + $0x138] sm:$0xff]
  %v1958 = vld [vmem:[%s1917 + $0x140] sm:$0xff]
  %v1959 = vld [vmem:[%s1917 + $0x148] sm:$0xff]
  %v1960 = vld [vmem:[%s1917 + $0x150] sm:$0xff]
  %v1961 = vld [vmem:[%s1917 + $0x158] sm:$0xff]
  %v1962 = vld [vmem:[%s1917 + $0x160] sm:$0xff]
  %v1963 = vld [vmem:[%s1917 + $0x168] sm:$0xff]
  %v1964 = vld [vmem:[%s1917 + $0x170] sm:$0xff]
  %v1965 = vld [vmem:[%s1917 + $0x178] sm:$0xff]
  %v1966 = vld [vmem:[%s1917 + $0x180] sm:$0xff]
  %v1967 = vld [vmem:[%s1917 + $0x188] sm:$0xff]
  %v1968 = vld [vmem:[%s1917 + $0x190] sm:$0xff]
  %v1969 = vld [vmem:[%s1917 + $0x198] sm:$0xff]
  %v1970 = vld [vmem:[%s1917 + $0x1a0] sm:$0xff]
  %v1971 = vld [vmem:[%s1917 + $0x1a8] sm:$0xff]
  %v1972 = vld [vmem:[%s1917 + $0x1b0] sm:$0xff]
  %v1973 = vld [vmem:[%s1917 + $0x1b8] sm:$0xff]
  %v1974 = vld [vmem:[%s1917 + $0x1c0] sm:$0xff]
  %v1975 = vld [vmem:[%s1917 + $0x1c8] sm:$0xff]
  %v1976 = vld [vmem:[%s1917 + $0x1d0] sm:$0xff]
  %v1977 = vld [vmem:[%s1917 + $0x1d8] sm:$0xff]
  %1978 = vmatprep.subr.mxu0 0.0
  %1979 = vmatpush1.msra.mxu0 0.0
  %1980 = vmatprep.subr.mxu0 0.0
  %1981 = vmatpush1.msra.mxu0 0.0
  %1982 = vmatprep.subr.mxu0 0.0
  %1983 = vmatpush1.msra.mxu0 0.0
  %1984 = vmatprep.subr.mxu0 0.0
  %1985 = vmatpush1.msra.mxu0 0.0
  %1986 = vmatprep.subr.mxu0 0.0
  %1987 = vmatpush1.msra.mxu0 0.0
  %1988 = vmatprep.subr.mxu0 0.0
  %1989 = vmatpush1.msra.mxu0 0.0
  %1990 = vmatprep.subr.mxu0 0.0
  %1991 = vmatpush1.msra.mxu0 0.0
  %1992 = vmatprep.subr.mxu0 0.0
  %1993 = vmatpush1.msra.mxu0 0.0
  %1994 = vmatprep.subr.mxu0 0.0
  %1995 = vmatpush1.msra.mxu0 0.0
  %1996 = vmatprep.subr.mxu0 0.0
  %1997 = vmatpush1.msra.mxu0 0.0
  %1998 = vmatprep.subr.mxu0 0.0
  %1999 = vmatpush1.msra.mxu0 0.0
  %2000 = vmatprep.subr.mxu0 0.0
  %2001 = vmatpush1.msra.mxu0 0.0
  %2002 = vmatprep.subr.mxu0 %v1964
  %2003 = vmatpush1.msra.mxu0 %v1963
  %2004 = vmatprep.subr.mxu0 %v1949
  %2005 = vmatpush1.msra.mxu0 %v1948
  %2006 = vmatprep.subr.mxu0 %v1934
  %2007 = vmatpush1.msra.mxu0 %v1933
  %2008 = vmatprep.subr.mxu0 %v1919
  %2009 = vmatpush1.msra.mxu0 %v1918
  %2010 = vmatprep.subr.mxu0 0.0
  %2011 = vmatpush2.msra.mxu0 0.0
  %2012 = vmatprep.subr.mxu0 0.0
  %2013 = vmatpush2.msra.mxu0 0.0
  %2014 = vmatprep.subr.mxu0 0.0
  %2015 = vmatpush2.msra.mxu0 0.0
  %2016 = vmatprep.subr.mxu0 0.0
  %2017 = vmatpush2.msra.mxu0 0.0
  %2018 = vmatprep.subr.mxu0 0.0
  %2019 = vmatpush2.msra.mxu0 0.0
  %2020 = vmatprep.subr.mxu0 0.0
  %2021 = vmatpush2.msra.mxu0 0.0
  %2022 = vmatprep.subr.mxu0 0.0
  %2023 = vmatpush2.msra.mxu0 0.0
  %2024 = vmatprep.subr.mxu0 0.0
  %2025 = vmatpush2.msra.mxu0 0.0
  %2026 = vmatprep.subr.mxu0 0.0
  %2027 = vmatpush2.msra.mxu0 0.0
  %2028 = vmatprep.subr.mxu0 0.0
  %2029 = vmatpush2.msra.mxu0 0.0
  %2030 = vmatprep.subr.mxu0 0.0
  %2031 = vmatpush2.msra.mxu0 0.0
  %2032 = vmatprep.subr.mxu0 0.0
  %2033 = vmatpush2.msra.mxu0 0.0
  %2034 = vmatprep.subr.mxu0 0.0
  %2035 = vmatpush2.msra.mxu0 0.0
  %2036 = vmatprep.subr.mxu0 0.0
  %2037 = vmatpush2.msra.mxu0 0.0
  %2038 = vmatprep.subr.mxu0 0.0
  %2039 = vmatpush2.msra.mxu0 0.0
  %2040 = vmatprep.subr.mxu0 0.0
  %2041 = vmatpush2.msra.mxu0 0.0
  %2042 = vmatprep.mubr.f32.mxu0 0.0
  %2043 = vmatmul.mubr.f32.gmra.mxu0 %v77
  %v2044 = vpop.f32.mrf.mxu0
  %v2045 = vadd.f32 0.0, %v2044
  %v2046 = vpop.f32.mrf.mxu0
  %v2047 = vadd.f32 0.0, %v2046
  %2048 = vdwg.mxu0
  %2049 = vmatprep.subr.mxu0 0.0
  %2050 = vmatpush1.msra.mxu0 0.0
  %2051 = vmatprep.subr.mxu0 0.0
  %2052 = vmatpush1.msra.mxu0 0.0
  %2053 = vmatprep.subr.mxu0 0.0
  %2054 = vmatpush1.msra.mxu0 0.0
  %2055 = vmatprep.subr.mxu0 0.0
  %2056 = vmatpush1.msra.mxu0 0.0
  %2057 = vmatprep.subr.mxu0 0.0
  %2058 = vmatpush1.msra.mxu0 0.0
  %2059 = vmatprep.subr.mxu0 0.0
  %2060 = vmatpush1.msra.mxu0 0.0
  %2061 = vmatprep.subr.mxu0 0.0
  %2062 = vmatpush1.msra.mxu0 0.0
  %2063 = vmatprep.subr.mxu0 0.0
  %2064 = vmatpush1.msra.mxu0 0.0
  %2065 = vmatprep.subr.mxu0 0.0
  %2066 = vmatpush1.msra.mxu0 0.0
  %2067 = vmatprep.subr.mxu0 0.0
  %2068 = vmatpush1.msra.mxu0 0.0
  %2069 = vmatprep.subr.mxu0 0.0
  %2070 = vmatpush1.msra.mxu0 0.0
  %2071 = vmatprep.subr.mxu0 0.0
  %2072 = vmatpush1.msra.mxu0 0.0
  %2073 = vmatprep.subr.mxu0 %v1966
  %2074 = vmatpush1.msra.mxu0 %v1965
  %2075 = vmatprep.subr.mxu0 %v1951
  %2076 = vmatpush1.msra.mxu0 %v1950
  %2077 = vmatprep.subr.mxu0 %v1936
  %2078 = vmatpush1.msra.mxu0 %v1935
  %2079 = vmatprep.subr.mxu0 %v1921
  %2080 = vmatpush1.msra.mxu0 %v1920
  %2081 = vmatprep.subr.mxu0 0.0
  %2082 = vmatpush2.msra.mxu0 0.0
  %2083 = vmatprep.subr.mxu0 0.0
  %2084 = vmatpush2.msra.mxu0 0.0
  %2085 = vmatprep.subr.mxu0 0.0
  %2086 = vmatpush2.msra.mxu0 0.0
  %2087 = vmatprep.subr.mxu0 0.0
  %2088 = vmatpush2.msra.mxu0 0.0
  %2089 = vmatprep.subr.mxu0 0.0
  %2090 = vmatpush2.msra.mxu0 0.0
  %2091 = vmatprep.subr.mxu0 0.0
  %2092 = vmatpush2.msra.mxu0 0.0
  %2093 = vmatprep.subr.mxu0 0.0
  %2094 = vmatpush2.msra.mxu0 0.0
  %2095 = vmatprep.subr.mxu0 0.0
  %2096 = vmatpush2.msra.mxu0 0.0
  %2097 = vmatprep.subr.mxu0 0.0
  %2098 = vmatpush2.msra.mxu0 0.0
  %2099 = vmatprep.subr.mxu0 0.0
  %2100 = vmatpush2.msra.mxu0 0.0
  %2101 = vmatprep.subr.mxu0 0.0
  %2102 = vmatpush2.msra.mxu0 0.0
  %2103 = vmatprep.subr.mxu0 0.0
  %2104 = vmatpush2.msra.mxu0 0.0
  %2105 = vmatprep.subr.mxu0 0.0
  %2106 = vmatpush2.msra.mxu0 0.0
  %2107 = vmatprep.subr.mxu0 0.0
  %2108 = vmatpush2.msra.mxu0 0.0
  %2109 = vmatprep.subr.mxu0 0.0
  %2110 = vmatpush2.msra.mxu0 0.0
  %2111 = vmatprep.subr.mxu0 0.0
  %2112 = vmatpush2.msra.mxu0 0.0
  %2113 = vmatprep.mubr.f32.mxu0 0.0
  %2114 = vmatmul.mubr.f32.gmra.mxu0 %v77
  %v2115 = vpop.f32.mrf.mxu0
  %v2116 = vadd.f32 0.0, %v2115
  %v2117 = vpop.f32.mrf.mxu0
  %v2118 = vadd.f32 0.0, %v2117
  %2119 = vdwg.mxu0
  %2120 = vmatprep.subr.mxu0 0.0
  %2121 = vmatpush1.msra.mxu0 0.0
  %2122 = vmatprep.subr.mxu0 0.0
  %2123 = vmatpush1.msra.mxu0 0.0
  %2124 = vmatprep.subr.mxu0 0.0
  %2125 = vmatpush1.msra.mxu0 0.0
  %2126 = vmatprep.subr.mxu0 0.0
  %2127 = vmatpush1.msra.mxu0 0.0
  %2128 = vmatprep.subr.mxu0 0.0
  %2129 = vmatpush1.msra.mxu0 0.0
  %2130 = vmatprep.subr.mxu0 0.0
  %2131 = vmatpush1.msra.mxu0 0.0
  %2132 = vmatprep.subr.mxu0 0.0
  %2133 = vmatpush1.msra.mxu0 0.0
  %2134 = vmatprep.subr.mxu0 0.0
  %2135 = vmatpush1.msra.mxu0 0.0
  %2136 = vmatprep.subr.mxu0 0.0
  %2137 = vmatpush1.msra.mxu0 0.0
  %2138 = vmatprep.subr.mxu0 0.0
  %2139 = vmatpush1.msra.mxu0 0.0
  %2140 = vmatprep.subr.mxu0 0.0
  %2141 = vmatpush1.msra.mxu0 0.0
  %2142 = vmatprep.subr.mxu0 0.0
  %2143 = vmatpush1.msra.mxu0 0.0
  %2144 = vmatprep.subr.mxu0 %v1968
  %2145 = vmatpush1.msra.mxu0 %v1967
  %2146 = vmatprep.subr.mxu0 %v1953
  %2147 = vmatpush1.msra.mxu0 %v1952
  %2148 = vmatprep.subr.mxu0 %v1938
  %2149 = vmatpush1.msra.mxu0 %v1937
  %2150 = vmatprep.subr.mxu0 %v1923
  %2151 = vmatpush1.msra.mxu0 %v1922
  %2152 = vmatprep.subr.mxu0 0.0
  %2153 = vmatpush2.msra.mxu0 0.0
  %2154 = vmatprep.subr.mxu0 0.0
  %2155 = vmatpush2.msra.mxu0 0.0
  %2156 = vmatprep.subr.mxu0 0.0
  %2157 = vmatpush2.msra.mxu0 0.0
  %2158 = vmatprep.subr.mxu0 0.0
  %2159 = vmatpush2.msra.mxu0 0.0
  %2160 = vmatprep.subr.mxu0 0.0
  %2161 = vmatpush2.msra.mxu0 0.0
  %2162 = vmatprep.subr.mxu0 0.0
  %2163 = vmatpush2.msra.mxu0 0.0
  %2164 = vmatprep.subr.mxu0 0.0
  %2165 = vmatpush2.msra.mxu0 0.0
  %2166 = vmatprep.subr.mxu0 0.0
  %2167 = vmatpush2.msra.mxu0 0.0
  %2168 = vmatprep.subr.mxu0 0.0
  %2169 = vmatpush2.msra.mxu0 0.0
  %2170 = vmatprep.subr.mxu0 0.0
  %2171 = vmatpush2.msra.mxu0 0.0
  %2172 = vmatprep.subr.mxu0 0.0
  %2173 = vmatpush2.msra.mxu0 0.0
  %2174 = vmatprep.subr.mxu0 0.0
  %2175 = vmatpush2.msra.mxu0 0.0
  %2176 = vmatprep.subr.mxu0 0.0
  %2177 = vmatpush2.msra.mxu0 0.0
  %2178 = vmatprep.subr.mxu0 0.0
  %2179 = vmatpush2.msra.mxu0 0.0
  %2180 = vmatprep.subr.mxu0 0.0
  %2181 = vmatpush2.msra.mxu0 0.0
  %2182 = vmatprep.subr.mxu0 0.0
  %2183 = vmatpush2.msra.mxu0 0.0
  %2184 = vmatprep.mubr.f32.mxu0 0.0
  %2185 = vmatmul.mubr.f32.gmra.mxu0 %v77
  %v2186 = vpop.f32.mrf.mxu0
  %v2187 = vadd.f32 0.0, %v2186
  %v2188 = vpop.f32.mrf.mxu0
  %v2189 = vadd.f32 0.0, %v2188
  %2190 = vdwg.mxu0
  %2191 = vmatprep.subr.mxu0 0.0
  %2192 = vmatpush1.msra.mxu0 0.0
  %2193 = vmatprep.subr.mxu0 0.0
  %2194 = vmatpush1.msra.mxu0 0.0
  %2195 = vmatprep.subr.mxu0 0.0
  %2196 = vmatpush1.msra.mxu0 0.0
  %2197 = vmatprep.subr.mxu0 0.0
  %2198 = vmatpush1.msra.mxu0 0.0
  %2199 = vmatprep.subr.mxu0 0.0
  %2200 = vmatpush1.msra.mxu0 0.0
  %2201 = vmatprep.subr.mxu0 0.0
  %2202 = vmatpush1.msra.mxu0 0.0
  %2203 = vmatprep.subr.mxu0 0.0
  %2204 = vmatpush1.msra.mxu0 0.0
  %2205 = vmatprep.subr.mxu0 0.0
  %2206 = vmatpush1.msra.mxu0 0.0
  %2207 = vmatprep.subr.mxu0 0.0
  %2208 = vmatpush1.msra.mxu0 0.0
  %2209 = vmatprep.subr.mxu0 0.0
  %2210 = vmatpush1.msra.mxu0 0.0
  %2211 = vmatprep.subr.mxu0 0.0
  %2212 = vmatpush1.msra.mxu0 0.0
  %2213 = vmatprep.subr.mxu0 0.0
  %2214 = vmatpush1.msra.mxu0 0.0
  %2215 = vmatprep.subr.mxu0 %v1970
  %2216 = vmatpush1.msra.mxu0 %v1969
  %2217 = vmatprep.subr.mxu0 %v1955
  %2218 = vmatpush1.msra.mxu0 %v1954
  %2219 = vmatprep.subr.mxu0 %v1940
  %2220 = vmatpush1.msra.mxu0 %v1939
  %2221 = vmatprep.subr.mxu0 %v1925
  %2222 = vmatpush1.msra.mxu0 %v1924
  %2223 = vmatprep.subr.mxu0 0.0
  %2224 = vmatpush2.msra.mxu0 0.0
  %2225 = vmatprep.subr.mxu0 0.0
  %2226 = vmatpush2.msra.mxu0 0.0
  %2227 = vmatprep.subr.mxu0 0.0
  %2228 = vmatpush2.msra.mxu0 0.0
  %2229 = vmatprep.subr.mxu0 0.0
  %2230 = vmatpush2.msra.mxu0 0.0
  %2231 = vmatprep.subr.mxu0 0.0
  %2232 = vmatpush2.msra.mxu0 0.0
  %2233 = vmatprep.subr.mxu0 0.0
  %2234 = vmatpush2.msra.mxu0 0.0
  %2235 = vmatprep.subr.mxu0 0.0
  %2236 = vmatpush2.msra.mxu0 0.0
  %2237 = vmatprep.subr.mxu0 0.0
  %2238 = vmatpush2.msra.mxu0 0.0
  %2239 = vmatprep.subr.mxu0 0.0
  %2240 = vmatpush2.msra.mxu0 0.0
  %2241 = vmatprep.subr.mxu0 0.0
  %2242 = vmatpush2.msra.mxu0 0.0
  %2243 = vmatprep.subr.mxu0 0.0
  %2244 = vmatpush2.msra.mxu0 0.0
  %2245 = vmatprep.subr.mxu0 0.0
  %2246 = vmatpush2.msra.mxu0 0.0
  %2247 = vmatprep.subr.mxu0 0.0
  %2248 = vmatpush2.msra.mxu0 0.0
  %2249 = vmatprep.subr.mxu0 0.0
  %2250 = vmatpush2.msra.mxu0 0.0
  %2251 = vmatprep.subr.mxu0 0.0
  %2252 = vmatpush2.msra.mxu0 0.0
  %2253 = vmatprep.subr.mxu0 0.0
  %2254 = vmatpush2.msra.mxu0 0.0
  %2255 = vmatprep.mubr.f32.mxu0 0.0
  %2256 = vmatmul.mubr.f32.gmra.mxu0 %v77
  %v2257 = vpop.f32.mrf.mxu0
  %v2258 = vadd.f32 0.0, %v2257
  %v2259 = vpop.f32.mrf.mxu0
  %v2260 = vadd.f32 0.0, %v2259
  %2261 = vdwg.mxu0
  %2262 = vmatprep.subr.mxu0 0.0
  %2263 = vmatpush1.msra.mxu0 0.0
  %2264 = vmatprep.subr.mxu0 0.0
  %2265 = vmatpush1.msra.mxu0 0.0
  %2266 = vmatprep.subr.mxu0 0.0
  %2267 = vmatpush1.msra.mxu0 0.0
  %2268 = vmatprep.subr.mxu0 0.0
  %2269 = vmatpush1.msra.mxu0 0.0
  %2270 = vmatprep.subr.mxu0 0.0
  %2271 = vmatpush1.msra.mxu0 0.0
  %2272 = vmatprep.subr.mxu0 0.0
  %2273 = vmatpush1.msra.mxu0 0.0
  %2274 = vmatprep.subr.mxu0 0.0
  %2275 = vmatpush1.msra.mxu0 0.0
  %2276 = vmatprep.subr.mxu0 0.0
  %2277 = vmatpush1.msra.mxu0 0.0
  %2278 = vmatprep.subr.mxu0 0.0
  %2279 = vmatpush1.msra.mxu0 0.0
  %2280 = vmatprep.subr.mxu0 0.0
  %2281 = vmatpush1.msra.mxu0 0.0
  %2282 = vmatprep.subr.mxu0 0.0
  %2283 = vmatpush1.msra.mxu0 0.0
  %2284 = vmatprep.subr.mxu0 0.0
  %2285 = vmatpush1.msra.mxu0 0.0
  %2286 = vmatprep.subr.mxu0 %v1972
  %2287 = vmatpush1.msra.mxu0 %v1971
  %2288 = vmatprep.subr.mxu0 %v1957
  %2289 = vmatpush1.msra.mxu0 %v1956
  %2290 = vmatprep.subr.mxu0 %v1942
  %2291 = vmatpush1.msra.mxu0 %v1941
  %2292 = vmatprep.subr.mxu0 %v1927
  %2293 = vmatpush1.msra.mxu0 %v1926
  %2294 = vmatprep.subr.mxu0 0.0
  %2295 = vmatpush2.msra.mxu0 0.0
  %2296 = vmatprep.subr.mxu0 0.0
  %2297 = vmatpush2.msra.mxu0 0.0
  %2298 = vmatprep.subr.mxu0 0.0
  %2299 = vmatpush2.msra.mxu0 0.0
  %2300 = vmatprep.subr.mxu0 0.0
  %2301 = vmatpush2.msra.mxu0 0.0
  %2302 = vmatprep.subr.mxu0 0.0
  %2303 = vmatpush2.msra.mxu0 0.0
  %2304 = vmatprep.subr.mxu0 0.0
  %2305 = vmatpush2.msra.mxu0 0.0
  %2306 = vmatprep.subr.mxu0 0.0
  %2307 = vmatpush2.msra.mxu0 0.0
  %2308 = vmatprep.subr.mxu0 0.0
  %2309 = vmatpush2.msra.mxu0 0.0
  %2310 = vmatprep.subr.mxu0 0.0
  %2311 = vmatpush2.msra.mxu0 0.0
  %2312 = vmatprep.subr.mxu0 0.0
  %2313 = vmatpush2.msra.mxu0 0.0
  %2314 = vmatprep.subr.mxu0 0.0
  %2315 = vmatpush2.msra.mxu0 0.0
  %2316 = vmatprep.subr.mxu0 0.0
  %2317 = vmatpush2.msra.mxu0 0.0
  %2318 = vmatprep.subr.mxu0 0.0
  %2319 = vmatpush2.msra.mxu0 0.0
  %2320 = vmatprep.subr.mxu0 0.0
  %2321 = vmatpush2.msra.mxu0 0.0
  %2322 = vmatprep.subr.mxu0 0.0
  %2323 = vmatpush2.msra.mxu0 0.0
  %2324 = vmatprep.subr.mxu0 0.0
  %2325 = vmatpush2.msra.mxu0 0.0
  %2326 = vmatprep.mubr.f32.mxu0 0.0
  %2327 = vmatmul.mubr.f32.gmra.mxu0 %v77
  %v2328 = vpop.f32.mrf.mxu0
  %v2329 = vadd.f32 0.0, %v2328
  %v2330 = vpop.f32.mrf.mxu0
  %v2331 = vadd.f32 0.0, %v2330
  %2332 = vdwg.mxu0
  %2333 = vmatprep.subr.mxu0 0.0
  %2334 = vmatpush1.msra.mxu0 0.0
  %2335 = vmatprep.subr.mxu0 0.0
  %2336 = vmatpush1.msra.mxu0 0.0
  %2337 = vmatprep.subr.mxu0 0.0
  %2338 = vmatpush1.msra.mxu0 0.0
  %2339 = vmatprep.subr.mxu0 0.0
  %2340 = vmatpush1.msra.mxu0 0.0
  %2341 = vmatprep.subr.mxu0 0.0
  %2342 = vmatpush1.msra.mxu0 0.0
  %2343 = vmatprep.subr.mxu0 0.0
  %2344 = vmatpush1.msra.mxu0 0.0
  %2345 = vmatprep.subr.mxu0 0.0
  %2346 = vmatpush1.msra.mxu0 0.0
  %2347 = vmatprep.subr.mxu0 0.0
  %2348 = vmatpush1.msra.mxu0 0.0
  %2349 = vmatprep.subr.mxu0 0.0
  %2350 = vmatpush1.msra.mxu0 0.0
  %2351 = vmatprep.subr.mxu0 0.0
  %2352 = vmatpush1.msra.mxu0 0.0
  %2353 = vmatprep.subr.mxu0 0.0
  %2354 = vmatpush1.msra.mxu0 0.0
  %2355 = vmatprep.subr.mxu0 0.0
  %2356 = vmatpush1.msra.mxu0 0.0
  %2357 = vmatprep.subr.mxu0 %v1974
  %2358 = vmatpush1.msra.mxu0 %v1973
  %2359 = vmatprep.subr.mxu0 %v1959
  %2360 = vmatpush1.msra.mxu0 %v1958
  %2361 = vmatprep.subr.mxu0 %v1944
  %2362 = vmatpush1.msra.mxu0 %v1943
  %2363 = vmatprep.subr.mxu0 %v1929
  %2364 = vmatpush1.msra.mxu0 %v1928
  %2365 = vmatprep.subr.mxu0 0.0
  %2366 = vmatpush2.msra.mxu0 0.0
  %2367 = vmatprep.subr.mxu0 0.0
  %2368 = vmatpush2.msra.mxu0 0.0
  %2369 = vmatprep.subr.mxu0 0.0
  %2370 = vmatpush2.msra.mxu0 0.0
  %2371 = vmatprep.subr.mxu0 0.0
  %2372 = vmatpush2.msra.mxu0 0.0
  %2373 = vmatprep.subr.mxu0 0.0
  %2374 = vmatpush2.msra.mxu0 0.0
  %2375 = vmatprep.subr.mxu0 0.0
  %2376 = vmatpush2.msra.mxu0 0.0
  %2377 = vmatprep.subr.mxu0 0.0
  %2378 = vmatpush2.msra.mxu0 0.0
  %2379 = vmatprep.subr.mxu0 0.0
  %2380 = vmatpush2.msra.mxu0 0.0
  %2381 = vmatprep.subr.mxu0 0.0
  %2382 = vmatpush2.msra.mxu0 0.0
  %2383 = vmatprep.subr.mxu0 0.0
  %2384 = vmatpush2.msra.mxu0 0.0
  %2385 = vmatprep.subr.mxu0 0.0
  %2386 = vmatpush2.msra.mxu0 0.0
  %2387 = vmatprep.subr.mxu0 0.0
  %2388 = vmatpush2.msra.mxu0 0.0
  %2389 = vmatprep.subr.mxu0 0.0
  %2390 = vmatpush2.msra.mxu0 0.0
  %2391 = vmatprep.subr.mxu0 0.0
  %2392 = vmatpush2.msra.mxu0 0.0
  %2393 = vmatprep.subr.mxu0 0.0
  %2394 = vmatpush2.msra.mxu0 0.0
  %2395 = vmatprep.subr.mxu0 0.0
  %2396 = vmatpush2.msra.mxu0 0.0
  %2397 = vmatprep.mubr.f32.mxu0 0.0
  %2398 = vmatmul.mubr.f32.gmra.mxu0 %v77
  %v2399 = vpop.f32.mrf.mxu0
  %v2400 = vadd.f32 0.0, %v2399
  %v2401 = vpop.f32.mrf.mxu0
  %v2402 = vadd.f32 0.0, %v2401
  %2403 = vdwg.mxu0
  %2404 = vmatprep.subr.mxu0 0.0
  %2405 = vmatpush1.msra.mxu0 0.0
  %2406 = vmatprep.subr.mxu0 0.0
  %2407 = vmatpush1.msra.mxu0 0.0
  %2408 = vmatprep.subr.mxu0 0.0
  %2409 = vmatpush1.msra.mxu0 0.0
  %2410 = vmatprep.subr.mxu0 0.0
  %2411 = vmatpush1.msra.mxu0 0.0
  %2412 = vmatprep.subr.mxu0 0.0
  %2413 = vmatpush1.msra.mxu0 0.0
  %2414 = vmatprep.subr.mxu0 0.0
  %2415 = vmatpush1.msra.mxu0 0.0
  %2416 = vmatprep.subr.mxu0 0.0
  %2417 = vmatpush1.msra.mxu0 0.0
  %2418 = vmatprep.subr.mxu0 0.0
  %2419 = vmatpush1.msra.mxu0 0.0
  %2420 = vmatprep.subr.mxu0 0.0
  %2421 = vmatpush1.msra.mxu0 0.0
  %2422 = vmatprep.subr.mxu0 0.0
  %2423 = vmatpush1.msra.mxu0 0.0
  %2424 = vmatprep.subr.mxu0 0.0
  %2425 = vmatpush1.msra.mxu0 0.0
  %2426 = vmatprep.subr.mxu0 0.0
  %2427 = vmatpush1.msra.mxu0 0.0
  %2428 = vmatprep.subr.mxu0 %v1976
  %2429 = vmatpush1.msra.mxu0 %v1975
  %2430 = vmatprep.subr.mxu0 %v1961
  %2431 = vmatpush1.msra.mxu0 %v1960
  %2432 = vmatprep.subr.mxu0 %v1946
  %2433 = vmatpush1.msra.mxu0 %v1945
  %2434 = vmatprep.subr.mxu0 %v1931
  %2435 = vmatpush1.msra.mxu0 %v1930
  %2436 = vmatprep.subr.mxu0 0.0
  %2437 = vmatpush2.msra.mxu0 0.0
  %2438 = vmatprep.subr.mxu0 0.0
  %2439 = vmatpush2.msra.mxu0 0.0
  %2440 = vmatprep.subr.mxu0 0.0
  %2441 = vmatpush2.msra.mxu0 0.0
  %2442 = vmatprep.subr.mxu0 0.0
  %2443 = vmatpush2.msra.mxu0 0.0
  %2444 = vmatprep.subr.mxu0 0.0
  %2445 = vmatpush2.msra.mxu0 0.0
  %2446 = vmatprep.subr.mxu0 0.0
  %2447 = vmatpush2.msra.mxu0 0.0
  %2448 = vmatprep.subr.mxu0 0.0
  %2449 = vmatpush2.msra.mxu0 0.0
  %2450 = vmatprep.subr.mxu0 0.0
  %2451 = vmatpush2.msra.mxu0 0.0
  %2452 = vmatprep.subr.mxu0 0.0
  %2453 = vmatpush2.msra.mxu0 0.0
  %2454 = vmatprep.subr.mxu0 0.0
  %2455 = vmatpush2.msra.mxu0 0.0
  %2456 = vmatprep.subr.mxu0 0.0
  %2457 = vmatpush2.msra.mxu0 0.0
  %2458 = vmatprep.subr.mxu0 0.0
  %2459 = vmatpush2.msra.mxu0 0.0
  %2460 = vmatprep.subr.mxu0 0.0
  %2461 = vmatpush2.msra.mxu0 0.0
  %2462 = vmatprep.subr.mxu0 0.0
  %2463 = vmatpush2.msra.mxu0 0.0
  %2464 = vmatprep.subr.mxu0 0.0
  %2465 = vmatpush2.msra.mxu0 0.0
  %2466 = vmatprep.subr.mxu0 0.0
  %2467 = vmatpush2.msra.mxu0 0.0
  %2468 = vmatprep.mubr.f32.mxu0 0.0
  %2469 = vmatmul.mubr.f32.gmra.mxu0 %v77
  %v2470 = vpop.f32.mrf.mxu0
  %v2471 = vadd.f32 0.0, %v2470
  %v2472 = vpop.f32.mrf.mxu0
  %v2473 = vadd.f32 0.0, %v2472
  %2474 = vdwg.mxu0
  %2475 = vmatprep.subr.mxu0 0.0
  %2476 = vmatpush1.msra.mxu0 0.0
  %2477 = vmatprep.subr.mxu0 0.0
  %2478 = vmatpush1.msra.mxu0 0.0
  %2479 = vmatprep.subr.mxu0 0.0
  %2480 = vmatpush1.msra.mxu0 0.0
  %2481 = vmatprep.subr.mxu0 0.0
  %2482 = vmatpush1.msra.mxu0 0.0
  %2483 = vmatprep.subr.mxu0 0.0
  %2484 = vmatpush1.msra.mxu0 0.0
  %2485 = vmatprep.subr.mxu0 0.0
  %2486 = vmatpush1.msra.mxu0 0.0
  %2487 = vmatprep.subr.mxu0 0.0
  %2488 = vmatpush1.msra.mxu0 0.0
  %2489 = vmatprep.subr.mxu0 0.0
  %2490 = vmatpush1.msra.mxu0 0.0
  %2491 = vmatprep.subr.mxu0 0.0
  %2492 = vmatpush1.msra.mxu0 0.0
  %2493 = vmatprep.subr.mxu0 0.0
  %2494 = vmatpush1.msra.mxu0 0.0
  %2495 = vmatprep.subr.mxu0 0.0
  %2496 = vmatpush1.msra.mxu0 0.0
  %2497 = vmatprep.subr.mxu0 0.0
  %2498 = vmatpush1.msra.mxu0 0.0
  %2499 = vmatprep.subr.mxu0 0.0
  %2500 = vmatpush1.msra.mxu0 %v1977
  %2501 = vmatprep.subr.mxu0 0.0
  %2502 = vmatpush1.msra.mxu0 %v1962
  %2503 = vmatprep.subr.mxu0 0.0
  %2504 = vmatpush1.msra.mxu0 %v1947
  %2505 = vmatprep.subr.mxu0 0.0
  %2506 = vmatpush1.msra.mxu0 %v1932
  %2507 = vmatprep.subr.mxu0 0.0
  %2508 = vmatpush2.msra.mxu0 0.0
  %2509 = vmatprep.subr.mxu0 0.0
  %2510 = vmatpush2.msra.mxu0 0.0
  %2511 = vmatprep.subr.mxu0 0.0
  %2512 = vmatpush2.msra.mxu0 0.0
  %2513 = vmatprep.subr.mxu0 0.0
  %2514 = vmatpush2.msra.mxu0 0.0
  %2515 = vmatprep.subr.mxu0 0.0
  %2516 = vmatpush2.msra.mxu0 0.0
  %2517 = vmatprep.subr.mxu0 0.0
  %2518 = vmatpush2.msra.mxu0 0.0
  %2519 = vmatprep.subr.mxu0 0.0
  %2520 = vmatpush2.msra.mxu0 0.0
  %2521 = vmatprep.subr.mxu0 0.0
  %2522 = vmatpush2.msra.mxu0 0.0
  %2523 = vmatprep.subr.mxu0 0.0
  %2524 = vmatpush2.msra.mxu0 0.0
  %2525 = vmatprep.subr.mxu0 0.0
  %2526 = vmatpush2.msra.mxu0 0.0
  %2527 = vmatprep.subr.mxu0 0.0
  %2528 = vmatpush2.msra.mxu0 0.0
  %2529 = vmatprep.subr.mxu0 0.0
  %2530 = vmatpush2.msra.mxu0 0.0
  %2531 = vmatprep.subr.mxu0 0.0
  %2532 = vmatpush2.msra.mxu0 0.0
  %2533 = vmatprep.subr.mxu0 0.0
  %2534 = vmatpush2.msra.mxu0 0.0
  %2535 = vmatprep.subr.mxu0 0.0
  %2536 = vmatpush2.msra.mxu0 0.0
  %2537 = vmatprep.subr.mxu0 0.0
  %2538 = vmatpush2.msra.mxu0 0.0
  %2539 = vmatprep.mubr.f32.mxu0 0.0
  %2540 = vmatmul.mubr.f32.gmra.mxu0 %v77
  %v2541 = vpop.f32.mrf.mxu0
  %v2542 = vadd.f32 0.0, %v2541
  %v2543 = vpop.f32.mrf.mxu0
  %2544 = vdwg.mxu0
  %v2545 = vmax.f32 %v1417, %v2045
  %v2546 = vmax.f32 %v1419, %v2047
  %v2547 = vmax.f32 %v1488, %v2116
  %v2548 = vmax.f32 %v1490, %v2118
  %v2549 = vmax.f32 %v1559, %v2187
  %v2550 = vmax.f32 %v1561, %v2189
  %v2551 = vmax.f32 %v1630, %v2258
  %v2552 = vmax.f32 %v1632, %v2260
  %v2553 = vmax.f32 %v1701, %v2329
  %v2554 = vmax.f32 %v1703, %v2331
  %v2555 = vmax.f32 %v1772, %v2400
  %v2556 = vmax.f32 %v1774, %v2402
  %v2557 = vmax.f32 %v1843, %v2471
  %v2558 = vmax.f32 %v1845, %v2473
  %v2559 = vmax.f32 %v1914, %v2542
  %v2560 = vmax.f32 %v1274, %v2545
  %v2561 = vmax.f32 %v1275, %v2546
  %v2562 = vmax.f32 %v1276, %v2547
  %v2563 = vmax.f32 %v1277, %v2548
  %v2564 = vmax.f32 %v1278, %v2549
  %v2565 = vmax.f32 %v1279, %v2550
  %v2566 = vmax.f32 %v1280, %v2551
  %v2567 = vmax.f32 %v1281, %v2552
  %v2568 = vmax.f32 %v1282, %v2553
  %v2569 = vmax.f32 %v1283, %v2554
  %v2570 = vmax.f32 %v1284, %v2555
  %v2571 = vmax.f32 %v1285, %v2556
  %v2572 = vmax.f32 %v1286, %v2557
  %v2573 = vmax.f32 %v1287, %v2558
  %v2574 = vmax.f32 %v1288, %v2559
  %v2575 = vld [vmem:[%s2] sm:$0xff]
  %2577 = vset.pattern.permute.xlu0 0
  %2578 = vperm.xlu0 %2577, %v2575
  %v2579 = vpop.permute.xlu0 %2578
  %v2581 = vadd.f32 %v2560, %v2579
  %v2582 = vadd.f32 %v2561, %v2579
  %v2583 = vadd.f32 %v2562, %v2579
  %v2584 = vadd.f32 %v2563, %v2579
  %v2585 = vadd.f32 %v2564, %v2579
  %v2586 = vadd.f32 %v2565, %v2579
  %v2587 = vadd.f32 %v2566, %v2579
  %v2588 = vadd.f32 %v2567, %v2579
  %v2589 = vadd.f32 %v2568, %v2579
  %v2590 = vadd.f32 %v2569, %v2579
  %v2591 = vadd.f32 %v2570, %v2579
  %v2592 = vadd.f32 %v2571, %v2579
  %v2593 = vadd.f32 %v2572, %v2579
  %v2594 = vadd.f32 %v2573, %v2579
  %v2595 = vadd.f32 %v2574, %v2579
  %vm2596 = vcmp.gt.f32.partialorder %v2581, 0.0
  %vm2597 = vcmp.gt.f32.partialorder %v2582, 0.0
  %vm2598 = vcmp.gt.f32.partialorder %v2583, 0.0
  %vm2599 = vcmp.gt.f32.partialorder %v2584, 0.0
  %vm2600 = vcmp.gt.f32.partialorder %v2585, 0.0
  %vm2601 = vcmp.gt.f32.partialorder %v2586, 0.0
  %vm2602 = vcmp.gt.f32.partialorder %v2587, 0.0
  %vm2603 = vcmp.gt.f32.partialorder %v2588, 0.0
  %vm2604 = vcmp.gt.f32.partialorder %v2589, 0.0
  %vm2605 = vcmp.gt.f32.partialorder %v2590, 0.0
  %vm2606 = vcmp.gt.f32.partialorder %v2591, 0.0
  %vm2607 = vcmp.gt.f32.partialorder %v2592, 0.0
  %vm2608 = vcmp.gt.f32.partialorder %v2593, 0.0
  %vm2609 = vcmp.gt.f32.partialorder %v2594, 0.0
  %vm2610 = vcmp.gt.f32.partialorder %v2595, 0.0
  %v2611 = vmul.f32 %v2581, 0.01
  %v2612 = vmul.f32 %v2582, 0.01
  %v2613 = vmul.f32 %v2583, 0.01
  %v2614 = vmul.f32 %v2584, 0.01
  %v2615 = vmul.f32 %v2585, 0.01
  %v2616 = vmul.f32 %v2586, 0.01
  %v2617 = vmul.f32 %v2587, 0.01
  %v2618 = vmul.f32 %v2588, 0.01
  %v2619 = vmul.f32 %v2589, 0.01
  %v2620 = vmul.f32 %v2590, 0.01
  %v2621 = vmul.f32 %v2591, 0.01
  %v2622 = vmul.f32 %v2592, 0.01
  %v2623 = vmul.f32 %v2593, 0.01
  %v2624 = vmul.f32 %v2594, 0.01
  %v2625 = vmul.f32 %v2595, 0.01
  %v2626 = vsel %vm2596, %v2581, %v2611
  %v2627 = vsel %vm2597, %v2582, %v2612
  %v2628 = vsel %vm2598, %v2583, %v2613
  %v2629 = vsel %vm2599, %v2584, %v2614
  %v2630 = vsel %vm2600, %v2585, %v2615
  %v2631 = vsel %vm2601, %v2586, %v2616
  %v2632 = vsel %vm2602, %v2587, %v2617
  %v2633 = vsel %vm2603, %v2588, %v2618
  %v2634 = vsel %vm2604, %v2589, %v2619
  %v2635 = vsel %vm2605, %v2590, %v2620
  %v2636 = vsel %vm2606, %v2591, %v2621
  %v2637 = vsel %vm2607, %v2592, %v2622
  %v2638 = vsel %vm2608, %v2593, %v2623
  %v2639 = vsel %vm2609, %v2594, %v2624
  %v2640 = vsel %vm2610, %v2595, %v2625
  %2641 = vst [vmem:[%s3] sm:$0xff] %v2626
  %2642 = vst [vmem:[%s3 + $0x8] sm:$0xff] %v2627
  %2643 = vst [vmem:[%s3 + $0x10] sm:$0xff] %v2628
  %2644 = vst [vmem:[%s3 + $0x18] sm:$0xff] %v2629
  %2645 = vst [vmem:[%s3 + $0x20] sm:$0xff] %v2630
  %2646 = vst [vmem:[%s3 + $0x28] sm:$0xff] %v2631
  %2647 = vst [vmem:[%s3 + $0x30] sm:$0xff] %v2632
  %2648 = vst [vmem:[%s3 + $0x38] sm:$0xff] %v2633
  %2649 = vst [vmem:[%s3 + $0x40] sm:$0xff] %v2634
  %2650 = vst [vmem:[%s3 + $0x48] sm:$0xff] %v2635
  %2651 = vst [vmem:[%s3 + $0x50] sm:$0xff] %v2636
  %2652 = vst [vmem:[%s3 + $0x58] sm:$0xff] %v2637
  %2653 = vst [vmem:[%s3 + $0x60] sm:$0xff] %v2638
  %2654 = vst [vmem:[%s3 + $0x68] sm:$0xff] %v2639
  %vm2655 = vcmask 64512
  %2656 = vst.msk [vmem:[%s3 + $0x70] sm:$0xff] %vm2655, %v2640
  // Predicated region
  $region14: #{net_forward.3} parent=0 // pred_check
    _
  $region15: #{net_forward.3} parent=0 // pred_check_branch
    %2658 = sbr.rel (0) target = $region17
  $region16: #{net_forward.3} parent=0 // pred_region
    _
  $region17: #{net_forward.3} parent=0 // pred_fallthru
    _
  // Predicated region
  $region18: #{net_forward.3} parent=0 // pred_check
    _
  $region19: #{net_forward.3} parent=0 // pred_check_branch
    %2660 = sbr.rel (0) target = $region21
  $region20: #{net_forward.3} parent=0 // pred_region
    _
  $region21: #{net_forward.3} parent=0 // pred_fallthru
    _

// kernel: net_forward.4
$region0: #{net_forward.4}
  #allocation0 [shape = 'u32[]', space=smem, size = 0x4, offset = 0x4, fixed_abs, tag = 'smem constant byte address 0x4 - core index']
  #allocation1 [shape = 'u32[144,128]{1,0:T(1,128)}', space=vmem, size = 0x12000, scoped, tag = 'internal scratch']
  %s0 = inlined_call_operand.vmem [shape: f32[16,152], index: 0, kind: input, shape index: {}]
  %s1 = inlined_call_operand.vmem [shape: f32[4,152,338], index: 1, kind: input, shape index: {}]
  %s2 = inlined_call_operand.vmem [shape: f32[16,1], index: 2, kind: input, shape index: {}]
  %s3 = inlined_call_operand.vmem [shape: f32[16,338], index: 3, kind: output, shape index: {}]
  %s4 = sld [smem:[#allocation0]]
  $region22: #{net_forward.4} parent=0
    _
  %s6 = ssub.s32 1, %s4
  %s7 = scalar_select 0, %s6, %s4
  // Predicated region
  $region2: #{net_forward.4} parent=0 // pred_check
    _
  $region3: #{net_forward.4} parent=0 // pred_check_branch
    %9 = sbr.rel (0) target = $region5
  $region4: #{net_forward.4} parent=0 // pred_region
    _
  $region5: #{net_forward.4} parent=0 // pred_fallthru
    _
  // Predicated region
  $region6: #{net_forward.4} parent=0 // pred_check
    _
  $region7: #{net_forward.4} parent=0 // pred_check_branch
    %11 = sbr.rel (0) target = $region9
  $region8: #{net_forward.4} parent=0 // pred_region
    _
  $region9: #{net_forward.4} parent=0 // pred_fallthru
    _
  // Predicated region
  $region10: #{net_forward.4} parent=0 // pred_check
    _
  $region11: #{net_forward.4} parent=0 // pred_check_branch
    %13 = sbr.rel (0) target = $region13
  $region12: #{net_forward.4} parent=0 // pred_region
    _
  $region13: #{net_forward.4} parent=0 // pred_fallthru
    _
  %v14 = vld [vmem:[%s0] sm:$0xff]
  %v15 = vld [vmem:[%s0 + $0x8] sm:$0xff]
  %v16 = vld [vmem:[%s0 + $0x10] sm:$0xff]
  %v17 = vld [vmem:[%s0 + $0x18] sm:$0xff]
  %v18 = vld [vmem:[%s1] sm:$0xff]
  %v19 = vld [vmem:[%s1 + $0x8] sm:$0xff]
  %v20 = vld [vmem:[%s1 + $0x10] sm:$0xff]
  %v21 = vld [vmem:[%s1 + $0x18] sm:$0xff]
  %v22 = vld [vmem:[%s1 + $0x20] sm:$0xff]
  %v23 = vld [vmem:[%s1 + $0x28] sm:$0xff]
  %v24 = vld [vmem:[%s1 + $0x30] sm:$0xff]
  %v25 = vld [vmem:[%s1 + $0x38] sm:$0xff]
  %v26 = vld [vmem:[%s1 + $0x40] sm:$0xff]
  %v27 = vld [vmem:[%s1 + $0x48] sm:$0xff]
  %v28 = vld [vmem:[%s1 + $0x50] sm:$0xff]
  %v29 = vld [vmem:[%s1 + $0x58] sm:$0xff]
  %v30 = vld [vmem:[%s1 + $0x60] sm:$0xff]
  %v31 = vld [vmem:[%s1 + $0x68] sm:$0xff]
  %v32 = vld [vmem:[%s1 + $0x70] sm:$0xff]
  %v33 = vld [vmem:[%s1 + $0x78] sm:$0xff]
  %v34 = vld [vmem:[%s1 + $0x80] sm:$0xff]
  %v35 = vld [vmem:[%s1 + $0x88] sm:$0xff]
  %v36 = vld [vmem:[%s1 + $0x90] sm:$0xff]
  %v37 = vld [vmem:[%s1 + $0x98] sm:$0xff]
  %v38 = vld [vmem:[%s1 + $0xa0] sm:$0xff]
  %v39 = vld [vmem:[%s1 + $0xa8] sm:$0xff]
  %v40 = vld [vmem:[%s1 + $0xb0] sm:$0xff]
  %v41 = vld [vmem:[%s1 + $0xb8] sm:$0xff]
  %v42 = vld [vmem:[%s1 + $0xc0] sm:$0xff]
  %v43 = vld [vmem:[%s1 + $0xc8] sm:$0xff]
  %v44 = vld [vmem:[%s1 + $0xd0] sm:$0xff]
  %v45 = vld [vmem:[%s1 + $0xd8] sm:$0xff]
  %v46 = vld [vmem:[%s1 + $0xe0] sm:$0xff]
  %v47 = vld [vmem:[%s1 + $0xe8] sm:$0xff]
  %v48 = vld [vmem:[%s1 + $0xf0] sm:$0xff]
  %v49 = vld [vmem:[%s1 + $0xf8] sm:$0xff]
  %v50 = vld [vmem:[%s1 + $0x100] sm:$0xff]
  %v51 = vld [vmem:[%s1 + $0x108] sm:$0xff]
  %v52 = vld [vmem:[%s1 + $0x110] sm:$0xff]
  %v53 = vld [vmem:[%s1 + $0x118] sm:$0xff]
  %v54 = vld [vmem:[%s1 + $0x120] sm:$0xff]
  %v55 = vld [vmem:[%s1 + $0x128] sm:$0xff]
  %v56 = vld [vmem:[%s1 + $0x130] sm:$0xff]
  %v57 = vld [vmem:[%s1 + $0x138] sm:$0xff]
  %v58 = vld [vmem:[%s1 + $0x140] sm:$0xff]
  %v59 = vld [vmem:[%s1 + $0x148] sm:$0xff]
  %v60 = vld [vmem:[%s1 + $0x150] sm:$0xff]
  %v61 = vld [vmem:[%s1 + $0x158] sm:$0xff]
  %v62 = vld [vmem:[%s1 + $0x160] sm:$0xff]
  %v63 = vld [vmem:[%s1 + $0x168] sm:$0xff]
  %v64 = vld [vmem:[%s1 + $0x170] sm:$0xff]
  %v65 = vld [vmem:[%s1 + $0x178] sm:$0xff]
  %v66 = vld [vmem:[%s1 + $0x180] sm:$0xff]
  %v67 = vld [vmem:[%s1 + $0x188] sm:$0xff]
  %v68 = vld [vmem:[%s1 + $0x190] sm:$0xff]
  %v69 = vld [vmem:[%s1 + $0x198] sm:$0xff]
  %v70 = vld [vmem:[%s1 + $0x1a0] sm:$0xff]
  %v71 = vld [vmem:[%s1 + $0x1a8] sm:$0xff]
  %v72 = vld [vmem:[%s1 + $0x1b0] sm:$0xff]
  %v73 = vld [vmem:[%s1 + $0x1b8] sm:$0xff]
  %v74 = vld [vmem:[%s1 + $0x1c0] sm:$0xff]
  %vm75 = vcmask 195584
  %v77 = vsel %vm75, %v15, 0
  %v80 = vsel %vm75, %v17, 0
  %82 = vmatprep.subr.mxu0 %v64
  %83 = vmatpush1.msra.mxu0 %v63
  %84 = vmatprep.subr.mxu0 %v61
  %85 = vmatpush1.msra.mxu0 %v60
  %86 = vmatprep.subr.mxu0 %v58
  %87 = vmatpush1.msra.mxu0 %v57
  %88 = vmatprep.subr.mxu0 %v55
  %89 = vmatpush1.msra.mxu0 %v54
  %90 = vmatprep.subr.mxu0 %v52
  %91 = vmatpush1.msra.mxu0 %v51
  %92 = vmatprep.subr.mxu0 %v49
  %93 = vmatpush1.msra.mxu0 %v48
  %94 = vmatprep.subr.mxu0 %v46
  %95 = vmatpush1.msra.mxu0 %v45
  %96 = vmatprep.subr.mxu0 %v43
  %97 = vmatpush1.msra.mxu0 %v42
  %98 = vmatprep.subr.mxu0 %v40
  %99 = vmatpush1.msra.mxu0 %v39
  %100 = vmatprep.subr.mxu0 %v37
  %101 = vmatpush1.msra.mxu0 %v36
  %102 = vmatprep.subr.mxu0 %v34
  %103 = vmatpush1.msra.mxu0 %v33
  %104 = vmatprep.subr.mxu0 %v31
  %105 = vmatpush1.msra.mxu0 %v30
  %106 = vmatprep.subr.mxu0 %v28
  %107 = vmatpush1.msra.mxu0 %v27
  %108 = vmatprep.subr.mxu0 %v25
  %109 = vmatpush1.msra.mxu0 %v24
  %110 = vmatprep.subr.mxu0 %v22
  %111 = vmatpush1.msra.mxu0 %v21
  %112 = vmatprep.subr.mxu0 %v19
  %113 = vmatpush1.msra.mxu0 %v18
  %114 = vmatprep.subr.mxu0 0.0
  %115 = vmatpush2.msra.mxu0 0.0
  %116 = vmatprep.subr.mxu0 0.0
  %117 = vmatpush2.msra.mxu0 0.0
  %118 = vmatprep.subr.mxu0 0.0
  %119 = vmatpush2.msra.mxu0 0.0
  %120 = vmatprep.subr.mxu0 0.0
  %121 = vmatpush2.msra.mxu0 0.0
  %122 = vmatprep.subr.mxu0 0.0
  %123 = vmatpush2.msra.mxu0 0.0
  %124 = vmatprep.subr.mxu0 0.0
  %125 = vmatpush2.msra.mxu0 0.0
  %126 = vmatprep.subr.mxu0 0.0
  %127 = vmatpush2.msra.mxu0 0.0
  %128 = vmatprep.subr.mxu0 0.0
  %129 = vmatpush2.msra.mxu0 0.0
  %130 = vmatprep.subr.mxu0 0.0
  %131 = vmatpush2.msra.mxu0 0.0
  %132 = vmatprep.subr.mxu0 0.0
  %133 = vmatpush2.msra.mxu0 0.0
  %134 = vmatprep.subr.mxu0 0.0
  %135 = vmatpush2.msra.mxu0 0.0
  %136 = vmatprep.subr.mxu0 0.0
  %137 = vmatpush2.msra.mxu0 0.0
  %138 = vmatprep.subr.mxu0 0.0
  %139 = vmatpush2.msra.mxu0 0.0
  %140 = vmatprep.subr.mxu0 %v73
  %141 = vmatpush2.msra.mxu0 %v72
  %142 = vmatprep.subr.mxu0 %v70
  %143 = vmatpush2.msra.mxu0 %v69
  %144 = vmatprep.subr.mxu0 %v67
  %145 = vmatpush2.msra.mxu0 %v66
  %146 = vmatprep.mubr.f32.mxu0 %v77
  %147 = vmatmul.mubr.f32.gmra.mxu0 %v14
  %v148 = vpop.f32.mrf.mxu0
  %v149 = vadd.f32 0.0, %v148
  %v150 = vpop.f32.mrf.mxu0
  %v151 = vadd.f32 0.0, %v150
  %152 = vmatprep.mubr.f32.mxu0 %v80
  %153 = vmatmul.mubr.f32.gmra.mxu0 %v16
  %v154 = vpop.f32.mrf.mxu0
  %v155 = vadd.f32 0.0, %v154
  %v156 = vpop.f32.mrf.mxu0
  %v157 = vadd.f32 0.0, %v156
  %158 = vdwg.mxu0
  %159 = vmatprep.subr.mxu0 0.0
  %160 = vmatpush1.msra.mxu0 %v65
  %161 = vmatprep.subr.mxu0 0.0
  %162 = vmatpush1.msra.mxu0 %v62
  %163 = vmatprep.subr.mxu0 0.0
  %164 = vmatpush1.msra.mxu0 %v59
  %165 = vmatprep.subr.mxu0 0.0
  %166 = vmatpush1.msra.mxu0 %v56
  %167 = vmatprep.subr.mxu0 0.0
  %168 = vmatpush1.msra.mxu0 %v53
  %169 = vmatprep.subr.mxu0 0.0
  %170 = vmatpush1.msra.mxu0 %v50
  %171 = vmatprep.subr.mxu0 0.0
  %172 = vmatpush1.msra.mxu0 %v47
  %173 = vmatprep.subr.mxu0 0.0
  %174 = vmatpush1.msra.mxu0 %v44
  %175 = vmatprep.subr.mxu0 0.0
  %176 = vmatpush1.msra.mxu0 %v41
  %177 = vmatprep.subr.mxu0 0.0
  %178 = vmatpush1.msra.mxu0 %v38
  %179 = vmatprep.subr.mxu0 0.0
  %180 = vmatpush1.msra.mxu0 %v35
  %181 = vmatprep.subr.mxu0 0.0
  %182 = vmatpush1.msra.mxu0 %v32
  %183 = vmatprep.subr.mxu0 0.0
  %184 = vmatpush1.msra.mxu0 %v29
  %185 = vmatprep.subr.mxu0 0.0
  %186 = vmatpush1.msra.mxu0 %v26
  %187 = vmatprep.subr.mxu0 0.0
  %188 = vmatpush1.msra.mxu0 %v23
  %189 = vmatprep.subr.mxu0 0.0
  %190 = vmatpush1.msra.mxu0 %v20
  %191 = vmatprep.subr.mxu0 0.0
  %192 = vmatpush2.msra.mxu0 0.0
  %193 = vmatprep.subr.mxu0 0.0
  %194 = vmatpush2.msra.mxu0 0.0
  %195 = vmatprep.subr.mxu0 0.0
  %196 = vmatpush2.msra.mxu0 0.0
  %197 = vmatprep.subr.mxu0 0.0
  %198 = vmatpush2.msra.mxu0 0.0
  %199 = vmatprep.subr.mxu0 0.0
  %200 = vmatpush2.msra.mxu0 0.0
  %201 = vmatprep.subr.mxu0 0.0
  %202 = vmatpush2.msra.mxu0 0.0
  %203 = vmatprep.subr.mxu0 0.0
  %204 = vmatpush2.msra.mxu0 0.0
  %205 = vmatprep.subr.mxu0 0.0
  %206 = vmatpush2.msra.mxu0 0.0
  %207 = vmatprep.subr.mxu0 0.0
  %208 = vmatpush2.msra.mxu0 0.0
  %209 = vmatprep.subr.mxu0 0.0
  %210 = vmatpush2.msra.mxu0 0.0
  %211 = vmatprep.subr.mxu0 0.0
  %212 = vmatpush2.msra.mxu0 0.0
  %213 = vmatprep.subr.mxu0 0.0
  %214 = vmatpush2.msra.mxu0 0.0
  %215 = vmatprep.subr.mxu0 0.0
  %216 = vmatpush2.msra.mxu0 0.0
  %217 = vmatprep.subr.mxu0 0.0
  %218 = vmatpush2.msra.mxu0 %v74
  %219 = vmatprep.subr.mxu0 0.0
  %220 = vmatpush2.msra.mxu0 %v71
  %221 = vmatprep.subr.mxu0 0.0
  %222 = vmatpush2.msra.mxu0 %v68
  %223 = vmatprep.mubr.f32.mxu0 %v77
  %224 = vmatmul.mubr.f32.gmra.mxu0 %v14
  %v225 = vpop.f32.mrf.mxu0
  %v226 = vadd.f32 0.0, %v225
  %v227 = vpop.f32.mrf.mxu0
  %228 = vmatprep.mubr.f32.mxu0 %v80
  %229 = vmatmul.mubr.f32.gmra.mxu0 %v16
  %v230 = vpop.f32.mrf.mxu0
  %v231 = vadd.f32 0.0, %v230
  %v232 = vpop.f32.mrf.mxu0
  %233 = vdwg.mxu0
  %s234 = scalar_lea.vmem %s1, 456
  %v235 = vld [vmem:[%s234] sm:$0xff]
  %v236 = vld [vmem:[%s234 + $0x8] sm:$0xff]
  %v237 = vld [vmem:[%s234 + $0x10] sm:$0xff]
  %v238 = vld [vmem:[%s234 + $0x18] sm:$0xff]
  %v239 = vld [vmem:[%s234 + $0x20] sm:$0xff]
  %v240 = vld [vmem:[%s234 + $0x28] sm:$0xff]
  %v241 = vld [vmem:[%s234 + $0x30] sm:$0xff]
  %v242 = vld [vmem:[%s234 + $0x38] sm:$0xff]
  %v243 = vld [vmem:[%s234 + $0x40] sm:$0xff]
  %v244 = vld [vmem:[%s234 + $0x48] sm:$0xff]
  %v245 = vld [vmem:[%s234 + $0x50] sm:$0xff]
  %v246 = vld [vmem:[%s234 + $0x58] sm:$0xff]
  %v247 = vld [vmem:[%s234 + $0x60] sm:$0xff]
  %v248 = vld [vmem:[%s234 + $0x68] sm:$0xff]
  %v249 = vld [vmem:[%s234 + $0x70] sm:$0xff]
  %v250 = vld [vmem:[%s234 + $0x78] sm:$0xff]
  %v251 = vld [vmem:[%s234 + $0x80] sm:$0xff]
  %v252 = vld [vmem:[%s234 + $0x88] sm:$0xff]
  %v253 = vld [vmem:[%s234 + $0x90] sm:$0xff]
  %v254 = vld [vmem:[%s234 + $0x98] sm:$0xff]
  %v255 = vld [vmem:[%s234 + $0xa0] sm:$0xff]
  %v256 = vld [vmem:[%s234 + $0xa8] sm:$0xff]
  %v257 = vld [vmem:[%s234 + $0xb0] sm:$0xff]
  %v258 = vld [vmem:[%s234 + $0xb8] sm:$0xff]
  %v259 = vld [vmem:[%s234 + $0xc0] sm:$0xff]
  %v260 = vld [vmem:[%s234 + $0xc8] sm:$0xff]
  %v261 = vld [vmem:[%s234 + $0xd0] sm:$0xff]
  %v262 = vld [vmem:[%s234 + $0xd8] sm:$0xff]
  %v263 = vld [vmem:[%s234 + $0xe0] sm:$0xff]
  %v264 = vld [vmem:[%s234 + $0xe8] sm:$0xff]
  %v265 = vld [vmem:[%s234 + $0xf0] sm:$0xff]
  %v266 = vld [vmem:[%s234 + $0xf8] sm:$0xff]
  %v267 = vld [vmem:[%s234 + $0x100] sm:$0xff]
  %v268 = vld [vmem:[%s234 + $0x108] sm:$0xff]
  %v269 = vld [vmem:[%s234 + $0x110] sm:$0xff]
  %v270 = vld [vmem:[%s234 + $0x118] sm:$0xff]
  %v271 = vld [vmem:[%s234 + $0x120] sm:$0xff]
  %v272 = vld [vmem:[%s234 + $0x128] sm:$0xff]
  %v273 = vld [vmem:[%s234 + $0x130] sm:$0xff]
  %v274 = vld [vmem:[%s234 + $0x138] sm:$0xff]
  %v275 = vld [vmem:[%s234 + $0x140] sm:$0xff]
  %v276 = vld [vmem:[%s234 + $0x148] sm:$0xff]
  %v277 = vld [vmem:[%s234 + $0x150] sm:$0xff]
  %v278 = vld [vmem:[%s234 + $0x158] sm:$0xff]
  %v279 = vld [vmem:[%s234 + $0x160] sm:$0xff]
  %v280 = vld [vmem:[%s234 + $0x168] sm:$0xff]
  %v281 = vld [vmem:[%s234 + $0x170] sm:$0xff]
  %v282 = vld [vmem:[%s234 + $0x178] sm:$0xff]
  %v283 = vld [vmem:[%s234 + $0x180] sm:$0xff]
  %v284 = vld [vmem:[%s234 + $0x188] sm:$0xff]
  %v285 = vld [vmem:[%s234 + $0x190] sm:$0xff]
  %v286 = vld [vmem:[%s234 + $0x198] sm:$0xff]
  %v287 = vld [vmem:[%s234 + $0x1a0] sm:$0xff]
  %v288 = vld [vmem:[%s234 + $0x1a8] sm:$0xff]
  %v289 = vld [vmem:[%s234 + $0x1b0] sm:$0xff]
  %v290 = vld [vmem:[%s234 + $0x1b8] sm:$0xff]
  %v291 = vld [vmem:[%s234 + $0x1c0] sm:$0xff]
  %292 = vmatprep.subr.mxu0 %v281
  %293 = vmatpush1.msra.mxu0 %v280
  %294 = vmatprep.subr.mxu0 %v278
  %295 = vmatpush1.msra.mxu0 %v277
  %296 = vmatprep.subr.mxu0 %v275
  %297 = vmatpush1.msra.mxu0 %v274
  %298 = vmatprep.subr.mxu0 %v272
  %299 = vmatpush1.msra.mxu0 %v271
  %300 = vmatprep.subr.mxu0 %v269
  %301 = vmatpush1.msra.mxu0 %v268
  %302 = vmatprep.subr.mxu0 %v266
  %303 = vmatpush1.msra.mxu0 %v265
  %304 = vmatprep.subr.mxu0 %v263
  %305 = vmatpush1.msra.mxu0 %v262
  %306 = vmatprep.subr.mxu0 %v260
  %307 = vmatpush1.msra.mxu0 %v259
  %308 = vmatprep.subr.mxu0 %v257
  %309 = vmatpush1.msra.mxu0 %v256
  %310 = vmatprep.subr.mxu0 %v254
  %311 = vmatpush1.msra.mxu0 %v253
  %312 = vmatprep.subr.mxu0 %v251
  %313 = vmatpush1.msra.mxu0 %v250
  %314 = vmatprep.subr.mxu0 %v248
  %315 = vmatpush1.msra.mxu0 %v247
  %316 = vmatprep.subr.mxu0 %v245
  %317 = vmatpush1.msra.mxu0 %v244
  %318 = vmatprep.subr.mxu0 %v242
  %319 = vmatpush1.msra.mxu0 %v241
  %320 = vmatprep.subr.mxu0 %v239
  %321 = vmatpush1.msra.mxu0 %v238
  %322 = vmatprep.subr.mxu0 %v236
  %323 = vmatpush1.msra.mxu0 %v235
  %324 = vmatprep.subr.mxu0 0.0
  %325 = vmatpush2.msra.mxu0 0.0
  %326 = vmatprep.subr.mxu0 0.0
  %327 = vmatpush2.msra.mxu0 0.0
  %328 = vmatprep.subr.mxu0 0.0
  %329 = vmatpush2.msra.mxu0 0.0
  %330 = vmatprep.subr.mxu0 0.0
  %331 = vmatpush2.msra.mxu0 0.0
  %332 = vmatprep.subr.mxu0 0.0
  %333 = vmatpush2.msra.mxu0 0.0
  %334 = vmatprep.subr.mxu0 0.0
  %335 = vmatpush2.msra.mxu0 0.0
  %336 = vmatprep.subr.mxu0 0.0
  %337 = vmatpush2.msra.mxu0 0.0
  %338 = vmatprep.subr.mxu0 0.0
  %339 = vmatpush2.msra.mxu0 0.0
  %340 = vmatprep.subr.mxu0 0.0
  %341 = vmatpush2.msra.mxu0 0.0
  %342 = vmatprep.subr.mxu0 0.0
  %343 = vmatpush2.msra.mxu0 0.0
  %344 = vmatprep.subr.mxu0 0.0
  %345 = vmatpush2.msra.mxu0 0.0
  %346 = vmatprep.subr.mxu0 0.0
  %347 = vmatpush2.msra.mxu0 0.0
  %348 = vmatprep.subr.mxu0 0.0
  %349 = vmatpush2.msra.mxu0 0.0
  %350 = vmatprep.subr.mxu0 %v290
  %351 = vmatpush2.msra.mxu0 %v289
  %352 = vmatprep.subr.mxu0 %v287
  %353 = vmatpush2.msra.mxu0 %v286
  %354 = vmatprep.subr.mxu0 %v284
  %355 = vmatpush2.msra.mxu0 %v283
  %356 = vmatprep.mubr.f32.mxu0 %v77
  %357 = vmatmul.mubr.f32.gmra.mxu0 %v14
  %v358 = vpop.f32.mrf.mxu0
  %v359 = vadd.f32 0.0, %v358
  %v360 = vpop.f32.mrf.mxu0
  %v361 = vadd.f32 0.0, %v360
  %362 = vmatprep.mubr.f32.mxu0 %v80
  %363 = vmatmul.mubr.f32.gmra.mxu0 %v16
  %v364 = vpop.f32.mrf.mxu0
  %v365 = vadd.f32 0.0, %v364
  %v366 = vpop.f32.mrf.mxu0
  %v367 = vadd.f32 0.0, %v366
  %368 = vdwg.mxu0
  %369 = vmatprep.subr.mxu0 0.0
  %370 = vmatpush1.msra.mxu0 %v282
  %371 = vmatprep.subr.mxu0 0.0
  %372 = vmatpush1.msra.mxu0 %v279
  %373 = vmatprep.subr.mxu0 0.0
  %374 = vmatpush1.msra.mxu0 %v276
  %375 = vmatprep.subr.mxu0 0.0
  %376 = vmatpush1.msra.mxu0 %v273
  %377 = vmatprep.subr.mxu0 0.0
  %378 = vmatpush1.msra.mxu0 %v270
  %379 = vmatprep.subr.mxu0 0.0
  %380 = vmatpush1.msra.mxu0 %v267
  %381 = vmatprep.subr.mxu0 0.0
  %382 = vmatpush1.msra.mxu0 %v264
  %383 = vmatprep.subr.mxu0 0.0
  %384 = vmatpush1.msra.mxu0 %v261
  %385 = vmatprep.subr.mxu0 0.0
  %386 = vmatpush1.msra.mxu0 %v258
  %387 = vmatprep.subr.mxu0 0.0
  %388 = vmatpush1.msra.mxu0 %v255
  %389 = vmatprep.subr.mxu0 0.0
  %390 = vmatpush1.msra.mxu0 %v252
  %391 = vmatprep.subr.mxu0 0.0
  %392 = vmatpush1.msra.mxu0 %v249
  %393 = vmatprep.subr.mxu0 0.0
  %394 = vmatpush1.msra.mxu0 %v246
  %395 = vmatprep.subr.mxu0 0.0
  %396 = vmatpush1.msra.mxu0 %v243
  %397 = vmatprep.subr.mxu0 0.0
  %398 = vmatpush1.msra.mxu0 %v240
  %399 = vmatprep.subr.mxu0 0.0
  %400 = vmatpush1.msra.mxu0 %v237
  %401 = vmatprep.subr.mxu0 0.0
  %402 = vmatpush2.msra.mxu0 0.0
  %403 = vmatprep.subr.mxu0 0.0
  %404 = vmatpush2.msra.mxu0 0.0
  %405 = vmatprep.subr.mxu0 0.0
  %406 = vmatpush2.msra.mxu0 0.0
  %407 = vmatprep.subr.mxu0 0.0
  %408 = vmatpush2.msra.mxu0 0.0
  %409 = vmatprep.subr.mxu0 0.0
  %410 = vmatpush2.msra.mxu0 0.0
  %411 = vmatprep.subr.mxu0 0.0
  %412 = vmatpush2.msra.mxu0 0.0
  %413 = vmatprep.subr.mxu0 0.0
  %414 = vmatpush2.msra.mxu0 0.0
  %415 = vmatprep.subr.mxu0 0.0
  %416 = vmatpush2.msra.mxu0 0.0
  %417 = vmatprep.subr.mxu0 0.0
  %418 = vmatpush2.msra.mxu0 0.0
  %419 = vmatprep.subr.mxu0 0.0
  %420 = vmatpush2.msra.mxu0 0.0
  %421 = vmatprep.subr.mxu0 0.0
  %422 = vmatpush2.msra.mxu0 0.0
  %423 = vmatprep.subr.mxu0 0.0
  %424 = vmatpush2.msra.mxu0 0.0
  %425 = vmatprep.subr.mxu0 0.0
  %426 = vmatpush2.msra.mxu0 0.0
  %427 = vmatprep.subr.mxu0 0.0
  %428 = vmatpush2.msra.mxu0 %v291
  %429 = vmatprep.subr.mxu0 0.0
  %430 = vmatpush2.msra.mxu0 %v288
  %431 = vmatprep.subr.mxu0 0.0
  %432 = vmatpush2.msra.mxu0 %v285
  %433 = vmatprep.mubr.f32.mxu0 %v77
  %434 = vmatmul.mubr.f32.gmra.mxu0 %v14
  %v435 = vpop.f32.mrf.mxu0
  %v436 = vadd.f32 0.0, %v435
  %v437 = vpop.f32.mrf.mxu0
  %438 = vmatprep.mubr.f32.mxu0 %v80
  %439 = vmatmul.mubr.f32.gmra.mxu0 %v16
  %v440 = vpop.f32.mrf.mxu0
  %v441 = vadd.f32 0.0, %v440
  %v442 = vpop.f32.mrf.mxu0
  %443 = vdwg.mxu0
  %v444 = vmax.f32 %v149, %v359
  %v445 = vmax.f32 %v151, %v361
  %v446 = vmax.f32 %v226, %v436
  %v447 = vmax.f32 %v155, %v365
  %v448 = vmax.f32 %v157, %v367
  %v449 = vmax.f32 %v231, %v441
  %s450 = scalar_lea.vmem %s1, 912
  %v451 = vld [vmem:[%s450] sm:$0xff]
  %v452 = vld [vmem:[%s450 + $0x8] sm:$0xff]
  %v453 = vld [vmem:[%s450 + $0x10] sm:$0xff]
  %v454 = vld [vmem:[%s450 + $0x18] sm:$0xff]
  %v455 = vld [vmem:[%s450 + $0x20] sm:$0xff]
  %v456 = vld [vmem:[%s450 + $0x28] sm:$0xff]
  %v457 = vld [vmem:[%s450 + $0x30] sm:$0xff]
  %v458 = vld [vmem:[%s450 + $0x38] sm:$0xff]
  %v459 = vld [vmem:[%s450 + $0x40] sm:$0xff]
  %v460 = vld [vmem:[%s450 + $0x48] sm:$0xff]
  %v461 = vld [vmem:[%s450 + $0x50] sm:$0xff]
  %v462 = vld [vmem:[%s450 + $0x58] sm:$0xff]
  %v463 = vld [vmem:[%s450 + $0x60] sm:$0xff]
  %v464 = vld [vmem:[%s450 + $0x68] sm:$0xff]
  %v465 = vld [vmem:[%s450 + $0x70] sm:$0xff]
  %v466 = vld [vmem:[%s450 + $0x78] sm:$0xff]
  %v467 = vld [vmem:[%s450 + $0x80] sm:$0xff]
  %v468 = vld [vmem:[%s450 + $0x88] sm:$0xff]
  %v469 = vld [vmem:[%s450 + $0x90] sm:$0xff]
  %v470 = vld [vmem:[%s450 + $0x98] sm:$0xff]
  %v471 = vld [vmem:[%s450 + $0xa0] sm:$0xff]
  %v472 = vld [vmem:[%s450 + $0xa8] sm:$0xff]
  %v473 = vld [vmem:[%s450 + $0xb0] sm:$0xff]
  %v474 = vld [vmem:[%s450 + $0xb8] sm:$0xff]
  %v475 = vld [vmem:[%s450 + $0xc0] sm:$0xff]
  %v476 = vld [vmem:[%s450 + $0xc8] sm:$0xff]
  %v477 = vld [vmem:[%s450 + $0xd0] sm:$0xff]
  %v478 = vld [vmem:[%s450 + $0xd8] sm:$0xff]
  %v479 = vld [vmem:[%s450 + $0xe0] sm:$0xff]
  %v480 = vld [vmem:[%s450 + $0xe8] sm:$0xff]
  %v481 = vld [vmem:[%s450 + $0xf0] sm:$0xff]
  %v482 = vld [vmem:[%s450 + $0xf8] sm:$0xff]
  %v483 = vld [vmem:[%s450 + $0x100] sm:$0xff]
  %v484 = vld [vmem:[%s450 + $0x108] sm:$0xff]
  %v485 = vld [vmem:[%s450 + $0x110] sm:$0xff]
  %v486 = vld [vmem:[%s450 + $0x118] sm:$0xff]
  %v487 = vld [vmem:[%s450 + $0x120] sm:$0xff]
  %v488 = vld [vmem:[%s450 + $0x128] sm:$0xff]
  %v489 = vld [vmem:[%s450 + $0x130] sm:$0xff]
  %v490 = vld [vmem:[%s450 + $0x138] sm:$0xff]
  %v491 = vld [vmem:[%s450 + $0x140] sm:$0xff]
  %v492 = vld [vmem:[%s450 + $0x148] sm:$0xff]
  %v493 = vld [vmem:[%s450 + $0x150] sm:$0xff]
  %v494 = vld [vmem:[%s450 + $0x158] sm:$0xff]
  %v495 = vld [vmem:[%s450 + $0x160] sm:$0xff]
  %v496 = vld [vmem:[%s450 + $0x168] sm:$0xff]
  %v497 = vld [vmem:[%s450 + $0x170] sm:$0xff]
  %v498 = vld [vmem:[%s450 + $0x178] sm:$0xff]
  %v499 = vld [vmem:[%s450 + $0x180] sm:$0xff]
  %v500 = vld [vmem:[%s450 + $0x188] sm:$0xff]
  %v501 = vld [vmem:[%s450 + $0x190] sm:$0xff]
  %v502 = vld [vmem:[%s450 + $0x198] sm:$0xff]
  %v503 = vld [vmem:[%s450 + $0x1a0] sm:$0xff]
  %v504 = vld [vmem:[%s450 + $0x1a8] sm:$0xff]
  %v505 = vld [vmem:[%s450 + $0x1b0] sm:$0xff]
  %v506 = vld [vmem:[%s450 + $0x1b8] sm:$0xff]
  %v507 = vld [vmem:[%s450 + $0x1c0] sm:$0xff]
  %508 = vmatprep.subr.mxu0 %v497
  %509 = vmatpush1.msra.mxu0 %v496
  %510 = vmatprep.subr.mxu0 %v494
  %511 = vmatpush1.msra.mxu0 %v493
  %512 = vmatprep.subr.mxu0 %v491
  %513 = vmatpush1.msra.mxu0 %v490
  %514 = vmatprep.subr.mxu0 %v488
  %515 = vmatpush1.msra.mxu0 %v487
  %516 = vmatprep.subr.mxu0 %v485
  %517 = vmatpush1.msra.mxu0 %v484
  %518 = vmatprep.subr.mxu0 %v482
  %519 = vmatpush1.msra.mxu0 %v481
  %520 = vmatprep.subr.mxu0 %v479
  %521 = vmatpush1.msra.mxu0 %v478
  %522 = vmatprep.subr.mxu0 %v476
  %523 = vmatpush1.msra.mxu0 %v475
  %524 = vmatprep.subr.mxu0 %v473
  %525 = vmatpush1.msra.mxu0 %v472
  %526 = vmatprep.subr.mxu0 %v470
  %527 = vmatpush1.msra.mxu0 %v469
  %528 = vmatprep.subr.mxu0 %v467
  %529 = vmatpush1.msra.mxu0 %v466
  %530 = vmatprep.subr.mxu0 %v464
  %531 = vmatpush1.msra.mxu0 %v463
  %532 = vmatprep.subr.mxu0 %v461
  %533 = vmatpush1.msra.mxu0 %v460
  %534 = vmatprep.subr.mxu0 %v458
  %535 = vmatpush1.msra.mxu0 %v457
  %536 = vmatprep.subr.mxu0 %v455
  %537 = vmatpush1.msra.mxu0 %v454
  %538 = vmatprep.subr.mxu0 %v452
  %539 = vmatpush1.msra.mxu0 %v451
  %540 = vmatprep.subr.mxu0 0.0
  %541 = vmatpush2.msra.mxu0 0.0
  %542 = vmatprep.subr.mxu0 0.0
  %543 = vmatpush2.msra.mxu0 0.0
  %544 = vmatprep.subr.mxu0 0.0
  %545 = vmatpush2.msra.mxu0 0.0
  %546 = vmatprep.subr.mxu0 0.0
  %547 = vmatpush2.msra.mxu0 0.0
  %548 = vmatprep.subr.mxu0 0.0
  %549 = vmatpush2.msra.mxu0 0.0
  %550 = vmatprep.subr.mxu0 0.0
  %551 = vmatpush2.msra.mxu0 0.0
  %552 = vmatprep.subr.mxu0 0.0
  %553 = vmatpush2.msra.mxu0 0.0
  %554 = vmatprep.subr.mxu0 0.0
  %555 = vmatpush2.msra.mxu0 0.0
  %556 = vmatprep.subr.mxu0 0.0
  %557 = vmatpush2.msra.mxu0 0.0
  %558 = vmatprep.subr.mxu0 0.0
  %559 = vmatpush2.msra.mxu0 0.0
  %560 = vmatprep.subr.mxu0 0.0
  %561 = vmatpush2.msra.mxu0 0.0
  %562 = vmatprep.subr.mxu0 0.0
  %563 = vmatpush2.msra.mxu0 0.0
  %564 = vmatprep.subr.mxu0 0.0
  %565 = vmatpush2.msra.mxu0 0.0
  %566 = vmatprep.subr.mxu0 %v506
  %567 = vmatpush2.msra.mxu0 %v505
  %568 = vmatprep.subr.mxu0 %v503
  %569 = vmatpush2.msra.mxu0 %v502
  %570 = vmatprep.subr.mxu0 %v500
  %571 = vmatpush2.msra.mxu0 %v499
  %572 = vmatprep.mubr.f32.mxu0 %v77
  %573 = vmatmul.mubr.f32.gmra.mxu0 %v14
  %v574 = vpop.f32.mrf.mxu0
  %v575 = vadd.f32 0.0, %v574
  %v576 = vpop.f32.mrf.mxu0
  %v577 = vadd.f32 0.0, %v576
  %578 = vmatprep.mubr.f32.mxu0 %v80
  %579 = vmatmul.mubr.f32.gmra.mxu0 %v16
  %v580 = vpop.f32.mrf.mxu0
  %v581 = vadd.f32 0.0, %v580
  %v582 = vpop.f32.mrf.mxu0
  %v583 = vadd.f32 0.0, %v582
  %584 = vdwg.mxu0
  %585 = vmatprep.subr.mxu0 0.0
  %586 = vmatpush1.msra.mxu0 %v498
  %587 = vmatprep.subr.mxu0 0.0
  %588 = vmatpush1.msra.mxu0 %v495
  %589 = vmatprep.subr.mxu0 0.0
  %590 = vmatpush1.msra.mxu0 %v492
  %591 = vmatprep.subr.mxu0 0.0
  %592 = vmatpush1.msra.mxu0 %v489
  %593 = vmatprep.subr.mxu0 0.0
  %594 = vmatpush1.msra.mxu0 %v486
  %595 = vmatprep.subr.mxu0 0.0
  %596 = vmatpush1.msra.mxu0 %v483
  %597 = vmatprep.subr.mxu0 0.0
  %598 = vmatpush1.msra.mxu0 %v480
  %599 = vmatprep.subr.mxu0 0.0
  %600 = vmatpush1.msra.mxu0 %v477
  %601 = vmatprep.subr.mxu0 0.0
  %602 = vmatpush1.msra.mxu0 %v474
  %603 = vmatprep.subr.mxu0 0.0
  %604 = vmatpush1.msra.mxu0 %v471
  %605 = vmatprep.subr.mxu0 0.0
  %606 = vmatpush1.msra.mxu0 %v468
  %607 = vmatprep.subr.mxu0 0.0
  %608 = vmatpush1.msra.mxu0 %v465
  %609 = vmatprep.subr.mxu0 0.0
  %610 = vmatpush1.msra.mxu0 %v462
  %611 = vmatprep.subr.mxu0 0.0
  %612 = vmatpush1.msra.mxu0 %v459
  %613 = vmatprep.subr.mxu0 0.0
  %614 = vmatpush1.msra.mxu0 %v456
  %615 = vmatprep.subr.mxu0 0.0
  %616 = vmatpush1.msra.mxu0 %v453
  %617 = vmatprep.subr.mxu0 0.0
  %618 = vmatpush2.msra.mxu0 0.0
  %619 = vmatprep.subr.mxu0 0.0
  %620 = vmatpush2.msra.mxu0 0.0
  %621 = vmatprep.subr.mxu0 0.0
  %622 = vmatpush2.msra.mxu0 0.0
  %623 = vmatprep.subr.mxu0 0.0
  %624 = vmatpush2.msra.mxu0 0.0
  %625 = vmatprep.subr.mxu0 0.0
  %626 = vmatpush2.msra.mxu0 0.0
  %627 = vmatprep.subr.mxu0 0.0
  %628 = vmatpush2.msra.mxu0 0.0
  %629 = vmatprep.subr.mxu0 0.0
  %630 = vmatpush2.msra.mxu0 0.0
  %631 = vmatprep.subr.mxu0 0.0
  %632 = vmatpush2.msra.mxu0 0.0
  %633 = vmatprep.subr.mxu0 0.0
  %634 = vmatpush2.msra.mxu0 0.0
  %635 = vmatprep.subr.mxu0 0.0
  %636 = vmatpush2.msra.mxu0 0.0
  %637 = vmatprep.subr.mxu0 0.0
  %638 = vmatpush2.msra.mxu0 0.0
  %639 = vmatprep.subr.mxu0 0.0
  %640 = vmatpush2.msra.mxu0 0.0
  %641 = vmatprep.subr.mxu0 0.0
  %642 = vmatpush2.msra.mxu0 0.0
  %643 = vmatprep.subr.mxu0 0.0
  %644 = vmatpush2.msra.mxu0 %v507
  %645 = vmatprep.subr.mxu0 0.0
  %646 = vmatpush2.msra.mxu0 %v504
  %647 = vmatprep.subr.mxu0 0.0
  %648 = vmatpush2.msra.mxu0 %v501
  %649 = vmatprep.mubr.f32.mxu0 %v77
  %650 = vmatmul.mubr.f32.gmra.mxu0 %v14
  %v651 = vpop.f32.mrf.mxu0
  %v652 = vadd.f32 0.0, %v651
  %v653 = vpop.f32.mrf.mxu0
  %654 = vmatprep.mubr.f32.mxu0 %v80
  %655 = vmatmul.mubr.f32.gmra.mxu0 %v16
  %v656 = vpop.f32.mrf.mxu0
  %v657 = vadd.f32 0.0, %v656
  %v658 = vpop.f32.mrf.mxu0
  %659 = vdwg.mxu0
  %s660 = scalar_lea.vmem %s1, 1368
  %v661 = vld [vmem:[%s660] sm:$0xff]
  %v662 = vld [vmem:[%s660 + $0x8] sm:$0xff]
  %v663 = vld [vmem:[%s660 + $0x10] sm:$0xff]
  %v664 = vld [vmem:[%s660 + $0x18] sm:$0xff]
  %v665 = vld [vmem:[%s660 + $0x20] sm:$0xff]
  %v666 = vld [vmem:[%s660 + $0x28] sm:$0xff]
  %v667 = vld [vmem:[%s660 + $0x30] sm:$0xff]
  %v668 = vld [vmem:[%s660 + $0x38] sm:$0xff]
  %v669 = vld [vmem:[%s660 + $0x40] sm:$0xff]
  %v670 = vld [vmem:[%s660 + $0x48] sm:$0xff]
  %v671 = vld [vmem:[%s660 + $0x50] sm:$0xff]
  %v672 = vld [vmem:[%s660 + $0x58] sm:$0xff]
  %v673 = vld [vmem:[%s660 + $0x60] sm:$0xff]
  %v674 = vld [vmem:[%s660 + $0x68] sm:$0xff]
  %v675 = vld [vmem:[%s660 + $0x70] sm:$0xff]
  %v676 = vld [vmem:[%s660 + $0x78] sm:$0xff]
  %v677 = vld [vmem:[%s660 + $0x80] sm:$0xff]
  %v678 = vld [vmem:[%s660 + $0x88] sm:$0xff]
  %v679 = vld [vmem:[%s660 + $0x90] sm:$0xff]
  %v680 = vld [vmem:[%s660 + $0x98] sm:$0xff]
  %v681 = vld [vmem:[%s660 + $0xa0] sm:$0xff]
  %v682 = vld [vmem:[%s660 + $0xa8] sm:$0xff]
  %v683 = vld [vmem:[%s660 + $0xb0] sm:$0xff]
  %v684 = vld [vmem:[%s660 + $0xb8] sm:$0xff]
  %v685 = vld [vmem:[%s660 + $0xc0] sm:$0xff]
  %v686 = vld [vmem:[%s660 + $0xc8] sm:$0xff]
  %v687 = vld [vmem:[%s660 + $0xd0] sm:$0xff]
  %v688 = vld [vmem:[%s660 + $0xd8] sm:$0xff]
  %v689 = vld [vmem:[%s660 + $0xe0] sm:$0xff]
  %v690 = vld [vmem:[%s660 + $0xe8] sm:$0xff]
  %v691 = vld [vmem:[%s660 + $0xf0] sm:$0xff]
  %v692 = vld [vmem:[%s660 + $0xf8] sm:$0xff]
  %v693 = vld [vmem:[%s660 + $0x100] sm:$0xff]
  %v694 = vld [vmem:[%s660 + $0x108] sm:$0xff]
  %v695 = vld [vmem:[%s660 + $0x110] sm:$0xff]
  %v696 = vld [vmem:[%s660 + $0x118] sm:$0xff]
  %v697 = vld [vmem:[%s660 + $0x120] sm:$0xff]
  %v698 = vld [vmem:[%s660 + $0x128] sm:$0xff]
  %v699 = vld [vmem:[%s660 + $0x130] sm:$0xff]
  %v700 = vld [vmem:[%s660 + $0x138] sm:$0xff]
  %v701 = vld [vmem:[%s660 + $0x140] sm:$0xff]
  %v702 = vld [vmem:[%s660 + $0x148] sm:$0xff]
  %v703 = vld [vmem:[%s660 + $0x150] sm:$0xff]
  %v704 = vld [vmem:[%s660 + $0x158] sm:$0xff]
  %v705 = vld [vmem:[%s660 + $0x160] sm:$0xff]
  %v706 = vld [vmem:[%s660 + $0x168] sm:$0xff]
  %v707 = vld [vmem:[%s660 + $0x170] sm:$0xff]
  %v708 = vld [vmem:[%s660 + $0x178] sm:$0xff]
  %v709 = vld [vmem:[%s660 + $0x180] sm:$0xff]
  %v710 = vld [vmem:[%s660 + $0x188] sm:$0xff]
  %v711 = vld [vmem:[%s660 + $0x190] sm:$0xff]
  %v712 = vld [vmem:[%s660 + $0x198] sm:$0xff]
  %v713 = vld [vmem:[%s660 + $0x1a0] sm:$0xff]
  %v714 = vld [vmem:[%s660 + $0x1a8] sm:$0xff]
  %v715 = vld [vmem:[%s660 + $0x1b0] sm:$0xff]
  %v716 = vld [vmem:[%s660 + $0x1b8] sm:$0xff]
  %v717 = vld [vmem:[%s660 + $0x1c0] sm:$0xff]
  %718 = vmatprep.subr.mxu0 %v707
  %719 = vmatpush1.msra.mxu0 %v706
  %720 = vmatprep.subr.mxu0 %v704
  %721 = vmatpush1.msra.mxu0 %v703
  %722 = vmatprep.subr.mxu0 %v701
  %723 = vmatpush1.msra.mxu0 %v700
  %724 = vmatprep.subr.mxu0 %v698
  %725 = vmatpush1.msra.mxu0 %v697
  %726 = vmatprep.subr.mxu0 %v695
  %727 = vmatpush1.msra.mxu0 %v694
  %728 = vmatprep.subr.mxu0 %v692
  %729 = vmatpush1.msra.mxu0 %v691
  %730 = vmatprep.subr.mxu0 %v689
  %731 = vmatpush1.msra.mxu0 %v688
  %732 = vmatprep.subr.mxu0 %v686
  %733 = vmatpush1.msra.mxu0 %v685
  %734 = vmatprep.subr.mxu0 %v683
  %735 = vmatpush1.msra.mxu0 %v682
  %736 = vmatprep.subr.mxu0 %v680
  %737 = vmatpush1.msra.mxu0 %v679
  %738 = vmatprep.subr.mxu0 %v677
  %739 = vmatpush1.msra.mxu0 %v676
  %740 = vmatprep.subr.mxu0 %v674
  %741 = vmatpush1.msra.mxu0 %v673
  %742 = vmatprep.subr.mxu0 %v671
  %743 = vmatpush1.msra.mxu0 %v670
  %744 = vmatprep.subr.mxu0 %v668
  %745 = vmatpush1.msra.mxu0 %v667
  %746 = vmatprep.subr.mxu0 %v665
  %747 = vmatpush1.msra.mxu0 %v664
  %748 = vmatprep.subr.mxu0 %v662
  %749 = vmatpush1.msra.mxu0 %v661
  %750 = vmatprep.subr.mxu0 0.0
  %751 = vmatpush2.msra.mxu0 0.0
  %752 = vmatprep.subr.mxu0 0.0
  %753 = vmatpush2.msra.mxu0 0.0
  %754 = vmatprep.subr.mxu0 0.0
  %755 = vmatpush2.msra.mxu0 0.0
  %756 = vmatprep.subr.mxu0 0.0
  %757 = vmatpush2.msra.mxu0 0.0
  %758 = vmatprep.subr.mxu0 0.0
  %759 = vmatpush2.msra.mxu0 0.0
  %760 = vmatprep.subr.mxu0 0.0
  %761 = vmatpush2.msra.mxu0 0.0
  %762 = vmatprep.subr.mxu0 0.0
  %763 = vmatpush2.msra.mxu0 0.0
  %764 = vmatprep.subr.mxu0 0.0
  %765 = vmatpush2.msra.mxu0 0.0
  %766 = vmatprep.subr.mxu0 0.0
  %767 = vmatpush2.msra.mxu0 0.0
  %768 = vmatprep.subr.mxu0 0.0
  %769 = vmatpush2.msra.mxu0 0.0
  %770 = vmatprep.subr.mxu0 0.0
  %771 = vmatpush2.msra.mxu0 0.0
  %772 = vmatprep.subr.mxu0 0.0
  %773 = vmatpush2.msra.mxu0 0.0
  %774 = vmatprep.subr.mxu0 0.0
  %775 = vmatpush2.msra.mxu0 0.0
  %776 = vmatprep.subr.mxu0 %v716
  %777 = vmatpush2.msra.mxu0 %v715
  %778 = vmatprep.subr.mxu0 %v713
  %779 = vmatpush2.msra.mxu0 %v712
  %780 = vmatprep.subr.mxu0 %v710
  %781 = vmatpush2.msra.mxu0 %v709
  %782 = vmatprep.mubr.f32.mxu0 %v77
  %783 = vmatmul.mubr.f32.gmra.mxu0 %v14
  %v784 = vpop.f32.mrf.mxu0
  %v785 = vadd.f32 0.0, %v784
  %v786 = vpop.f32.mrf.mxu0
  %v787 = vadd.f32 0.0, %v786
  %788 = vmatprep.mubr.f32.mxu0 %v80
  %789 = vmatmul.mubr.f32.gmra.mxu0 %v16
  %v790 = vpop.f32.mrf.mxu0
  %v791 = vadd.f32 0.0, %v790
  %v792 = vpop.f32.mrf.mxu0
  %v793 = vadd.f32 0.0, %v792
  %794 = vdwg.mxu0
  %795 = vmatprep.subr.mxu0 0.0
  %796 = vmatpush1.msra.mxu0 %v708
  %797 = vmatprep.subr.mxu0 0.0
  %798 = vmatpush1.msra.mxu0 %v705
  %799 = vmatprep.subr.mxu0 0.0
  %800 = vmatpush1.msra.mxu0 %v702
  %801 = vmatprep.subr.mxu0 0.0
  %802 = vmatpush1.msra.mxu0 %v699
  %803 = vmatprep.subr.mxu0 0.0
  %804 = vmatpush1.msra.mxu0 %v696
  %805 = vmatprep.subr.mxu0 0.0
  %806 = vmatpush1.msra.mxu0 %v693
  %807 = vmatprep.subr.mxu0 0.0
  %808 = vmatpush1.msra.mxu0 %v690
  %809 = vmatprep.subr.mxu0 0.0
  %810 = vmatpush1.msra.mxu0 %v687
  %811 = vmatprep.subr.mxu0 0.0
  %812 = vmatpush1.msra.mxu0 %v684
  %813 = vmatprep.subr.mxu0 0.0
  %814 = vmatpush1.msra.mxu0 %v681
  %815 = vmatprep.subr.mxu0 0.0
  %816 = vmatpush1.msra.mxu0 %v678
  %817 = vmatprep.subr.mxu0 0.0
  %818 = vmatpush1.msra.mxu0 %v675
  %819 = vmatprep.subr.mxu0 0.0
  %820 = vmatpush1.msra.mxu0 %v672
  %821 = vmatprep.subr.mxu0 0.0
  %822 = vmatpush1.msra.mxu0 %v669
  %823 = vmatprep.subr.mxu0 0.0
  %824 = vmatpush1.msra.mxu0 %v666
  %825 = vmatprep.subr.mxu0 0.0
  %826 = vmatpush1.msra.mxu0 %v663
  %827 = vmatprep.subr.mxu0 0.0
  %828 = vmatpush2.msra.mxu0 0.0
  %829 = vmatprep.subr.mxu0 0.0
  %830 = vmatpush2.msra.mxu0 0.0
  %831 = vmatprep.subr.mxu0 0.0
  %832 = vmatpush2.msra.mxu0 0.0
  %833 = vmatprep.subr.mxu0 0.0
  %834 = vmatpush2.msra.mxu0 0.0
  %835 = vmatprep.subr.mxu0 0.0
  %836 = vmatpush2.msra.mxu0 0.0
  %837 = vmatprep.subr.mxu0 0.0
  %838 = vmatpush2.msra.mxu0 0.0
  %839 = vmatprep.subr.mxu0 0.0
  %840 = vmatpush2.msra.mxu0 0.0
  %841 = vmatprep.subr.mxu0 0.0
  %842 = vmatpush2.msra.mxu0 0.0
  %843 = vmatprep.subr.mxu0 0.0
  %844 = vmatpush2.msra.mxu0 0.0
  %845 = vmatprep.subr.mxu0 0.0
  %846 = vmatpush2.msra.mxu0 0.0
  %847 = vmatprep.subr.mxu0 0.0
  %848 = vmatpush2.msra.mxu0 0.0
  %849 = vmatprep.subr.mxu0 0.0
  %850 = vmatpush2.msra.mxu0 0.0
  %851 = vmatprep.subr.mxu0 0.0
  %852 = vmatpush2.msra.mxu0 0.0
  %853 = vmatprep.subr.mxu0 0.0
  %854 = vmatpush2.msra.mxu0 %v717
  %855 = vmatprep.subr.mxu0 0.0
  %856 = vmatpush2.msra.mxu0 %v714
  %857 = vmatprep.subr.mxu0 0.0
  %858 = vmatpush2.msra.mxu0 %v711
  %859 = vmatprep.mubr.f32.mxu0 %v77
  %860 = vmatmul.mubr.f32.gmra.mxu0 %v14
  %v861 = vpop.f32.mrf.mxu0
  %v862 = vadd.f32 0.0, %v861
  %v863 = vpop.f32.mrf.mxu0
  %864 = vmatprep.mubr.f32.mxu0 %v80
  %865 = vmatmul.mubr.f32.gmra.mxu0 %v16
  %v866 = vpop.f32.mrf.mxu0
  %v867 = vadd.f32 0.0, %v866
  %v868 = vpop.f32.mrf.mxu0
  %869 = vdwg.mxu0
  %v870 = vmax.f32 %v575, %v785
  %v871 = vmax.f32 %v577, %v787
  %v872 = vmax.f32 %v652, %v862
  %v873 = vmax.f32 %v581, %v791
  %v874 = vmax.f32 %v583, %v793
  %v875 = vmax.f32 %v657, %v867
  %v876 = vmax.f32 %v444, %v870
  %v877 = vmax.f32 %v445, %v871
  %v878 = vmax.f32 %v446, %v872
  %v879 = vmax.f32 %v447, %v873
  %v880 = vmax.f32 %v448, %v874
  %v881 = vmax.f32 %v449, %v875
  %v882 = vld [vmem:[%s2] sm:$0xff]
  %v883 = vld [vmem:[%s2 + $0x8] sm:$0xff]
  %885 = vset.pattern.permute.xlu0 0
  %886 = vperm.xlu0 %885, %v882
  %v887 = vpop.permute.xlu0 %886
  %890 = vset.pattern.permute.xlu0 0
  %891 = vperm.xlu0 %890, %v883
  %v892 = vpop.permute.xlu0 %891
  %v894 = vadd.f32 %v876, %v887
  %v895 = vadd.f32 %v877, %v887
  %v896 = vadd.f32 %v878, %v887
  %v897 = vadd.f32 %v879, %v892
  %v898 = vadd.f32 %v880, %v892
  %v899 = vadd.f32 %v881, %v892
  %vm900 = vcmp.gt.f32.partialorder %v894, 0.0
  %vm901 = vcmp.gt.f32.partialorder %v895, 0.0
  %vm902 = vcmp.gt.f32.partialorder %v896, 0.0
  %vm903 = vcmp.gt.f32.partialorder %v897, 0.0
  %vm904 = vcmp.gt.f32.partialorder %v898, 0.0
  %vm905 = vcmp.gt.f32.partialorder %v899, 0.0
  %v906 = vmul.f32 %v894, 0.01
  %v907 = vmul.f32 %v895, 0.01
  %v908 = vmul.f32 %v896, 0.01
  %v909 = vmul.f32 %v897, 0.01
  %v910 = vmul.f32 %v898, 0.01
  %v911 = vmul.f32 %v899, 0.01
  %v912 = vsel %vm900, %v894, %v906
  %v913 = vsel %vm901, %v895, %v907
  %v914 = vsel %vm902, %v896, %v908
  %v915 = vsel %vm903, %v897, %v909
  %v916 = vsel %vm904, %v898, %v910
  %v917 = vsel %vm905, %v899, %v911
  %918 = vst [vmem:[%s3] sm:$0xff] %v912
  %919 = vst [vmem:[%s3 + $0x8] sm:$0xff] %v913
  %vm920 = vcmask 670720
  %921 = vst.msk [vmem:[%s3 + $0x10] sm:$0xff] %vm920, %v914
  %922 = vst [vmem:[%s3 + $0x18] sm:$0xff] %v915
  %923 = vst [vmem:[%s3 + $0x20] sm:$0xff] %v916
  %924 = vst.msk [vmem:[%s3 + $0x28] sm:$0xff] %vm920, %v917
  // Predicated region
  $region14: #{net_forward.4} parent=0 // pred_check
    _
  $region15: #{net_forward.4} parent=0 // pred_check_branch
    %926 = sbr.rel (0) target = $region17
  $region16: #{net_forward.4} parent=0 // pred_region
    _
  $region17: #{net_forward.4} parent=0 // pred_fallthru
    _
  // Predicated region
  $region18: #{net_forward.4} parent=0 // pred_check
    _
  $region19: #{net_forward.4} parent=0 // pred_check_branch
    %928 = sbr.rel (0) target = $region21
  $region20: #{net_forward.4} parent=0 // pred_region
    _
  $region21: #{net_forward.4} parent=0 // pred_fallthru
    _

// kernel: net_forward.5
$region0: #{net_forward.5}
  #allocation0 [shape = 'u32[]', space=smem, size = 0x4, offset = 0x4, fixed_abs, tag = 'smem constant byte address 0x4 - core index']
  #allocation1 [shape = 'u32[144,128]{1,0:T(1,128)}', space=vmem, size = 0x12000, scoped, tag = 'internal scratch']
  #allocation2 [shape = 'f32[8,128]{1,0:T(8,128)}', space=vmem, size = 0x1000, scoped, tag = 'scratch operand']
  %s0 = inlined_call_operand.vmem [shape: bf16[8,2704], index: 0, kind: input, shape index: {}]
  %s1 = inlined_call_operand.vmem [shape: bf16[2704,2048], index: 1, kind: input, shape index: {}]
  %s2 = inlined_call_operand.vmem [shape: f32[1,2048], index: 2, kind: input, shape index: {}]
  %s3 = inlined_call_operand.vmem [shape: bf16[2048,128], index: 3, kind: input, shape index: {}]
  %s4 = inlined_call_operand.vmem [shape: f32[1,128], index: 4, kind: input, shape index: {}]
  %s5 = inlined_call_operand.vmem [shape: bf16[128,128], index: 5, kind: input, shape index: {}]
  %s6 = inlined_call_operand.vmem [shape: f32[1,128], index: 6, kind: input, shape index: {}]
  %s7 = inlined_call_operand.vmem [shape: bf16[128,128], index: 7, kind: input, shape index: {}]
  %s8 = inlined_call_operand.vmem [shape: f32[1,128], index: 8, kind: input, shape index: {}]
  %s9 = inlined_call_operand.vmem [shape: f32[8,128], index: 9, kind: output, shape index: {}]
  %s10 = sld [smem:[#allocation0]]
  $region100: #{net_forward.5} parent=0
    _
  %s12 = ssub.s32 1, %s10
  %s13 = scalar_select 0, %s12, %s10
  $region1: #{net_forward.5} parent=0
    #allocation3 [shape = 'u8[5537792]{0}', space=vmem, size = 0x548000, scoped, tag = 'input window, operand 1']
    loop: start=0, step=1, limit=6
    $region2: #{net_forward.5} parent=1 // loop_pre_header
      _
    $region3: #{net_forward.5} parent=1 // loop_header
      %s15 = sphi 0, %s19
      %p16 = scmp.ge.s32.totalorder %s15, 6
      %s23 = sphi 0, %s23
      %s25 = sphi 0, %s23
      %s26 = sphi 0, %s25
      %s40 = sphi 0, %s26
      %s46 = sphi 0, %s48
      %s49 = sphi 0, %s46
      %s50 = sphi 0, %s49
      %s66 = sphi 0, %s50
      %s72 = sphi 0, %s74
      %s75 = sphi 0, %s72
      %s76 = sphi 0, %s75
      %s92 = sphi 0, %s76
      %s98 = sphi 0, %s100
      %s101 = sphi 0, %s98
      %s102 = sphi 0, %s101
      %s118 = sphi 0, %s102
      %s122 = sphi 0, %s122
      %s124 = sphi 0, %s122
      %s125 = sphi 0, %s124
      %s139 = sphi 0, %s125
      %s143 = sphi 0, %s143
      %s145 = sphi 0, %s143
      %s146 = sphi 0, %s145
      %s160 = sphi 0, %s146
      %s164 = sphi 0, %s164
      %s166 = sphi 0, %s164
      %s167 = sphi 0, %s166
      %s181 = sphi 0, %s167
      %s185 = sphi 0, %s185
      %s187 = sphi 0, %s185
      %s188 = sphi 0, %s187
      %s202 = sphi 0, %s188
      %s206 = sphi 0, %s206
      %s208 = sphi 0, %s206
      %s209 = sphi 0, %s208
      %s223 = sphi 0, %s209
      %s227 = sphi 0, %s227
      %s229 = sphi 0, %s227
      %s230 = sphi 0, %s229
      %s244 = sphi 0, %s230
    $region4: #{net_forward.5} parent=1 // loop_header_branch
      %18 = sbr.rel (%p16) target = $region8
    $region5: #{net_forward.5} parent=1 // loop_body
      %s20 = ssub.s32 %s15, 1
      %s21 = ssub.s32 %s15, 2
      %s22 = sadd.s32 %s15, 1
      %s24 = sadd.s32 %s23, 1
      %p27 = scmp.eq.s32.totalorder %s15, 3
      %p28 = scmp.ne.s32.totalorder %s23, %s25
      %p29 = scmp.eq.s32.totalorder %s15, 0
      %p30 = por %p28, %p29
      %p31 = scmp.ne.s32.totalorder %s23, %s25
      %p32 = scmp.eq.s32.totalorder %s20, 3
      %p33 = por %p31, %p32
      %p34 = scmp.ne.s32.totalorder %s25, %s26
      %p35 = scmp.eq.s32.totalorder %s20, 0
      %p36 = por %p34, %p35
      %p37 = scmp.ne.s32.totalorder %s25, %s26
      %p38 = scmp.eq.s32.totalorder %s21, 3
      %p39 = por %p37, %p38
      %p41 = scmp.ne.s32.totalorder %s26, %s40
      %p42 = scmp.eq.s32.totalorder %s21, 0
      %p43 = por %p41, %p42
      %s44 = ssub.s32 %s15, %s22
      %p45 = scmp.eq.s32.totalorder %s44, 0
      %s47 = sadd.s32 %s46, 1
      %s48 = scalar_select %p45, %s46, %s47
      %p51 = pneg %p45
      %p52 = scmp.eq.s32.totalorder %s15, 3
      %p53 = por %p51, %p52
      %p54 = scmp.ne.s32.totalorder %s46, %s49
      %p55 = scmp.eq.s32.totalorder %s15, 0
      %p56 = por %p54, %p55
      %p57 = scmp.ne.s32.totalorder %s46, %s49
      %p58 = scmp.eq.s32.totalorder %s20, 3
      %p59 = por %p57, %p58
      %p60 = scmp.ne.s32.totalorder %s49, %s50
      %p61 = scmp.eq.s32.totalorder %s20, 0
      %p62 = por %p60, %p61
      %p63 = scmp.ne.s32.totalorder %s49, %s50
      %p64 = scmp.eq.s32.totalorder %s21, 3
      %p65 = por %p63, %p64
      %p67 = scmp.ne.s32.totalorder %s50, %s66
      %p68 = scmp.eq.s32.totalorder %s21, 0
      %p69 = por %p67, %p68
      %s70 = ssub.s32 %s15, %s22
      %p71 = scmp.eq.s32.totalorder %s70, 0
      %s73 = sadd.s32 %s72, 1
      %s74 = scalar_select %p71, %s72, %s73
      %p77 = pneg %p71
      %p78 = scmp.eq.s32.totalorder %s15, 3
      %p79 = por %p77, %p78
      %p80 = scmp.ne.s32.totalorder %s72, %s75
      %p81 = scmp.eq.s32.totalorder %s15, 0
      %p82 = por %p80, %p81
      %p83 = scmp.ne.s32.totalorder %s72, %s75
      %p84 = scmp.eq.s32.totalorder %s20, 3
      %p85 = por %p83, %p84
      %p86 = scmp.ne.s32.totalorder %s75, %s76
      %p87 = scmp.eq.s32.totalorder %s20, 0
      %p88 = por %p86, %p87
      %p89 = scmp.ne.s32.totalorder %s75, %s76
      %p90 = scmp.eq.s32.totalorder %s21, 3
      %p91 = por %p89, %p90
      %p93 = scmp.ne.s32.totalorder %s76, %s92
      %p94 = scmp.eq.s32.totalorder %s21, 0
      %p95 = por %p93, %p94
      %s96 = ssub.s32 %s15, %s22
      %p97 = scmp.eq.s32.totalorder %s96, 0
      %s99 = sadd.s32 %s98, 1
      %s100 = scalar_select %p97, %s98, %s99
      %p103 = pneg %p97
      %p104 = scmp.eq.s32.totalorder %s15, 3
      %p105 = por %p103, %p104
      %p106 = scmp.ne.s32.totalorder %s98, %s101
      %p107 = scmp.eq.s32.totalorder %s15, 0
      %p108 = por %p106, %p107
      %p109 = scmp.ne.s32.totalorder %s98, %s101
      %p110 = scmp.eq.s32.totalorder %s20, 3
      %p111 = por %p109, %p110
      %p112 = scmp.ne.s32.totalorder %s101, %s102
      %p113 = scmp.eq.s32.totalorder %s20, 0
      %p114 = por %p112, %p113
      %p115 = scmp.ne.s32.totalorder %s101, %s102
      %p116 = scmp.eq.s32.totalorder %s21, 3
      %p117 = por %p115, %p116
      %p119 = scmp.ne.s32.totalorder %s102, %s118
      %p120 = scmp.eq.s32.totalorder %s21, 0
      %p121 = por %p119, %p120
      %s123 = sadd.s32 %s122, 1
      %p126 = scmp.eq.s32.totalorder %s15, 3
      %p127 = scmp.ne.s32.totalorder %s122, %s124
      %p128 = scmp.eq.s32.totalorder %s15, 0
      %p129 = por %p127, %p128
      %p130 = scmp.ne.s32.totalorder %s122, %s124
      %p131 = scmp.eq.s32.totalorder %s20, 3
      %p132 = por %p130, %p131
      %p133 = scmp.ne.s32.totalorder %s124, %s125
      %p134 = scmp.eq.s32.totalorder %s20, 0
      %p135 = por %p133, %p134
      %p136 = scmp.ne.s32.totalorder %s124, %s125
      %p137 = scmp.eq.s32.totalorder %s21, 3
      %p138 = por %p136, %p137
      %p140 = scmp.ne.s32.totalorder %s125, %s139
      %p141 = scmp.eq.s32.totalorder %s21, 0
      %p142 = por %p140, %p141
      %s144 = sadd.s32 %s143, 1
      %p147 = scmp.eq.s32.totalorder %s15, 3
      %p148 = scmp.ne.s32.totalorder %s143, %s145
      %p149 = scmp.eq.s32.totalorder %s15, 0
      %p150 = por %p148, %p149
      %p151 = scmp.ne.s32.totalorder %s143, %s145
      %p152 = scmp.eq.s32.totalorder %s20, 3
      %p153 = por %p151, %p152
      %p154 = scmp.ne.s32.totalorder %s145, %s146
      %p155 = scmp.eq.s32.totalorder %s20, 0
      %p156 = por %p154, %p155
      %p157 = scmp.ne.s32.totalorder %s145, %s146
      %p158 = scmp.eq.s32.totalorder %s21, 3
      %p159 = por %p157, %p158
      %p161 = scmp.ne.s32.totalorder %s146, %s160
      %p162 = scmp.eq.s32.totalorder %s21, 0
      %p163 = por %p161, %p162
      %s165 = sadd.s32 %s164, 1
      %p168 = scmp.eq.s32.totalorder %s15, 3
      %p169 = scmp.ne.s32.totalorder %s164, %s166
      %p170 = scmp.eq.s32.totalorder %s15, 0
      %p171 = por %p169, %p170
      %p172 = scmp.ne.s32.totalorder %s164, %s166
      %p173 = scmp.eq.s32.totalorder %s20, 3
      %p174 = por %p172, %p173
      %p175 = scmp.ne.s32.totalorder %s166, %s167
      %p176 = scmp.eq.s32.totalorder %s20, 0
      %p177 = por %p175, %p176
      %p178 = scmp.ne.s32.totalorder %s166, %s167
      %p179 = scmp.eq.s32.totalorder %s21, 3
      %p180 = por %p178, %p179
      %p182 = scmp.ne.s32.totalorder %s167, %s181
      %p183 = scmp.eq.s32.totalorder %s21, 0
      %p184 = por %p182, %p183
      %s186 = sadd.s32 %s185, 1
      %p189 = scmp.eq.s32.totalorder %s15, 3
      %p190 = scmp.ne.s32.totalorder %s185, %s187
      %p191 = scmp.eq.s32.totalorder %s15, 0
      %p192 = por %p190, %p191
      %p193 = scmp.ne.s32.totalorder %s185, %s187
      %p194 = scmp.eq.s32.totalorder %s20, 3
      %p195 = por %p193, %p194
      %p196 = scmp.ne.s32.totalorder %s187, %s188
      %p197 = scmp.eq.s32.totalorder %s20, 0
      %p198 = por %p196, %p197
      %p199 = scmp.ne.s32.totalorder %s187, %s188
      %p200 = scmp.eq.s32.totalorder %s21, 3
      %p201 = por %p199, %p200
      %p203 = scmp.ne.s32.totalorder %s188, %s202
      %p204 = scmp.eq.s32.totalorder %s21, 0
      %p205 = por %p203, %p204
      %s207 = sadd.s32 %s206, 1
      %p210 = scmp.eq.s32.totalorder %s15, 3
      %p211 = scmp.ne.s32.totalorder %s206, %s208
      %p212 = scmp.eq.s32.totalorder %s15, 0
      %p213 = por %p211, %p212
      %p214 = scmp.ne.s32.totalorder %s206, %s208
      %p215 = scmp.eq.s32.totalorder %s20, 3
      %p216 = por %p214, %p215
      %p217 = scmp.ne.s32.totalorder %s208, %s209
      %p218 = scmp.eq.s32.totalorder %s20, 0
      %p219 = por %p217, %p218
      %p220 = scmp.ne.s32.totalorder %s208, %s209
      %p221 = scmp.eq.s32.totalorder %s21, 3
      %p222 = por %p220, %p221
      %p224 = scmp.ne.s32.totalorder %s209, %s223
      %p225 = scmp.eq.s32.totalorder %s21, 0
      %p226 = por %p224, %p225
      %s228 = sadd.s32 %s227, 1
      %p231 = scmp.eq.s32.totalorder %s15, 3
      %p232 = scmp.ne.s32.totalorder %s227, %s229
      %p233 = scmp.eq.s32.totalorder %s15, 0
      %p234 = por %p232, %p233
      %p235 = scmp.ne.s32.totalorder %s227, %s229
      %p236 = scmp.eq.s32.totalorder %s20, 3
      %p237 = por %p235, %p236
      %p238 = scmp.ne.s32.totalorder %s229, %s230
      %p239 = scmp.eq.s32.totalorder %s20, 0
      %p240 = por %p238, %p239
      %p241 = scmp.ne.s32.totalorder %s229, %s230
      %p242 = scmp.eq.s32.totalorder %s21, 3
      %p243 = por %p241, %p242
      %p245 = scmp.ne.s32.totalorder %s230, %s244
      %p246 = scmp.eq.s32.totalorder %s21, 0
      %p247 = por %p245, %p246
      %p248 = scmp.le.s32.totalorder 1, %s15
      %p249 = scmp.lt.s32.totalorder %s15, 5
      %p250 = pnand %p248, %p249
      %p251 = pneg %p250
      // Predicated region
      $region9: #{net_forward.5} parent=5 // pred_check
        _
      $region10: #{net_forward.5} parent=5 // pred_check_branch
        %253 = sbr.rel (%p250) target = $region12
      $region11: #{net_forward.5} parent=5 // pred_region
        %s254 = ssub.s32 %s15, 1
        // Predicated region
        $region13: #{net_forward.5} parent=11 // pred_check
          %p255 = pneg %p36
        $region14: #{net_forward.5} parent=11 // pred_check_branch
          %257 = sbr.rel (%p255) target = $region16
        $region15: #{net_forward.5} parent=11 // pred_region
          _
        $region16: #{net_forward.5} parent=11 // pred_fallthru
          _
        // Predicated region
        $region17: #{net_forward.5} parent=11 // pred_check
          %p258 = pneg %p135
        $region18: #{net_forward.5} parent=11 // pred_check_branch
          %260 = sbr.rel (%p258) target = $region20
        $region19: #{net_forward.5} parent=11 // pred_region
          _
        $region20: #{net_forward.5} parent=11 // pred_fallthru
          _
        // Predicated region
        $region21: #{net_forward.5} parent=11 // pred_check
          %p261 = pneg %p156
        $region22: #{net_forward.5} parent=11 // pred_check_branch
          %263 = sbr.rel (%p261) target = $region24
        $region23: #{net_forward.5} parent=11 // pred_region
          _
        $region24: #{net_forward.5} parent=11 // pred_fallthru
          _
        // Predicated region
        $region25: #{net_forward.5} parent=11 // pred_check
          %p264 = pneg %p177
        $region26: #{net_forward.5} parent=11 // pred_check_branch
          %266 = sbr.rel (%p264) target = $region28
        $region27: #{net_forward.5} parent=11 // pred_region
          _
        $region28: #{net_forward.5} parent=11 // pred_fallthru
          _
        // Predicated region
        $region29: #{net_forward.5} parent=11 // pred_check
          %p267 = pneg %p198
        $region30: #{net_forward.5} parent=11 // pred_check_branch
          %269 = sbr.rel (%p267) target = $region32
        $region31: #{net_forward.5} parent=11 // pred_region
          _
        $region32: #{net_forward.5} parent=11 // pred_fallthru
          _
        // Predicated region
        $region33: #{net_forward.5} parent=11 // pred_check
          %p270 = pneg %p219
        $region34: #{net_forward.5} parent=11 // pred_check_branch
          %272 = sbr.rel (%p270) target = $region36
        $region35: #{net_forward.5} parent=11 // pred_region
          _
        $region36: #{net_forward.5} parent=11 // pred_fallthru
          _
      $region12: #{net_forward.5} parent=5 // pred_fallthru
        _
      %p273 = scmp.lt.s32.totalorder %s15, 4
      // Predicated region
      $region37: #{net_forward.5} parent=5 // pred_check
        %p274 = pneg %p273
      $region38: #{net_forward.5} parent=5 // pred_check_branch
        %276 = sbr.rel (%p274) target = $region40
      $region39: #{net_forward.5} parent=5 // pred_region
        // Predicated region
        $region41: #{net_forward.5} parent=39 // pred_check
          %p277 = pneg %p56
        $region42: #{net_forward.5} parent=39 // pred_check_branch
          %279 = sbr.rel (%p277) target = $region44
        $region43: #{net_forward.5} parent=39 // pred_region
          %s280 = sand.u32 %s46, 1
          %s281 = sand.u32 %s46, 1
          %s282 = smul.addr %s281, 5408
          %s283 = scalar_lea.vmem [#allocation3], %s282
          %s284 = smul.u32 4, %s15
          %s285 = smul.addr %s284, 4
          %s286 = scalar_lea.vmem %s1, %s285
          // Predicated region
          $region45: #{net_forward.5} parent=43 // pred_check
            _
          $region46: #{net_forward.5} parent=43 // pred_check_branch
            %288 = sbr.rel (0) target = $region48
          $region47: #{net_forward.5} parent=43 // pred_region
            // Predicated region
            $region49: #{net_forward.5} parent=47 // pred_check
              _
            $region50: #{net_forward.5} parent=47 // pred_check_branch
              %290 = sbr.rel (0) target = $region52
            $region51: #{net_forward.5} parent=47 // pred_region
              loop: start=0, step=1, limit=1
              $region53: #{net_forward.5} parent=51 // loop_pre_header
                _
              $region54: #{net_forward.5} parent=51 // loop_header
                %s292 = sphi 0, %s296
                %p293 = scmp.ge.s32.totalorder %s292, 1
                %s297 = sphi %s286, %s286
                %s298 = sphi %s283, %s283
              $region55: #{net_forward.5} parent=51 // loop_header_branch
                %295 = sbr.rel (%p293) target = $region59
              $region56: #{net_forward.5} parent=51 // loop_body
                %v299 = vld [vmem:[%s297] sm:$0xff]
                %300 = vst [vmem:[%s298] sm:$0xff] %v299
                %v301 = vld [vmem:[%s297 + $0x8] sm:$0xff]
                %302 = vst [vmem:[%s298 + $0x8] sm:$0xff] %v301
                %v303 = vld [vmem:[%s297 + $0x40] sm:$0xff]
                %304 = vst [vmem:[%s298 + $0x10] sm:$0xff] %v303
                %v305 = vld [vmem:[%s297 + $0x48] sm:$0xff]
                %306 = vst [vmem:[%s298 + $0x18] sm:$0xff] %v305
                %v307 = vld [vmem:[%s297 + $0x80] sm:$0xff]
                %308 = vst [vmem:[%s298 + $0x20] sm:$0xff] %v307
                %v309 = vld [vmem:[%s297 + $0x88] sm:$0xff]
                %310 = vst [vmem:[%s298 + $0x28] sm:$0xff] %v309
                %v311 = vld [vmem:[%s297 + $0xc0] sm:$0xff]
                %312 = vst [vmem:[%s298 + $0x30] sm:$0xff] %v311
                %v313 = vld [vmem:[%s297 + $0xc8] sm:$0xff]
                %314 = vst [vmem:[%s298 + $0x38] sm:$0xff] %v313
                %v315 = vld [vmem:[%s297 + $0x100] sm:$0xff]
                %316 = vst [vmem:[%s298 + $0x40] sm:$0xff] %v315
                %v317 = vld [vmem:[%s297 + $0x108] sm:$0xff]
                %318 = vst [vmem:[%s298 + $0x48] sm:$0xff] %v317
                %v319 = vld [vmem:[%s297 + $0x140] sm:$0xff]
                %320 = vst [vmem:[%s298 + $0x50] sm:$0xff] %v319
                %v321 = vld [vmem:[%s297 + $0x148] sm:$0xff]
                %322 = vst [vmem:[%s298 + $0x58] sm:$0xff] %v321
                %v323 = vld [vmem:[%s297 + $0x180] sm:$0xff]
                %324 = vst [vmem:[%s298 + $0x60] sm:$0xff] %v323
                %v325 = vld [vmem:[%s297 + $0x188] sm:$0xff]
                %326 = vst [vmem:[%s298 + $0x68] sm:$0xff] %v325
                %v327 = vld [vmem:[%s297 + $0x1c0] sm:$0xff]
                %328 = vst [vmem:[%s298 + $0x70] sm:$0xff] %v327
                %v329 = vld [vmem:[%s297 + $0x1c8] sm:$0xff]
                %330 = vst [vmem:[%s298 + $0x78] sm:$0xff] %v329
                %v331 = vld [vmem:[%s297 + $0x200] sm:$0xff]
                %332 = vst [vmem:[%s298 + $0x80] sm:$0xff] %v331
                %v333 = vld [vmem:[%s297 + $0x208] sm:$0xff]
                %334 = vst [vmem:[%s298 + $0x88] sm:$0xff] %v333
                %v335 = vld [vmem:[%s297 + $0x240] sm:$0xff]
                %336 = vst [vmem:[%s298 + $0x90] sm:$0xff] %v335
                %v337 = vld [vmem:[%s297 + $0x248] sm:$0xff]
                %338 = vst [vmem:[%s298 + $0x98] sm:$0xff] %v337
                %v339 = vld [vmem:[%s297 + $0x280] sm:$0xff]
                %340 = vst [vmem:[%s298 + $0xa0] sm:$0xff] %v339
                %v341 = vld [vmem:[%s297 + $0x288] sm:$0xff]
                %342 = vst [vmem:[%s298 + $0xa8] sm:$0xff] %v341
                %v343 = vld [vmem:[%s297 + $0x2c0] sm:$0xff]
                %344 = vst [vmem:[%s298 + $0xb0] sm:$0xff] %v343
                %v345 = vld [vmem:[%s297 + $0x2c8] sm:$0xff]
                %346 = vst [vmem:[%s298 + $0xb8] sm:$0xff] %v345
                %v347 = vld [vmem:[%s297 + $0x300] sm:$0xff]
                %348 = vst [vmem:[%s298 + $0xc0] sm:$0xff] %v347
                %v349 = vld [vmem:[%s297 + $0x308] sm:$0xff]
                %350 = vst [vmem:[%s298 + $0xc8] sm:$0xff] %v349
                %v351 = vld [vmem:[%s297 + $0x340] sm:$0xff]
                %352 = vst [vmem:[%s298 + $0xd0] sm:$0xff] %v351
                %v353 = vld [vmem:[%s297 + $0x348] sm:$0xff]
                %354 = vst [vmem:[%s298 + $0xd8] sm:$0xff] %v353
                %v355 = vld [vmem:[%s297 + $0x380] sm:$0xff]
                %356 = vst [vmem:[%s298 + $0xe0] sm:$0xff] %v355
                %v357 = vld [vmem:[%s297 + $0x388] sm:$0xff]
                %358 = vst [vmem:[%s298 + $0xe8] sm:$0xff] %v357
                %v359 = vld [vmem:[%s297 + $0x3c0] sm:$0xff]
                %360 = vst [vmem:[%s298 + $0xf0] sm:$0xff] %v359
                %v361 = vld [vmem:[%s297 + $0x3c8] sm:$0xff]
                %362 = vst [vmem:[%s298 + $0xf8] sm:$0xff] %v361
                %v363 = vld [vmem:[%s297 + $0x400] sm:$0xff]
                %364 = vst [vmem:[%s298 + $0x100] sm:$0xff] %v363
                %v365 = vld [vmem:[%s297 + $0x408] sm:$0xff]
                %366 = vst [vmem:[%s298 + $0x108] sm:$0xff] %v365
                %v367 = vld [vmem:[%s297 + $0x440] sm:$0xff]
                %368 = vst [vmem:[%s298 + $0x110] sm:$0xff] %v367
                %v369 = vld [vmem:[%s297 + $0x448] sm:$0xff]
                %370 = vst [vmem:[%s298 + $0x118] sm:$0xff] %v369
                %v371 = vld [vmem:[%s297 + $0x480] sm:$0xff]
                %372 = vst [vmem:[%s298 + $0x120] sm:$0xff] %v371
                %v373 = vld [vmem:[%s297 + $0x488] sm:$0xff]
                %374 = vst [vmem:[%s298 + $0x128] sm:$0xff] %v373
                %v375 = vld [vmem:[%s297 + $0x4c0] sm:$0xff]
                %376 = vst [vmem:[%s298 + $0x130] sm:$0xff] %v375
                %v377 = vld [vmem:[%s297 + $0x4c8] sm:$0xff]
                %378 = vst [vmem:[%s298 + $0x138] sm:$0xff] %v377
                %v379 = vld [vmem:[%s297 + $0x500] sm:$0xff]
                %380 = vst [vmem:[%s298 + $0x140] sm:$0xff] %v379
                %v381 = vld [vmem:[%s297 + $0x508] sm:$0xff]
                %382 = vst [vmem:[%s298 + $0x148] sm:$0xff] %v381
                %v383 = vld [vmem:[%s297 + $0x540] sm:$0xff]
                %384 = vst [vmem:[%s298 + $0x150] sm:$0xff] %v383
                %v385 = vld [vmem:[%s297 + $0x548] sm:$0xff]
                %386 = vst [vmem:[%s298 + $0x158] sm:$0xff] %v385
                %v387 = vld [vmem:[%s297 + $0x580] sm:$0xff]
                %388 = vst [vmem:[%s298 + $0x160] sm:$0xff] %v387
                %v389 = vld [vmem:[%s297 + $0x588] sm:$0xff]
                %390 = vst [vmem:[%s298 + $0x168] sm:$0xff] %v389
                %v391 = vld [vmem:[%s297 + $0x5c0] sm:$0xff]
                %392 = vst [vmem:[%s298 + $0x170] sm:$0xff] %v391
                %v393 = vld [vmem:[%s297 + $0x5c8] sm:$0xff]
                %394 = vst [vmem:[%s298 + $0x178] sm:$0xff] %v393
                %v395 = vld [vmem:[%s297 + $0x600] sm:$0xff]
                %396 = vst [vmem:[%s298 + $0x180] sm:$0xff] %v395
                %v397 = vld [vmem:[%s297 + $0x608] sm:$0xff]
                %398 = vst [vmem:[%s298 + $0x188] sm:$0xff] %v397
                %v399 = vld [vmem:[%s297 + $0x640] sm:$0xff]
                %400 = vst [vmem:[%s298 + $0x190] sm:$0xff] %v399
                %v401 = vld [vmem:[%s297 + $0x648] sm:$0xff]
                %402 = vst [vmem:[%s298 + $0x198] sm:$0xff] %v401
                %v403 = vld [vmem:[%s297 + $0x680] sm:$0xff]
                %404 = vst [vmem:[%s298 + $0x1a0] sm:$0xff] %v403
                %v405 = vld [vmem:[%s297 + $0x688] sm:$0xff]
                %406 = vst [vmem:[%s298 + $0x1a8] sm:$0xff] %v405
                %v407 = vld [vmem:[%s297 + $0x6c0] sm:$0xff]
                %408 = vst [vmem:[%s298 + $0x1b0] sm:$0xff] %v407
                %v409 = vld [vmem:[%s297 + $0x6c8] sm:$0xff]
                %410 = vst [vmem:[%s298 + $0x1b8] sm:$0xff] %v409
                %v411 = vld [vmem:[%s297 + $0x700] sm:$0xff]
                %412 = vst [vmem:[%s298 + $0x1c0] sm:$0xff] %v411
                %v413 = vld [vmem:[%s297 + $0x708] sm:$0xff]
                %414 = vst [vmem:[%s298 + $0x1c8] sm:$0xff] %v413
                %v415 = vld [vmem:[%s297 + $0x740] sm:$0xff]
                %416 = vst [vmem:[%s298 + $0x1d0] sm:$0xff] %v415
                %v417 = vld [vmem:[%s297 + $0x748] sm:$0xff]
                %418 = vst [vmem:[%s298 + $0x1d8] sm:$0xff] %v417
                %v419 = vld [vmem:[%s297 + $0x780] sm:$0xff]
                %420 = vst [vmem:[%s298 + $0x1e0] sm:$0xff] %v419
                %v421 = vld [vmem:[%s297 + $0x788] sm:$0xff]
                %422 = vst [vmem:[%s298 + $0x1e8] sm:$0xff] %v421
                %v423 = vld [vmem:[%s297 + $0x7c0] sm:$0xff]
                %424 = vst [vmem:[%s298 + $0x1f0] sm:$0xff] %v423
                %v425 = vld [vmem:[%s297 + $0x7c8] sm:$0xff]
                %426 = vst [vmem:[%s298 + $0x1f8] sm:$0xff] %v425
                %v427 = vld [vmem:[%s297 + $0x800] sm:$0xff]
                %428 = vst [vmem:[%s298 + $0x200] sm:$0xff] %v427
                %v429 = vld [vmem:[%s297 + $0x808] sm:$0xff]
                %430 = vst [vmem:[%s298 + $0x208] sm:$0xff] %v429
                %v431 = vld [vmem:[%s297 + $0x840] sm:$0xff]
                %432 = vst [vmem:[%s298 + $0x210] sm:$0xff] %v431
                %v433 = vld [vmem:[%s297 + $0x848] sm:$0xff]
                %434 = vst [vmem:[%s298 + $0x218] sm:$0xff] %v433
                %v435 = vld [vmem:[%s297 + $0x880] sm:$0xff]
                %436 = vst [vmem:[%s298 + $0x220] sm:$0xff] %v435
                %v437 = vld [vmem:[%s297 + $0x888] sm:$0xff]
                %438 = vst [vmem:[%s298 + $0x228] sm:$0xff] %v437
                %v439 = vld [vmem:[%s297 + $0x8c0] sm:$0xff]
                %440 = vst [vmem:[%s298 + $0x230] sm:$0xff] %v439
                %v441 = vld [vmem:[%s297 + $0x8c8] sm:$0xff]
                %442 = vst [vmem:[%s298 + $0x238] sm:$0xff] %v441
                %v443 = vld [vmem:[%s297 + $0x900] sm:$0xff]
                %444 = vst [vmem:[%s298 + $0x240] sm:$0xff] %v443
                %v445 = vld [vmem:[%s297 + $0x908] sm:$0xff]
                %446 = vst [vmem:[%s298 + $0x248] sm:$0xff] %v445
                %v447 = vld [vmem:[%s297 + $0x940] sm:$0xff]
                %448 = vst [vmem:[%s298 + $0x250] sm:$0xff] %v447
                %v449 = vld [vmem:[%s297 + $0x948] sm:$0xff]
                %450 = vst [vmem:[%s298 + $0x258] sm:$0xff] %v449
                %v451 = vld [vmem:[%s297 + $0x980] sm:$0xff]
                %452 = vst [vmem:[%s298 + $0x260] sm:$0xff] %v451
                %v453 = vld [vmem:[%s297 + $0x988] sm:$0xff]
                %454 = vst [vmem:[%s298 + $0x268] sm:$0xff] %v453
                %v455 = vld [vmem:[%s297 + $0x9c0] sm:$0xff]
                %456 = vst [vmem:[%s298 + $0x270] sm:$0xff] %v455
                %v457 = vld [vmem:[%s297 + $0x9c8] sm:$0xff]
                %458 = vst [vmem:[%s298 + $0x278] sm:$0xff] %v457
                %v459 = vld [vmem:[%s297 + $0xa00] sm:$0xff]
                %460 = vst [vmem:[%s298 + $0x280] sm:$0xff] %v459
                %v461 = vld [vmem:[%s297 + $0xa08] sm:$0xff]
                %462 = vst [vmem:[%s298 + $0x288] sm:$0xff] %v461
                %v463 = vld [vmem:[%s297 + $0xa40] sm:$0xff]
                %464 = vst [vmem:[%s298 + $0x290] sm:$0xff] %v463
                %v465 = vld [vmem:[%s297 + $0xa48] sm:$0xff]
                %466 = vst [vmem:[%s298 + $0x298] sm:$0xff] %v465
                %v467 = vld [vmem:[%s297 + $0xa80] sm:$0xff]
                %468 = vst [vmem:[%s298 + $0x2a0] sm:$0xff] %v467
                %v469 = vld [vmem:[%s297 + $0xa88] sm:$0xff]
                %470 = vst [vmem:[%s298 + $0x2a8] sm:$0xff] %v469
                %v471 = vld [vmem:[%s297 + $0xac0] sm:$0xff]
                %472 = vst [vmem:[%s298 + $0x2b0] sm:$0xff] %v471
                %v473 = vld [vmem:[%s297 + $0xac8] sm:$0xff]
                %474 = vst [vmem:[%s298 + $0x2b8] sm:$0xff] %v473
                %v475 = vld [vmem:[%s297 + $0xb00] sm:$0xff]
                %476 = vst [vmem:[%s298 + $0x2c0] sm:$0xff] %v475
                %v477 = vld [vmem:[%s297 + $0xb08] sm:$0xff]
                %478 = vst [vmem:[%s298 + $0x2c8] sm:$0xff] %v477
                %v479 = vld [vmem:[%s297 + $0xb40] sm:$0xff]
                %480 = vst [vmem:[%s298 + $0x2d0] sm:$0xff] %v479
                %v481 = vld [vmem:[%s297 + $0xb48] sm:$0xff]
                %482 = vst [vmem:[%s298 + $0x2d8] sm:$0xff] %v481
                %v483 = vld [vmem:[%s297 + $0xb80] sm:$0xff]
                %484 = vst [vmem:[%s298 + $0x2e0] sm:$0xff] %v483
                %v485 = vld [vmem:[%s297 + $0xb88] sm:$0xff]
                %486 = vst [vmem:[%s298 + $0x2e8] sm:$0xff] %v485
                %v487 = vld [vmem:[%s297 + $0xbc0] sm:$0xff]
                %488 = vst [vmem:[%s298 + $0x2f0] sm:$0xff] %v487
                %v489 = vld [vmem:[%s297 + $0xbc8] sm:$0xff]
                %490 = vst [vmem:[%s298 + $0x2f8] sm:$0xff] %v489
                %v491 = vld [vmem:[%s297 + $0xc00] sm:$0xff]
                %492 = vst [vmem:[%s298 + $0x300] sm:$0xff] %v491
                %v493 = vld [vmem:[%s297 + $0xc08] sm:$0xff]
                %494 = vst [vmem:[%s298 + $0x308] sm:$0xff] %v493
                %v495 = vld [vmem:[%s297 + $0xc40] sm:$0xff]
                %496 = vst [vmem:[%s298 + $0x310] sm:$0xff] %v495
                %v497 = vld [vmem:[%s297 + $0xc48] sm:$0xff]
                %498 = vst [vmem:[%s298 + $0x318] sm:$0xff] %v497
                %v499 = vld [vmem:[%s297 + $0xc80] sm:$0xff]
                %500 = vst [vmem:[%s298 + $0x320] sm:$0xff] %v499
                %v501 = vld [vmem:[%s297 + $0xc88] sm:$0xff]
                %502 = vst [vmem:[%s298 + $0x328] sm:$0xff] %v501
                %v503 = vld [vmem:[%s297 + $0xcc0] sm:$0xff]
                %504 = vst [vmem:[%s298 + $0x330] sm:$0xff] %v503
                %v505 = vld [vmem:[%s297 + $0xcc8] sm:$0xff]
                %506 = vst [vmem:[%s298 + $0x338] sm:$0xff] %v505
                %v507 = vld [vmem:[%s297 + $0xd00] sm:$0xff]
                %508 = vst [vmem:[%s298 + $0x340] sm:$0xff] %v507
                %v509 = vld [vmem:[%s297 + $0xd08] sm:$0xff]
                %510 = vst [vmem:[%s298 + $0x348] sm:$0xff] %v509
                %v511 = vld [vmem:[%s297 + $0xd40] sm:$0xff]
                %512 = vst [vmem:[%s298 + $0x350] sm:$0xff] %v511
                %v513 = vld [vmem:[%s297 + $0xd48] sm:$0xff]
                %514 = vst [vmem:[%s298 + $0x358] sm:$0xff] %v513
                %v515 = vld [vmem:[%s297 + $0xd80] sm:$0xff]
                %516 = vst [vmem:[%s298 + $0x360] sm:$0xff] %v515
                %v517 = vld [vmem:[%s297 + $0xd88] sm:$0xff]
                %518 = vst [vmem:[%s298 + $0x368] sm:$0xff] %v517
                %v519 = vld [vmem:[%s297 + $0xdc0] sm:$0xff]
                %520 = vst [vmem:[%s298 + $0x370] sm:$0xff] %v519
                %v521 = vld [vmem:[%s297 + $0xdc8] sm:$0xff]
                %522 = vst [vmem:[%s298 + $0x378] sm:$0xff] %v521
                %v523 = vld [vmem:[%s297 + $0xe00] sm:$0xff]
                %524 = vst [vmem:[%s298 + $0x380] sm:$0xff] %v523
                %v525 = vld [vmem:[%s297 + $0xe08] sm:$0xff]
                %526 = vst [vmem:[%s298 + $0x388] sm:$0xff] %v525
                %v527 = vld [vmem:[%s297 + $0xe40] sm:$0xff]
                %528 = vst [vmem:[%s298 + $0x390] sm:$0xff] %v527
                %v529 = vld [vmem:[%s297 + $0xe48] sm:$0xff]
                %530 = vst [vmem:[%s298 + $0x398] sm:$0xff] %v529
                %v531 = vld [vmem:[%s297 + $0xe80] sm:$0xff]
                %532 = vst [vmem:[%s298 + $0x3a0] sm:$0xff] %v531
                %v533 = vld [vmem:[%s297 + $0xe88] sm:$0xff]
                %534 = vst [vmem:[%s298 + $0x3a8] sm:$0xff] %v533
                %v535 = vld [vmem:[%s297 + $0xec0] sm:$0xff]
                %536 = vst [vmem:[%s298 + $0x3b0] sm:$0xff] %v535
                %v537 = vld [vmem:[%s297 + $0xec8] sm:$0xff]
                %538 = vst [vmem:[%s298 + $0x3b8] sm:$0xff] %v537
                %v539 = vld [vmem:[%s297 + $0xf00] sm:$0xff]
                %540 = vst [vmem:[%s298 + $0x3c0] sm:$0xff] %v539
                %v541 = vld [vmem:[%s297 + $0xf08] sm:$0xff]
                %542 = vst [vmem:[%s298 + $0x3c8] sm:$0xff] %v541
                %v543 = vld [vmem:[%s297 + $0xf40] sm:$0xff]
                %544 = vst [vmem:[%s298 + $0x3d0] sm:$0xff] %v543
                %v545 = vld [vmem:[%s297 + $0xf48] sm:$0xff]
                %546 = vst [vmem:[%s298 + $0x3d8] sm:$0xff] %v545
                %v547 = vld [vmem:[%s297 + $0xf80] sm:$0xff]
                %548 = vst [vmem:[%s298 + $0x3e0] sm:$0xff] %v547
                %v549 = vld [vmem:[%s297 + $0xf88] sm:$0xff]
                %550 = vst [vmem:[%s298 + $0x3e8] sm:$0xff] %v549
                %v551 = vld [vmem:[%s297 + $0xfc0] sm:$0xff]
                %552 = vst [vmem:[%s298 + $0x3f0] sm:$0xff] %v551
                %v553 = vld [vmem:[%s297 + $0xfc8] sm:$0xff]
                %554 = vst [vmem:[%s298 + $0x3f8] sm:$0xff] %v553
                %v555 = vld [vmem:[%s297 + $0x1000] sm:$0xff]
                %556 = vst [vmem:[%s298 + $0x400] sm:$0xff] %v555
                %v557 = vld [vmem:[%s297 + $0x1008] sm:$0xff]
                %558 = vst [vmem:[%s298 + $0x408] sm:$0xff] %v557
                %v559 = vld [vmem:[%s297 + $0x1040] sm:$0xff]
                %560 = vst [vmem:[%s298 + $0x410] sm:$0xff] %v559
                %v561 = vld [vmem:[%s297 + $0x1048] sm:$0xff]
                %562 = vst [vmem:[%s298 + $0x418] sm:$0xff] %v561
                %v563 = vld [vmem:[%s297 + $0x1080] sm:$0xff]
                %564 = vst [vmem:[%s298 + $0x420] sm:$0xff] %v563
                %v565 = vld [vmem:[%s297 + $0x1088] sm:$0xff]
                %566 = vst [vmem:[%s298 + $0x428] sm:$0xff] %v565
                %v567 = vld [vmem:[%s297 + $0x10c0] sm:$0xff]
                %568 = vst [vmem:[%s298 + $0x430] sm:$0xff] %v567
                %v569 = vld [vmem:[%s297 + $0x10c8] sm:$0xff]
                %570 = vst [vmem:[%s298 + $0x438] sm:$0xff] %v569
                %v571 = vld [vmem:[%s297 + $0x1100] sm:$0xff]
                %572 = vst [vmem:[%s298 + $0x440] sm:$0xff] %v571
                %v573 = vld [vmem:[%s297 + $0x1108] sm:$0xff]
                %574 = vst [vmem:[%s298 + $0x448] sm:$0xff] %v573
                %v575 = vld [vmem:[%s297 + $0x1140] sm:$0xff]
                %576 = vst [vmem:[%s298 + $0x450] sm:$0xff] %v575
                %v577 = vld [vmem:[%s297 + $0x1148] sm:$0xff]
                %578 = vst [vmem:[%s298 + $0x458] sm:$0xff] %v577
                %v579 = vld [vmem:[%s297 + $0x1180] sm:$0xff]
                %580 = vst [vmem:[%s298 + $0x460] sm:$0xff] %v579
                %v581 = vld [vmem:[%s297 + $0x1188] sm:$0xff]
                %582 = vst [vmem:[%s298 + $0x468] sm:$0xff] %v581
                %v583 = vld [vmem:[%s297 + $0x11c0] sm:$0xff]
                %584 = vst [vmem:[%s298 + $0x470] sm:$0xff] %v583
                %v585 = vld [vmem:[%s297 + $0x11c8] sm:$0xff]
                %586 = vst [vmem:[%s298 + $0x478] sm:$0xff] %v585
                %v587 = vld [vmem:[%s297 + $0x1200] sm:$0xff]
                %588 = vst [vmem:[%s298 + $0x480] sm:$0xff] %v587
                %v589 = vld [vmem:[%s297 + $0x1208] sm:$0xff]
                %590 = vst [vmem:[%s298 + $0x488] sm:$0xff] %v589
                %v591 = vld [vmem:[%s297 + $0x1240] sm:$0xff]
                %592 = vst [vmem:[%s298 + $0x490] sm:$0xff] %v591
                %v593 = vld [vmem:[%s297 + $0x1248] sm:$0xff]
                %594 = vst [vmem:[%s298 + $0x498] sm:$0xff] %v593
                %v595 = vld [vmem:[%s297 + $0x1280] sm:$0xff]
                %596 = vst [vmem:[%s298 + $0x4a0] sm:$0xff] %v595
                %v597 = vld [vmem:[%s297 + $0x1288] sm:$0xff]
                %598 = vst [vmem:[%s298 + $0x4a8] sm:$0xff] %v597
                %v599 = vld [vmem:[%s297 + $0x12c0] sm:$0xff]
                %600 = vst [vmem:[%s298 + $0x4b0] sm:$0xff] %v599
                %v601 = vld [vmem:[%s297 + $0x12c8] sm:$0xff]
                %602 = vst [vmem:[%s298 + $0x4b8] sm:$0xff] %v601
                %v603 = vld [vmem:[%s297 + $0x1300] sm:$0xff]
                %604 = vst [vmem:[%s298 + $0x4c0] sm:$0xff] %v603
                %v605 = vld [vmem:[%s297 + $0x1308] sm:$0xff]
                %606 = vst [vmem:[%s298 + $0x4c8] sm:$0xff] %v605
                %v607 = vld [vmem:[%s297 + $0x1340] sm:$0xff]
                %608 = vst [vmem:[%s298 + $0x4d0] sm:$0xff] %v607
                %v609 = vld [vmem:[%s297 + $0x1348] sm:$0xff]
                %610 = vst [vmem:[%s298 + $0x4d8] sm:$0xff] %v609
                %v611 = vld [vmem:[%s297 + $0x1380] sm:$0xff]
                %612 = vst [vmem:[%s298 + $0x4e0] sm:$0xff] %v611
                %v613 = vld [vmem:[%s297 + $0x1388] sm:$0xff]
                %614 = vst [vmem:[%s298 + $0x4e8] sm:$0xff] %v613
                %v615 = vld [vmem:[%s297 + $0x13c0] sm:$0xff]
                %616 = vst [vmem:[%s298 + $0x4f0] sm:$0xff] %v615
                %v617 = vld [vmem:[%s297 + $0x13c8] sm:$0xff]
                %618 = vst [vmem:[%s298 + $0x4f8] sm:$0xff] %v617
                %v619 = vld [vmem:[%s297 + $0x1400] sm:$0xff]
                %620 = vst [vmem:[%s298 + $0x500] sm:$0xff] %v619
                %v621 = vld [vmem:[%s297 + $0x1408] sm:$0xff]
                %622 = vst [vmem:[%s298 + $0x508] sm:$0xff] %v621
                %v623 = vld [vmem:[%s297 + $0x1440] sm:$0xff]
                %624 = vst [vmem:[%s298 + $0x510] sm:$0xff] %v623
                %v625 = vld [vmem:[%s297 + $0x1448] sm:$0xff]
                %626 = vst [vmem:[%s298 + $0x518] sm:$0xff] %v625
                %v627 = vld [vmem:[%s297 + $0x1480] sm:$0xff]
                %628 = vst [vmem:[%s298 + $0x520] sm:$0xff] %v627
                %v629 = vld [vmem:[%s297 + $0x1488] sm:$0xff]
                %630 = vst [vmem:[%s298 + $0x528] sm:$0xff] %v629
                %v631 = vld [vmem:[%s297 + $0x14c0] sm:$0xff]
                %632 = vst [vmem:[%s298 + $0x530] sm:$0xff] %v631
                %v633 = vld [vmem:[%s297 + $0x14c8] sm:$0xff]
                %634 = vst [vmem:[%s298 + $0x538] sm:$0xff] %v633
                %v635 = vld [vmem:[%s297 + $0x1500] sm:$0xff]
                %636 = vst [vmem:[%s298 + $0x540] sm:$0xff] %v635
                %v637 = vld [vmem:[%s297 + $0x1508] sm:$0xff]
                %638 = vst [vmem:[%s298 + $0x548] sm:$0xff] %v637
                %v639 = vld [vmem:[%s297 + $0x1540] sm:$0xff]
                %640 = vst [vmem:[%s298 + $0x550] sm:$0xff] %v639
                %v641 = vld [vmem:[%s297 + $0x1548] sm:$0xff]
                %642 = vst [vmem:[%s298 + $0x558] sm:$0xff] %v641
                %v643 = vld [vmem:[%s297 + $0x1580] sm:$0xff]
                %644 = vst [vmem:[%s298 + $0x560] sm:$0xff] %v643
                %v645 = vld [vmem:[%s297 + $0x1588] sm:$0xff]
                %646 = vst [vmem:[%s298 + $0x568] sm:$0xff] %v645
                %v647 = vld [vmem:[%s297 + $0x15c0] sm:$0xff]
                %648 = vst [vmem:[%s298 + $0x570] sm:$0xff] %v647
                %v649 = vld [vmem:[%s297 + $0x15c8] sm:$0xff]
                %650 = vst [vmem:[%s298 + $0x578] sm:$0xff] %v649
                %v651 = vld [vmem:[%s297 + $0x1600] sm:$0xff]
                %652 = vst [vmem:[%s298 + $0x580] sm:$0xff] %v651
                %v653 = vld [vmem:[%s297 + $0x1608] sm:$0xff]
                %654 = vst [vmem:[%s298 + $0x588] sm:$0xff] %v653
                %v655 = vld [vmem:[%s297 + $0x1640] sm:$0xff]
                %656 = vst [vmem:[%s298 + $0x590] sm:$0xff] %v655
                %v657 = vld [vmem:[%s297 + $0x1648] sm:$0xff]
                %658 = vst [vmem:[%s298 + $0x598] sm:$0xff] %v657
                %v659 = vld [vmem:[%s297 + $0x1680] sm:$0xff]
                %660 = vst [vmem:[%s298 + $0x5a0] sm:$0xff] %v659
                %v661 = vld [vmem:[%s297 + $0x1688] sm:$0xff]
                %662 = vst [vmem:[%s298 + $0x5a8] sm:$0xff] %v661
                %v663 = vld [vmem:[%s297 + $0x16c0] sm:$0xff]
                %664 = vst [vmem:[%s298 + $0x5b0] sm:$0xff] %v663
                %v665 = vld [vmem:[%s297 + $0x16c8] sm:$0xff]
                %666 = vst [vmem:[%s298 + $0x5b8] sm:$0xff] %v665
                %v667 = vld [vmem:[%s297 + $0x1700] sm:$0xff]
                %668 = vst [vmem:[%s298 + $0x5c0] sm:$0xff] %v667
                %v669 = vld [vmem:[%s297 + $0x1708] sm:$0xff]
                %670 = vst [vmem:[%s298 + $0x5c8] sm:$0xff] %v669
                %v671 = vld [vmem:[%s297 + $0x1740] sm:$0xff]
                %672 = vst [vmem:[%s298 + $0x5d0] sm:$0xff] %v671
                %v673 = vld [vmem:[%s297 + $0x1748] sm:$0xff]
                %674 = vst [vmem:[%s298 + $0x5d8] sm:$0xff] %v673
                %v675 = vld [vmem:[%s297 + $0x1780] sm:$0xff]
                %676 = vst [vmem:[%s298 + $0x5e0] sm:$0xff] %v675
                %v677 = vld [vmem:[%s297 + $0x1788] sm:$0xff]
                %678 = vst [vmem:[%s298 + $0x5e8] sm:$0xff] %v677
                %v679 = vld [vmem:[%s297 + $0x17c0] sm:$0xff]
                %680 = vst [vmem:[%s298 + $0x5f0] sm:$0xff] %v679
                %v681 = vld [vmem:[%s297 + $0x17c8] sm:$0xff]
                %682 = vst [vmem:[%s298 + $0x5f8] sm:$0xff] %v681
                %v683 = vld [vmem:[%s297 + $0x1800] sm:$0xff]
                %684 = vst [vmem:[%s298 + $0x600] sm:$0xff] %v683
                %v685 = vld [vmem:[%s297 + $0x1808] sm:$0xff]
                %686 = vst [vmem:[%s298 + $0x608] sm:$0xff] %v685
                %v687 = vld [vmem:[%s297 + $0x1840] sm:$0xff]
                %688 = vst [vmem:[%s298 + $0x610] sm:$0xff] %v687
                %v689 = vld [vmem:[%s297 + $0x1848] sm:$0xff]
                %690 = vst [vmem:[%s298 + $0x618] sm:$0xff] %v689
                %v691 = vld [vmem:[%s297 + $0x1880] sm:$0xff]
                %692 = vst [vmem:[%s298 + $0x620] sm:$0xff] %v691
                %v693 = vld [vmem:[%s297 + $0x1888] sm:$0xff]
                %694 = vst [vmem:[%s298 + $0x628] sm:$0xff] %v693
                %v695 = vld [vmem:[%s297 + $0x18c0] sm:$0xff]
                %696 = vst [vmem:[%s298 + $0x630] sm:$0xff] %v695
                %v697 = vld [vmem:[%s297 + $0x18c8] sm:$0xff]
                %698 = vst [vmem:[%s298 + $0x638] sm:$0xff] %v697
                %v699 = vld [vmem:[%s297 + $0x1900] sm:$0xff]
                %700 = vst [vmem:[%s298 + $0x640] sm:$0xff] %v699
                %v701 = vld [vmem:[%s297 + $0x1908] sm:$0xff]
                %702 = vst [vmem:[%s298 + $0x648] sm:$0xff] %v701
                %v703 = vld [vmem:[%s297 + $0x1940] sm:$0xff]
                %704 = vst [vmem:[%s298 + $0x650] sm:$0xff] %v703
                %v705 = vld [vmem:[%s297 + $0x1948] sm:$0xff]
                %706 = vst [vmem:[%s298 + $0x658] sm:$0xff] %v705
                %v707 = vld [vmem:[%s297 + $0x1980] sm:$0xff]
                %708 = vst [vmem:[%s298 + $0x660] sm:$0xff] %v707
                %v709 = vld [vmem:[%s297 + $0x1988] sm:$0xff]
                %710 = vst [vmem:[%s298 + $0x668] sm:$0xff] %v709
                %v711 = vld [vmem:[%s297 + $0x19c0] sm:$0xff]
                %712 = vst [vmem:[%s298 + $0x670] sm:$0xff] %v711
                %v713 = vld [vmem:[%s297 + $0x19c8] sm:$0xff]
                %714 = vst [vmem:[%s298 + $0x678] sm:$0xff] %v713
                %v715 = vld [vmem:[%s297 + $0x1a00] sm:$0xff]
                %716 = vst [vmem:[%s298 + $0x680] sm:$0xff] %v715
                %v717 = vld [vmem:[%s297 + $0x1a08] sm:$0xff]
                %718 = vst [vmem:[%s298 + $0x688] sm:$0xff] %v717
                %v719 = vld [vmem:[%s297 + $0x1a40] sm:$0xff]
                %720 = vst [vmem:[%s298 + $0x690] sm:$0xff] %v719
                %v721 = vld [vmem:[%s297 + $0x1a48] sm:$0xff]
                %722 = vst [vmem:[%s298 + $0x698] sm:$0xff] %v721
                %v723 = vld [vmem:[%s297 + $0x1a80] sm:$0xff]
                %724 = vst [vmem:[%s298 + $0x6a0] sm:$0xff] %v723
                %v725 = vld [vmem:[%s297 + $0x1a88] sm:$0xff]
                %726 = vst [vmem:[%s298 + $0x6a8] sm:$0xff] %v725
                %v727 = vld [vmem:[%s297 + $0x1ac0] sm:$0xff]
                %728 = vst [vmem:[%s298 + $0x6b0] sm:$0xff] %v727
                %v729 = vld [vmem:[%s297 + $0x1ac8] sm:$0xff]
                %730 = vst [vmem:[%s298 + $0x6b8] sm:$0xff] %v729
                %v731 = vld [vmem:[%s297 + $0x1b00] sm:$0xff]
                %732 = vst [vmem:[%s298 + $0x6c0] sm:$0xff] %v731
                %v733 = vld [vmem:[%s297 + $0x1b08] sm:$0xff]
                %734 = vst [vmem:[%s298 + $0x6c8] sm:$0xff] %v733
                %v735 = vld [vmem:[%s297 + $0x1b40] sm:$0xff]
                %736 = vst [vmem:[%s298 + $0x6d0] sm:$0xff] %v735
                %v737 = vld [vmem:[%s297 + $0x1b48] sm:$0xff]
                %738 = vst [vmem:[%s298 + $0x6d8] sm:$0xff] %v737
                %v739 = vld [vmem:[%s297 + $0x1b80] sm:$0xff]
                %740 = vst [vmem:[%s298 + $0x6e0] sm:$0xff] %v739
                %v741 = vld [vmem:[%s297 + $0x1b88] sm:$0xff]
                %742 = vst [vmem:[%s298 + $0x6e8] sm:$0xff] %v741
                %v743 = vld [vmem:[%s297 + $0x1bc0] sm:$0xff]
                %744 = vst [vmem:[%s298 + $0x6f0] sm:$0xff] %v743
                %v745 = vld [vmem:[%s297 + $0x1bc8] sm:$0xff]
                %746 = vst [vmem:[%s298 + $0x6f8] sm:$0xff] %v745
                %v747 = vld [vmem:[%s297 + $0x1c00] sm:$0xff]
                %748 = vst [vmem:[%s298 + $0x700] sm:$0xff] %v747
                %v749 = vld [vmem:[%s297 + $0x1c08] sm:$0xff]
                %750 = vst [vmem:[%s298 + $0x708] sm:$0xff] %v749
                %v751 = vld [vmem:[%s297 + $0x1c40] sm:$0xff]
                %752 = vst [vmem:[%s298 + $0x710] sm:$0xff] %v751
                %v753 = vld [vmem:[%s297 + $0x1c48] sm:$0xff]
                %754 = vst [vmem:[%s298 + $0x718] sm:$0xff] %v753
                %v755 = vld [vmem:[%s297 + $0x1c80] sm:$0xff]
                %756 = vst [vmem:[%s298 + $0x720] sm:$0xff] %v755
                %v757 = vld [vmem:[%s297 + $0x1c88] sm:$0xff]
                %758 = vst [vmem:[%s298 + $0x728] sm:$0xff] %v757
                %v759 = vld [vmem:[%s297 + $0x1cc0] sm:$0xff]
                %760 = vst [vmem:[%s298 + $0x730] sm:$0xff] %v759
                %v761 = vld [vmem:[%s297 + $0x1cc8] sm:$0xff]
                %762 = vst [vmem:[%s298 + $0x738] sm:$0xff] %v761
                %v763 = vld [vmem:[%s297 + $0x1d00] sm:$0xff]
                %764 = vst [vmem:[%s298 + $0x740] sm:$0xff] %v763
                %v765 = vld [vmem:[%s297 + $0x1d08] sm:$0xff]
                %766 = vst [vmem:[%s298 + $0x748] sm:$0xff] %v765
                %v767 = vld [vmem:[%s297 + $0x1d40] sm:$0xff]
                %768 = vst [vmem:[%s298 + $0x750] sm:$0xff] %v767
                %v769 = vld [vmem:[%s297 + $0x1d48] sm:$0xff]
                %770 = vst [vmem:[%s298 + $0x758] sm:$0xff] %v769
                %v771 = vld [vmem:[%s297 + $0x1d80] sm:$0xff]
                %772 = vst [vmem:[%s298 + $0x760] sm:$0xff] %v771
                %v773 = vld [vmem:[%s297 + $0x1d88] sm:$0xff]
                %774 = vst [vmem:[%s298 + $0x768] sm:$0xff] %v773
                %v775 = vld [vmem:[%s297 + $0x1dc0] sm:$0xff]
                %776 = vst [vmem:[%s298 + $0x770] sm:$0xff] %v775
                %v777 = vld [vmem:[%s297 + $0x1dc8] sm:$0xff]
                %778 = vst [vmem:[%s298 + $0x778] sm:$0xff] %v777
                %v779 = vld [vmem:[%s297 + $0x1e00] sm:$0xff]
                %780 = vst [vmem:[%s298 + $0x780] sm:$0xff] %v779
                %v781 = vld [vmem:[%s297 + $0x1e08] sm:$0xff]
                %782 = vst [vmem:[%s298 + $0x788] sm:$0xff] %v781
                %v783 = vld [vmem:[%s297 + $0x1e40] sm:$0xff]
                %784 = vst [vmem:[%s298 + $0x790] sm:$0xff] %v783
                %v785 = vld [vmem:[%s297 + $0x1e48] sm:$0xff]
                %786 = vst [vmem:[%s298 + $0x798] sm:$0xff] %v785
                %v787 = vld [vmem:[%s297 + $0x1e80] sm:$0xff]
                %788 = vst [vmem:[%s298 + $0x7a0] sm:$0xff] %v787
                %v789 = vld [vmem:[%s297 + $0x1e88] sm:$0xff]
                %790 = vst [vmem:[%s298 + $0x7a8] sm:$0xff] %v789
                %v791 = vld [vmem:[%s297 + $0x1ec0] sm:$0xff]
                %792 = vst [vmem:[%s298 + $0x7b0] sm:$0xff] %v791
                %v793 = vld [vmem:[%s297 + $0x1ec8] sm:$0xff]
                %794 = vst [vmem:[%s298 + $0x7b8] sm:$0xff] %v793
                %v795 = vld [vmem:[%s297 + $0x1f00] sm:$0xff]
                %796 = vst [vmem:[%s298 + $0x7c0] sm:$0xff] %v795
                %v797 = vld [vmem:[%s297 + $0x1f08] sm:$0xff]
                %798 = vst [vmem:[%s298 + $0x7c8] sm:$0xff] %v797
                %v799 = vld [vmem:[%s297 + $0x1f40] sm:$0xff]
                %800 = vst [vmem:[%s298 + $0x7d0] sm:$0xff] %v799
                %v801 = vld [vmem:[%s297 + $0x1f48] sm:$0xff]
                %802 = vst [vmem:[%s298 + $0x7d8] sm:$0xff] %v801
                %v803 = vld [vmem:[%s297 + $0x1f80] sm:$0xff]
                %804 = vst [vmem:[%s298 + $0x7e0] sm:$0xff] %v803
                %v805 = vld [vmem:[%s297 + $0x1f88] sm:$0xff]
                %806 = vst [vmem:[%s298 + $0x7e8] sm:$0xff] %v805
                %v807 = vld [vmem:[%s297 + $0x1fc0] sm:$0xff]
                %808 = vst [vmem:[%s298 + $0x7f0] sm:$0xff] %v807
                %v809 = vld [vmem:[%s297 + $0x1fc8] sm:$0xff]
                %810 = vst [vmem:[%s298 + $0x7f8] sm:$0xff] %v809
                %v811 = vld [vmem:[%s297 + $0x2000] sm:$0xff]
                %812 = vst [vmem:[%s298 + $0x800] sm:$0xff] %v811
                %v813 = vld [vmem:[%s297 + $0x2008] sm:$0xff]
                %814 = vst [vmem:[%s298 + $0x808] sm:$0xff] %v813
                %v815 = vld [vmem:[%s297 + $0x2040] sm:$0xff]
                %816 = vst [vmem:[%s298 + $0x810] sm:$0xff] %v815
                %v817 = vld [vmem:[%s297 + $0x2048] sm:$0xff]
                %818 = vst [vmem:[%s298 + $0x818] sm:$0xff] %v817
                %v819 = vld [vmem:[%s297 + $0x2080] sm:$0xff]
                %820 = vst [vmem:[%s298 + $0x820] sm:$0xff] %v819
                %v821 = vld [vmem:[%s297 + $0x2088] sm:$0xff]
                %822 = vst [vmem:[%s298 + $0x828] sm:$0xff] %v821
                %v823 = vld [vmem:[%s297 + $0x20c0] sm:$0xff]
                %824 = vst [vmem:[%s298 + $0x830] sm:$0xff] %v823
                %v825 = vld [vmem:[%s297 + $0x20c8] sm:$0xff]
                %826 = vst [vmem:[%s298 + $0x838] sm:$0xff] %v825
                %v827 = vld [vmem:[%s297 + $0x2100] sm:$0xff]
                %828 = vst [vmem:[%s298 + $0x840] sm:$0xff] %v827
                %v829 = vld [vmem:[%s297 + $0x2108] sm:$0xff]
                %830 = vst [vmem:[%s298 + $0x848] sm:$0xff] %v829
                %v831 = vld [vmem:[%s297 + $0x2140] sm:$0xff]
                %832 = vst [vmem:[%s298 + $0x850] sm:$0xff] %v831
                %v833 = vld [vmem:[%s297 + $0x2148] sm:$0xff]
                %834 = vst [vmem:[%s298 + $0x858] sm:$0xff] %v833
                %v835 = vld [vmem:[%s297 + $0x2180] sm:$0xff]
                %836 = vst [vmem:[%s298 + $0x860] sm:$0xff] %v835
                %v837 = vld [vmem:[%s297 + $0x2188] sm:$0xff]
                %838 = vst [vmem:[%s298 + $0x868] sm:$0xff] %v837
                %v839 = vld [vmem:[%s297 + $0x21c0] sm:$0xff]
                %840 = vst [vmem:[%s298 + $0x870] sm:$0xff] %v839
                %v841 = vld [vmem:[%s297 + $0x21c8] sm:$0xff]
                %842 = vst [vmem:[%s298 + $0x878] sm:$0xff] %v841
                %v843 = vld [vmem:[%s297 + $0x2200] sm:$0xff]
                %844 = vst [vmem:[%s298 + $0x880] sm:$0xff] %v843
                %v845 = vld [vmem:[%s297 + $0x2208] sm:$0xff]
                %846 = vst [vmem:[%s298 + $0x888] sm:$0xff] %v845
                %v847 = vld [vmem:[%s297 + $0x2240] sm:$0xff]
                %848 = vst [vmem:[%s298 + $0x890] sm:$0xff] %v847
                %v849 = vld [vmem:[%s297 + $0x2248] sm:$0xff]
                %850 = vst [vmem:[%s298 + $0x898] sm:$0xff] %v849
                %v851 = vld [vmem:[%s297 + $0x2280] sm:$0xff]
                %852 = vst [vmem:[%s298 + $0x8a0] sm:$0xff] %v851
                %v853 = vld [vmem:[%s297 + $0x2288] sm:$0xff]
                %854 = vst [vmem:[%s298 + $0x8a8] sm:$0xff] %v853
                %v855 = vld [vmem:[%s297 + $0x22c0] sm:$0xff]
                %856 = vst [vmem:[%s298 + $0x8b0] sm:$0xff] %v855
                %v857 = vld [vmem:[%s297 + $0x22c8] sm:$0xff]
                %858 = vst [vmem:[%s298 + $0x8b8] sm:$0xff] %v857
                %v859 = vld [vmem:[%s297 + $0x2300] sm:$0xff]
                %860 = vst [vmem:[%s298 + $0x8c0] sm:$0xff] %v859
                %v861 = vld [vmem:[%s297 + $0x2308] sm:$0xff]
                %862 = vst [vmem:[%s298 + $0x8c8] sm:$0xff] %v861
                %v863 = vld [vmem:[%s297 + $0x2340] sm:$0xff]
                %864 = vst [vmem:[%s298 + $0x8d0] sm:$0xff] %v863
                %v865 = vld [vmem:[%s297 + $0x2348] sm:$0xff]
                %866 = vst [vmem:[%s298 + $0x8d8] sm:$0xff] %v865
                %v867 = vld [vmem:[%s297 + $0x2380] sm:$0xff]
                %868 = vst [vmem:[%s298 + $0x8e0] sm:$0xff] %v867
                %v869 = vld [vmem:[%s297 + $0x2388] sm:$0xff]
                %870 = vst [vmem:[%s298 + $0x8e8] sm:$0xff] %v869
                %v871 = vld [vmem:[%s297 + $0x23c0] sm:$0xff]
                %872 = vst [vmem:[%s298 + $0x8f0] sm:$0xff] %v871
                %v873 = vld [vmem:[%s297 + $0x23c8] sm:$0xff]
                %874 = vst [vmem:[%s298 + $0x8f8] sm:$0xff] %v873
                %v875 = vld [vmem:[%s297 + $0x2400] sm:$0xff]
                %876 = vst [vmem:[%s298 + $0x900] sm:$0xff] %v875
                %v877 = vld [vmem:[%s297 + $0x2408] sm:$0xff]
                %878 = vst [vmem:[%s298 + $0x908] sm:$0xff] %v877
                %v879 = vld [vmem:[%s297 + $0x2440] sm:$0xff]
                %880 = vst [vmem:[%s298 + $0x910] sm:$0xff] %v879
                %v881 = vld [vmem:[%s297 + $0x2448] sm:$0xff]
                %882 = vst [vmem:[%s298 + $0x918] sm:$0xff] %v881
                %v883 = vld [vmem:[%s297 + $0x2480] sm:$0xff]
                %884 = vst [vmem:[%s298 + $0x920] sm:$0xff] %v883
                %v885 = vld [vmem:[%s297 + $0x2488] sm:$0xff]
                %886 = vst [vmem:[%s298 + $0x928] sm:$0xff] %v885
                %v887 = vld [vmem:[%s297 + $0x24c0] sm:$0xff]
                %888 = vst [vmem:[%s298 + $0x930] sm:$0xff] %v887
                %v889 = vld [vmem:[%s297 + $0x24c8] sm:$0xff]
                %890 = vst [vmem:[%s298 + $0x938] sm:$0xff] %v889
                %v891 = vld [vmem:[%s297 + $0x2500] sm:$0xff]
                %892 = vst [vmem:[%s298 + $0x940] sm:$0xff] %v891
                %v893 = vld [vmem:[%s297 + $0x2508] sm:$0xff]
                %894 = vst [vmem:[%s298 + $0x948] sm:$0xff] %v893
                %v895 = vld [vmem:[%s297 + $0x2540] sm:$0xff]
                %896 = vst [vmem:[%s298 + $0x950] sm:$0xff] %v895
                %v897 = vld [vmem:[%s297 + $0x2548] sm:$0xff]
                %898 = vst [vmem:[%s298 + $0x958] sm:$0xff] %v897
                %v899 = vld [vmem:[%s297 + $0x2580] sm:$0xff]
                %900 = vst [vmem:[%s298 + $0x960] sm:$0xff] %v899
                %v901 = vld [vmem:[%s297 + $0x2588] sm:$0xff]
                %902 = vst [vmem:[%s298 + $0x968] sm:$0xff] %v901
                %v903 = vld [vmem:[%s297 + $0x25c0] sm:$0xff]
                %904 = vst [vmem:[%s298 + $0x970] sm:$0xff] %v903
                %v905 = vld [vmem:[%s297 + $0x25c8] sm:$0xff]
                %906 = vst [vmem:[%s298 + $0x978] sm:$0xff] %v905
                %v907 = vld [vmem:[%s297 + $0x2600] sm:$0xff]
                %908 = vst [vmem:[%s298 + $0x980] sm:$0xff] %v907
                %v909 = vld [vmem:[%s297 + $0x2608] sm:$0xff]
                %910 = vst [vmem:[%s298 + $0x988] sm:$0xff] %v909
                %v911 = vld [vmem:[%s297 + $0x2640] sm:$0xff]
                %912 = vst [vmem:[%s298 + $0x990] sm:$0xff] %v911
                %v913 = vld [vmem:[%s297 + $0x2648] sm:$0xff]
                %914 = vst [vmem:[%s298 + $0x998] sm:$0xff] %v913
                %v915 = vld [vmem:[%s297 + $0x2680] sm:$0xff]
                %916 = vst [vmem:[%s298 + $0x9a0] sm:$0xff] %v915
                %v917 = vld [vmem:[%s297 + $0x2688] sm:$0xff]
                %918 = vst [vmem:[%s298 + $0x9a8] sm:$0xff] %v917
                %v919 = vld [vmem:[%s297 + $0x26c0] sm:$0xff]
                %920 = vst [vmem:[%s298 + $0x9b0] sm:$0xff] %v919
                %v921 = vld [vmem:[%s297 + $0x26c8] sm:$0xff]
                %922 = vst [vmem:[%s298 + $0x9b8] sm:$0xff] %v921
                %v923 = vld [vmem:[%s297 + $0x2700] sm:$0xff]
                %924 = vst [vmem:[%s298 + $0x9c0] sm:$0xff] %v923
                %v925 = vld [vmem:[%s297 + $0x2708] sm:$0xff]
                %926 = vst [vmem:[%s298 + $0x9c8] sm:$0xff] %v925
                %v927 = vld [vmem:[%s297 + $0x2740] sm:$0xff]
                %928 = vst [vmem:[%s298 + $0x9d0] sm:$0xff] %v927
                %v929 = vld [vmem:[%s297 + $0x2748] sm:$0xff]
                %930 = vst [vmem:[%s298 + $0x9d8] sm:$0xff] %v929
                %v931 = vld [vmem:[%s297 + $0x2780] sm:$0xff]
                %932 = vst [vmem:[%s298 + $0x9e0] sm:$0xff] %v931
                %v933 = vld [vmem:[%s297 + $0x2788] sm:$0xff]
                %934 = vst [vmem:[%s298 + $0x9e8] sm:$0xff] %v933
                %v935 = vld [vmem:[%s297 + $0x27c0] sm:$0xff]
                %936 = vst [vmem:[%s298 + $0x9f0] sm:$0xff] %v935
                %v937 = vld [vmem:[%s297 + $0x27c8] sm:$0xff]
                %938 = vst [vmem:[%s298 + $0x9f8] sm:$0xff] %v937
                %v939 = vld [vmem:[%s297 + $0x2800] sm:$0xff]
                %940 = vst [vmem:[%s298 + $0xa00] sm:$0xff] %v939
                %v941 = vld [vmem:[%s297 + $0x2808] sm:$0xff]
                %942 = vst [vmem:[%s298 + $0xa08] sm:$0xff] %v941
                %v943 = vld [vmem:[%s297 + $0x2840] sm:$0xff]
                %944 = vst [vmem:[%s298 + $0xa10] sm:$0xff] %v943
                %v945 = vld [vmem:[%s297 + $0x2848] sm:$0xff]
                %946 = vst [vmem:[%s298 + $0xa18] sm:$0xff] %v945
                %v947 = vld [vmem:[%s297 + $0x2880] sm:$0xff]
                %948 = vst [vmem:[%s298 + $0xa20] sm:$0xff] %v947
                %v949 = vld [vmem:[%s297 + $0x2888] sm:$0xff]
                %950 = vst [vmem:[%s298 + $0xa28] sm:$0xff] %v949
                %v951 = vld [vmem:[%s297 + $0x28c0] sm:$0xff]
                %952 = vst [vmem:[%s298 + $0xa30] sm:$0xff] %v951
                %v953 = vld [vmem:[%s297 + $0x28c8] sm:$0xff]
                %954 = vst [vmem:[%s298 + $0xa38] sm:$0xff] %v953
                %v955 = vld [vmem:[%s297 + $0x2900] sm:$0xff]
                %956 = vst [vmem:[%s298 + $0xa40] sm:$0xff] %v955
                %v957 = vld [vmem:[%s297 + $0x2908] sm:$0xff]
                %958 = vst [vmem:[%s298 + $0xa48] sm:$0xff] %v957
                %v959 = vld [vmem:[%s297 + $0x2940] sm:$0xff]
                %960 = vst [vmem:[%s298 + $0xa50] sm:$0xff] %v959
                %v961 = vld [vmem:[%s297 + $0x2948] sm:$0xff]
                %962 = vst [vmem:[%s298 + $0xa58] sm:$0xff] %v961
                %v963 = vld [vmem:[%s297 + $0x2980] sm:$0xff]
                %964 = vst [vmem:[%s298 + $0xa60] sm:$0xff] %v963
                %v965 = vld [vmem:[%s297 + $0x2988] sm:$0xff]
                %966 = vst [vmem:[%s298 + $0xa68] sm:$0xff] %v965
                %v967 = vld [vmem:[%s297 + $0x29c0] sm:$0xff]
                %968 = vst [vmem:[%s298 + $0xa70] sm:$0xff] %v967
                %v969 = vld [vmem:[%s297 + $0x29c8] sm:$0xff]
                %970 = vst [vmem:[%s298 + $0xa78] sm:$0xff] %v969
                %v971 = vld [vmem:[%s297 + $0x2a00] sm:$0xff]
                %972 = vst [vmem:[%s298 + $0xa80] sm:$0xff] %v971
                %v973 = vld [vmem:[%s297 + $0x2a08] sm:$0xff]
                %974 = vst [vmem:[%s298 + $0xa88] sm:$0xff] %v973
                %v975 = vld [vmem:[%s297 + $0x2a40] sm:$0xff]
                %976 = vst [vmem:[%s298 + $0xa90] sm:$0xff] %v975
                %v977 = vld [vmem:[%s297 + $0x2a48] sm:$0xff]
                %978 = vst [vmem:[%s298 + $0xa98] sm:$0xff] %v977
                %v979 = vld [vmem:[%s297 + $0x2a80] sm:$0xff]
                %980 = vst [vmem:[%s298 + $0xaa0] sm:$0xff] %v979
                %v981 = vld [vmem:[%s297 + $0x2a88] sm:$0xff]
                %982 = vst [vmem:[%s298 + $0xaa8] sm:$0xff] %v981
                %v983 = vld [vmem:[%s297 + $0x2ac0] sm:$0xff]
                %984 = vst [vmem:[%s298 + $0xab0] sm:$0xff] %v983
                %v985 = vld [vmem:[%s297 + $0x2ac8] sm:$0xff]
                %986 = vst [vmem:[%s298 + $0xab8] sm:$0xff] %v985
                %v987 = vld [vmem:[%s297 + $0x2b00] sm:$0xff]
                %988 = vst [vmem:[%s298 + $0xac0] sm:$0xff] %v987
                %v989 = vld [vmem:[%s297 + $0x2b08] sm:$0xff]
                %990 = vst [vmem:[%s298 + $0xac8] sm:$0xff] %v989
                %v991 = vld [vmem:[%s297 + $0x2b40] sm:$0xff]
                %992 = vst [vmem:[%s298 + $0xad0] sm:$0xff] %v991
                %v993 = vld [vmem:[%s297 + $0x2b48] sm:$0xff]
                %994 = vst [vmem:[%s298 + $0xad8] sm:$0xff] %v993
                %v995 = vld [vmem:[%s297 + $0x2b80] sm:$0xff]
                %996 = vst [vmem:[%s298 + $0xae0] sm:$0xff] %v995
                %v997 = vld [vmem:[%s297 + $0x2b88] sm:$0xff]
                %998 = vst [vmem:[%s298 + $0xae8] sm:$0xff] %v997
                %v999 = vld [vmem:[%s297 + $0x2bc0] sm:$0xff]
                %1000 = vst [vmem:[%s298 + $0xaf0] sm:$0xff] %v999
                %v1001 = vld [vmem:[%s297 + $0x2bc8] sm:$0xff]
                %1002 = vst [vmem:[%s298 + $0xaf8] sm:$0xff] %v1001
                %v1003 = vld [vmem:[%s297 + $0x2c00] sm:$0xff]
                %1004 = vst [vmem:[%s298 + $0xb00] sm:$0xff] %v1003
                %v1005 = vld [vmem:[%s297 + $0x2c08] sm:$0xff]
                %1006 = vst [vmem:[%s298 + $0xb08] sm:$0xff] %v1005
                %v1007 = vld [vmem:[%s297 + $0x2c40] sm:$0xff]
                %1008 = vst [vmem:[%s298 + $0xb10] sm:$0xff] %v1007
                %v1009 = vld [vmem:[%s297 + $0x2c48] sm:$0xff]
                %1010 = vst [vmem:[%s298 + $0xb18] sm:$0xff] %v1009
                %v1011 = vld [vmem:[%s297 + $0x2c80] sm:$0xff]
                %1012 = vst [vmem:[%s298 + $0xb20] sm:$0xff] %v1011
                %v1013 = vld [vmem:[%s297 + $0x2c88] sm:$0xff]
                %1014 = vst [vmem:[%s298 + $0xb28] sm:$0xff] %v1013
                %v1015 = vld [vmem:[%s297 + $0x2cc0] sm:$0xff]
                %1016 = vst [vmem:[%s298 + $0xb30] sm:$0xff] %v1015
                %v1017 = vld [vmem:[%s297 + $0x2cc8] sm:$0xff]
                %1018 = vst [vmem:[%s298 + $0xb38] sm:$0xff] %v1017
                %v1019 = vld [vmem:[%s297 + $0x2d00] sm:$0xff]
                %1020 = vst [vmem:[%s298 + $0xb40] sm:$0xff] %v1019
                %v1021 = vld [vmem:[%s297 + $0x2d08] sm:$0xff]
                %1022 = vst [vmem:[%s298 + $0xb48] sm:$0xff] %v1021
                %v1023 = vld [vmem:[%s297 + $0x2d40] sm:$0xff]
                %1024 = vst [vmem:[%s298 + $0xb50] sm:$0xff] %v1023
                %v1025 = vld [vmem:[%s297 + $0x2d48] sm:$0xff]
                %1026 = vst [vmem:[%s298 + $0xb58] sm:$0xff] %v1025
                %v1027 = vld [vmem:[%s297 + $0x2d80] sm:$0xff]
                %1028 = vst [vmem:[%s298 + $0xb60] sm:$0xff] %v1027
                %v1029 = vld [vmem:[%s297 + $0x2d88] sm:$0xff]
                %1030 = vst [vmem:[%s298 + $0xb68] sm:$0xff] %v1029
                %v1031 = vld [vmem:[%s297 + $0x2dc0] sm:$0xff]
                %1032 = vst [vmem:[%s298 + $0xb70] sm:$0xff] %v1031
                %v1033 = vld [vmem:[%s297 + $0x2dc8] sm:$0xff]
                %1034 = vst [vmem:[%s298 + $0xb78] sm:$0xff] %v1033
                %v1035 = vld [vmem:[%s297 + $0x2e00] sm:$0xff]
                %1036 = vst [vmem:[%s298 + $0xb80] sm:$0xff] %v1035
                %v1037 = vld [vmem:[%s297 + $0x2e08] sm:$0xff]
                %1038 = vst [vmem:[%s298 + $0xb88] sm:$0xff] %v1037
                %v1039 = vld [vmem:[%s297 + $0x2e40] sm:$0xff]
                %1040 = vst [vmem:[%s298 + $0xb90] sm:$0xff] %v1039
                %v1041 = vld [vmem:[%s297 + $0x2e48] sm:$0xff]
                %1042 = vst [vmem:[%s298 + $0xb98] sm:$0xff] %v1041
                %v1043 = vld [vmem:[%s297 + $0x2e80] sm:$0xff]
                %1044 = vst [vmem:[%s298 + $0xba0] sm:$0xff] %v1043
                %v1045 = vld [vmem:[%s297 + $0x2e88] sm:$0xff]
                %1046 = vst [vmem:[%s298 + $0xba8] sm:$0xff] %v1045
                %v1047 = vld [vmem:[%s297 + $0x2ec0] sm:$0xff]
                %1048 = vst [vmem:[%s298 + $0xbb0] sm:$0xff] %v1047
                %v1049 = vld [vmem:[%s297 + $0x2ec8] sm:$0xff]
                %1050 = vst [vmem:[%s298 + $0xbb8] sm:$0xff] %v1049
                %v1051 = vld [vmem:[%s297 + $0x2f00] sm:$0xff]
                %1052 = vst [vmem:[%s298 + $0xbc0] sm:$0xff] %v1051
                %v1053 = vld [vmem:[%s297 + $0x2f08] sm:$0xff]
                %1054 = vst [vmem:[%s298 + $0xbc8] sm:$0xff] %v1053
                %v1055 = vld [vmem:[%s297 + $0x2f40] sm:$0xff]
                %1056 = vst [vmem:[%s298 + $0xbd0] sm:$0xff] %v1055
                %v1057 = vld [vmem:[%s297 + $0x2f48] sm:$0xff]
                %1058 = vst [vmem:[%s298 + $0xbd8] sm:$0xff] %v1057
                %v1059 = vld [vmem:[%s297 + $0x2f80] sm:$0xff]
                %1060 = vst [vmem:[%s298 + $0xbe0] sm:$0xff] %v1059
                %v1061 = vld [vmem:[%s297 + $0x2f88] sm:$0xff]
                %1062 = vst [vmem:[%s298 + $0xbe8] sm:$0xff] %v1061
                %v1063 = vld [vmem:[%s297 + $0x2fc0] sm:$0xff]
                %1064 = vst [vmem:[%s298 + $0xbf0] sm:$0xff] %v1063
                %v1065 = vld [vmem:[%s297 + $0x2fc8] sm:$0xff]
                %1066 = vst [vmem:[%s298 + $0xbf8] sm:$0xff] %v1065
                %v1067 = vld [vmem:[%s297 + $0x3000] sm:$0xff]
                %1068 = vst [vmem:[%s298 + $0xc00] sm:$0xff] %v1067
                %v1069 = vld [vmem:[%s297 + $0x3008] sm:$0xff]
                %1070 = vst [vmem:[%s298 + $0xc08] sm:$0xff] %v1069
                %v1071 = vld [vmem:[%s297 + $0x3040] sm:$0xff]
                %1072 = vst [vmem:[%s298 + $0xc10] sm:$0xff] %v1071
                %v1073 = vld [vmem:[%s297 + $0x3048] sm:$0xff]
                %1074 = vst [vmem:[%s298 + $0xc18] sm:$0xff] %v1073
                %v1075 = vld [vmem:[%s297 + $0x3080] sm:$0xff]
                %1076 = vst [vmem:[%s298 + $0xc20] sm:$0xff] %v1075
                %v1077 = vld [vmem:[%s297 + $0x3088] sm:$0xff]
                %1078 = vst [vmem:[%s298 + $0xc28] sm:$0xff] %v1077
                %v1079 = vld [vmem:[%s297 + $0x30c0] sm:$0xff]
                %1080 = vst [vmem:[%s298 + $0xc30] sm:$0xff] %v1079
                %v1081 = vld [vmem:[%s297 + $0x30c8] sm:$0xff]
                %1082 = vst [vmem:[%s298 + $0xc38] sm:$0xff] %v1081
                %v1083 = vld [vmem:[%s297 + $0x3100] sm:$0xff]
                %1084 = vst [vmem:[%s298 + $0xc40] sm:$0xff] %v1083
                %v1085 = vld [vmem:[%s297 + $0x3108] sm:$0xff]
                %1086 = vst [vmem:[%s298 + $0xc48] sm:$0xff] %v1085
                %v1087 = vld [vmem:[%s297 + $0x3140] sm:$0xff]
                %1088 = vst [vmem:[%s298 + $0xc50] sm:$0xff] %v1087
                %v1089 = vld [vmem:[%s297 + $0x3148] sm:$0xff]
                %1090 = vst [vmem:[%s298 + $0xc58] sm:$0xff] %v1089
                %v1091 = vld [vmem:[%s297 + $0x3180] sm:$0xff]
                %1092 = vst [vmem:[%s298 + $0xc60] sm:$0xff] %v1091
                %v1093 = vld [vmem:[%s297 + $0x3188] sm:$0xff]
                %1094 = vst [vmem:[%s298 + $0xc68] sm:$0xff] %v1093
                %v1095 = vld [vmem:[%s297 + $0x31c0] sm:$0xff]
                %1096 = vst [vmem:[%s298 + $0xc70] sm:$0xff] %v1095
                %v1097 = vld [vmem:[%s297 + $0x31c8] sm:$0xff]
                %1098 = vst [vmem:[%s298 + $0xc78] sm:$0xff] %v1097
                %v1099 = vld [vmem:[%s297 + $0x3200] sm:$0xff]
                %1100 = vst [vmem:[%s298 + $0xc80] sm:$0xff] %v1099
                %v1101 = vld [vmem:[%s297 + $0x3208] sm:$0xff]
                %1102 = vst [vmem:[%s298 + $0xc88] sm:$0xff] %v1101
                %v1103 = vld [vmem:[%s297 + $0x3240] sm:$0xff]
                %1104 = vst [vmem:[%s298 + $0xc90] sm:$0xff] %v1103
                %v1105 = vld [vmem:[%s297 + $0x3248] sm:$0xff]
                %1106 = vst [vmem:[%s298 + $0xc98] sm:$0xff] %v1105
                %v1107 = vld [vmem:[%s297 + $0x3280] sm:$0xff]
                %1108 = vst [vmem:[%s298 + $0xca0] sm:$0xff] %v1107
                %v1109 = vld [vmem:[%s297 + $0x3288] sm:$0xff]
                %1110 = vst [vmem:[%s298 + $0xca8] sm:$0xff] %v1109
                %v1111 = vld [vmem:[%s297 + $0x32c0] sm:$0xff]
                %1112 = vst [vmem:[%s298 + $0xcb0] sm:$0xff] %v1111
                %v1113 = vld [vmem:[%s297 + $0x32c8] sm:$0xff]
                %1114 = vst [vmem:[%s298 + $0xcb8] sm:$0xff] %v1113
                %v1115 = vld [vmem:[%s297 + $0x3300] sm:$0xff]
                %1116 = vst [vmem:[%s298 + $0xcc0] sm:$0xff] %v1115
                %v1117 = vld [vmem:[%s297 + $0x3308] sm:$0xff]
                %1118 = vst [vmem:[%s298 + $0xcc8] sm:$0xff] %v1117
                %v1119 = vld [vmem:[%s297 + $0x3340] sm:$0xff]
                %1120 = vst [vmem:[%s298 + $0xcd0] sm:$0xff] %v1119
                %v1121 = vld [vmem:[%s297 + $0x3348] sm:$0xff]
                %1122 = vst [vmem:[%s298 + $0xcd8] sm:$0xff] %v1121
                %v1123 = vld [vmem:[%s297 + $0x3380] sm:$0xff]
                %1124 = vst [vmem:[%s298 + $0xce0] sm:$0xff] %v1123
                %v1125 = vld [vmem:[%s297 + $0x3388] sm:$0xff]
                %1126 = vst [vmem:[%s298 + $0xce8] sm:$0xff] %v1125
                %v1127 = vld [vmem:[%s297 + $0x33c0] sm:$0xff]
                %1128 = vst [vmem:[%s298 + $0xcf0] sm:$0xff] %v1127
                %v1129 = vld [vmem:[%s297 + $0x33c8] sm:$0xff]
                %1130 = vst [vmem:[%s298 + $0xcf8] sm:$0xff] %v1129
                %v1131 = vld [vmem:[%s297 + $0x3400] sm:$0xff]
                %1132 = vst [vmem:[%s298 + $0xd00] sm:$0xff] %v1131
                %v1133 = vld [vmem:[%s297 + $0x3408] sm:$0xff]
                %1134 = vst [vmem:[%s298 + $0xd08] sm:$0xff] %v1133
                %v1135 = vld [vmem:[%s297 + $0x3440] sm:$0xff]
                %1136 = vst [vmem:[%s298 + $0xd10] sm:$0xff] %v1135
                %v1137 = vld [vmem:[%s297 + $0x3448] sm:$0xff]
                %1138 = vst [vmem:[%s298 + $0xd18] sm:$0xff] %v1137
                %v1139 = vld [vmem:[%s297 + $0x3480] sm:$0xff]
                %1140 = vst [vmem:[%s298 + $0xd20] sm:$0xff] %v1139
                %v1141 = vld [vmem:[%s297 + $0x3488] sm:$0xff]
                %1142 = vst [vmem:[%s298 + $0xd28] sm:$0xff] %v1141
                %v1143 = vld [vmem:[%s297 + $0x34c0] sm:$0xff]
                %1144 = vst [vmem:[%s298 + $0xd30] sm:$0xff] %v1143
                %v1145 = vld [vmem:[%s297 + $0x34c8] sm:$0xff]
                %1146 = vst [vmem:[%s298 + $0xd38] sm:$0xff] %v1145
                %v1147 = vld [vmem:[%s297 + $0x3500] sm:$0xff]
                %1148 = vst [vmem:[%s298 + $0xd40] sm:$0xff] %v1147
                %v1149 = vld [vmem:[%s297 + $0x3508] sm:$0xff]
                %1150 = vst [vmem:[%s298 + $0xd48] sm:$0xff] %v1149
                %v1151 = vld [vmem:[%s297 + $0x3540] sm:$0xff]
                %1152 = vst [vmem:[%s298 + $0xd50] sm:$0xff] %v1151
                %v1153 = vld [vmem:[%s297 + $0x3548] sm:$0xff]
                %1154 = vst [vmem:[%s298 + $0xd58] sm:$0xff] %v1153
                %v1155 = vld [vmem:[%s297 + $0x3580] sm:$0xff]
                %1156 = vst [vmem:[%s298 + $0xd60] sm:$0xff] %v1155
                %v1157 = vld [vmem:[%s297 + $0x3588] sm:$0xff]
                %1158 = vst [vmem:[%s298 + $0xd68] sm:$0xff] %v1157
                %v1159 = vld [vmem:[%s297 + $0x35c0] sm:$0xff]
                %1160 = vst [vmem:[%s298 + $0xd70] sm:$0xff] %v1159
                %v1161 = vld [vmem:[%s297 + $0x35c8] sm:$0xff]
                %1162 = vst [vmem:[%s298 + $0xd78] sm:$0xff] %v1161
                %v1163 = vld [vmem:[%s297 + $0x3600] sm:$0xff]
                %1164 = vst [vmem:[%s298 + $0xd80] sm:$0xff] %v1163
                %v1165 = vld [vmem:[%s297 + $0x3608] sm:$0xff]
                %1166 = vst [vmem:[%s298 + $0xd88] sm:$0xff] %v1165
                %v1167 = vld [vmem:[%s297 + $0x3640] sm:$0xff]
                %1168 = vst [vmem:[%s298 + $0xd90] sm:$0xff] %v1167
                %v1169 = vld [vmem:[%s297 + $0x3648] sm:$0xff]
                %1170 = vst [vmem:[%s298 + $0xd98] sm:$0xff] %v1169
                %v1171 = vld [vmem:[%s297 + $0x3680] sm:$0xff]
                %1172 = vst [vmem:[%s298 + $0xda0] sm:$0xff] %v1171
                %v1173 = vld [vmem:[%s297 + $0x3688] sm:$0xff]
                %1174 = vst [vmem:[%s298 + $0xda8] sm:$0xff] %v1173
                %v1175 = vld [vmem:[%s297 + $0x36c0] sm:$0xff]
                %1176 = vst [vmem:[%s298 + $0xdb0] sm:$0xff] %v1175
                %v1177 = vld [vmem:[%s297 + $0x36c8] sm:$0xff]
                %1178 = vst [vmem:[%s298 + $0xdb8] sm:$0xff] %v1177
                %v1179 = vld [vmem:[%s297 + $0x3700] sm:$0xff]
                %1180 = vst [vmem:[%s298 + $0xdc0] sm:$0xff] %v1179
                %v1181 = vld [vmem:[%s297 + $0x3708] sm:$0xff]
                %1182 = vst [vmem:[%s298 + $0xdc8] sm:$0xff] %v1181
                %v1183 = vld [vmem:[%s297 + $0x3740] sm:$0xff]
                %1184 = vst [vmem:[%s298 + $0xdd0] sm:$0xff] %v1183
                %v1185 = vld [vmem:[%s297 + $0x3748] sm:$0xff]
                %1186 = vst [vmem:[%s298 + $0xdd8] sm:$0xff] %v1185
                %v1187 = vld [vmem:[%s297 + $0x3780] sm:$0xff]
                %1188 = vst [vmem:[%s298 + $0xde0] sm:$0xff] %v1187
                %v1189 = vld [vmem:[%s297 + $0x3788] sm:$0xff]
                %1190 = vst [vmem:[%s298 + $0xde8] sm:$0xff] %v1189
                %v1191 = vld [vmem:[%s297 + $0x37c0] sm:$0xff]
                %1192 = vst [vmem:[%s298 + $0xdf0] sm:$0xff] %v1191
                %v1193 = vld [vmem:[%s297 + $0x37c8] sm:$0xff]
                %1194 = vst [vmem:[%s298 + $0xdf8] sm:$0xff] %v1193
                %v1195 = vld [vmem:[%s297 + $0x3800] sm:$0xff]
                %1196 = vst [vmem:[%s298 + $0xe00] sm:$0xff] %v1195
                %v1197 = vld [vmem:[%s297 + $0x3808] sm:$0xff]
                %1198 = vst [vmem:[%s298 + $0xe08] sm:$0xff] %v1197
                %v1199 = vld [vmem:[%s297 + $0x3840] sm:$0xff]
                %1200 = vst [vmem:[%s298 + $0xe10] sm:$0xff] %v1199
                %v1201 = vld [vmem:[%s297 + $0x3848] sm:$0xff]
                %1202 = vst [vmem:[%s298 + $0xe18] sm:$0xff] %v1201
                %v1203 = vld [vmem:[%s297 + $0x3880] sm:$0xff]
                %1204 = vst [vmem:[%s298 + $0xe20] sm:$0xff] %v1203
                %v1205 = vld [vmem:[%s297 + $0x3888] sm:$0xff]
                %1206 = vst [vmem:[%s298 + $0xe28] sm:$0xff] %v1205
                %v1207 = vld [vmem:[%s297 + $0x38c0] sm:$0xff]
                %1208 = vst [vmem:[%s298 + $0xe30] sm:$0xff] %v1207
                %v1209 = vld [vmem:[%s297 + $0x38c8] sm:$0xff]
                %1210 = vst [vmem:[%s298 + $0xe38] sm:$0xff] %v1209
                %v1211 = vld [vmem:[%s297 + $0x3900] sm:$0xff]
                %1212 = vst [vmem:[%s298 + $0xe40] sm:$0xff] %v1211
                %v1213 = vld [vmem:[%s297 + $0x3908] sm:$0xff]
                %1214 = vst [vmem:[%s298 + $0xe48] sm:$0xff] %v1213
                %v1215 = vld [vmem:[%s297 + $0x3940] sm:$0xff]
                %1216 = vst [vmem:[%s298 + $0xe50] sm:$0xff] %v1215
                %v1217 = vld [vmem:[%s297 + $0x3948] sm:$0xff]
                %1218 = vst [vmem:[%s298 + $0xe58] sm:$0xff] %v1217
                %v1219 = vld [vmem:[%s297 + $0x3980] sm:$0xff]
                %1220 = vst [vmem:[%s298 + $0xe60] sm:$0xff] %v1219
                %v1221 = vld [vmem:[%s297 + $0x3988] sm:$0xff]
                %1222 = vst [vmem:[%s298 + $0xe68] sm:$0xff] %v1221
                %v1223 = vld [vmem:[%s297 + $0x39c0] sm:$0xff]
                %1224 = vst [vmem:[%s298 + $0xe70] sm:$0xff] %v1223
                %v1225 = vld [vmem:[%s297 + $0x39c8] sm:$0xff]
                %1226 = vst [vmem:[%s298 + $0xe78] sm:$0xff] %v1225
                %v1227 = vld [vmem:[%s297 + $0x3a00] sm:$0xff]
                %1228 = vst [vmem:[%s298 + $0xe80] sm:$0xff] %v1227
                %v1229 = vld [vmem:[%s297 + $0x3a08] sm:$0xff]
                %1230 = vst [vmem:[%s298 + $0xe88] sm:$0xff] %v1229
                %v1231 = vld [vmem:[%s297 + $0x3a40] sm:$0xff]
                %1232 = vst [vmem:[%s298 + $0xe90] sm:$0xff] %v1231
                %v1233 = vld [vmem:[%s297 + $0x3a48] sm:$0xff]
                %1234 = vst [vmem:[%s298 + $0xe98] sm:$0xff] %v1233
                %v1235 = vld [vmem:[%s297 + $0x3a80] sm:$0xff]
                %1236 = vst [vmem:[%s298 + $0xea0] sm:$0xff] %v1235
                %v1237 = vld [vmem:[%s297 + $0x3a88] sm:$0xff]
                %1238 = vst [vmem:[%s298 + $0xea8] sm:$0xff] %v1237
                %v1239 = vld [vmem:[%s297 + $0x3ac0] sm:$0xff]
                %1240 = vst [vmem:[%s298 + $0xeb0] sm:$0xff] %v1239
                %v1241 = vld [vmem:[%s297 + $0x3ac8] sm:$0xff]
                %1242 = vst [vmem:[%s298 + $0xeb8] sm:$0xff] %v1241
                %v1243 = vld [vmem:[%s297 + $0x3b00] sm:$0xff]
                %1244 = vst [vmem:[%s298 + $0xec0] sm:$0xff] %v1243
                %v1245 = vld [vmem:[%s297 + $0x3b08] sm:$0xff]
                %1246 = vst [vmem:[%s298 + $0xec8] sm:$0xff] %v1245
                %v1247 = vld [vmem:[%s297 + $0x3b40] sm:$0xff]
                %1248 = vst [vmem:[%s298 + $0xed0] sm:$0xff] %v1247
                %v1249 = vld [vmem:[%s297 + $0x3b48] sm:$0xff]
                %1250 = vst [vmem:[%s298 + $0xed8] sm:$0xff] %v1249
                %v1251 = vld [vmem:[%s297 + $0x3b80] sm:$0xff]
                %1252 = vst [vmem:[%s298 + $0xee0] sm:$0xff] %v1251
                %v1253 = vld [vmem:[%s297 + $0x3b88] sm:$0xff]
                %1254 = vst [vmem:[%s298 + $0xee8] sm:$0xff] %v1253
                %v1255 = vld [vmem:[%s297 + $0x3bc0] sm:$0xff]
                %1256 = vst [vmem:[%s298 + $0xef0] sm:$0xff] %v1255
                %v1257 = vld [vmem:[%s297 + $0x3bc8] sm:$0xff]
                %1258 = vst [vmem:[%s298 + $0xef8] sm:$0xff] %v1257
                %v1259 = vld [vmem:[%s297 + $0x3c00] sm:$0xff]
                %1260 = vst [vmem:[%s298 + $0xf00] sm:$0xff] %v1259
                %v1261 = vld [vmem:[%s297 + $0x3c08] sm:$0xff]
                %1262 = vst [vmem:[%s298 + $0xf08] sm:$0xff] %v1261
                %v1263 = vld [vmem:[%s297 + $0x3c40] sm:$0xff]
                %1264 = vst [vmem:[%s298 + $0xf10] sm:$0xff] %v1263
                %v1265 = vld [vmem:[%s297 + $0x3c48] sm:$0xff]
                %1266 = vst [vmem:[%s298 + $0xf18] sm:$0xff] %v1265
                %v1267 = vld [vmem:[%s297 + $0x3c80] sm:$0xff]
                %1268 = vst [vmem:[%s298 + $0xf20] sm:$0xff] %v1267
                %v1269 = vld [vmem:[%s297 + $0x3c88] sm:$0xff]
                %1270 = vst [vmem:[%s298 + $0xf28] sm:$0xff] %v1269
                %v1271 = vld [vmem:[%s297 + $0x3cc0] sm:$0xff]
                %1272 = vst [vmem:[%s298 + $0xf30] sm:$0xff] %v1271
                %v1273 = vld [vmem:[%s297 + $0x3cc8] sm:$0xff]
                %1274 = vst [vmem:[%s298 + $0xf38] sm:$0xff] %v1273
                %v1275 = vld [vmem:[%s297 + $0x3d00] sm:$0xff]
                %1276 = vst [vmem:[%s298 + $0xf40] sm:$0xff] %v1275
                %v1277 = vld [vmem:[%s297 + $0x3d08] sm:$0xff]
                %1278 = vst [vmem:[%s298 + $0xf48] sm:$0xff] %v1277
                %v1279 = vld [vmem:[%s297 + $0x3d40] sm:$0xff]
                %1280 = vst [vmem:[%s298 + $0xf50] sm:$0xff] %v1279
                %v1281 = vld [vmem:[%s297 + $0x3d48] sm:$0xff]
                %1282 = vst [vmem:[%s298 + $0xf58] sm:$0xff] %v1281
                %v1283 = vld [vmem:[%s297 + $0x3d80] sm:$0xff]
                %1284 = vst [vmem:[%s298 + $0xf60] sm:$0xff] %v1283
                %v1285 = vld [vmem:[%s297 + $0x3d88] sm:$0xff]
                %1286 = vst [vmem:[%s298 + $0xf68] sm:$0xff] %v1285
                %v1287 = vld [vmem:[%s297 + $0x3dc0] sm:$0xff]
                %1288 = vst [vmem:[%s298 + $0xf70] sm:$0xff] %v1287
                %v1289 = vld [vmem:[%s297 + $0x3dc8] sm:$0xff]
                %1290 = vst [vmem:[%s298 + $0xf78] sm:$0xff] %v1289
                %v1291 = vld [vmem:[%s297 + $0x3e00] sm:$0xff]
                %1292 = vst [vmem:[%s298 + $0xf80] sm:$0xff] %v1291
                %v1293 = vld [vmem:[%s297 + $0x3e08] sm:$0xff]
                %1294 = vst [vmem:[%s298 + $0xf88] sm:$0xff] %v1293
                %v1295 = vld [vmem:[%s297 + $0x3e40] sm:$0xff]
                %1296 = vst [vmem:[%s298 + $0xf90] sm:$0xff] %v1295
                %v1297 = vld [vmem:[%s297 + $0x3e48] sm:$0xff]
                %1298 = vst [vmem:[%s298 + $0xf98] sm:$0xff] %v1297
                %v1299 = vld [vmem:[%s297 + $0x3e80] sm:$0xff]
                %1300 = vst [vmem:[%s298 + $0xfa0] sm:$0xff] %v1299
                %v1301 = vld [vmem:[%s297 + $0x3e88] sm:$0xff]
                %1302 = vst [vmem:[%s298 + $0xfa8] sm:$0xff] %v1301
                %v1303 = vld [vmem:[%s297 + $0x3ec0] sm:$0xff]
                %1304 = vst [vmem:[%s298 + $0xfb0] sm:$0xff] %v1303
                %v1305 = vld [vmem:[%s297 + $0x3ec8] sm:$0xff]
                %1306 = vst [vmem:[%s298 + $0xfb8] sm:$0xff] %v1305
                %v1307 = vld [vmem:[%s297 + $0x3f00] sm:$0xff]
                %1308 = vst [vmem:[%s298 + $0xfc0] sm:$0xff] %v1307
                %v1309 = vld [vmem:[%s297 + $0x3f08] sm:$0xff]
                %1310 = vst [vmem:[%s298 + $0xfc8] sm:$0xff] %v1309
                %v1311 = vld [vmem:[%s297 + $0x3f40] sm:$0xff]
                %1312 = vst [vmem:[%s298 + $0xfd0] sm:$0xff] %v1311
                %v1313 = vld [vmem:[%s297 + $0x3f48] sm:$0xff]
                %1314 = vst [vmem:[%s298 + $0xfd8] sm:$0xff] %v1313
                %v1315 = vld [vmem:[%s297 + $0x3f80] sm:$0xff]
                %1316 = vst [vmem:[%s298 + $0xfe0] sm:$0xff] %v1315
                %v1317 = vld [vmem:[%s297 + $0x3f88] sm:$0xff]
                %1318 = vst [vmem:[%s298 + $0xfe8] sm:$0xff] %v1317
                %v1319 = vld [vmem:[%s297 + $0x3fc0] sm:$0xff]
                %1320 = vst [vmem:[%s298 + $0xff0] sm:$0xff] %v1319
                %v1321 = vld [vmem:[%s297 + $0x3fc8] sm:$0xff]
                %1322 = vst [vmem:[%s298 + $0xff8] sm:$0xff] %v1321
                %v1323 = vld [vmem:[%s297 + $0x4000] sm:$0xff]
                %1324 = vst [vmem:[%s298 + $0x1000] sm:$0xff] %v1323
                %v1325 = vld [vmem:[%s297 + $0x4008] sm:$0xff]
                %1326 = vst [vmem:[%s298 + $0x1008] sm:$0xff] %v1325
                %v1327 = vld [vmem:[%s297 + $0x4040] sm:$0xff]
                %1328 = vst [vmem:[%s298 + $0x1010] sm:$0xff] %v1327
                %v1329 = vld [vmem:[%s297 + $0x4048] sm:$0xff]
                %1330 = vst [vmem:[%s298 + $0x1018] sm:$0xff] %v1329
                %v1331 = vld [vmem:[%s297 + $0x4080] sm:$0xff]
                %1332 = vst [vmem:[%s298 + $0x1020] sm:$0xff] %v1331
                %v1333 = vld [vmem:[%s297 + $0x4088] sm:$0xff]
                %1334 = vst [vmem:[%s298 + $0x1028] sm:$0xff] %v1333
                %v1335 = vld [vmem:[%s297 + $0x40c0] sm:$0xff]
                %1336 = vst [vmem:[%s298 + $0x1030] sm:$0xff] %v1335
                %v1337 = vld [vmem:[%s297 + $0x40c8] sm:$0xff]
                %1338 = vst [vmem:[%s298 + $0x1038] sm:$0xff] %v1337
                %v1339 = vld [vmem:[%s297 + $0x4100] sm:$0xff]
                %1340 = vst [vmem:[%s298 + $0x1040] sm:$0xff] %v1339
                %v1341 = vld [vmem:[%s297 + $0x4108] sm:$0xff]
                %1342 = vst [vmem:[%s298 + $0x1048] sm:$0xff] %v1341
                %v1343 = vld [vmem:[%s297 + $0x4140] sm:$0xff]
                %1344 = vst [vmem:[%s298 + $0x1050] sm:$0xff] %v1343
                %v1345 = vld [vmem:[%s297 + $0x4148] sm:$0xff]
                %1346 = vst [vmem:[%s298 + $0x1058] sm:$0xff] %v1345
                %v1347 = vld [vmem:[%s297 + $0x4180] sm:$0xff]
                %1348 = vst [vmem:[%s298 + $0x1060] sm:$0xff] %v1347
                %v1349 = vld [vmem:[%s297 + $0x4188] sm:$0xff]
                %1350 = vst [vmem:[%s298 + $0x1068] sm:$0xff] %v1349
                %v1351 = vld [vmem:[%s297 + $0x41c0] sm:$0xff]
                %1352 = vst [vmem:[%s298 + $0x1070] sm:$0xff] %v1351
                %v1353 = vld [vmem:[%s297 + $0x41c8] sm:$0xff]
                %1354 = vst [vmem:[%s298 + $0x1078] sm:$0xff] %v1353
                %v1355 = vld [vmem:[%s297 + $0x4200] sm:$0xff]
                %1356 = vst [vmem:[%s298 + $0x1080] sm:$0xff] %v1355
                %v1357 = vld [vmem:[%s297 + $0x4208] sm:$0xff]
                %1358 = vst [vmem:[%s298 + $0x1088] sm:$0xff] %v1357
                %v1359 = vld [vmem:[%s297 + $0x4240] sm:$0xff]
                %1360 = vst [vmem:[%s298 + $0x1090] sm:$0xff] %v1359
                %v1361 = vld [vmem:[%s297 + $0x4248] sm:$0xff]
                %1362 = vst [vmem:[%s298 + $0x1098] sm:$0xff] %v1361
                %v1363 = vld [vmem:[%s297 + $0x4280] sm:$0xff]
                %1364 = vst [vmem:[%s298 + $0x10a0] sm:$0xff] %v1363
                %v1365 = vld [vmem:[%s297 + $0x4288] sm:$0xff]
                %1366 = vst [vmem:[%s298 + $0x10a8] sm:$0xff] %v1365
                %v1367 = vld [vmem:[%s297 + $0x42c0] sm:$0xff]
                %1368 = vst [vmem:[%s298 + $0x10b0] sm:$0xff] %v1367
                %v1369 = vld [vmem:[%s297 + $0x42c8] sm:$0xff]
                %1370 = vst [vmem:[%s298 + $0x10b8] sm:$0xff] %v1369
                %v1371 = vld [vmem:[%s297 + $0x4300] sm:$0xff]
                %1372 = vst [vmem:[%s298 + $0x10c0] sm:$0xff] %v1371
                %v1373 = vld [vmem:[%s297 + $0x4308] sm:$0xff]
                %1374 = vst [vmem:[%s298 + $0x10c8] sm:$0xff] %v1373
                %v1375 = vld [vmem:[%s297 + $0x4340] sm:$0xff]
                %1376 = vst [vmem:[%s298 + $0x10d0] sm:$0xff] %v1375
                %v1377 = vld [vmem:[%s297 + $0x4348] sm:$0xff]
                %1378 = vst [vmem:[%s298 + $0x10d8] sm:$0xff] %v1377
                %v1379 = vld [vmem:[%s297 + $0x4380] sm:$0xff]
                %1380 = vst [vmem:[%s298 + $0x10e0] sm:$0xff] %v1379
                %v1381 = vld [vmem:[%s297 + $0x4388] sm:$0xff]
                %1382 = vst [vmem:[%s298 + $0x10e8] sm:$0xff] %v1381
                %v1383 = vld [vmem:[%s297 + $0x43c0] sm:$0xff]
                %1384 = vst [vmem:[%s298 + $0x10f0] sm:$0xff] %v1383
                %v1385 = vld [vmem:[%s297 + $0x43c8] sm:$0xff]
                %1386 = vst [vmem:[%s298 + $0x10f8] sm:$0xff] %v1385
                %v1387 = vld [vmem:[%s297 + $0x4400] sm:$0xff]
                %1388 = vst [vmem:[%s298 + $0x1100] sm:$0xff] %v1387
                %v1389 = vld [vmem:[%s297 + $0x4408] sm:$0xff]
                %1390 = vst [vmem:[%s298 + $0x1108] sm:$0xff] %v1389
                %v1391 = vld [vmem:[%s297 + $0x4440] sm:$0xff]
                %1392 = vst [vmem:[%s298 + $0x1110] sm:$0xff] %v1391
                %v1393 = vld [vmem:[%s297 + $0x4448] sm:$0xff]
                %1394 = vst [vmem:[%s298 + $0x1118] sm:$0xff] %v1393
                %v1395 = vld [vmem:[%s297 + $0x4480] sm:$0xff]
                %1396 = vst [vmem:[%s298 + $0x1120] sm:$0xff] %v1395
                %v1397 = vld [vmem:[%s297 + $0x4488] sm:$0xff]
                %1398 = vst [vmem:[%s298 + $0x1128] sm:$0xff] %v1397
                %v1399 = vld [vmem:[%s297 + $0x44c0] sm:$0xff]
                %1400 = vst [vmem:[%s298 + $0x1130] sm:$0xff] %v1399
                %v1401 = vld [vmem:[%s297 + $0x44c8] sm:$0xff]
                %1402 = vst [vmem:[%s298 + $0x1138] sm:$0xff] %v1401
                %v1403 = vld [vmem:[%s297 + $0x4500] sm:$0xff]
                %1404 = vst [vmem:[%s298 + $0x1140] sm:$0xff] %v1403
                %v1405 = vld [vmem:[%s297 + $0x4508] sm:$0xff]
                %1406 = vst [vmem:[%s298 + $0x1148] sm:$0xff] %v1405
                %v1407 = vld [vmem:[%s297 + $0x4540] sm:$0xff]
                %1408 = vst [vmem:[%s298 + $0x1150] sm:$0xff] %v1407
                %v1409 = vld [vmem:[%s297 + $0x4548] sm:$0xff]
                %1410 = vst [vmem:[%s298 + $0x1158] sm:$0xff] %v1409
                %v1411 = vld [vmem:[%s297 + $0x4580] sm:$0xff]
                %1412 = vst [vmem:[%s298 + $0x1160] sm:$0xff] %v1411
                %v1413 = vld [vmem:[%s297 + $0x4588] sm:$0xff]
                %1414 = vst [vmem:[%s298 + $0x1168] sm:$0xff] %v1413
                %v1415 = vld [vmem:[%s297 + $0x45c0] sm:$0xff]
                %1416 = vst [vmem:[%s298 + $0x1170] sm:$0xff] %v1415
                %v1417 = vld [vmem:[%s297 + $0x45c8] sm:$0xff]
                %1418 = vst [vmem:[%s298 + $0x1178] sm:$0xff] %v1417
                %v1419 = vld [vmem:[%s297 + $0x4600] sm:$0xff]
                %1420 = vst [vmem:[%s298 + $0x1180] sm:$0xff] %v1419
                %v1421 = vld [vmem:[%s297 + $0x4608] sm:$0xff]
                %1422 = vst [vmem:[%s298 + $0x1188] sm:$0xff] %v1421
                %v1423 = vld [vmem:[%s297 + $0x4640] sm:$0xff]
                %1424 = vst [vmem:[%s298 + $0x1190] sm:$0xff] %v1423
                %v1425 = vld [vmem:[%s297 + $0x4648] sm:$0xff]
                %1426 = vst [vmem:[%s298 + $0x1198] sm:$0xff] %v1425
                %v1427 = vld [vmem:[%s297 + $0x4680] sm:$0xff]
                %1428 = vst [vmem:[%s298 + $0x11a0] sm:$0xff] %v1427
                %v1429 = vld [vmem:[%s297 + $0x4688] sm:$0xff]
                %1430 = vst [vmem:[%s298 + $0x11a8] sm:$0xff] %v1429
                %v1431 = vld [vmem:[%s297 + $0x46c0] sm:$0xff]
                %1432 = vst [vmem:[%s298 + $0x11b0] sm:$0xff] %v1431
                %v1433 = vld [vmem:[%s297 + $0x46c8] sm:$0xff]
                %1434 = vst [vmem:[%s298 + $0x11b8] sm:$0xff] %v1433
                %v1435 = vld [vmem:[%s297 + $0x4700] sm:$0xff]
                %1436 = vst [vmem:[%s298 + $0x11c0] sm:$0xff] %v1435
                %v1437 = vld [vmem:[%s297 + $0x4708] sm:$0xff]
                %1438 = vst [vmem:[%s298 + $0x11c8] sm:$0xff] %v1437
                %v1439 = vld [vmem:[%s297 + $0x4740] sm:$0xff]
                %1440 = vst [vmem:[%s298 + $0x11d0] sm:$0xff] %v1439
                %v1441 = vld [vmem:[%s297 + $0x4748] sm:$0xff]
                %1442 = vst [vmem:[%s298 + $0x11d8] sm:$0xff] %v1441
                %v1443 = vld [vmem:[%s297 + $0x4780] sm:$0xff]
                %1444 = vst [vmem:[%s298 + $0x11e0] sm:$0xff] %v1443
                %v1445 = vld [vmem:[%s297 + $0x4788] sm:$0xff]
                %1446 = vst [vmem:[%s298 + $0x11e8] sm:$0xff] %v1445
                %v1447 = vld [vmem:[%s297 + $0x47c0] sm:$0xff]
                %1448 = vst [vmem:[%s298 + $0x11f0] sm:$0xff] %v1447
                %v1449 = vld [vmem:[%s297 + $0x47c8] sm:$0xff]
                %1450 = vst [vmem:[%s298 + $0x11f8] sm:$0xff] %v1449
                %v1451 = vld [vmem:[%s297 + $0x4800] sm:$0xff]
                %1452 = vst [vmem:[%s298 + $0x1200] sm:$0xff] %v1451
                %v1453 = vld [vmem:[%s297 + $0x4808] sm:$0xff]
                %1454 = vst [vmem:[%s298 + $0x1208] sm:$0xff] %v1453
                %v1455 = vld [vmem:[%s297 + $0x4840] sm:$0xff]
                %1456 = vst [vmem:[%s298 + $0x1210] sm:$0xff] %v1455
                %v1457 = vld [vmem:[%s297 + $0x4848] sm:$0xff]
                %1458 = vst [vmem:[%s298 + $0x1218] sm:$0xff] %v1457
                %v1459 = vld [vmem:[%s297 + $0x4880] sm:$0xff]
                %1460 = vst [vmem:[%s298 + $0x1220] sm:$0xff] %v1459
                %v1461 = vld [vmem:[%s297 + $0x4888] sm:$0xff]
                %1462 = vst [vmem:[%s298 + $0x1228] sm:$0xff] %v1461
                %v1463 = vld [vmem:[%s297 + $0x48c0] sm:$0xff]
                %1464 = vst [vmem:[%s298 + $0x1230] sm:$0xff] %v1463
                %v1465 = vld [vmem:[%s297 + $0x48c8] sm:$0xff]
                %1466 = vst [vmem:[%s298 + $0x1238] sm:$0xff] %v1465
                %v1467 = vld [vmem:[%s297 + $0x4900] sm:$0xff]
                %1468 = vst [vmem:[%s298 + $0x1240] sm:$0xff] %v1467
                %v1469 = vld [vmem:[%s297 + $0x4908] sm:$0xff]
                %1470 = vst [vmem:[%s298 + $0x1248] sm:$0xff] %v1469
                %v1471 = vld [vmem:[%s297 + $0x4940] sm:$0xff]
                %1472 = vst [vmem:[%s298 + $0x1250] sm:$0xff] %v1471
                %v1473 = vld [vmem:[%s297 + $0x4948] sm:$0xff]
                %1474 = vst [vmem:[%s298 + $0x1258] sm:$0xff] %v1473
                %v1475 = vld [vmem:[%s297 + $0x4980] sm:$0xff]
                %1476 = vst [vmem:[%s298 + $0x1260] sm:$0xff] %v1475
                %v1477 = vld [vmem:[%s297 + $0x4988] sm:$0xff]
                %1478 = vst [vmem:[%s298 + $0x1268] sm:$0xff] %v1477
                %v1479 = vld [vmem:[%s297 + $0x49c0] sm:$0xff]
                %1480 = vst [vmem:[%s298 + $0x1270] sm:$0xff] %v1479
                %v1481 = vld [vmem:[%s297 + $0x49c8] sm:$0xff]
                %1482 = vst [vmem:[%s298 + $0x1278] sm:$0xff] %v1481
                %v1483 = vld [vmem:[%s297 + $0x4a00] sm:$0xff]
                %1484 = vst [vmem:[%s298 + $0x1280] sm:$0xff] %v1483
                %v1485 = vld [vmem:[%s297 + $0x4a08] sm:$0xff]
                %1486 = vst [vmem:[%s298 + $0x1288] sm:$0xff] %v1485
                %v1487 = vld [vmem:[%s297 + $0x4a40] sm:$0xff]
                %1488 = vst [vmem:[%s298 + $0x1290] sm:$0xff] %v1487
                %v1489 = vld [vmem:[%s297 + $0x4a48] sm:$0xff]
                %1490 = vst [vmem:[%s298 + $0x1298] sm:$0xff] %v1489
                %v1491 = vld [vmem:[%s297 + $0x4a80] sm:$0xff]
                %1492 = vst [vmem:[%s298 + $0x12a0] sm:$0xff] %v1491
                %v1493 = vld [vmem:[%s297 + $0x4a88] sm:$0xff]
                %1494 = vst [vmem:[%s298 + $0x12a8] sm:$0xff] %v1493
                %v1495 = vld [vmem:[%s297 + $0x4ac0] sm:$0xff]
                %1496 = vst [vmem:[%s298 + $0x12b0] sm:$0xff] %v1495
                %v1497 = vld [vmem:[%s297 + $0x4ac8] sm:$0xff]
                %1498 = vst [vmem:[%s298 + $0x12b8] sm:$0xff] %v1497
                %v1499 = vld [vmem:[%s297 + $0x4b00] sm:$0xff]
                %1500 = vst [vmem:[%s298 + $0x12c0] sm:$0xff] %v1499
                %v1501 = vld [vmem:[%s297 + $0x4b08] sm:$0xff]
                %1502 = vst [vmem:[%s298 + $0x12c8] sm:$0xff] %v1501
                %v1503 = vld [vmem:[%s297 + $0x4b40] sm:$0xff]
                %1504 = vst [vmem:[%s298 + $0x12d0] sm:$0xff] %v1503
                %v1505 = vld [vmem:[%s297 + $0x4b48] sm:$0xff]
                %1506 = vst [vmem:[%s298 + $0x12d8] sm:$0xff] %v1505
                %v1507 = vld [vmem:[%s297 + $0x4b80] sm:$0xff]
                %1508 = vst [vmem:[%s298 + $0x12e0] sm:$0xff] %v1507
                %v1509 = vld [vmem:[%s297 + $0x4b88] sm:$0xff]
                %1510 = vst [vmem:[%s298 + $0x12e8] sm:$0xff] %v1509
                %v1511 = vld [vmem:[%s297 + $0x4bc0] sm:$0xff]
                %1512 = vst [vmem:[%s298 + $0x12f0] sm:$0xff] %v1511
                %v1513 = vld [vmem:[%s297 + $0x4bc8] sm:$0xff]
                %1514 = vst [vmem:[%s298 + $0x12f8] sm:$0xff] %v1513
                %v1515 = vld [vmem:[%s297 + $0x4c00] sm:$0xff]
                %1516 = vst [vmem:[%s298 + $0x1300] sm:$0xff] %v1515
                %v1517 = vld [vmem:[%s297 + $0x4c08] sm:$0xff]
                %1518 = vst [vmem:[%s298 + $0x1308] sm:$0xff] %v1517
                %v1519 = vld [vmem:[%s297 + $0x4c40] sm:$0xff]
                %1520 = vst [vmem:[%s298 + $0x1310] sm:$0xff] %v1519
                %v1521 = vld [vmem:[%s297 + $0x4c48] sm:$0xff]
                %1522 = vst [vmem:[%s298 + $0x1318] sm:$0xff] %v1521
                %v1523 = vld [vmem:[%s297 + $0x4c80] sm:$0xff]
                %1524 = vst [vmem:[%s298 + $0x1320] sm:$0xff] %v1523
                %v1525 = vld [vmem:[%s297 + $0x4c88] sm:$0xff]
                %1526 = vst [vmem:[%s298 + $0x1328] sm:$0xff] %v1525
                %v1527 = vld [vmem:[%s297 + $0x4cc0] sm:$0xff]
                %1528 = vst [vmem:[%s298 + $0x1330] sm:$0xff] %v1527
                %v1529 = vld [vmem:[%s297 + $0x4cc8] sm:$0xff]
                %1530 = vst [vmem:[%s298 + $0x1338] sm:$0xff] %v1529
                %v1531 = vld [vmem:[%s297 + $0x4d00] sm:$0xff]
                %1532 = vst [vmem:[%s298 + $0x1340] sm:$0xff] %v1531
                %v1533 = vld [vmem:[%s297 + $0x4d08] sm:$0xff]
                %1534 = vst [vmem:[%s298 + $0x1348] sm:$0xff] %v1533
                %v1535 = vld [vmem:[%s297 + $0x4d40] sm:$0xff]
                %1536 = vst [vmem:[%s298 + $0x1350] sm:$0xff] %v1535
                %v1537 = vld [vmem:[%s297 + $0x4d48] sm:$0xff]
                %1538 = vst [vmem:[%s298 + $0x1358] sm:$0xff] %v1537
                %v1539 = vld [vmem:[%s297 + $0x4d80] sm:$0xff]
                %1540 = vst [vmem:[%s298 + $0x1360] sm:$0xff] %v1539
                %v1541 = vld [vmem:[%s297 + $0x4d88] sm:$0xff]
                %1542 = vst [vmem:[%s298 + $0x1368] sm:$0xff] %v1541
                %v1543 = vld [vmem:[%s297 + $0x4dc0] sm:$0xff]
                %1544 = vst [vmem:[%s298 + $0x1370] sm:$0xff] %v1543
                %v1545 = vld [vmem:[%s297 + $0x4dc8] sm:$0xff]
                %1546 = vst [vmem:[%s298 + $0x1378] sm:$0xff] %v1545
                %v1547 = vld [vmem:[%s297 + $0x4e00] sm:$0xff]
                %1548 = vst [vmem:[%s298 + $0x1380] sm:$0xff] %v1547
                %v1549 = vld [vmem:[%s297 + $0x4e08] sm:$0xff]
                %1550 = vst [vmem:[%s298 + $0x1388] sm:$0xff] %v1549
                %v1551 = vld [vmem:[%s297 + $0x4e40] sm:$0xff]
                %1552 = vst [vmem:[%s298 + $0x1390] sm:$0xff] %v1551
                %v1553 = vld [vmem:[%s297 + $0x4e48] sm:$0xff]
                %1554 = vst [vmem:[%s298 + $0x1398] sm:$0xff] %v1553
                %v1555 = vld [vmem:[%s297 + $0x4e80] sm:$0xff]
                %1556 = vst [vmem:[%s298 + $0x13a0] sm:$0xff] %v1555
                %v1557 = vld [vmem:[%s297 + $0x4e88] sm:$0xff]
                %1558 = vst [vmem:[%s298 + $0x13a8] sm:$0xff] %v1557
                %v1559 = vld [vmem:[%s297 + $0x4ec0] sm:$0xff]
                %1560 = vst [vmem:[%s298 + $0x13b0] sm:$0xff] %v1559
                %v1561 = vld [vmem:[%s297 + $0x4ec8] sm:$0xff]
                %1562 = vst [vmem:[%s298 + $0x13b8] sm:$0xff] %v1561
                %v1563 = vld [vmem:[%s297 + $0x4f00] sm:$0xff]
                %1564 = vst [vmem:[%s298 + $0x13c0] sm:$0xff] %v1563
                %v1565 = vld [vmem:[%s297 + $0x4f08] sm:$0xff]
                %1566 = vst [vmem:[%s298 + $0x13c8] sm:$0xff] %v1565
                %v1567 = vld [vmem:[%s297 + $0x4f40] sm:$0xff]
                %1568 = vst [vmem:[%s298 + $0x13d0] sm:$0xff] %v1567
                %v1569 = vld [vmem:[%s297 + $0x4f48] sm:$0xff]
                %1570 = vst [vmem:[%s298 + $0x13d8] sm:$0xff] %v1569
                %v1571 = vld [vmem:[%s297 + $0x4f80] sm:$0xff]
                %1572 = vst [vmem:[%s298 + $0x13e0] sm:$0xff] %v1571
                %v1573 = vld [vmem:[%s297 + $0x4f88] sm:$0xff]
                %1574 = vst [vmem:[%s298 + $0x13e8] sm:$0xff] %v1573
                %v1575 = vld [vmem:[%s297 + $0x4fc0] sm:$0xff]
                %1576 = vst [vmem:[%s298 + $0x13f0] sm:$0xff] %v1575
                %v1577 = vld [vmem:[%s297 + $0x4fc8] sm:$0xff]
                %1578 = vst [vmem:[%s298 + $0x13f8] sm:$0xff] %v1577
                %v1579 = vld [vmem:[%s297 + $0x5000] sm:$0xff]
                %1580 = vst [vmem:[%s298 + $0x1400] sm:$0xff] %v1579
                %v1581 = vld [vmem:[%s297 + $0x5008] sm:$0xff]
                %1582 = vst [vmem:[%s298 + $0x1408] sm:$0xff] %v1581
                %v1583 = vld [vmem:[%s297 + $0x5040] sm:$0xff]
                %1584 = vst [vmem:[%s298 + $0x1410] sm:$0xff] %v1583
                %v1585 = vld [vmem:[%s297 + $0x5048] sm:$0xff]
                %1586 = vst [vmem:[%s298 + $0x1418] sm:$0xff] %v1585
                %v1587 = vld [vmem:[%s297 + $0x5080] sm:$0xff]
                %1588 = vst [vmem:[%s298 + $0x1420] sm:$0xff] %v1587
                %v1589 = vld [vmem:[%s297 + $0x5088] sm:$0xff]
                %1590 = vst [vmem:[%s298 + $0x1428] sm:$0xff] %v1589
                %v1591 = vld [vmem:[%s297 + $0x50c0] sm:$0xff]
                %1592 = vst [vmem:[%s298 + $0x1430] sm:$0xff] %v1591
                %v1593 = vld [vmem:[%s297 + $0x50c8] sm:$0xff]
                %1594 = vst [vmem:[%s298 + $0x1438] sm:$0xff] %v1593
                %v1595 = vld [vmem:[%s297 + $0x5100] sm:$0xff]
                %1596 = vst [vmem:[%s298 + $0x1440] sm:$0xff] %v1595
                %v1597 = vld [vmem:[%s297 + $0x5108] sm:$0xff]
                %1598 = vst [vmem:[%s298 + $0x1448] sm:$0xff] %v1597
                %v1599 = vld [vmem:[%s297 + $0x5140] sm:$0xff]
                %1600 = vst [vmem:[%s298 + $0x1450] sm:$0xff] %v1599
                %v1601 = vld [vmem:[%s297 + $0x5148] sm:$0xff]
                %1602 = vst [vmem:[%s298 + $0x1458] sm:$0xff] %v1601
                %v1603 = vld [vmem:[%s297 + $0x5180] sm:$0xff]
                %1604 = vst [vmem:[%s298 + $0x1460] sm:$0xff] %v1603
                %v1605 = vld [vmem:[%s297 + $0x5188] sm:$0xff]
                %1606 = vst [vmem:[%s298 + $0x1468] sm:$0xff] %v1605
                %v1607 = vld [vmem:[%s297 + $0x51c0] sm:$0xff]
                %1608 = vst [vmem:[%s298 + $0x1470] sm:$0xff] %v1607
                %v1609 = vld [vmem:[%s297 + $0x51c8] sm:$0xff]
                %1610 = vst [vmem:[%s298 + $0x1478] sm:$0xff] %v1609
                %v1611 = vld [vmem:[%s297 + $0x5200] sm:$0xff]
                %1612 = vst [vmem:[%s298 + $0x1480] sm:$0xff] %v1611
                %v1613 = vld [vmem:[%s297 + $0x5208] sm:$0xff]
                %1614 = vst [vmem:[%s298 + $0x1488] sm:$0xff] %v1613
                %v1615 = vld [vmem:[%s297 + $0x5240] sm:$0xff]
                %1616 = vst [vmem:[%s298 + $0x1490] sm:$0xff] %v1615
                %v1617 = vld [vmem:[%s297 + $0x5248] sm:$0xff]
                %1618 = vst [vmem:[%s298 + $0x1498] sm:$0xff] %v1617
                %v1619 = vld [vmem:[%s297 + $0x5280] sm:$0xff]
                %1620 = vst [vmem:[%s298 + $0x14a0] sm:$0xff] %v1619
                %v1621 = vld [vmem:[%s297 + $0x5288] sm:$0xff]
                %1622 = vst [vmem:[%s298 + $0x14a8] sm:$0xff] %v1621
                %v1623 = vld [vmem:[%s297 + $0x52c0] sm:$0xff]
                %1624 = vst [vmem:[%s298 + $0x14b0] sm:$0xff] %v1623
                %v1625 = vld [vmem:[%s297 + $0x52c8] sm:$0xff]
                %1626 = vst [vmem:[%s298 + $0x14b8] sm:$0xff] %v1625
                %v1627 = vld [vmem:[%s297 + $0x5300] sm:$0xff]
                %1628 = vst [vmem:[%s298 + $0x14c0] sm:$0xff] %v1627
                %v1629 = vld [vmem:[%s297 + $0x5308] sm:$0xff]
                %1630 = vst [vmem:[%s298 + $0x14c8] sm:$0xff] %v1629
                %v1631 = vld [vmem:[%s297 + $0x5340] sm:$0xff]
                %1632 = vst [vmem:[%s298 + $0x14d0] sm:$0xff] %v1631
                %v1633 = vld [vmem:[%s297 + $0x5348] sm:$0xff]
                %1634 = vst [vmem:[%s298 + $0x14d8] sm:$0xff] %v1633
                %v1635 = vld [vmem:[%s297 + $0x5380] sm:$0xff]
                %1636 = vst [vmem:[%s298 + $0x14e0] sm:$0xff] %v1635
                %v1637 = vld [vmem:[%s297 + $0x5388] sm:$0xff]
                %1638 = vst [vmem:[%s298 + $0x14e8] sm:$0xff] %v1637
                %v1639 = vld [vmem:[%s297 + $0x53c0] sm:$0xff]
                %1640 = vst [vmem:[%s298 + $0x14f0] sm:$0xff] %v1639
                %v1641 = vld [vmem:[%s297 + $0x53c8] sm:$0xff]
                %1642 = vst [vmem:[%s298 + $0x14f8] sm:$0xff] %v1641
                %v1643 = vld [vmem:[%s297 + $0x5400] sm:$0xff]
                %1644 = vst [vmem:[%s298 + $0x1500] sm:$0xff] %v1643
                %v1645 = vld [vmem:[%s297 + $0x5408] sm:$0xff]
                %1646 = vst [vmem:[%s298 + $0x1508] sm:$0xff] %v1645
                %v1647 = vld [vmem:[%s297 + $0x5440] sm:$0xff]
                %1648 = vst [vmem:[%s298 + $0x1510] sm:$0xff] %v1647
                %v1649 = vld [vmem:[%s297 + $0x5448] sm:$0xff]
                %1650 = vst [vmem:[%s298 + $0x1518] sm:$0xff] %v1649
              $region57: #{net_forward.5} parent=51 // loop_footer
                %s296 = sadd.s32 1, %s292
              $region58: #{net_forward.5} parent=51 // loop_footer_branch
                %291 = sbr.rel target = $region54
              $region59: #{net_forward.5} parent=51 // loop_exit
                _
            $region52: #{net_forward.5} parent=47 // pred_fallthru
              _
            // Predicated region
            $region60: #{net_forward.5} parent=47 // pred_check
              _
            $region61: #{net_forward.5} parent=47 // pred_check_branch
              %1652 = sbr.rel target = $region63
            $region62: #{net_forward.5} parent=47 // pred_region
              _
            $region63: #{net_forward.5} parent=47 // pred_fallthru
              _
          $region48: #{net_forward.5} parent=43 // pred_fallthru
            _
          %1653 = vnop
        $region44: #{net_forward.5} parent=39 // pred_fallthru
          _
        // Predicated region
        $region64: #{net_forward.5} parent=39 // pred_check
          %p1654 = pneg %p82
        $region65: #{net_forward.5} parent=39 // pred_check_branch
          %1656 = sbr.rel (%p1654) target = $region67
        $region66: #{net_forward.5} parent=39 // pred_region
          %s1657 = smul.u32 4, %s15
          %p1658 = scmp.lt.s32.totalorder %s1657, 15
          %s1659 = scalar_select %p1658, %s1657, 15
          %s1660 = scalar_lea.vmem %s2, %s1659
          %s1661 = smul.u32 4, %s15
        $region67: #{net_forward.5} parent=39 // pred_fallthru
          _
        // Predicated region
        $region68: #{net_forward.5} parent=39 // pred_check
          %p1662 = pneg %p108
        $region69: #{net_forward.5} parent=39 // pred_check_branch
          %1664 = sbr.rel (%p1662) target = $region71
        $region70: #{net_forward.5} parent=39 // pred_region
          %s1665 = smul.u32 64, %s15
          %p1666 = scmp.lt.s32.totalorder %s1665, 255
          %s1667 = scalar_select %p1666, %s1665, 255
          %s1668 = smul.addr %s1667, 4
          %s1669 = scalar_lea.vmem %s3, %s1668
          %s1670 = smul.u32 64, %s15
        $region71: #{net_forward.5} parent=39 // pred_fallthru
          _
      $region40: #{net_forward.5} parent=5 // pred_fallthru
        _
      %p1671 = scmp.le.s32.totalorder 1, %s15
      %p1672 = scmp.lt.s32.totalorder %s15, 5
      %p1673 = pnand %p1671, %p1672
      %p1674 = pneg %p1673
      // Predicated region
      $region72: #{net_forward.5} parent=5 // pred_check
        _
      $region73: #{net_forward.5} parent=5 // pred_check_branch
        %1676 = sbr.rel (%p1673) target = $region75
      $region74: #{net_forward.5} parent=5 // pred_region
        %s1677 = ssub.s32 %s15, 1
        %s1678 = sand.u32 %s49, 1
        %s1679 = sand.u32 %s49, 1
        %s1680 = smul.addr %s1679, 5408
        %s1681 = scalar_lea.vmem [#allocation3], %s1680
        // Predicated region
        $region76: #{net_forward.5} parent=74 // pred_check
          %p1682 = pneg %p62
        $region77: #{net_forward.5} parent=74 // pred_check_branch
          %1684 = sbr.rel (%p1682) target = $region79
        $region78: #{net_forward.5} parent=74 // pred_region
          _
        $region79: #{net_forward.5} parent=74 // pred_fallthru
          _
        %p1685 = pneg %p36
        %p1686 = pneg %p33
        %s1687 = sand.u32 %s49, 1
        %s1688 = sand.u32 %s49, 1
        %s1689 = smul.addr %s1688, 5408
        %s1690 = scalar_lea.vmem [#allocation3], %s1689
        %p1691 = pneg %p62
        %p1692 = pneg %p59
        %s1693 = smul.u32 4, %s20
        %p1694 = scmp.lt.s32.totalorder %s1693, 15
        %s1695 = scalar_select %p1694, %s1693, 15
        %s1696 = scalar_lea.vmem %s2, %s1695
        %p1697 = pneg %p88
        %p1698 = pneg %p85
        %s1699 = smul.u32 64, %s20
        %p1700 = scmp.lt.s32.totalorder %s1699, 255
        %s1701 = scalar_select %p1700, %s1699, 255
        %s1702 = smul.addr %s1701, 4
        %s1703 = scalar_lea.vmem %s3, %s1702
        %p1704 = pneg %p114
        %p1705 = pneg %p111
        %p1706 = pneg %p135
        %p1707 = pneg %p132
        %p1708 = pneg %p156
        %p1709 = pneg %p153
        %p1710 = pneg %p177
        %p1711 = pneg %p174
        %p1712 = pneg %p198
        %p1713 = pneg %p195
        %p1714 = pneg %p219
        %p1715 = pneg %p216
        %p1716 = pneg %p240
        %p1717 = pneg %p237
        %s1718 = smul.u32 4, %s20
        %s1719 = smul.u32 4, %s20
        %p1720 = scmp.lt.s32.totalorder %s1719, 15
        %s1721 = scalar_select %p1720, %s1719, 15
        %s1722 = scalar_lea.vmem %s2, %s1721
        %s1723 = smul.u32 4, %s20
        %s1724 = smul.u32 64, %s20
        %p1725 = scmp.lt.s32.totalorder %s1724, 255
        %s1726 = scalar_select %p1725, %s1724, 255
        %s1727 = smul.addr %s1726, 4
        %s1728 = scalar_lea.vmem %s3, %s1727
        %s1729 = smul.u32 64, %s20
        %p1731 = scmp.eq.s32.totalorder %s20, 0
        // Predicated region
        $region80: #{net_forward.5} parent=74 // pred_check
          %p1732 = pneg %p1731
        $region81: #{net_forward.5} parent=74 // pred_check_branch
          %1734 = sbr.rel (%p1732) target = $region83
        $region82: #{net_forward.5} parent=74 // pred_region
          %1735 = vst [vmem:[#allocation2] sm:$0xff] 0.0
        $region83: #{net_forward.5} parent=74 // pred_fallthru
          _
        %v1736 = vld [vmem:[%s0] sm:$0xff]
        %v1737 = vld [vmem:[%s0 + $0x8] sm:$0xff]
        %v1738 = vld [vmem:[%s0 + $0x10] sm:$0xff]
        %v1739 = vld [vmem:[%s0 + $0x18] sm:$0xff]
        %v1740 = vld [vmem:[%s0 + $0x20] sm:$0xff]
        %v1741 = vld [vmem:[%s0 + $0x28] sm:$0xff]
        %v1742 = vld [vmem:[%s0 + $0x30] sm:$0xff]
        %v1743 = vld [vmem:[%s0 + $0x38] sm:$0xff]
        %v1744 = vld [vmem:[%s0 + $0x40] sm:$0xff]
        %v1745 = vld [vmem:[%s0 + $0x48] sm:$0xff]
        %v1746 = vld [vmem:[%s0 + $0x50] sm:$0xff]
        %v1747 = vld [vmem:[%s1681] sm:$0xff]
        %v1748 = vld [vmem:[%s1681 + $0x8] sm:$0xff]
        %v1749 = vld [vmem:[%s1681 + $0x10] sm:$0xff]
        %v1750 = vld [vmem:[%s1681 + $0x18] sm:$0xff]
        %v1751 = vld [vmem:[%s1681 + $0x20] sm:$0xff]
        %v1752 = vld [vmem:[%s1681 + $0x28] sm:$0xff]
        %v1753 = vld [vmem:[%s1681 + $0x30] sm:$0xff]
        %v1754 = vld [vmem:[%s1681 + $0x38] sm:$0xff]
        %v1755 = vld [vmem:[%s1681 + $0x40] sm:$0xff]
        %v1756 = vld [vmem:[%s1681 + $0x48] sm:$0xff]
        %v1757 = vld [vmem:[%s1681 + $0x50] sm:$0xff]
        %v1758 = vld [vmem:[%s1681 + $0x58] sm:$0xff]
        %v1759 = vld [vmem:[%s1681 + $0x60] sm:$0xff]
        %v1760 = vld [vmem:[%s1681 + $0x68] sm:$0xff]
        %v1761 = vld [vmem:[%s1681 + $0x70] sm:$0xff]
        %v1762 = vld [vmem:[%s1681 + $0x78] sm:$0xff]
        %v1763 = vld [vmem:[%s1681 + $0x80] sm:$0xff]
        %v1764 = vld [vmem:[%s1681 + $0x88] sm:$0xff]
        %v1765 = vld [vmem:[%s1681 + $0x90] sm:$0xff]
        %v1766 = vld [vmem:[%s1681 + $0x98] sm:$0xff]
        %v1767 = vld [vmem:[%s1681 + $0xa0] sm:$0xff]
        %v1768 = vld [vmem:[%s1681 + $0xa8] sm:$0xff]
        %v1769 = vld [vmem:[%s1681 + $0xb0] sm:$0xff]
        %v1770 = vld [vmem:[%s1681 + $0xb8] sm:$0xff]
        %v1771 = vld [vmem:[%s1681 + $0xc0] sm:$0xff]
        %v1772 = vld [vmem:[%s1681 + $0xc8] sm:$0xff]
        %v1773 = vld [vmem:[%s1681 + $0xd0] sm:$0xff]
        %v1774 = vld [vmem:[%s1681 + $0xd8] sm:$0xff]
        %v1775 = vld [vmem:[%s1681 + $0xe0] sm:$0xff]
        %v1776 = vld [vmem:[%s1681 + $0xe8] sm:$0xff]
        %v1777 = vld [vmem:[%s1681 + $0xf0] sm:$0xff]
        %v1778 = vld [vmem:[%s1681 + $0xf8] sm:$0xff]
        %v1779 = vld [vmem:[%s1681 + $0x100] sm:$0xff]
        %v1780 = vld [vmem:[%s1681 + $0x108] sm:$0xff]
        %v1781 = vld [vmem:[%s1681 + $0x110] sm:$0xff]
        %v1782 = vld [vmem:[%s1681 + $0x118] sm:$0xff]
        %v1783 = vld [vmem:[%s1681 + $0x120] sm:$0xff]
        %v1784 = vld [vmem:[%s1681 + $0x128] sm:$0xff]
        %v1785 = vld [vmem:[%s1681 + $0x130] sm:$0xff]
        %v1786 = vld [vmem:[%s1681 + $0x138] sm:$0xff]
        %v1787 = vld [vmem:[%s1681 + $0x140] sm:$0xff]
        %v1788 = vld [vmem:[%s1681 + $0x148] sm:$0xff]
        %v1789 = vld [vmem:[%s1681 + $0x150] sm:$0xff]
        %v1790 = vld [vmem:[%s1681 + $0x158] sm:$0xff]
        %v1791 = vld [vmem:[%s1681 + $0x160] sm:$0xff]
        %v1792 = vld [vmem:[%s1681 + $0x168] sm:$0xff]
        %v1793 = vld [vmem:[%s1681 + $0x170] sm:$0xff]
        %v1794 = vld [vmem:[%s1681 + $0x178] sm:$0xff]
        %v1795 = vld [vmem:[%s1681 + $0x180] sm:$0xff]
        %v1796 = vld [vmem:[%s1681 + $0x188] sm:$0xff]
        %v1797 = vld [vmem:[%s1681 + $0x190] sm:$0xff]
        %v1798 = vld [vmem:[%s1681 + $0x198] sm:$0xff]
        %v1799 = vld [vmem:[%s1681 + $0x1a0] sm:$0xff]
        %v1800 = vld [vmem:[%s1681 + $0x1a8] sm:$0xff]
        %v1801 = vld [vmem:[%s1681 + $0x1b0] sm:$0xff]
        %v1802 = vld [vmem:[%s1681 + $0x1b8] sm:$0xff]
        %v1803 = vld [vmem:[%s1681 + $0x1c0] sm:$0xff]
        %v1804 = vld [vmem:[%s1681 + $0x1c8] sm:$0xff]
        %v1805 = vld [vmem:[%s1681 + $0x1d0] sm:$0xff]
        %v1806 = vld [vmem:[%s1681 + $0x1d8] sm:$0xff]
        %v1807 = vld [vmem:[%s1681 + $0x1e0] sm:$0xff]
        %v1808 = vld [vmem:[%s1681 + $0x1e8] sm:$0xff]
        %v1809 = vld [vmem:[%s1681 + $0x1f0] sm:$0xff]
        %v1810 = vld [vmem:[%s1681 + $0x1f8] sm:$0xff]
        %v1811 = vld [vmem:[%s1681 + $0x200] sm:$0xff]
        %v1812 = vld [vmem:[%s1681 + $0x208] sm:$0xff]
        %v1813 = vld [vmem:[%s1681 + $0x210] sm:$0xff]
        %v1814 = vld [vmem:[%s1681 + $0x218] sm:$0xff]
        %v1815 = vld [vmem:[%s1681 + $0x220] sm:$0xff]
        %v1816 = vld [vmem:[%s1681 + $0x228] sm:$0xff]
        %v1817 = vld [vmem:[%s1681 + $0x230] sm:$0xff]
        %v1818 = vld [vmem:[%s1681 + $0x238] sm:$0xff]
        %v1819 = vld [vmem:[%s1681 + $0x240] sm:$0xff]
        %v1820 = vld [vmem:[%s1681 + $0x248] sm:$0xff]
        %v1821 = vld [vmem:[%s1681 + $0x250] sm:$0xff]
        %v1822 = vld [vmem:[%s1681 + $0x258] sm:$0xff]
        %v1823 = vld [vmem:[%s1681 + $0x260] sm:$0xff]
        %v1824 = vld [vmem:[%s1681 + $0x268] sm:$0xff]
        %v1825 = vld [vmem:[%s1681 + $0x270] sm:$0xff]
        %v1826 = vld [vmem:[%s1681 + $0x278] sm:$0xff]
        %v1827 = vld [vmem:[%s1681 + $0x280] sm:$0xff]
        %v1828 = vld [vmem:[%s1681 + $0x288] sm:$0xff]
        %v1829 = vld [vmem:[%s1681 + $0x290] sm:$0xff]
        %v1830 = vld [vmem:[%s1681 + $0x298] sm:$0xff]
        %v1831 = vld [vmem:[%s1681 + $0x2a0] sm:$0xff]
        %v1832 = vld [vmem:[%s1681 + $0x2a8] sm:$0xff]
        %v1833 = vld [vmem:[%s1681 + $0x2b0] sm:$0xff]
        %v1834 = vld [vmem:[%s1681 + $0x2b8] sm:$0xff]
        %v1835 = vld [vmem:[%s1681 + $0x2c0] sm:$0xff]
        %v1836 = vld [vmem:[%s1681 + $0x2c8] sm:$0xff]
        %v1837 = vld [vmem:[%s1681 + $0x2d0] sm:$0xff]
        %v1838 = vld [vmem:[%s1681 + $0x2d8] sm:$0xff]
        %v1839 = vld [vmem:[%s1681 + $0x2e0] sm:$0xff]
        %v1840 = vld [vmem:[%s1681 + $0x2e8] sm:$0xff]
        %v1841 = vld [vmem:[%s1681 + $0x2f0] sm:$0xff]
        %v1842 = vld [vmem:[%s1681 + $0x2f8] sm:$0xff]
        %v1843 = vld [vmem:[%s1681 + $0x300] sm:$0xff]
        %v1844 = vld [vmem:[%s1681 + $0x308] sm:$0xff]
        %v1845 = vld [vmem:[%s1681 + $0x310] sm:$0xff]
        %v1846 = vld [vmem:[%s1681 + $0x318] sm:$0xff]
        %v1847 = vld [vmem:[%s1681 + $0x320] sm:$0xff]
        %v1848 = vld [vmem:[%s1681 + $0x328] sm:$0xff]
        %v1849 = vld [vmem:[%s1681 + $0x330] sm:$0xff]
        %v1850 = vld [vmem:[%s1681 + $0x338] sm:$0xff]
        %v1851 = vld [vmem:[%s1681 + $0x340] sm:$0xff]
        %v1852 = vld [vmem:[%s1681 + $0x348] sm:$0xff]
        %v1853 = vld [vmem:[%s1681 + $0x350] sm:$0xff]
        %v1854 = vld [vmem:[%s1681 + $0x358] sm:$0xff]
        %v1855 = vld [vmem:[%s1681 + $0x360] sm:$0xff]
        %v1856 = vld [vmem:[%s1681 + $0x368] sm:$0xff]
        %v1857 = vld [vmem:[%s1681 + $0x370] sm:$0xff]
        %v1858 = vld [vmem:[%s1681 + $0x378] sm:$0xff]
        %v1859 = vld [vmem:[%s1681 + $0x380] sm:$0xff]
        %v1860 = vld [vmem:[%s1681 + $0x388] sm:$0xff]
        %v1861 = vld [vmem:[%s1681 + $0x390] sm:$0xff]
        %v1862 = vld [vmem:[%s1681 + $0x398] sm:$0xff]
        %v1863 = vld [vmem:[%s1681 + $0x3a0] sm:$0xff]
        %v1864 = vld [vmem:[%s1681 + $0x3a8] sm:$0xff]
        %v1865 = vld [vmem:[%s1681 + $0x3b0] sm:$0xff]
        %v1866 = vld [vmem:[%s1681 + $0x3b8] sm:$0xff]
        %v1867 = vld [vmem:[%s1681 + $0x3c0] sm:$0xff]
        %v1868 = vld [vmem:[%s1681 + $0x3c8] sm:$0xff]
        %v1869 = vld [vmem:[%s1681 + $0x3d0] sm:$0xff]
        %v1870 = vld [vmem:[%s1681 + $0x3d8] sm:$0xff]
        %v1871 = vld [vmem:[%s1681 + $0x3e0] sm:$0xff]
        %v1872 = vld [vmem:[%s1681 + $0x3e8] sm:$0xff]
        %v1873 = vld [vmem:[%s1681 + $0x3f0] sm:$0xff]
        %v1874 = vld [vmem:[%s1681 + $0x3f8] sm:$0xff]
        %v1875 = vld [vmem:[%s1681 + $0x400] sm:$0xff]
        %v1876 = vld [vmem:[%s1681 + $0x408] sm:$0xff]
        %v1877 = vld [vmem:[%s1681 + $0x410] sm:$0xff]
        %v1878 = vld [vmem:[%s1681 + $0x418] sm:$0xff]
        %v1879 = vld [vmem:[%s1681 + $0x420] sm:$0xff]
        %v1880 = vld [vmem:[%s1681 + $0x428] sm:$0xff]
        %v1881 = vld [vmem:[%s1681 + $0x430] sm:$0xff]
        %v1882 = vld [vmem:[%s1681 + $0x438] sm:$0xff]
        %v1883 = vld [vmem:[%s1681 + $0x440] sm:$0xff]
        %v1884 = vld [vmem:[%s1681 + $0x448] sm:$0xff]
        %v1885 = vld [vmem:[%s1681 + $0x450] sm:$0xff]
        %v1886 = vld [vmem:[%s1681 + $0x458] sm:$0xff]
        %v1887 = vld [vmem:[%s1681 + $0x460] sm:$0xff]
        %v1888 = vld [vmem:[%s1681 + $0x468] sm:$0xff]
        %v1889 = vld [vmem:[%s1681 + $0x470] sm:$0xff]
        %v1890 = vld [vmem:[%s1681 + $0x478] sm:$0xff]
        %v1891 = vld [vmem:[%s1681 + $0x480] sm:$0xff]
        %v1892 = vld [vmem:[%s1681 + $0x488] sm:$0xff]
        %v1893 = vld [vmem:[%s1681 + $0x490] sm:$0xff]
        %v1894 = vld [vmem:[%s1681 + $0x498] sm:$0xff]
        %v1895 = vld [vmem:[%s1681 + $0x4a0] sm:$0xff]
        %v1896 = vld [vmem:[%s1681 + $0x4a8] sm:$0xff]
        %v1897 = vld [vmem:[%s1681 + $0x4b0] sm:$0xff]
        %v1898 = vld [vmem:[%s1681 + $0x4b8] sm:$0xff]
        %v1899 = vld [vmem:[%s1681 + $0x4c0] sm:$0xff]
        %v1900 = vld [vmem:[%s1681 + $0x4c8] sm:$0xff]
        %v1901 = vld [vmem:[%s1681 + $0x4d0] sm:$0xff]
        %v1902 = vld [vmem:[%s1681 + $0x4d8] sm:$0xff]
        %v1903 = vld [vmem:[%s1681 + $0x4e0] sm:$0xff]
        %v1904 = vld [vmem:[%s1681 + $0x4e8] sm:$0xff]
        %v1905 = vld [vmem:[%s1681 + $0x4f0] sm:$0xff]
        %v1906 = vld [vmem:[%s1681 + $0x4f8] sm:$0xff]
        %v1907 = vld [vmem:[%s1681 + $0x500] sm:$0xff]
        %v1908 = vld [vmem:[%s1681 + $0x508] sm:$0xff]
        %v1909 = vld [vmem:[%s1681 + $0x510] sm:$0xff]
        %v1910 = vld [vmem:[%s1681 + $0x518] sm:$0xff]
        %v1911 = vld [vmem:[%s1681 + $0x520] sm:$0xff]
        %v1912 = vld [vmem:[%s1681 + $0x528] sm:$0xff]
        %v1913 = vld [vmem:[%s1681 + $0x530] sm:$0xff]
        %v1914 = vld [vmem:[%s1681 + $0x538] sm:$0xff]
        %v1915 = vld [vmem:[%s1681 + $0x540] sm:$0xff]
        %v1916 = vld [vmem:[%s1681 + $0x548] sm:$0xff]
        %v1917 = vld [vmem:[%s1681 + $0x550] sm:$0xff]
        %v1918 = vld [vmem:[%s1681 + $0x558] sm:$0xff]
        %v1919 = vld [vmem:[%s1681 + $0x560] sm:$0xff]
        %v1920 = vld [vmem:[%s1681 + $0x568] sm:$0xff]
        %v1921 = vld [vmem:[%s1681 + $0x570] sm:$0xff]
        %v1922 = vld [vmem:[%s1681 + $0x578] sm:$0xff]
        %v1923 = vld [vmem:[%s1681 + $0x580] sm:$0xff]
        %v1924 = vld [vmem:[%s1681 + $0x588] sm:$0xff]
        %v1925 = vld [vmem:[%s1681 + $0x590] sm:$0xff]
        %v1926 = vld [vmem:[%s1681 + $0x598] sm:$0xff]
        %v1927 = vld [vmem:[%s1681 + $0x5a0] sm:$0xff]
        %v1928 = vld [vmem:[%s1681 + $0x5a8] sm:$0xff]
        %v1929 = vld [vmem:[%s1681 + $0x5b0] sm:$0xff]
        %v1930 = vld [vmem:[%s1681 + $0x5b8] sm:$0xff]
        %v1931 = vld [vmem:[%s1681 + $0x5c0] sm:$0xff]
        %v1932 = vld [vmem:[%s1681 + $0x5c8] sm:$0xff]
        %v1933 = vld [vmem:[%s1681 + $0x5d0] sm:$0xff]
        %v1934 = vld [vmem:[%s1681 + $0x5d8] sm:$0xff]
        %v1935 = vld [vmem:[%s1681 + $0x5e0] sm:$0xff]
        %v1936 = vld [vmem:[%s1681 + $0x5e8] sm:$0xff]
        %v1937 = vld [vmem:[%s1681 + $0x5f0] sm:$0xff]
        %v1938 = vld [vmem:[%s1681 + $0x5f8] sm:$0xff]
        %v1939 = vld [vmem:[%s1681 + $0x600] sm:$0xff]
        %v1940 = vld [vmem:[%s1681 + $0x608] sm:$0xff]
        %v1941 = vld [vmem:[%s1681 + $0x610] sm:$0xff]
        %v1942 = vld [vmem:[%s1681 + $0x618] sm:$0xff]
        %v1943 = vld [vmem:[%s1681 + $0x620] sm:$0xff]
        %v1944 = vld [vmem:[%s1681 + $0x628] sm:$0xff]
        %v1945 = vld [vmem:[%s1681 + $0x630] sm:$0xff]
        %v1946 = vld [vmem:[%s1681 + $0x638] sm:$0xff]
        %v1947 = vld [vmem:[%s1681 + $0x640] sm:$0xff]
        %v1948 = vld [vmem:[%s1681 + $0x648] sm:$0xff]
        %v1949 = vld [vmem:[%s1681 + $0x650] sm:$0xff]
        %v1950 = vld [vmem:[%s1681 + $0x658] sm:$0xff]
        %v1951 = vld [vmem:[%s1681 + $0x660] sm:$0xff]
        %v1952 = vld [vmem:[%s1681 + $0x668] sm:$0xff]
        %v1953 = vld [vmem:[%s1681 + $0x670] sm:$0xff]
        %v1954 = vld [vmem:[%s1681 + $0x678] sm:$0xff]
        %v1955 = vld [vmem:[%s1681 + $0x680] sm:$0xff]
        %v1956 = vld [vmem:[%s1681 + $0x688] sm:$0xff]
        %v1957 = vld [vmem:[%s1681 + $0x690] sm:$0xff]
        %v1958 = vld [vmem:[%s1681 + $0x698] sm:$0xff]
        %v1959 = vld [vmem:[%s1681 + $0x6a0] sm:$0xff]
        %v1960 = vld [vmem:[%s1681 + $0x6a8] sm:$0xff]
        %v1961 = vld [vmem:[%s1681 + $0x6b0] sm:$0xff]
        %v1962 = vld [vmem:[%s1681 + $0x6b8] sm:$0xff]
        %v1963 = vld [vmem:[%s1681 + $0x6c0] sm:$0xff]
        %v1964 = vld [vmem:[%s1681 + $0x6c8] sm:$0xff]
        %v1965 = vld [vmem:[%s1681 + $0x6d0] sm:$0xff]
        %v1966 = vld [vmem:[%s1681 + $0x6d8] sm:$0xff]
        %v1967 = vld [vmem:[%s1681 + $0x6e0] sm:$0xff]
        %v1968 = vld [vmem:[%s1681 + $0x6e8] sm:$0xff]
        %v1969 = vld [vmem:[%s1681 + $0x6f0] sm:$0xff]
        %v1970 = vld [vmem:[%s1681 + $0x6f8] sm:$0xff]
        %v1971 = vld [vmem:[%s1681 + $0x700] sm:$0xff]
        %v1972 = vld [vmem:[%s1681 + $0x708] sm:$0xff]
        %v1973 = vld [vmem:[%s1681 + $0x710] sm:$0xff]
        %v1974 = vld [vmem:[%s1681 + $0x718] sm:$0xff]
        %v1975 = vld [vmem:[%s1681 + $0x720] sm:$0xff]
        %v1976 = vld [vmem:[%s1681 + $0x728] sm:$0xff]
        %v1977 = vld [vmem:[%s1681 + $0x730] sm:$0xff]
        %v1978 = vld [vmem:[%s1681 + $0x738] sm:$0xff]
        %v1979 = vld [vmem:[%s1681 + $0x740] sm:$0xff]
        %v1980 = vld [vmem:[%s1681 + $0x748] sm:$0xff]
        %v1981 = vld [vmem:[%s1681 + $0x750] sm:$0xff]
        %v1982 = vld [vmem:[%s1681 + $0x758] sm:$0xff]
        %v1983 = vld [vmem:[%s1681 + $0x760] sm:$0xff]
        %v1984 = vld [vmem:[%s1681 + $0x768] sm:$0xff]
        %v1985 = vld [vmem:[%s1681 + $0x770] sm:$0xff]
        %v1986 = vld [vmem:[%s1681 + $0x778] sm:$0xff]
        %v1987 = vld [vmem:[%s1681 + $0x780] sm:$0xff]
        %v1988 = vld [vmem:[%s1681 + $0x788] sm:$0xff]
        %v1989 = vld [vmem:[%s1681 + $0x790] sm:$0xff]
        %v1990 = vld [vmem:[%s1681 + $0x798] sm:$0xff]
        %v1991 = vld [vmem:[%s1681 + $0x7a0] sm:$0xff]
        %v1992 = vld [vmem:[%s1681 + $0x7a8] sm:$0xff]
        %v1993 = vld [vmem:[%s1681 + $0x7b0] sm:$0xff]
        %v1994 = vld [vmem:[%s1681 + $0x7b8] sm:$0xff]
        %v1995 = vld [vmem:[%s1681 + $0x7c0] sm:$0xff]
        %v1996 = vld [vmem:[%s1681 + $0x7c8] sm:$0xff]
        %v1997 = vld [vmem:[%s1681 + $0x7d0] sm:$0xff]
        %v1998 = vld [vmem:[%s1681 + $0x7d8] sm:$0xff]
        %v1999 = vld [vmem:[%s1681 + $0x7e0] sm:$0xff]
        %v2000 = vld [vmem:[%s1681 + $0x7e8] sm:$0xff]
        %v2001 = vld [vmem:[%s1681 + $0x7f0] sm:$0xff]
        %v2002 = vld [vmem:[%s1681 + $0x7f8] sm:$0xff]
        %v2003 = vld [vmem:[%s1681 + $0x800] sm:$0xff]
        %v2004 = vld [vmem:[%s1681 + $0x808] sm:$0xff]
        %v2005 = vld [vmem:[%s1681 + $0x810] sm:$0xff]
        %v2006 = vld [vmem:[%s1681 + $0x818] sm:$0xff]
        %v2007 = vld [vmem:[%s1681 + $0x820] sm:$0xff]
        %v2008 = vld [vmem:[%s1681 + $0x828] sm:$0xff]
        %v2009 = vld [vmem:[%s1681 + $0x830] sm:$0xff]
        %v2010 = vld [vmem:[%s1681 + $0x838] sm:$0xff]
        %v2011 = vld [vmem:[%s1681 + $0x840] sm:$0xff]
        %v2012 = vld [vmem:[%s1681 + $0x848] sm:$0xff]
        %v2013 = vld [vmem:[%s1681 + $0x850] sm:$0xff]
        %v2014 = vld [vmem:[%s1681 + $0x858] sm:$0xff]
        %v2015 = vld [vmem:[%s1681 + $0x860] sm:$0xff]
        %v2016 = vld [vmem:[%s1681 + $0x868] sm:$0xff]
        %v2017 = vld [vmem:[%s1681 + $0x870] sm:$0xff]
        %v2018 = vld [vmem:[%s1681 + $0x878] sm:$0xff]
        %v2019 = vld [vmem:[%s1681 + $0x880] sm:$0xff]
        %v2020 = vld [vmem:[%s1681 + $0x888] sm:$0xff]
        %v2021 = vld [vmem:[%s1681 + $0x890] sm:$0xff]
        %v2022 = vld [vmem:[%s1681 + $0x898] sm:$0xff]
        %v2023 = vld [vmem:[%s1681 + $0x8a0] sm:$0xff]
        %v2024 = vld [vmem:[%s1681 + $0x8a8] sm:$0xff]
        %v2025 = vld [vmem:[%s1681 + $0x8b0] sm:$0xff]
        %v2026 = vld [vmem:[%s1681 + $0x8b8] sm:$0xff]
        %v2027 = vld [vmem:[%s1681 + $0x8c0] sm:$0xff]
        %v2028 = vld [vmem:[%s1681 + $0x8c8] sm:$0xff]
        %v2029 = vld [vmem:[%s1681 + $0x8d0] sm:$0xff]
        %v2030 = vld [vmem:[%s1681 + $0x8d8] sm:$0xff]
        %v2031 = vld [vmem:[%s1681 + $0x8e0] sm:$0xff]
        %v2032 = vld [vmem:[%s1681 + $0x8e8] sm:$0xff]
        %v2033 = vld [vmem:[%s1681 + $0x8f0] sm:$0xff]
        %v2034 = vld [vmem:[%s1681 + $0x8f8] sm:$0xff]
        %v2035 = vld [vmem:[%s1681 + $0x900] sm:$0xff]
        %v2036 = vld [vmem:[%s1681 + $0x908] sm:$0xff]
        %v2037 = vld [vmem:[%s1681 + $0x910] sm:$0xff]
        %v2038 = vld [vmem:[%s1681 + $0x918] sm:$0xff]
        %v2039 = vld [vmem:[%s1681 + $0x920] sm:$0xff]
        %v2040 = vld [vmem:[%s1681 + $0x928] sm:$0xff]
        %v2041 = vld [vmem:[%s1681 + $0x930] sm:$0xff]
        %v2042 = vld [vmem:[%s1681 + $0x938] sm:$0xff]
        %v2043 = vld [vmem:[%s1681 + $0x940] sm:$0xff]
        %v2044 = vld [vmem:[%s1681 + $0x948] sm:$0xff]
        %v2045 = vld [vmem:[%s1681 + $0x950] sm:$0xff]
        %v2046 = vld [vmem:[%s1681 + $0x958] sm:$0xff]
        %v2047 = vld [vmem:[%s1681 + $0x960] sm:$0xff]
        %v2048 = vld [vmem:[%s1681 + $0x968] sm:$0xff]
        %v2049 = vld [vmem:[%s1681 + $0x970] sm:$0xff]
        %v2050 = vld [vmem:[%s1681 + $0x978] sm:$0xff]
        %v2051 = vld [vmem:[%s1681 + $0x980] sm:$0xff]
        %v2052 = vld [vmem:[%s1681 + $0x988] sm:$0xff]
        %v2053 = vld [vmem:[%s1681 + $0x990] sm:$0xff]
        %v2054 = vld [vmem:[%s1681 + $0x998] sm:$0xff]
        %v2055 = vld [vmem:[%s1681 + $0x9a0] sm:$0xff]
        %v2056 = vld [vmem:[%s1681 + $0x9a8] sm:$0xff]
        %v2057 = vld [vmem:[%s1681 + $0x9b0] sm:$0xff]
        %v2058 = vld [vmem:[%s1681 + $0x9b8] sm:$0xff]
        %v2059 = vld [vmem:[%s1681 + $0x9c0] sm:$0xff]
        %v2060 = vld [vmem:[%s1681 + $0x9c8] sm:$0xff]
        %v2061 = vld [vmem:[%s1681 + $0x9d0] sm:$0xff]
        %v2062 = vld [vmem:[%s1681 + $0x9d8] sm:$0xff]
        %v2063 = vld [vmem:[%s1681 + $0x9e0] sm:$0xff]
        %v2064 = vld [vmem:[%s1681 + $0x9e8] sm:$0xff]
        %v2065 = vld [vmem:[%s1681 + $0x9f0] sm:$0xff]
        %v2066 = vld [vmem:[%s1681 + $0x9f8] sm:$0xff]
        %v2067 = vld [vmem:[%s1681 + $0xa00] sm:$0xff]
        %v2068 = vld [vmem:[%s1681 + $0xa08] sm:$0xff]
        %v2069 = vld [vmem:[%s1681 + $0xa10] sm:$0xff]
        %v2070 = vld [vmem:[%s1681 + $0xa18] sm:$0xff]
        %v2071 = vld [vmem:[%s1681 + $0xa20] sm:$0xff]
        %v2072 = vld [vmem:[%s1681 + $0xa28] sm:$0xff]
        %v2073 = vld [vmem:[%s1681 + $0xa30] sm:$0xff]
        %v2074 = vld [vmem:[%s1681 + $0xa38] sm:$0xff]
        %v2075 = vld [vmem:[%s1681 + $0xa40] sm:$0xff]
        %v2076 = vld [vmem:[%s1681 + $0xa48] sm:$0xff]
        %v2077 = vld [vmem:[%s1681 + $0xa50] sm:$0xff]
        %v2078 = vld [vmem:[%s1681 + $0xa58] sm:$0xff]
        %v2079 = vld [vmem:[%s1681 + $0xa60] sm:$0xff]
        %v2080 = vld [vmem:[%s1681 + $0xa68] sm:$0xff]
        %v2081 = vld [vmem:[%s1681 + $0xa70] sm:$0xff]
        %v2082 = vld [vmem:[%s1681 + $0xa78] sm:$0xff]
        %v2083 = vld [vmem:[%s1681 + $0xa80] sm:$0xff]
        %v2084 = vld [vmem:[%s1681 + $0xa88] sm:$0xff]
        %v2085 = vld [vmem:[%s1681 + $0xa90] sm:$0xff]
        %v2086 = vld [vmem:[%s1681 + $0xa98] sm:$0xff]
        %v2087 = vld [vmem:[%s1681 + $0xaa0] sm:$0xff]
        %v2088 = vld [vmem:[%s1681 + $0xaa8] sm:$0xff]
        %v2089 = vld [vmem:[%s1681 + $0xab0] sm:$0xff]
        %v2090 = vld [vmem:[%s1681 + $0xab8] sm:$0xff]
        %v2091 = vld [vmem:[%s1681 + $0xac0] sm:$0xff]
        %v2092 = vld [vmem:[%s1681 + $0xac8] sm:$0xff]
        %v2093 = vld [vmem:[%s1681 + $0xad0] sm:$0xff]
        %v2094 = vld [vmem:[%s1681 + $0xad8] sm:$0xff]
        %v2095 = vld [vmem:[%s1681 + $0xae0] sm:$0xff]
        %v2096 = vld [vmem:[%s1681 + $0xae8] sm:$0xff]
        %v2097 = vld [vmem:[%s1681 + $0xaf0] sm:$0xff]
        %v2098 = vld [vmem:[%s1681 + $0xaf8] sm:$0xff]
        %v2099 = vld [vmem:[%s1681 + $0xb00] sm:$0xff]
        %v2100 = vld [vmem:[%s1681 + $0xb08] sm:$0xff]
        %v2101 = vld [vmem:[%s1681 + $0xb10] sm:$0xff]
        %v2102 = vld [vmem:[%s1681 + $0xb18] sm:$0xff]
        %v2103 = vld [vmem:[%s1681 + $0xb20] sm:$0xff]
        %v2104 = vld [vmem:[%s1681 + $0xb28] sm:$0xff]
        %v2105 = vld [vmem:[%s1681 + $0xb30] sm:$0xff]
        %v2106 = vld [vmem:[%s1681 + $0xb38] sm:$0xff]
        %v2107 = vld [vmem:[%s1681 + $0xb40] sm:$0xff]
        %v2108 = vld [vmem:[%s1681 + $0xb48] sm:$0xff]
        %v2109 = vld [vmem:[%s1681 + $0xb50] sm:$0xff]
        %v2110 = vld [vmem:[%s1681 + $0xb58] sm:$0xff]
        %v2111 = vld [vmem:[%s1681 + $0xb60] sm:$0xff]
        %v2112 = vld [vmem:[%s1681 + $0xb68] sm:$0xff]
        %v2113 = vld [vmem:[%s1681 + $0xb70] sm:$0xff]
        %v2114 = vld [vmem:[%s1681 + $0xb78] sm:$0xff]
        %v2115 = vld [vmem:[%s1681 + $0xb80] sm:$0xff]
        %v2116 = vld [vmem:[%s1681 + $0xb88] sm:$0xff]
        %v2117 = vld [vmem:[%s1681 + $0xb90] sm:$0xff]
        %v2118 = vld [vmem:[%s1681 + $0xb98] sm:$0xff]
        %v2119 = vld [vmem:[%s1681 + $0xba0] sm:$0xff]
        %v2120 = vld [vmem:[%s1681 + $0xba8] sm:$0xff]
        %v2121 = vld [vmem:[%s1681 + $0xbb0] sm:$0xff]
        %v2122 = vld [vmem:[%s1681 + $0xbb8] sm:$0xff]
        %v2123 = vld [vmem:[%s1681 + $0xbc0] sm:$0xff]
        %v2124 = vld [vmem:[%s1681 + $0xbc8] sm:$0xff]
        %v2125 = vld [vmem:[%s1681 + $0xbd0] sm:$0xff]
        %v2126 = vld [vmem:[%s1681 + $0xbd8] sm:$0xff]
        %v2127 = vld [vmem:[%s1681 + $0xbe0] sm:$0xff]
        %v2128 = vld [vmem:[%s1681 + $0xbe8] sm:$0xff]
        %v2129 = vld [vmem:[%s1681 + $0xbf0] sm:$0xff]
        %v2130 = vld [vmem:[%s1681 + $0xbf8] sm:$0xff]
        %v2131 = vld [vmem:[%s1681 + $0xc00] sm:$0xff]
        %v2132 = vld [vmem:[%s1681 + $0xc08] sm:$0xff]
        %v2133 = vld [vmem:[%s1681 + $0xc10] sm:$0xff]
        %v2134 = vld [vmem:[%s1681 + $0xc18] sm:$0xff]
        %v2135 = vld [vmem:[%s1681 + $0xc20] sm:$0xff]
        %v2136 = vld [vmem:[%s1681 + $0xc28] sm:$0xff]
        %v2137 = vld [vmem:[%s1681 + $0xc30] sm:$0xff]
        %v2138 = vld [vmem:[%s1681 + $0xc38] sm:$0xff]
        %v2139 = vld [vmem:[%s1681 + $0xc40] sm:$0xff]
        %v2140 = vld [vmem:[%s1681 + $0xc48] sm:$0xff]
        %v2141 = vld [vmem:[%s1681 + $0xc50] sm:$0xff]
        %v2142 = vld [vmem:[%s1681 + $0xc58] sm:$0xff]
        %v2143 = vld [vmem:[%s1681 + $0xc60] sm:$0xff]
        %v2144 = vld [vmem:[%s1681 + $0xc68] sm:$0xff]
        %v2145 = vld [vmem:[%s1681 + $0xc70] sm:$0xff]
        %v2146 = vld [vmem:[%s1681 + $0xc78] sm:$0xff]
        %v2147 = vld [vmem:[%s1681 + $0xc80] sm:$0xff]
        %v2148 = vld [vmem:[%s1681 + $0xc88] sm:$0xff]
        %v2149 = vld [vmem:[%s1681 + $0xc90] sm:$0xff]
        %v2150 = vld [vmem:[%s1681 + $0xc98] sm:$0xff]
        %v2151 = vld [vmem:[%s1681 + $0xca0] sm:$0xff]
        %v2152 = vld [vmem:[%s1681 + $0xca8] sm:$0xff]
        %v2153 = vld [vmem:[%s1681 + $0xcb0] sm:$0xff]
        %v2154 = vld [vmem:[%s1681 + $0xcb8] sm:$0xff]
        %v2155 = vld [vmem:[%s1681 + $0xcc0] sm:$0xff]
        %v2156 = vld [vmem:[%s1681 + $0xcc8] sm:$0xff]
        %v2157 = vld [vmem:[%s1681 + $0xcd0] sm:$0xff]
        %v2158 = vld [vmem:[%s1681 + $0xcd8] sm:$0xff]
        %v2159 = vld [vmem:[%s1681 + $0xce0] sm:$0xff]
        %v2160 = vld [vmem:[%s1681 + $0xce8] sm:$0xff]
        %v2161 = vld [vmem:[%s1681 + $0xcf0] sm:$0xff]
        %v2162 = vld [vmem:[%s1681 + $0xcf8] sm:$0xff]
        %v2163 = vld [vmem:[%s1681 + $0xd00] sm:$0xff]
        %v2164 = vld [vmem:[%s1681 + $0xd08] sm:$0xff]
        %v2165 = vld [vmem:[%s1681 + $0xd10] sm:$0xff]
        %v2166 = vld [vmem:[%s1681 + $0xd18] sm:$0xff]
        %v2167 = vld [vmem:[%s1681 + $0xd20] sm:$0xff]
        %v2168 = vld [vmem:[%s1681 + $0xd28] sm:$0xff]
        %v2169 = vld [vmem:[%s1681 + $0xd30] sm:$0xff]
        %v2170 = vld [vmem:[%s1681 + $0xd38] sm:$0xff]
        %v2171 = vld [vmem:[%s1681 + $0xd40] sm:$0xff]
        %v2172 = vld [vmem:[%s1681 + $0xd48] sm:$0xff]
        %v2173 = vld [vmem:[%s1681 + $0xd50] sm:$0xff]
        %v2174 = vld [vmem:[%s1681 + $0xd58] sm:$0xff]
        %v2175 = vld [vmem:[%s1681 + $0xd60] sm:$0xff]
        %v2176 = vld [vmem:[%s1681 + $0xd68] sm:$0xff]
        %v2177 = vld [vmem:[%s1681 + $0xd70] sm:$0xff]
        %v2178 = vld [vmem:[%s1681 + $0xd78] sm:$0xff]
        %v2179 = vld [vmem:[%s1681 + $0xd80] sm:$0xff]
        %v2180 = vld [vmem:[%s1681 + $0xd88] sm:$0xff]
        %v2181 = vld [vmem:[%s1681 + $0xd90] sm:$0xff]
        %v2182 = vld [vmem:[%s1681 + $0xd98] sm:$0xff]
        %v2183 = vld [vmem:[%s1681 + $0xda0] sm:$0xff]
        %v2184 = vld [vmem:[%s1681 + $0xda8] sm:$0xff]
        %v2185 = vld [vmem:[%s1681 + $0xdb0] sm:$0xff]
        %v2186 = vld [vmem:[%s1681 + $0xdb8] sm:$0xff]
        %v2187 = vld [vmem:[%s1681 + $0xdc0] sm:$0xff]
        %v2188 = vld [vmem:[%s1681 + $0xdc8] sm:$0xff]
        %v2189 = vld [vmem:[%s1681 + $0xdd0] sm:$0xff]
        %v2190 = vld [vmem:[%s1681 + $0xdd8] sm:$0xff]
        %v2191 = vld [vmem:[%s1681 + $0xde0] sm:$0xff]
        %v2192 = vld [vmem:[%s1681 + $0xde8] sm:$0xff]
        %v2193 = vld [vmem:[%s1681 + $0xdf0] sm:$0xff]
        %v2194 = vld [vmem:[%s1681 + $0xdf8] sm:$0xff]
        %v2195 = vld [vmem:[%s1681 + $0xe00] sm:$0xff]
        %v2196 = vld [vmem:[%s1681 + $0xe08] sm:$0xff]
        %v2197 = vld [vmem:[%s1681 + $0xe10] sm:$0xff]
        %v2198 = vld [vmem:[%s1681 + $0xe18] sm:$0xff]
        %v2199 = vld [vmem:[%s1681 + $0xe20] sm:$0xff]
        %v2200 = vld [vmem:[%s1681 + $0xe28] sm:$0xff]
        %v2201 = vld [vmem:[%s1681 + $0xe30] sm:$0xff]
        %v2202 = vld [vmem:[%s1681 + $0xe38] sm:$0xff]
        %v2203 = vld [vmem:[%s1681 + $0xe40] sm:$0xff]
        %v2204 = vld [vmem:[%s1681 + $0xe48] sm:$0xff]
        %v2205 = vld [vmem:[%s1681 + $0xe50] sm:$0xff]
        %v2206 = vld [vmem:[%s1681 + $0xe58] sm:$0xff]
        %v2207 = vld [vmem:[%s1681 + $0xe60] sm:$0xff]
        %v2208 = vld [vmem:[%s1681 + $0xe68] sm:$0xff]
        %v2209 = vld [vmem:[%s1681 + $0xe70] sm:$0xff]
        %v2210 = vld [vmem:[%s1681 + $0xe78] sm:$0xff]
        %v2211 = vld [vmem:[%s1681 + $0xe80] sm:$0xff]
        %v2212 = vld [vmem:[%s1681 + $0xe88] sm:$0xff]
        %v2213 = vld [vmem:[%s1681 + $0xe90] sm:$0xff]
        %v2214 = vld [vmem:[%s1681 + $0xe98] sm:$0xff]
        %v2215 = vld [vmem:[%s1681 + $0xea0] sm:$0xff]
        %v2216 = vld [vmem:[%s1681 + $0xea8] sm:$0xff]
        %v2217 = vld [vmem:[%s1681 + $0xeb0] sm:$0xff]
        %v2218 = vld [vmem:[%s1681 + $0xeb8] sm:$0xff]
        %v2219 = vld [vmem:[%s1681 + $0xec0] sm:$0xff]
        %v2220 = vld [vmem:[%s1681 + $0xec8] sm:$0xff]
        %v2221 = vld [vmem:[%s1681 + $0xed0] sm:$0xff]
        %v2222 = vld [vmem:[%s1681 + $0xed8] sm:$0xff]
        %v2223 = vld [vmem:[%s1681 + $0xee0] sm:$0xff]
        %v2224 = vld [vmem:[%s1681 + $0xee8] sm:$0xff]
        %v2225 = vld [vmem:[%s1681 + $0xef0] sm:$0xff]
        %v2226 = vld [vmem:[%s1681 + $0xef8] sm:$0xff]
        %v2227 = vld [vmem:[%s1681 + $0xf00] sm:$0xff]
        %v2228 = vld [vmem:[%s1681 + $0xf08] sm:$0xff]
        %v2229 = vld [vmem:[%s1681 + $0xf10] sm:$0xff]
        %v2230 = vld [vmem:[%s1681 + $0xf18] sm:$0xff]
        %v2231 = vld [vmem:[%s1681 + $0xf20] sm:$0xff]
        %v2232 = vld [vmem:[%s1681 + $0xf28] sm:$0xff]
        %v2233 = vld [vmem:[%s1681 + $0xf30] sm:$0xff]
        %v2234 = vld [vmem:[%s1681 + $0xf38] sm:$0xff]
        %v2235 = vld [vmem:[%s1681 + $0xf40] sm:$0xff]
        %v2236 = vld [vmem:[%s1681 + $0xf48] sm:$0xff]
        %v2237 = vld [vmem:[%s1681 + $0xf50] sm:$0xff]
        %v2238 = vld [vmem:[%s1681 + $0xf58] sm:$0xff]
        %v2239 = vld [vmem:[%s1681 + $0xf60] sm:$0xff]
        %v2240 = vld [vmem:[%s1681 + $0xf68] sm:$0xff]
        %v2241 = vld [vmem:[%s1681 + $0xf70] sm:$0xff]
        %v2242 = vld [vmem:[%s1681 + $0xf78] sm:$0xff]
        %v2243 = vld [vmem:[%s1681 + $0xf80] sm:$0xff]
        %v2244 = vld [vmem:[%s1681 + $0xf88] sm:$0xff]
        %v2245 = vld [vmem:[%s1681 + $0xf90] sm:$0xff]
        %v2246 = vld [vmem:[%s1681 + $0xf98] sm:$0xff]
        %v2247 = vld [vmem:[%s1681 + $0xfa0] sm:$0xff]
        %v2248 = vld [vmem:[%s1681 + $0xfa8] sm:$0xff]
        %v2249 = vld [vmem:[%s1681 + $0xfb0] sm:$0xff]
        %v2250 = vld [vmem:[%s1681 + $0xfb8] sm:$0xff]
        %v2251 = vld [vmem:[%s1681 + $0xfc0] sm:$0xff]
        %v2252 = vld [vmem:[%s1681 + $0xfc8] sm:$0xff]
        %v2253 = vld [vmem:[%s1681 + $0xfd0] sm:$0xff]
        %v2254 = vld [vmem:[%s1681 + $0xfd8] sm:$0xff]
        %v2255 = vld [vmem:[%s1681 + $0xfe0] sm:$0xff]
        %v2256 = vld [vmem:[%s1681 + $0xfe8] sm:$0xff]
        %v2257 = vld [vmem:[%s1681 + $0xff0] sm:$0xff]
        %v2258 = vld [vmem:[%s1681 + $0xff8] sm:$0xff]
        %v2259 = vld [vmem:[%s1681 + $0x1000] sm:$0xff]
        %v2260 = vld [vmem:[%s1681 + $0x1008] sm:$0xff]
        %v2261 = vld [vmem:[%s1681 + $0x1010] sm:$0xff]
        %v2262 = vld [vmem:[%s1681 + $0x1018] sm:$0xff]
        %v2263 = vld [vmem:[%s1681 + $0x1020] sm:$0xff]
        %v2264 = vld [vmem:[%s1681 + $0x1028] sm:$0xff]
        %v2265 = vld [vmem:[%s1681 + $0x1030] sm:$0xff]
        %v2266 = vld [vmem:[%s1681 + $0x1038] sm:$0xff]
        %v2267 = vld [vmem:[%s1681 + $0x1040] sm:$0xff]
        %v2268 = vld [vmem:[%s1681 + $0x1048] sm:$0xff]
        %v2269 = vld [vmem:[%s1681 + $0x1050] sm:$0xff]
        %v2270 = vld [vmem:[%s1681 + $0x1058] sm:$0xff]
        %v2271 = vld [vmem:[%s1681 + $0x1060] sm:$0xff]
        %v2272 = vld [vmem:[%s1681 + $0x1068] sm:$0xff]
        %v2273 = vld [vmem:[%s1681 + $0x1070] sm:$0xff]
        %v2274 = vld [vmem:[%s1681 + $0x1078] sm:$0xff]
        %v2275 = vld [vmem:[%s1681 + $0x1080] sm:$0xff]
        %v2276 = vld [vmem:[%s1681 + $0x1088] sm:$0xff]
        %v2277 = vld [vmem:[%s1681 + $0x1090] sm:$0xff]
        %v2278 = vld [vmem:[%s1681 + $0x1098] sm:$0xff]
        %v2279 = vld [vmem:[%s1681 + $0x10a0] sm:$0xff]
        %v2280 = vld [vmem:[%s1681 + $0x10a8] sm:$0xff]
        %v2281 = vld [vmem:[%s1681 + $0x10b0] sm:$0xff]
        %v2282 = vld [vmem:[%s1681 + $0x10b8] sm:$0xff]
        %v2283 = vld [vmem:[%s1681 + $0x10c0] sm:$0xff]
        %v2284 = vld [vmem:[%s1681 + $0x10c8] sm:$0xff]
        %v2285 = vld [vmem:[%s1681 + $0x10d0] sm:$0xff]
        %v2286 = vld [vmem:[%s1681 + $0x10d8] sm:$0xff]
        %v2287 = vld [vmem:[%s1681 + $0x10e0] sm:$0xff]
        %v2288 = vld [vmem:[%s1681 + $0x10e8] sm:$0xff]
        %v2289 = vld [vmem:[%s1681 + $0x10f0] sm:$0xff]
        %v2290 = vld [vmem:[%s1681 + $0x10f8] sm:$0xff]
        %v2291 = vld [vmem:[%s1681 + $0x1100] sm:$0xff]
        %v2292 = vld [vmem:[%s1681 + $0x1108] sm:$0xff]
        %v2293 = vld [vmem:[%s1681 + $0x1110] sm:$0xff]
        %v2294 = vld [vmem:[%s1681 + $0x1118] sm:$0xff]
        %v2295 = vld [vmem:[%s1681 + $0x1120] sm:$0xff]
        %v2296 = vld [vmem:[%s1681 + $0x1128] sm:$0xff]
        %v2297 = vld [vmem:[%s1681 + $0x1130] sm:$0xff]
        %v2298 = vld [vmem:[%s1681 + $0x1138] sm:$0xff]
        %v2299 = vld [vmem:[%s1681 + $0x1140] sm:$0xff]
        %v2300 = vld [vmem:[%s1681 + $0x1148] sm:$0xff]
        %v2301 = vld [vmem:[%s1681 + $0x1150] sm:$0xff]
        %v2302 = vld [vmem:[%s1681 + $0x1158] sm:$0xff]
        %v2303 = vld [vmem:[%s1681 + $0x1160] sm:$0xff]
        %v2304 = vld [vmem:[%s1681 + $0x1168] sm:$0xff]
        %v2305 = vld [vmem:[%s1681 + $0x1170] sm:$0xff]
        %v2306 = vld [vmem:[%s1681 + $0x1178] sm:$0xff]
        %v2307 = vld [vmem:[%s1681 + $0x1180] sm:$0xff]
        %v2308 = vld [vmem:[%s1681 + $0x1188] sm:$0xff]
        %v2309 = vld [vmem:[%s1681 + $0x1190] sm:$0xff]
        %v2310 = vld [vmem:[%s1681 + $0x1198] sm:$0xff]
        %v2311 = vld [vmem:[%s1681 + $0x11a0] sm:$0xff]
        %v2312 = vld [vmem:[%s1681 + $0x11a8] sm:$0xff]
        %v2313 = vld [vmem:[%s1681 + $0x11b0] sm:$0xff]
        %v2314 = vld [vmem:[%s1681 + $0x11b8] sm:$0xff]
        %v2315 = vld [vmem:[%s1681 + $0x11c0] sm:$0xff]
        %v2316 = vld [vmem:[%s1681 + $0x11c8] sm:$0xff]
        %v2317 = vld [vmem:[%s1681 + $0x11d0] sm:$0xff]
        %v2318 = vld [vmem:[%s1681 + $0x11d8] sm:$0xff]
        %v2319 = vld [vmem:[%s1681 + $0x11e0] sm:$0xff]
        %v2320 = vld [vmem:[%s1681 + $0x11e8] sm:$0xff]
        %v2321 = vld [vmem:[%s1681 + $0x11f0] sm:$0xff]
        %v2322 = vld [vmem:[%s1681 + $0x11f8] sm:$0xff]
        %v2323 = vld [vmem:[%s1681 + $0x1200] sm:$0xff]
        %v2324 = vld [vmem:[%s1681 + $0x1208] sm:$0xff]
        %v2325 = vld [vmem:[%s1681 + $0x1210] sm:$0xff]
        %v2326 = vld [vmem:[%s1681 + $0x1218] sm:$0xff]
        %v2327 = vld [vmem:[%s1681 + $0x1220] sm:$0xff]
        %v2328 = vld [vmem:[%s1681 + $0x1228] sm:$0xff]
        %v2329 = vld [vmem:[%s1681 + $0x1230] sm:$0xff]
        %v2330 = vld [vmem:[%s1681 + $0x1238] sm:$0xff]
        %v2331 = vld [vmem:[%s1681 + $0x1240] sm:$0xff]
        %v2332 = vld [vmem:[%s1681 + $0x1248] sm:$0xff]
        %v2333 = vld [vmem:[%s1681 + $0x1250] sm:$0xff]
        %v2334 = vld [vmem:[%s1681 + $0x1258] sm:$0xff]
        %v2335 = vld [vmem:[%s1681 + $0x1260] sm:$0xff]
        %v2336 = vld [vmem:[%s1681 + $0x1268] sm:$0xff]
        %v2337 = vld [vmem:[%s1681 + $0x1270] sm:$0xff]
        %v2338 = vld [vmem:[%s1681 + $0x1278] sm:$0xff]
        %v2339 = vld [vmem:[%s1681 + $0x1280] sm:$0xff]
        %v2340 = vld [vmem:[%s1681 + $0x1288] sm:$0xff]
        %v2341 = vld [vmem:[%s1681 + $0x1290] sm:$0xff]
        %v2342 = vld [vmem:[%s1681 + $0x1298] sm:$0xff]
        %v2343 = vld [vmem:[%s1681 + $0x12a0] sm:$0xff]
        %v2344 = vld [vmem:[%s1681 + $0x12a8] sm:$0xff]
        %v2345 = vld [vmem:[%s1681 + $0x12b0] sm:$0xff]
        %v2346 = vld [vmem:[%s1681 + $0x12b8] sm:$0xff]
        %v2347 = vld [vmem:[%s1681 + $0x12c0] sm:$0xff]
        %v2348 = vld [vmem:[%s1681 + $0x12c8] sm:$0xff]
        %v2349 = vld [vmem:[%s1681 + $0x12d0] sm:$0xff]
        %v2350 = vld [vmem:[%s1681 + $0x12d8] sm:$0xff]
        %v2351 = vld [vmem:[%s1681 + $0x12e0] sm:$0xff]
        %v2352 = vld [vmem:[%s1681 + $0x12e8] sm:$0xff]
        %v2353 = vld [vmem:[%s1681 + $0x12f0] sm:$0xff]
        %v2354 = vld [vmem:[%s1681 + $0x12f8] sm:$0xff]
        %v2355 = vld [vmem:[%s1681 + $0x1300] sm:$0xff]
        %v2356 = vld [vmem:[%s1681 + $0x1308] sm:$0xff]
        %v2357 = vld [vmem:[%s1681 + $0x1310] sm:$0xff]
        %v2358 = vld [vmem:[%s1681 + $0x1318] sm:$0xff]
        %v2359 = vld [vmem:[%s1681 + $0x1320] sm:$0xff]
        %v2360 = vld [vmem:[%s1681 + $0x1328] sm:$0xff]
        %v2361 = vld [vmem:[%s1681 + $0x1330] sm:$0xff]
        %v2362 = vld [vmem:[%s1681 + $0x1338] sm:$0xff]
        %v2363 = vld [vmem:[%s1681 + $0x1340] sm:$0xff]
        %v2364 = vld [vmem:[%s1681 + $0x1348] sm:$0xff]
        %v2365 = vld [vmem:[%s1681 + $0x1350] sm:$0xff]
        %v2366 = vld [vmem:[%s1681 + $0x1358] sm:$0xff]
        %v2367 = vld [vmem:[%s1681 + $0x1360] sm:$0xff]
        %v2368 = vld [vmem:[%s1681 + $0x1368] sm:$0xff]
        %v2369 = vld [vmem:[%s1681 + $0x1370] sm:$0xff]
        %v2370 = vld [vmem:[%s1681 + $0x1378] sm:$0xff]
        %v2371 = vld [vmem:[%s1681 + $0x1380] sm:$0xff]
        %v2372 = vld [vmem:[%s1681 + $0x1388] sm:$0xff]
        %v2373 = vld [vmem:[%s1681 + $0x1390] sm:$0xff]
        %v2374 = vld [vmem:[%s1681 + $0x1398] sm:$0xff]
        %v2375 = vld [vmem:[%s1681 + $0x13a0] sm:$0xff]
        %v2376 = vld [vmem:[%s1681 + $0x13a8] sm:$0xff]
        %v2377 = vld [vmem:[%s1681 + $0x13b0] sm:$0xff]
        %v2378 = vld [vmem:[%s1681 + $0x13b8] sm:$0xff]
        %v2379 = vld [vmem:[%s1681 + $0x13c0] sm:$0xff]
        %v2380 = vld [vmem:[%s1681 + $0x13c8] sm:$0xff]
        %v2381 = vld [vmem:[%s1681 + $0x13d0] sm:$0xff]
        %v2382 = vld [vmem:[%s1681 + $0x13d8] sm:$0xff]
        %v2383 = vld [vmem:[%s1681 + $0x13e0] sm:$0xff]
        %v2384 = vld [vmem:[%s1681 + $0x13e8] sm:$0xff]
        %v2385 = vld [vmem:[%s1681 + $0x13f0] sm:$0xff]
        %v2386 = vld [vmem:[%s1681 + $0x13f8] sm:$0xff]
        %v2387 = vld [vmem:[%s1681 + $0x1400] sm:$0xff]
        %v2388 = vld [vmem:[%s1681 + $0x1408] sm:$0xff]
        %v2389 = vld [vmem:[%s1681 + $0x1410] sm:$0xff]
        %v2390 = vld [vmem:[%s1681 + $0x1418] sm:$0xff]
        %v2391 = vld [vmem:[%s1681 + $0x1420] sm:$0xff]
        %v2392 = vld [vmem:[%s1681 + $0x1428] sm:$0xff]
        %v2393 = vld [vmem:[%s1681 + $0x1430] sm:$0xff]
        %v2394 = vld [vmem:[%s1681 + $0x1438] sm:$0xff]
        %v2395 = vld [vmem:[%s1681 + $0x1440] sm:$0xff]
        %v2396 = vld [vmem:[%s1681 + $0x1448] sm:$0xff]
        %v2397 = vld [vmem:[%s1681 + $0x1450] sm:$0xff]
        %v2398 = vld [vmem:[%s1681 + $0x1458] sm:$0xff]
        %v2399 = vld [vmem:[%s1681 + $0x1460] sm:$0xff]
        %v2400 = vld [vmem:[%s1681 + $0x1468] sm:$0xff]
        %v2401 = vld [vmem:[%s1681 + $0x1470] sm:$0xff]
        %v2402 = vld [vmem:[%s1681 + $0x1478] sm:$0xff]
        %v2403 = vld [vmem:[%s1681 + $0x1480] sm:$0xff]
        %v2404 = vld [vmem:[%s1681 + $0x1488] sm:$0xff]
        %v2405 = vld [vmem:[%s1681 + $0x1490] sm:$0xff]
        %v2406 = vld [vmem:[%s1681 + $0x1498] sm:$0xff]
        %v2407 = vld [vmem:[%s1681 + $0x14a0] sm:$0xff]
        %v2408 = vld [vmem:[%s1681 + $0x14a8] sm:$0xff]
        %v2409 = vld [vmem:[%s1681 + $0x14b0] sm:$0xff]
        %v2410 = vld [vmem:[%s1681 + $0x14b8] sm:$0xff]
        %v2411 = vld [vmem:[%s1681 + $0x14c0] sm:$0xff]
        %v2412 = vld [vmem:[%s1681 + $0x14c8] sm:$0xff]
        %v2413 = vld [vmem:[%s1681 + $0x14d0] sm:$0xff]
        %v2414 = vld [vmem:[%s1681 + $0x14d8] sm:$0xff]
        %v2415 = vld [vmem:[%s1681 + $0x14e0] sm:$0xff]
        %v2416 = vld [vmem:[%s1681 + $0x14e8] sm:$0xff]
        %v2417 = vld [vmem:[%s1681 + $0x14f0] sm:$0xff]
        %v2418 = vld [vmem:[%s1681 + $0x14f8] sm:$0xff]
        %v2419 = vld [vmem:[%s1681 + $0x1500] sm:$0xff]
        %v2420 = vld [vmem:[%s1681 + $0x1508] sm:$0xff]
        %v2421 = vld [vmem:[%s1681 + $0x1510] sm:$0xff]
        %v2422 = vld [vmem:[%s1681 + $0x1518] sm:$0xff]
        %v2423 = vld [vmem:[%s1722] sm:$0xf]
        %v2425 = vlaneseq
        %v2426 = vshrl.u32 %v2425, 7
        %v2427 = vsub.s32 0, %v2426
        %v2428 = vrot.slane %v2423, %v2427
        %v2429 = vlaneseq
        %v2430 = vshrl.u32 %v2429, 7
        %v2431 = vsub.s32 1, %v2430
        %v2432 = vrot.slane %v2423, %v2431
        %v2433 = vlaneseq
        %v2434 = vshrl.u32 %v2433, 7
        %v2435 = vsub.s32 2, %v2434
        %v2436 = vrot.slane %v2423, %v2435
        %v2437 = vlaneseq
        %v2438 = vshrl.u32 %v2437, 7
        %v2439 = vsub.s32 3, %v2438
        %v2440 = vrot.slane %v2423, %v2439
        %v2456 = vunpack.c.l.b16 %v1736
        %v2457 = vunpack.c.h.b16 %v1736
        %v2458 = vunpack.c.l.b16 %v1737
        %v2459 = vunpack.c.h.b16 %v1737
        %v2460 = vunpack.c.l.b16 %v1738
        %v2461 = vunpack.c.h.b16 %v1738
        %v2462 = vunpack.c.l.b16 %v1739
        %v2463 = vunpack.c.h.b16 %v1739
        %v2464 = vunpack.c.l.b16 %v1740
        %v2465 = vunpack.c.h.b16 %v1740
        %v2466 = vunpack.c.l.b16 %v1741
        %v2467 = vunpack.c.h.b16 %v1741
        %v2468 = vunpack.c.l.b16 %v1742
        %v2469 = vunpack.c.h.b16 %v1742
        %v2470 = vunpack.c.l.b16 %v1743
        %v2471 = vunpack.c.h.b16 %v1743
        %v2472 = vunpack.c.l.b16 %v1744
        %v2473 = vunpack.c.h.b16 %v1744
        %v2474 = vunpack.c.l.b16 %v1745
        %v2475 = vunpack.c.h.b16 %v1745
        %v2476 = vunpack.c.l.b16 %v1746
        %v2477 = vunpack.c.h.b16 %v1746
        %v2478 = vpack.c.b16 %v2456, %v2456
        %v2479 = vpack.c.b16 %v2457, %v2457
        %v2480 = vpack.c.b16 %v2458, %v2458
        %v2481 = vpack.c.b16 %v2459, %v2459
        %v2482 = vpack.c.b16 %v2460, %v2460
        %v2483 = vpack.c.b16 %v2461, %v2461
        %v2484 = vpack.c.b16 %v2462, %v2462
        %v2485 = vpack.c.b16 %v2463, %v2463
        %v2486 = vpack.c.b16 %v2464, %v2464
        %v2487 = vpack.c.b16 %v2465, %v2465
        %v2488 = vpack.c.b16 %v2466, %v2466
        %v2489 = vpack.c.b16 %v2467, %v2467
        %v2490 = vpack.c.b16 %v2468, %v2468
        %v2491 = vpack.c.b16 %v2469, %v2469
        %v2492 = vpack.c.b16 %v2470, %v2470
        %v2493 = vpack.c.b16 %v2471, %v2471
        %v2494 = vpack.c.b16 %v2472, %v2472
        %v2495 = vpack.c.b16 %v2473, %v2473
        %v2496 = vpack.c.b16 %v2474, %v2474
        %v2497 = vpack.c.b16 %v2475, %v2475
        %v2498 = vpack.c.b16 %v2476, %v2476
        %v2499 = vpack.c.b16 %v2477, %v2477
        %v3197 = vunpack.c.l.b16 %v1747
        %v3198 = vunpack.c.h.b16 %v1747
        %v3199 = vunpack.c.l.b16 %v1748
        %v3200 = vunpack.c.h.b16 %v1748
        %v3201 = vunpack.c.l.b16 %v1749
        %v3202 = vunpack.c.h.b16 %v1749
        %v3203 = vunpack.c.l.b16 %v1750
        %v3204 = vunpack.c.h.b16 %v1750
        %v3205 = vunpack.c.l.b16 %v1751
        %v3206 = vunpack.c.h.b16 %v1751
        %v3207 = vunpack.c.l.b16 %v1752
        %v3208 = vunpack.c.h.b16 %v1752
        %v3209 = vunpack.c.l.b16 %v1753
        %v3210 = vunpack.c.h.b16 %v1753
        %v3211 = vunpack.c.l.b16 %v1754
        %v3212 = vunpack.c.h.b16 %v1754
        %v3213 = vunpack.c.l.b16 %v1755
        %v3214 = vunpack.c.h.b16 %v1755
        %v3215 = vunpack.c.l.b16 %v1756
        %v3216 = vunpack.c.h.b16 %v1756
        %v3217 = vunpack.c.l.b16 %v1757
        %v3218 = vunpack.c.h.b16 %v1757
        %v3219 = vunpack.c.l.b16 %v1758
        %v3220 = vunpack.c.h.b16 %v1758
        %v3221 = vunpack.c.l.b16 %v1759
        %v3222 = vunpack.c.h.b16 %v1759
        %v3223 = vunpack.c.l.b16 %v1760
        %v3224 = vunpack.c.h.b16 %v1760
        %v3225 = vunpack.c.l.b16 %v1761
        %v3226 = vunpack.c.h.b16 %v1761
        %v3227 = vunpack.c.l.b16 %v1762
        %v3228 = vunpack.c.h.b16 %v1762
        %v3229 = vunpack.c.l.b16 %v1763
        %v3230 = vunpack.c.h.b16 %v1763
        %v3231 = vunpack.c.l.b16 %v1764
        %v3232 = vunpack.c.h.b16 %v1764
        %v3233 = vunpack.c.l.b16 %v1765
        %v3234 = vunpack.c.h.b16 %v1765
        %v3235 = vunpack.c.l.b16 %v1766
        %v3236 = vunpack.c.h.b16 %v1766
        %v3237 = vunpack.c.l.b16 %v1767
        %v3238 = vunpack.c.h.b16 %v1767
        %v3239 = vunpack.c.l.b16 %v1768
        %v3240 = vunpack.c.h.b16 %v1768
        %v3241 = vunpack.c.l.b16 %v1769
        %v3242 = vunpack.c.h.b16 %v1769
        %v3243 = vunpack.c.l.b16 %v1770
        %v3244 = vunpack.c.h.b16 %v1770
        %v3245 = vunpack.c.l.b16 %v1771
        %v3246 = vunpack.c.h.b16 %v1771
        %v3247 = vunpack.c.l.b16 %v1772
        %v3248 = vunpack.c.h.b16 %v1772
        %v3249 = vunpack.c.l.b16 %v1773
        %v3250 = vunpack.c.h.b16 %v1773
        %v3251 = vunpack.c.l.b16 %v1774
        %v3252 = vunpack.c.h.b16 %v1774
        %v3253 = vunpack.c.l.b16 %v1775
        %v3254 = vunpack.c.h.b16 %v1775
        %v3255 = vunpack.c.l.b16 %v1776
        %v3256 = vunpack.c.h.b16 %v1776
        %v3257 = vunpack.c.l.b16 %v1777
        %v3258 = vunpack.c.h.b16 %v1777
        %v3259 = vunpack.c.l.b16 %v1778
        %v3260 = vunpack.c.h.b16 %v1778
        %v3261 = vunpack.c.l.b16 %v1779
        %v3262 = vunpack.c.h.b16 %v1779
        %v3263 = vunpack.c.l.b16 %v1780
        %v3264 = vunpack.c.h.b16 %v1780
        %v3265 = vunpack.c.l.b16 %v1781
        %v3266 = vunpack.c.h.b16 %v1781
        %v3267 = vunpack.c.l.b16 %v1782
        %v3268 = vunpack.c.h.b16 %v1782
        %v3269 = vunpack.c.l.b16 %v1783
        %v3270 = vunpack.c.h.b16 %v1783
        %v3271 = vunpack.c.l.b16 %v1784
        %v3272 = vunpack.c.h.b16 %v1784
        %v3273 = vunpack.c.l.b16 %v1785
        %v3274 = vunpack.c.h.b16 %v1785
        %v3275 = vunpack.c.l.b16 %v1786
        %v3276 = vunpack.c.h.b16 %v1786
        %v3277 = vunpack.c.l.b16 %v1787
        %v3278 = vunpack.c.h.b16 %v1787
        %v3279 = vunpack.c.l.b16 %v1788
        %v3280 = vunpack.c.h.b16 %v1788
        %v3281 = vunpack.c.l.b16 %v1789
        %v3282 = vunpack.c.h.b16 %v1789
        %v3283 = vunpack.c.l.b16 %v1790
        %v3284 = vunpack.c.h.b16 %v1790
        %v3285 = vunpack.c.l.b16 %v1791
        %v3286 = vunpack.c.h.b16 %v1791
        %v3287 = vunpack.c.l.b16 %v1792
        %v3288 = vunpack.c.h.b16 %v1792
        %v3289 = vunpack.c.l.b16 %v1793
        %v3290 = vunpack.c.h.b16 %v1793
        %v3291 = vunpack.c.l.b16 %v1794
        %v3292 = vunpack.c.h.b16 %v1794
        %v3293 = vunpack.c.l.b16 %v1795
        %v3294 = vunpack.c.h.b16 %v1795
        %v3295 = vunpack.c.l.b16 %v1796
        %v3296 = vunpack.c.h.b16 %v1796
        %v3297 = vunpack.c.l.b16 %v1797
        %v3298 = vunpack.c.h.b16 %v1797
        %v3299 = vunpack.c.l.b16 %v1798
        %v3300 = vunpack.c.h.b16 %v1798
        %v3301 = vunpack.c.l.b16 %v1799
        %v3302 = vunpack.c.h.b16 %v1799
        %v3303 = vunpack.c.l.b16 %v1800
        %v3304 = vunpack.c.h.b16 %v1800
        %v3305 = vunpack.c.l.b16 %v1801
        %v3306 = vunpack.c.h.b16 %v1801
        %v3307 = vunpack.c.l.b16 %v1802
        %v3308 = vunpack.c.h.b16 %v1802
        %v3309 = vunpack.c.l.b16 %v1803
        %v3310 = vunpack.c.h.b16 %v1803
        %v3311 = vunpack.c.l.b16 %v1804
        %v3312 = vunpack.c.h.b16 %v1804
        %v3313 = vunpack.c.l.b16 %v1805
        %v3314 = vunpack.c.h.b16 %v1805
        %v3315 = vunpack.c.l.b16 %v1806
        %v3316 = vunpack.c.h.b16 %v1806
        %v3317 = vunpack.c.l.b16 %v1807
        %v3318 = vunpack.c.h.b16 %v1807
        %v3319 = vunpack.c.l.b16 %v1808
        %v3320 = vunpack.c.h.b16 %v1808
        %v3321 = vunpack.c.l.b16 %v1809
        %v3322 = vunpack.c.h.b16 %v1809
        %v3323 = vunpack.c.l.b16 %v1810
        %v3324 = vunpack.c.h.b16 %v1810
        %v3325 = vunpack.c.l.b16 %v1811
        %v3326 = vunpack.c.h.b16 %v1811
        %v3327 = vunpack.c.l.b16 %v1812
        %v3328 = vunpack.c.h.b16 %v1812
        %v3329 = vunpack.c.l.b16 %v1813
        %v3330 = vunpack.c.h.b16 %v1813
        %v3331 = vunpack.c.l.b16 %v1814
        %v3332 = vunpack.c.h.b16 %v1814
        %v3333 = vunpack.c.l.b16 %v1815
        %v3334 = vunpack.c.h.b16 %v1815
        %v3335 = vunpack.c.l.b16 %v1816
        %v3336 = vunpack.c.h.b16 %v1816
        %v3337 = vunpack.c.l.b16 %v1817
        %v3338 = vunpack.c.h.b16 %v1817
        %v3339 = vunpack.c.l.b16 %v1818
        %v3340 = vunpack.c.h.b16 %v1818
        %v3341 = vunpack.c.l.b16 %v1819
        %v3342 = vunpack.c.h.b16 %v1819
        %v3343 = vunpack.c.l.b16 %v1820
        %v3344 = vunpack.c.h.b16 %v1820
        %v3345 = vunpack.c.l.b16 %v1821
        %v3346 = vunpack.c.h.b16 %v1821
        %v3347 = vunpack.c.l.b16 %v1822
        %v3348 = vunpack.c.h.b16 %v1822
        %v3349 = vunpack.c.l.b16 %v1823
        %v3350 = vunpack.c.h.b16 %v1823
        %v3351 = vunpack.c.l.b16 %v1824
        %v3352 = vunpack.c.h.b16 %v1824
        %v3353 = vunpack.c.l.b16 %v1825
        %v3354 = vunpack.c.h.b16 %v1825
        %v3355 = vunpack.c.l.b16 %v1826
        %v3356 = vunpack.c.h.b16 %v1826
        %v3357 = vunpack.c.l.b16 %v1827
        %v3358 = vunpack.c.h.b16 %v1827
        %v3359 = vunpack.c.l.b16 %v1828
        %v3360 = vunpack.c.h.b16 %v1828
        %v3361 = vunpack.c.l.b16 %v1829
        %v3362 = vunpack.c.h.b16 %v1829
        %v3363 = vunpack.c.l.b16 %v1830
        %v3364 = vunpack.c.h.b16 %v1830
        %v3365 = vunpack.c.l.b16 %v1831
        %v3366 = vunpack.c.h.b16 %v1831
        %v3367 = vunpack.c.l.b16 %v1832
        %v3368 = vunpack.c.h.b16 %v1832
        %v3369 = vunpack.c.l.b16 %v1833
        %v3370 = vunpack.c.h.b16 %v1833
        %v3371 = vunpack.c.l.b16 %v1834
        %v3372 = vunpack.c.h.b16 %v1834
        %v3373 = vunpack.c.l.b16 %v1835
        %v3374 = vunpack.c.h.b16 %v1835
        %v3375 = vunpack.c.l.b16 %v1836
        %v3376 = vunpack.c.h.b16 %v1836
        %v3377 = vunpack.c.l.b16 %v1837
        %v3378 = vunpack.c.h.b16 %v1837
        %v3379 = vunpack.c.l.b16 %v1838
        %v3380 = vunpack.c.h.b16 %v1838
        %v3381 = vunpack.c.l.b16 %v1839
        %v3382 = vunpack.c.h.b16 %v1839
        %v3383 = vunpack.c.l.b16 %v1840
        %v3384 = vunpack.c.h.b16 %v1840
        %v3385 = vunpack.c.l.b16 %v1841
        %v3386 = vunpack.c.h.b16 %v1841
        %v3387 = vunpack.c.l.b16 %v1842
        %v3388 = vunpack.c.h.b16 %v1842
        %v3389 = vunpack.c.l.b16 %v1843
        %v3390 = vunpack.c.h.b16 %v1843
        %v3391 = vunpack.c.l.b16 %v1844
        %v3392 = vunpack.c.h.b16 %v1844
        %v3393 = vunpack.c.l.b16 %v1845
        %v3394 = vunpack.c.h.b16 %v1845
        %v3395 = vunpack.c.l.b16 %v1846
        %v3396 = vunpack.c.h.b16 %v1846
        %v3397 = vunpack.c.l.b16 %v1847
        %v3398 = vunpack.c.h.b16 %v1847
        %v3399 = vunpack.c.l.b16 %v1848
        %v3400 = vunpack.c.h.b16 %v1848
        %v3401 = vunpack.c.l.b16 %v1849
        %v3402 = vunpack.c.h.b16 %v1849
        %v3403 = vunpack.c.l.b16 %v1850
        %v3404 = vunpack.c.h.b16 %v1850
        %v3405 = vunpack.c.l.b16 %v1851
        %v3406 = vunpack.c.h.b16 %v1851
        %v3407 = vunpack.c.l.b16 %v1852
        %v3408 = vunpack.c.h.b16 %v1852
        %v3409 = vunpack.c.l.b16 %v1853
        %v3410 = vunpack.c.h.b16 %v1853
        %v3411 = vunpack.c.l.b16 %v1854
        %v3412 = vunpack.c.h.b16 %v1854
        %v3413 = vunpack.c.l.b16 %v1855
        %v3414 = vunpack.c.h.b16 %v1855
        %v3415 = vunpack.c.l.b16 %v1856
        %v3416 = vunpack.c.h.b16 %v1856
        %v3417 = vunpack.c.l.b16 %v1857
        %v3418 = vunpack.c.h.b16 %v1857
        %v3419 = vunpack.c.l.b16 %v1858
        %v3420 = vunpack.c.h.b16 %v1858
        %v3421 = vunpack.c.l.b16 %v1859
        %v3422 = vunpack.c.h.b16 %v1859
        %v3423 = vunpack.c.l.b16 %v1860
        %v3424 = vunpack.c.h.b16 %v1860
        %v3425 = vunpack.c.l.b16 %v1861
        %v3426 = vunpack.c.h.b16 %v1861
        %v3427 = vunpack.c.l.b16 %v1862
        %v3428 = vunpack.c.h.b16 %v1862
        %v3429 = vunpack.c.l.b16 %v1863
        %v3430 = vunpack.c.h.b16 %v1863
        %v3431 = vunpack.c.l.b16 %v1864
        %v3432 = vunpack.c.h.b16 %v1864
        %v3433 = vunpack.c.l.b16 %v1865
        %v3434 = vunpack.c.h.b16 %v1865
        %v3435 = vunpack.c.l.b16 %v1866
        %v3436 = vunpack.c.h.b16 %v1866
        %v3437 = vunpack.c.l.b16 %v1867
        %v3438 = vunpack.c.h.b16 %v1867
        %v3439 = vunpack.c.l.b16 %v1868
        %v3440 = vunpack.c.h.b16 %v1868
        %v3441 = vunpack.c.l.b16 %v1869
        %v3442 = vunpack.c.h.b16 %v1869
        %v3443 = vunpack.c.l.b16 %v1870
        %v3444 = vunpack.c.h.b16 %v1870
        %v3445 = vunpack.c.l.b16 %v1871
        %v3446 = vunpack.c.h.b16 %v1871
        %v3447 = vunpack.c.l.b16 %v1872
        %v3448 = vunpack.c.h.b16 %v1872
        %v3449 = vunpack.c.l.b16 %v1873
        %v3450 = vunpack.c.h.b16 %v1873
        %v3451 = vunpack.c.l.b16 %v1874
        %v3452 = vunpack.c.h.b16 %v1874
        %v3453 = vunpack.c.l.b16 %v1875
        %v3454 = vunpack.c.h.b16 %v1875
        %v3455 = vunpack.c.l.b16 %v1876
        %v3456 = vunpack.c.h.b16 %v1876
        %v3457 = vunpack.c.l.b16 %v1877
        %v3458 = vunpack.c.h.b16 %v1877
        %v3459 = vunpack.c.l.b16 %v1878
        %v3460 = vunpack.c.h.b16 %v1878
        %v3461 = vunpack.c.l.b16 %v1879
        %v3462 = vunpack.c.h.b16 %v1879
        %v3463 = vunpack.c.l.b16 %v1880
        %v3464 = vunpack.c.h.b16 %v1880
        %v3465 = vunpack.c.l.b16 %v1881
        %v3466 = vunpack.c.h.b16 %v1881
        %v3467 = vunpack.c.l.b16 %v1882
        %v3468 = vunpack.c.h.b16 %v1882
        %v3469 = vunpack.c.l.b16 %v1883
        %v3470 = vunpack.c.h.b16 %v1883
        %v3471 = vunpack.c.l.b16 %v1884
        %v3472 = vunpack.c.h.b16 %v1884
        %v3473 = vunpack.c.l.b16 %v1885
        %v3474 = vunpack.c.h.b16 %v1885
        %v3475 = vunpack.c.l.b16 %v1886
        %v3476 = vunpack.c.h.b16 %v1886
        %v3477 = vunpack.c.l.b16 %v1887
        %v3478 = vunpack.c.h.b16 %v1887
        %v3479 = vunpack.c.l.b16 %v1888
        %v3480 = vunpack.c.h.b16 %v1888
        %v3481 = vunpack.c.l.b16 %v1889
        %v3482 = vunpack.c.h.b16 %v1889
        %v3483 = vunpack.c.l.b16 %v1890
        %v3484 = vunpack.c.h.b16 %v1890
        %v3485 = vunpack.c.l.b16 %v1891
        %v3486 = vunpack.c.h.b16 %v1891
        %v3487 = vunpack.c.l.b16 %v1892
        %v3488 = vunpack.c.h.b16 %v1892
        %v3489 = vunpack.c.l.b16 %v1893
        %v3490 = vunpack.c.h.b16 %v1893
        %v3491 = vunpack.c.l.b16 %v1894
        %v3492 = vunpack.c.h.b16 %v1894
        %v3493 = vunpack.c.l.b16 %v1895
        %v3494 = vunpack.c.h.b16 %v1895
        %v3495 = vunpack.c.l.b16 %v1896
        %v3496 = vunpack.c.h.b16 %v1896
        %v3497 = vunpack.c.l.b16 %v1897
        %v3498 = vunpack.c.h.b16 %v1897
        %v3499 = vunpack.c.l.b16 %v1898
        %v3500 = vunpack.c.h.b16 %v1898
        %v3501 = vunpack.c.l.b16 %v1899
        %v3502 = vunpack.c.h.b16 %v1899
        %v3503 = vunpack.c.l.b16 %v1900
        %v3504 = vunpack.c.h.b16 %v1900
        %v3505 = vunpack.c.l.b16 %v1901
        %v3506 = vunpack.c.h.b16 %v1901
        %v3507 = vunpack.c.l.b16 %v1902
        %v3508 = vunpack.c.h.b16 %v1902
        %v3509 = vunpack.c.l.b16 %v1903
        %v3510 = vunpack.c.h.b16 %v1903
        %v3511 = vunpack.c.l.b16 %v1904
        %v3512 = vunpack.c.h.b16 %v1904
        %v3513 = vunpack.c.l.b16 %v1905
        %v3514 = vunpack.c.h.b16 %v1905
        %v3515 = vunpack.c.l.b16 %v1906
        %v3516 = vunpack.c.h.b16 %v1906
        %v3517 = vunpack.c.l.b16 %v1907
        %v3518 = vunpack.c.h.b16 %v1907
        %v3519 = vunpack.c.l.b16 %v1908
        %v3520 = vunpack.c.h.b16 %v1908
        %v3521 = vunpack.c.l.b16 %v1909
        %v3522 = vunpack.c.h.b16 %v1909
        %v3523 = vunpack.c.l.b16 %v1910
        %v3524 = vunpack.c.h.b16 %v1910
        %v3525 = vunpack.c.l.b16 %v1911
        %v3526 = vunpack.c.h.b16 %v1911
        %v3527 = vunpack.c.l.b16 %v1912
        %v3528 = vunpack.c.h.b16 %v1912
        %v3529 = vunpack.c.l.b16 %v1913
        %v3530 = vunpack.c.h.b16 %v1913
        %v3531 = vunpack.c.l.b16 %v1914
        %v3532 = vunpack.c.h.b16 %v1914
        %v3533 = vunpack.c.l.b16 %v1915
        %v3534 = vunpack.c.h.b16 %v1915
        %v3535 = vunpack.c.l.b16 %v1916
        %v3536 = vunpack.c.h.b16 %v1916
        %v3537 = vunpack.c.l.b16 %v1917
        %v3538 = vunpack.c.h.b16 %v1917
        %v3539 = vunpack.c.l.b16 %v1918
        %v3540 = vunpack.c.h.b16 %v1918
        %v3541 = vunpack.c.l.b16 %v1919
        %v3542 = vunpack.c.h.b16 %v1919
        %v3543 = vunpack.c.l.b16 %v1920
        %v3544 = vunpack.c.h.b16 %v1920
        %v3545 = vunpack.c.l.b16 %v1921
        %v3546 = vunpack.c.h.b16 %v1921
        %v3547 = vunpack.c.l.b16 %v1922
        %v3548 = vunpack.c.h.b16 %v1922
        %v3549 = vunpack.c.l.b16 %v1923
        %v3550 = vunpack.c.h.b16 %v1923
        %v3551 = vunpack.c.l.b16 %v1924
        %v3552 = vunpack.c.h.b16 %v1924
        %v3553 = vunpack.c.l.b16 %v1925
        %v3554 = vunpack.c.h.b16 %v1925
        %v3555 = vunpack.c.l.b16 %v1926
        %v3556 = vunpack.c.h.b16 %v1926
        %v3557 = vunpack.c.l.b16 %v1927
        %v3558 = vunpack.c.h.b16 %v1927
        %v3559 = vunpack.c.l.b16 %v1928
        %v3560 = vunpack.c.h.b16 %v1928
        %v3561 = vunpack.c.l.b16 %v1929
        %v3562 = vunpack.c.h.b16 %v1929
        %v3563 = vunpack.c.l.b16 %v1930
        %v3564 = vunpack.c.h.b16 %v1930
        %v3565 = vunpack.c.l.b16 %v1931
        %v3566 = vunpack.c.h.b16 %v1931
        %v3567 = vunpack.c.l.b16 %v1932
        %v3568 = vunpack.c.h.b16 %v1932
        %v3569 = vunpack.c.l.b16 %v1933
        %v3570 = vunpack.c.h.b16 %v1933
        %v3571 = vunpack.c.l.b16 %v1934
        %v3572 = vunpack.c.h.b16 %v1934
        %v3573 = vunpack.c.l.b16 %v1935
        %v3574 = vunpack.c.h.b16 %v1935
        %v3575 = vunpack.c.l.b16 %v1936
        %v3576 = vunpack.c.h.b16 %v1936
        %v3577 = vunpack.c.l.b16 %v1937
        %v3578 = vunpack.c.h.b16 %v1937
        %v3579 = vunpack.c.l.b16 %v1938
        %v3580 = vunpack.c.h.b16 %v1938
        %v3581 = vunpack.c.l.b16 %v1939
        %v3582 = vunpack.c.h.b16 %v1939
        %v3583 = vunpack.c.l.b16 %v1940
        %v3584 = vunpack.c.h.b16 %v1940
        %v3585 = vunpack.c.l.b16 %v1941
        %v3586 = vunpack.c.h.b16 %v1941
        %v3587 = vunpack.c.l.b16 %v1942
        %v3588 = vunpack.c.h.b16 %v1942
        %v3589 = vunpack.c.l.b16 %v1943
        %v3590 = vunpack.c.h.b16 %v1943
        %v3591 = vunpack.c.l.b16 %v1944
        %v3592 = vunpack.c.h.b16 %v1944
        %v3593 = vunpack.c.l.b16 %v1945
        %v3594 = vunpack.c.h.b16 %v1945
        %v3595 = vunpack.c.l.b16 %v1946
        %v3596 = vunpack.c.h.b16 %v1946
        %v3597 = vunpack.c.l.b16 %v1947
        %v3598 = vunpack.c.h.b16 %v1947
        %v3599 = vunpack.c.l.b16 %v1948
        %v3600 = vunpack.c.h.b16 %v1948
        %v3601 = vunpack.c.l.b16 %v1949
        %v3602 = vunpack.c.h.b16 %v1949
        %v3603 = vunpack.c.l.b16 %v1950
        %v3604 = vunpack.c.h.b16 %v1950
        %v3605 = vunpack.c.l.b16 %v1951
        %v3606 = vunpack.c.h.b16 %v1951
        %v3607 = vunpack.c.l.b16 %v1952
        %v3608 = vunpack.c.h.b16 %v1952
        %v3609 = vunpack.c.l.b16 %v1953
        %v3610 = vunpack.c.h.b16 %v1953
        %v3611 = vunpack.c.l.b16 %v1954
        %v3612 = vunpack.c.h.b16 %v1954
        %v3613 = vunpack.c.l.b16 %v1955
        %v3614 = vunpack.c.h.b16 %v1955
        %v3615 = vunpack.c.l.b16 %v1956
        %v3616 = vunpack.c.h.b16 %v1956
        %v3617 = vunpack.c.l.b16 %v1957
        %v3618 = vunpack.c.h.b16 %v1957
        %v3619 = vunpack.c.l.b16 %v1958
        %v3620 = vunpack.c.h.b16 %v1958
        %v3621 = vunpack.c.l.b16 %v1959
        %v3622 = vunpack.c.h.b16 %v1959
        %v3623 = vunpack.c.l.b16 %v1960
        %v3624 = vunpack.c.h.b16 %v1960
        %v3625 = vunpack.c.l.b16 %v1961
        %v3626 = vunpack.c.h.b16 %v1961
        %v3627 = vunpack.c.l.b16 %v1962
        %v3628 = vunpack.c.h.b16 %v1962
        %v3629 = vunpack.c.l.b16 %v1963
        %v3630 = vunpack.c.h.b16 %v1963
        %v3631 = vunpack.c.l.b16 %v1964
        %v3632 = vunpack.c.h.b16 %v1964
        %v3633 = vunpack.c.l.b16 %v1965
        %v3634 = vunpack.c.h.b16 %v1965
        %v3635 = vunpack.c.l.b16 %v1966
        %v3636 = vunpack.c.h.b16 %v1966
        %v3637 = vunpack.c.l.b16 %v1967
        %v3638 = vunpack.c.h.b16 %v1967
        %v3639 = vunpack.c.l.b16 %v1968
        %v3640 = vunpack.c.h.b16 %v1968
        %v3641 = vunpack.c.l.b16 %v1969
        %v3642 = vunpack.c.h.b16 %v1969
        %v3643 = vunpack.c.l.b16 %v1970
        %v3644 = vunpack.c.h.b16 %v1970
        %v3645 = vunpack.c.l.b16 %v1971
        %v3646 = vunpack.c.h.b16 %v1971
        %v3647 = vunpack.c.l.b16 %v1972
        %v3648 = vunpack.c.h.b16 %v1972
        %v3649 = vunpack.c.l.b16 %v1973
        %v3650 = vunpack.c.h.b16 %v1973
        %v3651 = vunpack.c.l.b16 %v1974
        %v3652 = vunpack.c.h.b16 %v1974
        %v3653 = vunpack.c.l.b16 %v1975
        %v3654 = vunpack.c.h.b16 %v1975
        %v3655 = vunpack.c.l.b16 %v1976
        %v3656 = vunpack.c.h.b16 %v1976
        %v3657 = vunpack.c.l.b16 %v1977
        %v3658 = vunpack.c.h.b16 %v1977
        %v3659 = vunpack.c.l.b16 %v1978
        %v3660 = vunpack.c.h.b16 %v1978
        %v3661 = vunpack.c.l.b16 %v1979
        %v3662 = vunpack.c.h.b16 %v1979
        %v3663 = vunpack.c.l.b16 %v1980
        %v3664 = vunpack.c.h.b16 %v1980
        %v3665 = vunpack.c.l.b16 %v1981
        %v3666 = vunpack.c.h.b16 %v1981
        %v3667 = vunpack.c.l.b16 %v1982
        %v3668 = vunpack.c.h.b16 %v1982
        %v3669 = vunpack.c.l.b16 %v1983
        %v3670 = vunpack.c.h.b16 %v1983
        %v3671 = vunpack.c.l.b16 %v1984
        %v3672 = vunpack.c.h.b16 %v1984
        %v3673 = vunpack.c.l.b16 %v1985
        %v3674 = vunpack.c.h.b16 %v1985
        %v3675 = vunpack.c.l.b16 %v1986
        %v3676 = vunpack.c.h.b16 %v1986
        %v3677 = vunpack.c.l.b16 %v1987
        %v3678 = vunpack.c.h.b16 %v1987
        %v3679 = vunpack.c.l.b16 %v1988
        %v3680 = vunpack.c.h.b16 %v1988
        %v3681 = vunpack.c.l.b16 %v1989
        %v3682 = vunpack.c.h.b16 %v1989
        %v3683 = vunpack.c.l.b16 %v1990
        %v3684 = vunpack.c.h.b16 %v1990
        %v3685 = vunpack.c.l.b16 %v1991
        %v3686 = vunpack.c.h.b16 %v1991
        %v3687 = vunpack.c.l.b16 %v1992
        %v3688 = vunpack.c.h.b16 %v1992
        %v3689 = vunpack.c.l.b16 %v1993
        %v3690 = vunpack.c.h.b16 %v1993
        %v3691 = vunpack.c.l.b16 %v1994
        %v3692 = vunpack.c.h.b16 %v1994
        %v3693 = vunpack.c.l.b16 %v1995
        %v3694 = vunpack.c.h.b16 %v1995
        %v3695 = vunpack.c.l.b16 %v1996
        %v3696 = vunpack.c.h.b16 %v1996
        %v3697 = vunpack.c.l.b16 %v1997
        %v3698 = vunpack.c.h.b16 %v1997
        %v3699 = vunpack.c.l.b16 %v1998
        %v3700 = vunpack.c.h.b16 %v1998
        %v3701 = vunpack.c.l.b16 %v1999
        %v3702 = vunpack.c.h.b16 %v1999
        %v3703 = vunpack.c.l.b16 %v2000
        %v3704 = vunpack.c.h.b16 %v2000
        %v3705 = vunpack.c.l.b16 %v2001
        %v3706 = vunpack.c.h.b16 %v2001
        %v3707 = vunpack.c.l.b16 %v2002
        %v3708 = vunpack.c.h.b16 %v2002
        %v3709 = vunpack.c.l.b16 %v2003
        %v3710 = vunpack.c.h.b16 %v2003
        %v3711 = vunpack.c.l.b16 %v2004
        %v3712 = vunpack.c.h.b16 %v2004
        %v3713 = vunpack.c.l.b16 %v2005
        %v3714 = vunpack.c.h.b16 %v2005
        %v3715 = vunpack.c.l.b16 %v2006
        %v3716 = vunpack.c.h.b16 %v2006
        %v3717 = vunpack.c.l.b16 %v2007
        %v3718 = vunpack.c.h.b16 %v2007
        %v3719 = vunpack.c.l.b16 %v2008
        %v3720 = vunpack.c.h.b16 %v2008
        %v3721 = vunpack.c.l.b16 %v2009
        %v3722 = vunpack.c.h.b16 %v2009
        %v3723 = vunpack.c.l.b16 %v2010
        %v3724 = vunpack.c.h.b16 %v2010
        %v3725 = vunpack.c.l.b16 %v2011
        %v3726 = vunpack.c.h.b16 %v2011
        %v3727 = vunpack.c.l.b16 %v2012
        %v3728 = vunpack.c.h.b16 %v2012
        %v3729 = vunpack.c.l.b16 %v2013
        %v3730 = vunpack.c.h.b16 %v2013
        %v3731 = vunpack.c.l.b16 %v2014
        %v3732 = vunpack.c.h.b16 %v2014
        %v3733 = vunpack.c.l.b16 %v2015
        %v3734 = vunpack.c.h.b16 %v2015
        %v3735 = vunpack.c.l.b16 %v2016
        %v3736 = vunpack.c.h.b16 %v2016
        %v3737 = vunpack.c.l.b16 %v2017
        %v3738 = vunpack.c.h.b16 %v2017
        %v3739 = vunpack.c.l.b16 %v2018
        %v3740 = vunpack.c.h.b16 %v2018
        %v3741 = vunpack.c.l.b16 %v2019
        %v3742 = vunpack.c.h.b16 %v2019
        %v3743 = vunpack.c.l.b16 %v2020
        %v3744 = vunpack.c.h.b16 %v2020
        %v3745 = vunpack.c.l.b16 %v2021
        %v3746 = vunpack.c.h.b16 %v2021
        %v3747 = vunpack.c.l.b16 %v2022
        %v3748 = vunpack.c.h.b16 %v2022
        %v3749 = vunpack.c.l.b16 %v2023
        %v3750 = vunpack.c.h.b16 %v2023
        %v3751 = vunpack.c.l.b16 %v2024
        %v3752 = vunpack.c.h.b16 %v2024
        %v3753 = vunpack.c.l.b16 %v2025
        %v3754 = vunpack.c.h.b16 %v2025
        %v3755 = vunpack.c.l.b16 %v2026
        %v3756 = vunpack.c.h.b16 %v2026
        %v3757 = vunpack.c.l.b16 %v2027
        %v3758 = vunpack.c.h.b16 %v2027
        %v3759 = vunpack.c.l.b16 %v2028
        %v3760 = vunpack.c.h.b16 %v2028
        %v3761 = vunpack.c.l.b16 %v2029
        %v3762 = vunpack.c.h.b16 %v2029
        %v3763 = vunpack.c.l.b16 %v2030
        %v3764 = vunpack.c.h.b16 %v2030
        %v3765 = vunpack.c.l.b16 %v2031
        %v3766 = vunpack.c.h.b16 %v2031
        %v3767 = vunpack.c.l.b16 %v2032
        %v3768 = vunpack.c.h.b16 %v2032
        %v3769 = vunpack.c.l.b16 %v2033
        %v3770 = vunpack.c.h.b16 %v2033
        %v3771 = vunpack.c.l.b16 %v2034
        %v3772 = vunpack.c.h.b16 %v2034
        %v3773 = vunpack.c.l.b16 %v2035
        %v3774 = vunpack.c.h.b16 %v2035
        %v3775 = vunpack.c.l.b16 %v2036
        %v3776 = vunpack.c.h.b16 %v2036
        %v3777 = vunpack.c.l.b16 %v2037
        %v3778 = vunpack.c.h.b16 %v2037
        %v3779 = vunpack.c.l.b16 %v2038
        %v3780 = vunpack.c.h.b16 %v2038
        %v3781 = vunpack.c.l.b16 %v2039
        %v3782 = vunpack.c.h.b16 %v2039
        %v3783 = vunpack.c.l.b16 %v2040
        %v3784 = vunpack.c.h.b16 %v2040
        %v3785 = vunpack.c.l.b16 %v2041
        %v3786 = vunpack.c.h.b16 %v2041
        %v3787 = vunpack.c.l.b16 %v2042
        %v3788 = vunpack.c.h.b16 %v2042
        %v3789 = vunpack.c.l.b16 %v2043
        %v3790 = vunpack.c.h.b16 %v2043
        %v3791 = vunpack.c.l.b16 %v2044
        %v3792 = vunpack.c.h.b16 %v2044
        %v3793 = vunpack.c.l.b16 %v2045
        %v3794 = vunpack.c.h.b16 %v2045
        %v3795 = vunpack.c.l.b16 %v2046
        %v3796 = vunpack.c.h.b16 %v2046
        %v3797 = vunpack.c.l.b16 %v2047
        %v3798 = vunpack.c.h.b16 %v2047
        %v3799 = vunpack.c.l.b16 %v2048
        %v3800 = vunpack.c.h.b16 %v2048
        %v3801 = vunpack.c.l.b16 %v2049
        %v3802 = vunpack.c.h.b16 %v2049
        %v3803 = vunpack.c.l.b16 %v2050
        %v3804 = vunpack.c.h.b16 %v2050
        %v3805 = vunpack.c.l.b16 %v2051
        %v3806 = vunpack.c.h.b16 %v2051
        %v3807 = vunpack.c.l.b16 %v2052
        %v3808 = vunpack.c.h.b16 %v2052
        %v3809 = vunpack.c.l.b16 %v2053
        %v3810 = vunpack.c.h.b16 %v2053
        %v3811 = vunpack.c.l.b16 %v2054
        %v3812 = vunpack.c.h.b16 %v2054
        %v3813 = vunpack.c.l.b16 %v2055
        %v3814 = vunpack.c.h.b16 %v2055
        %v3815 = vunpack.c.l.b16 %v2056
        %v3816 = vunpack.c.h.b16 %v2056
        %v3817 = vunpack.c.l.b16 %v2057
        %v3818 = vunpack.c.h.b16 %v2057
        %v3819 = vunpack.c.l.b16 %v2058
        %v3820 = vunpack.c.h.b16 %v2058
        %v3821 = vunpack.c.l.b16 %v2059
        %v3822 = vunpack.c.h.b16 %v2059
        %v3823 = vunpack.c.l.b16 %v2060
        %v3824 = vunpack.c.h.b16 %v2060
        %v3825 = vunpack.c.l.b16 %v2061
        %v3826 = vunpack.c.h.b16 %v2061
        %v3827 = vunpack.c.l.b16 %v2062
        %v3828 = vunpack.c.h.b16 %v2062
        %v3829 = vunpack.c.l.b16 %v2063
        %v3830 = vunpack.c.h.b16 %v2063
        %v3831 = vunpack.c.l.b16 %v2064
        %v3832 = vunpack.c.h.b16 %v2064
        %v3833 = vunpack.c.l.b16 %v2065
        %v3834 = vunpack.c.h.b16 %v2065
        %v3835 = vunpack.c.l.b16 %v2066
        %v3836 = vunpack.c.h.b16 %v2066
        %v3837 = vunpack.c.l.b16 %v2067
        %v3838 = vunpack.c.h.b16 %v2067
        %v3839 = vunpack.c.l.b16 %v2068
        %v3840 = vunpack.c.h.b16 %v2068
        %v3841 = vunpack.c.l.b16 %v2069
        %v3842 = vunpack.c.h.b16 %v2069
        %v3843 = vunpack.c.l.b16 %v2070
        %v3844 = vunpack.c.h.b16 %v2070
        %v3845 = vunpack.c.l.b16 %v2071
        %v3846 = vunpack.c.h.b16 %v2071
        %v3847 = vunpack.c.l.b16 %v2072
        %v3848 = vunpack.c.h.b16 %v2072
        %v3849 = vunpack.c.l.b16 %v2073
        %v3850 = vunpack.c.h.b16 %v2073
        %v3851 = vunpack.c.l.b16 %v2074
        %v3852 = vunpack.c.h.b16 %v2074
        %v3853 = vunpack.c.l.b16 %v2075
        %v3854 = vunpack.c.h.b16 %v2075
        %v3855 = vunpack.c.l.b16 %v2076
        %v3856 = vunpack.c.h.b16 %v2076
        %v3857 = vunpack.c.l.b16 %v2077
        %v3858 = vunpack.c.h.b16 %v2077
        %v3859 = vunpack.c.l.b16 %v2078
        %v3860 = vunpack.c.h.b16 %v2078
        %v3861 = vunpack.c.l.b16 %v2079
        %v3862 = vunpack.c.h.b16 %v2079
        %v3863 = vunpack.c.l.b16 %v2080
        %v3864 = vunpack.c.h.b16 %v2080
        %v3865 = vunpack.c.l.b16 %v2081
        %v3866 = vunpack.c.h.b16 %v2081
        %v3867 = vunpack.c.l.b16 %v2082
        %v3868 = vunpack.c.h.b16 %v2082
        %v3869 = vunpack.c.l.b16 %v2083
        %v3870 = vunpack.c.h.b16 %v2083
        %v3871 = vunpack.c.l.b16 %v2084
        %v3872 = vunpack.c.h.b16 %v2084
        %v3873 = vunpack.c.l.b16 %v2085
        %v3874 = vunpack.c.h.b16 %v2085
        %v3875 = vunpack.c.l.b16 %v2086
        %v3876 = vunpack.c.h.b16 %v2086
        %v3877 = vunpack.c.l.b16 %v2087
        %v3878 = vunpack.c.h.b16 %v2087
        %v3879 = vunpack.c.l.b16 %v2088
        %v3880 = vunpack.c.h.b16 %v2088
        %v3881 = vunpack.c.l.b16 %v2089
        %v3882 = vunpack.c.h.b16 %v2089
        %v3883 = vunpack.c.l.b16 %v2090
        %v3884 = vunpack.c.h.b16 %v2090
        %v3885 = vunpack.c.l.b16 %v2091
        %v3886 = vunpack.c.h.b16 %v2091
        %v3887 = vunpack.c.l.b16 %v2092
        %v3888 = vunpack.c.h.b16 %v2092
        %v3889 = vunpack.c.l.b16 %v2093
        %v3890 = vunpack.c.h.b16 %v2093
        %v3891 = vunpack.c.l.b16 %v2094
        %v3892 = vunpack.c.h.b16 %v2094
        %v3893 = vunpack.c.l.b16 %v2095
        %v3894 = vunpack.c.h.b16 %v2095
        %v3895 = vunpack.c.l.b16 %v2096
        %v3896 = vunpack.c.h.b16 %v2096
        %v3897 = vunpack.c.l.b16 %v2097
        %v3898 = vunpack.c.h.b16 %v2097
        %v3899 = vunpack.c.l.b16 %v2098
        %v3900 = vunpack.c.h.b16 %v2098
        %v3901 = vunpack.c.l.b16 %v2099
        %v3902 = vunpack.c.h.b16 %v2099
        %v3903 = vunpack.c.l.b16 %v2100
        %v3904 = vunpack.c.h.b16 %v2100
        %v3905 = vunpack.c.l.b16 %v2101
        %v3906 = vunpack.c.h.b16 %v2101
        %v3907 = vunpack.c.l.b16 %v2102
        %v3908 = vunpack.c.h.b16 %v2102
        %v3909 = vunpack.c.l.b16 %v2103
        %v3910 = vunpack.c.h.b16 %v2103
        %v3911 = vunpack.c.l.b16 %v2104
        %v3912 = vunpack.c.h.b16 %v2104
        %v3913 = vunpack.c.l.b16 %v2105
        %v3914 = vunpack.c.h.b16 %v2105
        %v3915 = vunpack.c.l.b16 %v2106
        %v3916 = vunpack.c.h.b16 %v2106
        %v3917 = vunpack.c.l.b16 %v2107
        %v3918 = vunpack.c.h.b16 %v2107
        %v3919 = vunpack.c.l.b16 %v2108
        %v3920 = vunpack.c.h.b16 %v2108
        %v3921 = vunpack.c.l.b16 %v2109
        %v3922 = vunpack.c.h.b16 %v2109
        %v3923 = vunpack.c.l.b16 %v2110
        %v3924 = vunpack.c.h.b16 %v2110
        %v3925 = vunpack.c.l.b16 %v2111
        %v3926 = vunpack.c.h.b16 %v2111
        %v3927 = vunpack.c.l.b16 %v2112
        %v3928 = vunpack.c.h.b16 %v2112
        %v3929 = vunpack.c.l.b16 %v2113
        %v3930 = vunpack.c.h.b16 %v2113
        %v3931 = vunpack.c.l.b16 %v2114
        %v3932 = vunpack.c.h.b16 %v2114
        %v3933 = vunpack.c.l.b16 %v2115
        %v3934 = vunpack.c.h.b16 %v2115
        %v3935 = vunpack.c.l.b16 %v2116
        %v3936 = vunpack.c.h.b16 %v2116
        %v3937 = vunpack.c.l.b16 %v2117
        %v3938 = vunpack.c.h.b16 %v2117
        %v3939 = vunpack.c.l.b16 %v2118
        %v3940 = vunpack.c.h.b16 %v2118
        %v3941 = vunpack.c.l.b16 %v2119
        %v3942 = vunpack.c.h.b16 %v2119
        %v3943 = vunpack.c.l.b16 %v2120
        %v3944 = vunpack.c.h.b16 %v2120
        %v3945 = vunpack.c.l.b16 %v2121
        %v3946 = vunpack.c.h.b16 %v2121
        %v3947 = vunpack.c.l.b16 %v2122
        %v3948 = vunpack.c.h.b16 %v2122
        %v3949 = vunpack.c.l.b16 %v2123
        %v3950 = vunpack.c.h.b16 %v2123
        %v3951 = vunpack.c.l.b16 %v2124
        %v3952 = vunpack.c.h.b16 %v2124
        %v3953 = vunpack.c.l.b16 %v2125
        %v3954 = vunpack.c.h.b16 %v2125
        %v3955 = vunpack.c.l.b16 %v2126
        %v3956 = vunpack.c.h.b16 %v2126
        %v3957 = vunpack.c.l.b16 %v2127
        %v3958 = vunpack.c.h.b16 %v2127
        %v3959 = vunpack.c.l.b16 %v2128
        %v3960 = vunpack.c.h.b16 %v2128
        %v3961 = vunpack.c.l.b16 %v2129
        %v3962 = vunpack.c.h.b16 %v2129
        %v3963 = vunpack.c.l.b16 %v2130
        %v3964 = vunpack.c.h.b16 %v2130
        %v3965 = vunpack.c.l.b16 %v2131
        %v3966 = vunpack.c.h.b16 %v2131
        %v3967 = vunpack.c.l.b16 %v2132
        %v3968 = vunpack.c.h.b16 %v2132
        %v3969 = vunpack.c.l.b16 %v2133
        %v3970 = vunpack.c.h.b16 %v2133
        %v3971 = vunpack.c.l.b16 %v2134
        %v3972 = vunpack.c.h.b16 %v2134
        %v3973 = vunpack.c.l.b16 %v2135
        %v3974 = vunpack.c.h.b16 %v2135
        %v3975 = vunpack.c.l.b16 %v2136
        %v3976 = vunpack.c.h.b16 %v2136
        %v3977 = vunpack.c.l.b16 %v2137
        %v3978 = vunpack.c.h.b16 %v2137
        %v3979 = vunpack.c.l.b16 %v2138
        %v3980 = vunpack.c.h.b16 %v2138
        %v3981 = vunpack.c.l.b16 %v2139
        %v3982 = vunpack.c.h.b16 %v2139
        %v3983 = vunpack.c.l.b16 %v2140
        %v3984 = vunpack.c.h.b16 %v2140
        %v3985 = vunpack.c.l.b16 %v2141
        %v3986 = vunpack.c.h.b16 %v2141
        %v3987 = vunpack.c.l.b16 %v2142
        %v3988 = vunpack.c.h.b16 %v2142
        %v3989 = vunpack.c.l.b16 %v2143
        %v3990 = vunpack.c.h.b16 %v2143
        %v3991 = vunpack.c.l.b16 %v2144
        %v3992 = vunpack.c.h.b16 %v2144
        %v3993 = vunpack.c.l.b16 %v2145
        %v3994 = vunpack.c.h.b16 %v2145
        %v3995 = vunpack.c.l.b16 %v2146
        %v3996 = vunpack.c.h.b16 %v2146
        %v3997 = vunpack.c.l.b16 %v2147
        %v3998 = vunpack.c.h.b16 %v2147
        %v3999 = vunpack.c.l.b16 %v2148
        %v4000 = vunpack.c.h.b16 %v2148
        %v4001 = vunpack.c.l.b16 %v2149
        %v4002 = vunpack.c.h.b16 %v2149
        %v4003 = vunpack.c.l.b16 %v2150
        %v4004 = vunpack.c.h.b16 %v2150
        %v4005 = vunpack.c.l.b16 %v2151
        %v4006 = vunpack.c.h.b16 %v2151
        %v4007 = vunpack.c.l.b16 %v2152
        %v4008 = vunpack.c.h.b16 %v2152
        %v4009 = vunpack.c.l.b16 %v2153
        %v4010 = vunpack.c.h.b16 %v2153
        %v4011 = vunpack.c.l.b16 %v2154
        %v4012 = vunpack.c.h.b16 %v2154
        %v4013 = vunpack.c.l.b16 %v2155
        %v4014 = vunpack.c.h.b16 %v2155
        %v4015 = vunpack.c.l.b16 %v2156
        %v4016 = vunpack.c.h.b16 %v2156
        %v4017 = vunpack.c.l.b16 %v2157
        %v4018 = vunpack.c.h.b16 %v2157
        %v4019 = vunpack.c.l.b16 %v2158
        %v4020 = vunpack.c.h.b16 %v2158
        %v4021 = vunpack.c.l.b16 %v2159
        %v4022 = vunpack.c.h.b16 %v2159
        %v4023 = vunpack.c.l.b16 %v2160
        %v4024 = vunpack.c.h.b16 %v2160
        %v4025 = vunpack.c.l.b16 %v2161
        %v4026 = vunpack.c.h.b16 %v2161
        %v4027 = vunpack.c.l.b16 %v2162
        %v4028 = vunpack.c.h.b16 %v2162
        %v4029 = vunpack.c.l.b16 %v2163
        %v4030 = vunpack.c.h.b16 %v2163
        %v4031 = vunpack.c.l.b16 %v2164
        %v4032 = vunpack.c.h.b16 %v2164
        %v4033 = vunpack.c.l.b16 %v2165
        %v4034 = vunpack.c.h.b16 %v2165
        %v4035 = vunpack.c.l.b16 %v2166
        %v4036 = vunpack.c.h.b16 %v2166
        %v4037 = vunpack.c.l.b16 %v2167
        %v4038 = vunpack.c.h.b16 %v2167
        %v4039 = vunpack.c.l.b16 %v2168
        %v4040 = vunpack.c.h.b16 %v2168
        %v4041 = vunpack.c.l.b16 %v2169
        %v4042 = vunpack.c.h.b16 %v2169
        %v4043 = vunpack.c.l.b16 %v2170
        %v4044 = vunpack.c.h.b16 %v2170
        %v4045 = vunpack.c.l.b16 %v2171
        %v4046 = vunpack.c.h.b16 %v2171
        %v4047 = vunpack.c.l.b16 %v2172
        %v4048 = vunpack.c.h.b16 %v2172
        %v4049 = vunpack.c.l.b16 %v2173
        %v4050 = vunpack.c.h.b16 %v2173
        %v4051 = vunpack.c.l.b16 %v2174
        %v4052 = vunpack.c.h.b16 %v2174
        %v4053 = vunpack.c.l.b16 %v2175
        %v4054 = vunpack.c.h.b16 %v2175
        %v4055 = vunpack.c.l.b16 %v2176
        %v4056 = vunpack.c.h.b16 %v2176
        %v4057 = vunpack.c.l.b16 %v2177
        %v4058 = vunpack.c.h.b16 %v2177
        %v4059 = vunpack.c.l.b16 %v2178
        %v4060 = vunpack.c.h.b16 %v2178
        %v4061 = vunpack.c.l.b16 %v2179
        %v4062 = vunpack.c.h.b16 %v2179
        %v4063 = vunpack.c.l.b16 %v2180
        %v4064 = vunpack.c.h.b16 %v2180
        %v4065 = vunpack.c.l.b16 %v2181
        %v4066 = vunpack.c.h.b16 %v2181
        %v4067 = vunpack.c.l.b16 %v2182
        %v4068 = vunpack.c.h.b16 %v2182
        %v4069 = vunpack.c.l.b16 %v2183
        %v4070 = vunpack.c.h.b16 %v2183
        %v4071 = vunpack.c.l.b16 %v2184
        %v4072 = vunpack.c.h.b16 %v2184
        %v4073 = vunpack.c.l.b16 %v2185
        %v4074 = vunpack.c.h.b16 %v2185
        %v4075 = vunpack.c.l.b16 %v2186
        %v4076 = vunpack.c.h.b16 %v2186
        %v4077 = vunpack.c.l.b16 %v2187
        %v4078 = vunpack.c.h.b16 %v2187
        %v4079 = vunpack.c.l.b16 %v2188
        %v4080 = vunpack.c.h.b16 %v2188
        %v4081 = vunpack.c.l.b16 %v2189
        %v4082 = vunpack.c.h.b16 %v2189
        %v4083 = vunpack.c.l.b16 %v2190
        %v4084 = vunpack.c.h.b16 %v2190
        %v4085 = vunpack.c.l.b16 %v2191
        %v4086 = vunpack.c.h.b16 %v2191
        %v4087 = vunpack.c.l.b16 %v2192
        %v4088 = vunpack.c.h.b16 %v2192
        %v4089 = vunpack.c.l.b16 %v2193
        %v4090 = vunpack.c.h.b16 %v2193
        %v4091 = vunpack.c.l.b16 %v2194
        %v4092 = vunpack.c.h.b16 %v2194
        %v4093 = vunpack.c.l.b16 %v2195
        %v4094 = vunpack.c.h.b16 %v2195
        %v4095 = vunpack.c.l.b16 %v2196
        %v4096 = vunpack.c.h.b16 %v2196
        %v4097 = vunpack.c.l.b16 %v2197
        %v4098 = vunpack.c.h.b16 %v2197
        %v4099 = vunpack.c.l.b16 %v2198
        %v4100 = vunpack.c.h.b16 %v2198
        %v4101 = vunpack.c.l.b16 %v2199
        %v4102 = vunpack.c.h.b16 %v2199
        %v4103 = vunpack.c.l.b16 %v2200
        %v4104 = vunpack.c.h.b16 %v2200
        %v4105 = vunpack.c.l.b16 %v2201
        %v4106 = vunpack.c.h.b16 %v2201
        %v4107 = vunpack.c.l.b16 %v2202
        %v4108 = vunpack.c.h.b16 %v2202
        %v4109 = vunpack.c.l.b16 %v2203
        %v4110 = vunpack.c.h.b16 %v2203
        %v4111 = vunpack.c.l.b16 %v2204
        %v4112 = vunpack.c.h.b16 %v2204
        %v4113 = vunpack.c.l.b16 %v2205
        %v4114 = vunpack.c.h.b16 %v2205
        %v4115 = vunpack.c.l.b16 %v2206
        %v4116 = vunpack.c.h.b16 %v2206
        %v4117 = vunpack.c.l.b16 %v2207
        %v4118 = vunpack.c.h.b16 %v2207
        %v4119 = vunpack.c.l.b16 %v2208
        %v4120 = vunpack.c.h.b16 %v2208
        %v4121 = vunpack.c.l.b16 %v2209
        %v4122 = vunpack.c.h.b16 %v2209
        %v4123 = vunpack.c.l.b16 %v2210
        %v4124 = vunpack.c.h.b16 %v2210
        %v4125 = vunpack.c.l.b16 %v2211
        %v4126 = vunpack.c.h.b16 %v2211
        %v4127 = vunpack.c.l.b16 %v2212
        %v4128 = vunpack.c.h.b16 %v2212
        %v4129 = vunpack.c.l.b16 %v2213
        %v4130 = vunpack.c.h.b16 %v2213
        %v4131 = vunpack.c.l.b16 %v2214
        %v4132 = vunpack.c.h.b16 %v2214
        %v4133 = vunpack.c.l.b16 %v2215
        %v4134 = vunpack.c.h.b16 %v2215
        %v4135 = vunpack.c.l.b16 %v2216
        %v4136 = vunpack.c.h.b16 %v2216
        %v4137 = vunpack.c.l.b16 %v2217
        %v4138 = vunpack.c.h.b16 %v2217
        %v4139 = vunpack.c.l.b16 %v2218
        %v4140 = vunpack.c.h.b16 %v2218
        %v4141 = vunpack.c.l.b16 %v2219
        %v4142 = vunpack.c.h.b16 %v2219
        %v4143 = vunpack.c.l.b16 %v2220
        %v4144 = vunpack.c.h.b16 %v2220
        %v4145 = vunpack.c.l.b16 %v2221
        %v4146 = vunpack.c.h.b16 %v2221
        %v4147 = vunpack.c.l.b16 %v2222
        %v4148 = vunpack.c.h.b16 %v2222
        %v4149 = vunpack.c.l.b16 %v2223
        %v4150 = vunpack.c.h.b16 %v2223
        %v4151 = vunpack.c.l.b16 %v2224
        %v4152 = vunpack.c.h.b16 %v2224
        %v4153 = vunpack.c.l.b16 %v2225
        %v4154 = vunpack.c.h.b16 %v2225
        %v4155 = vunpack.c.l.b16 %v2226
        %v4156 = vunpack.c.h.b16 %v2226
        %v4157 = vunpack.c.l.b16 %v2227
        %v4158 = vunpack.c.h.b16 %v2227
        %v4159 = vunpack.c.l.b16 %v2228
        %v4160 = vunpack.c.h.b16 %v2228
        %v4161 = vunpack.c.l.b16 %v2229
        %v4162 = vunpack.c.h.b16 %v2229
        %v4163 = vunpack.c.l.b16 %v2230
        %v4164 = vunpack.c.h.b16 %v2230
        %v4165 = vunpack.c.l.b16 %v2231
        %v4166 = vunpack.c.h.b16 %v2231
        %v4167 = vunpack.c.l.b16 %v2232
        %v4168 = vunpack.c.h.b16 %v2232
        %v4169 = vunpack.c.l.b16 %v2233
        %v4170 = vunpack.c.h.b16 %v2233
        %v4171 = vunpack.c.l.b16 %v2234
        %v4172 = vunpack.c.h.b16 %v2234
        %v4173 = vunpack.c.l.b16 %v2235
        %v4174 = vunpack.c.h.b16 %v2235
        %v4175 = vunpack.c.l.b16 %v2236
        %v4176 = vunpack.c.h.b16 %v2236
        %v4177 = vunpack.c.l.b16 %v2237
        %v4178 = vunpack.c.h.b16 %v2237
        %v4179 = vunpack.c.l.b16 %v2238
        %v4180 = vunpack.c.h.b16 %v2238
        %v4181 = vunpack.c.l.b16 %v2239
        %v4182 = vunpack.c.h.b16 %v2239
        %v4183 = vunpack.c.l.b16 %v2240
        %v4184 = vunpack.c.h.b16 %v2240
        %v4185 = vunpack.c.l.b16 %v2241
        %v4186 = vunpack.c.h.b16 %v2241
        %v4187 = vunpack.c.l.b16 %v2242
        %v4188 = vunpack.c.h.b16 %v2242
        %v4189 = vunpack.c.l.b16 %v2243
        %v4190 = vunpack.c.h.b16 %v2243
        %v4191 = vunpack.c.l.b16 %v2244
        %v4192 = vunpack.c.h.b16 %v2244
        %v4193 = vunpack.c.l.b16 %v2245
        %v4194 = vunpack.c.h.b16 %v2245
        %v4195 = vunpack.c.l.b16 %v2246
        %v4196 = vunpack.c.h.b16 %v2246
        %v4197 = vunpack.c.l.b16 %v2247
        %v4198 = vunpack.c.h.b16 %v2247
        %v4199 = vunpack.c.l.b16 %v2248
        %v4200 = vunpack.c.h.b16 %v2248
        %v4201 = vunpack.c.l.b16 %v2249
        %v4202 = vunpack.c.h.b16 %v2249
        %v4203 = vunpack.c.l.b16 %v2250
        %v4204 = vunpack.c.h.b16 %v2250
        %v4205 = vunpack.c.l.b16 %v2251
        %v4206 = vunpack.c.h.b16 %v2251
        %v4207 = vunpack.c.l.b16 %v2252
        %v4208 = vunpack.c.h.b16 %v2252
        %v4209 = vunpack.c.l.b16 %v2253
        %v4210 = vunpack.c.h.b16 %v2253
        %v4211 = vunpack.c.l.b16 %v2254
        %v4212 = vunpack.c.h.b16 %v2254
        %v4213 = vunpack.c.l.b16 %v2255
        %v4214 = vunpack.c.h.b16 %v2255
        %v4215 = vunpack.c.l.b16 %v2256
        %v4216 = vunpack.c.h.b16 %v2256
        %v4217 = vunpack.c.l.b16 %v2257
        %v4218 = vunpack.c.h.b16 %v2257
        %v4219 = vunpack.c.l.b16 %v2258
        %v4220 = vunpack.c.h.b16 %v2258
        %v4221 = vunpack.c.l.b16 %v2259
        %v4222 = vunpack.c.h.b16 %v2259
        %v4223 = vunpack.c.l.b16 %v2260
        %v4224 = vunpack.c.h.b16 %v2260
        %v4225 = vunpack.c.l.b16 %v2261
        %v4226 = vunpack.c.h.b16 %v2261
        %v4227 = vunpack.c.l.b16 %v2262
        %v4228 = vunpack.c.h.b16 %v2262
        %v4229 = vunpack.c.l.b16 %v2263
        %v4230 = vunpack.c.h.b16 %v2263
        %v4231 = vunpack.c.l.b16 %v2264
        %v4232 = vunpack.c.h.b16 %v2264
        %v4233 = vunpack.c.l.b16 %v2265
        %v4234 = vunpack.c.h.b16 %v2265
        %v4235 = vunpack.c.l.b16 %v2266
        %v4236 = vunpack.c.h.b16 %v2266
        %v4237 = vunpack.c.l.b16 %v2267
        %v4238 = vunpack.c.h.b16 %v2267
        %v4239 = vunpack.c.l.b16 %v2268
        %v4240 = vunpack.c.h.b16 %v2268
        %v4241 = vunpack.c.l.b16 %v2269
        %v4242 = vunpack.c.h.b16 %v2269
        %v4243 = vunpack.c.l.b16 %v2270
        %v4244 = vunpack.c.h.b16 %v2270
        %v4245 = vunpack.c.l.b16 %v2271
        %v4246 = vunpack.c.h.b16 %v2271
        %v4247 = vunpack.c.l.b16 %v2272
        %v4248 = vunpack.c.h.b16 %v2272
        %v4249 = vunpack.c.l.b16 %v2273
        %v4250 = vunpack.c.h.b16 %v2273
        %v4251 = vunpack.c.l.b16 %v2274
        %v4252 = vunpack.c.h.b16 %v2274
        %v4253 = vunpack.c.l.b16 %v2275
        %v4254 = vunpack.c.h.b16 %v2275
        %v4255 = vunpack.c.l.b16 %v2276
        %v4256 = vunpack.c.h.b16 %v2276
        %v4257 = vunpack.c.l.b16 %v2277
        %v4258 = vunpack.c.h.b16 %v2277
        %v4259 = vunpack.c.l.b16 %v2278
        %v4260 = vunpack.c.h.b16 %v2278
        %v4261 = vunpack.c.l.b16 %v2279
        %v4262 = vunpack.c.h.b16 %v2279
        %v4263 = vunpack.c.l.b16 %v2280
        %v4264 = vunpack.c.h.b16 %v2280
        %v4265 = vunpack.c.l.b16 %v2281
        %v4266 = vunpack.c.h.b16 %v2281
        %v4267 = vunpack.c.l.b16 %v2282
        %v4268 = vunpack.c.h.b16 %v2282
        %v4269 = vunpack.c.l.b16 %v2283
        %v4270 = vunpack.c.h.b16 %v2283
        %v4271 = vunpack.c.l.b16 %v2284
        %v4272 = vunpack.c.h.b16 %v2284
        %v4273 = vunpack.c.l.b16 %v2285
        %v4274 = vunpack.c.h.b16 %v2285
        %v4275 = vunpack.c.l.b16 %v2286
        %v4276 = vunpack.c.h.b16 %v2286
        %v4277 = vunpack.c.l.b16 %v2287
        %v4278 = vunpack.c.h.b16 %v2287
        %v4279 = vunpack.c.l.b16 %v2288
        %v4280 = vunpack.c.h.b16 %v2288
        %v4281 = vunpack.c.l.b16 %v2289
        %v4282 = vunpack.c.h.b16 %v2289
        %v4283 = vunpack.c.l.b16 %v2290
        %v4284 = vunpack.c.h.b16 %v2290
        %v4285 = vunpack.c.l.b16 %v2291
        %v4286 = vunpack.c.h.b16 %v2291
        %v4287 = vunpack.c.l.b16 %v2292
        %v4288 = vunpack.c.h.b16 %v2292
        %v4289 = vunpack.c.l.b16 %v2293
        %v4290 = vunpack.c.h.b16 %v2293
        %v4291 = vunpack.c.l.b16 %v2294
        %v4292 = vunpack.c.h.b16 %v2294
        %v4293 = vunpack.c.l.b16 %v2295
        %v4294 = vunpack.c.h.b16 %v2295
        %v4295 = vunpack.c.l.b16 %v2296
        %v4296 = vunpack.c.h.b16 %v2296
        %v4297 = vunpack.c.l.b16 %v2297
        %v4298 = vunpack.c.h.b16 %v2297
        %v4299 = vunpack.c.l.b16 %v2298
        %v4300 = vunpack.c.h.b16 %v2298
        %v4301 = vunpack.c.l.b16 %v2299
        %v4302 = vunpack.c.h.b16 %v2299
        %v4303 = vunpack.c.l.b16 %v2300
        %v4304 = vunpack.c.h.b16 %v2300
        %v4305 = vunpack.c.l.b16 %v2301
        %v4306 = vunpack.c.h.b16 %v2301
        %v4307 = vunpack.c.l.b16 %v2302
        %v4308 = vunpack.c.h.b16 %v2302
        %v4309 = vunpack.c.l.b16 %v2303
        %v4310 = vunpack.c.h.b16 %v2303
        %v4311 = vunpack.c.l.b16 %v2304
        %v4312 = vunpack.c.h.b16 %v2304
        %v4313 = vunpack.c.l.b16 %v2305
        %v4314 = vunpack.c.h.b16 %v2305
        %v4315 = vunpack.c.l.b16 %v2306
        %v4316 = vunpack.c.h.b16 %v2306
        %v4317 = vunpack.c.l.b16 %v2307
        %v4318 = vunpack.c.h.b16 %v2307
        %v4319 = vunpack.c.l.b16 %v2308
        %v4320 = vunpack.c.h.b16 %v2308
        %v4321 = vunpack.c.l.b16 %v2309
        %v4322 = vunpack.c.h.b16 %v2309
        %v4323 = vunpack.c.l.b16 %v2310
        %v4324 = vunpack.c.h.b16 %v2310
        %v4325 = vunpack.c.l.b16 %v2311
        %v4326 = vunpack.c.h.b16 %v2311
        %v4327 = vunpack.c.l.b16 %v2312
        %v4328 = vunpack.c.h.b16 %v2312
        %v4329 = vunpack.c.l.b16 %v2313
        %v4330 = vunpack.c.h.b16 %v2313
        %v4331 = vunpack.c.l.b16 %v2314
        %v4332 = vunpack.c.h.b16 %v2314
        %v4333 = vunpack.c.l.b16 %v2315
        %v4334 = vunpack.c.h.b16 %v2315
        %v4335 = vunpack.c.l.b16 %v2316
        %v4336 = vunpack.c.h.b16 %v2316
        %v4337 = vunpack.c.l.b16 %v2317
        %v4338 = vunpack.c.h.b16 %v2317
        %v4339 = vunpack.c.l.b16 %v2318
        %v4340 = vunpack.c.h.b16 %v2318
        %v4341 = vunpack.c.l.b16 %v2319
        %v4342 = vunpack.c.h.b16 %v2319
        %v4343 = vunpack.c.l.b16 %v2320
        %v4344 = vunpack.c.h.b16 %v2320
        %v4345 = vunpack.c.l.b16 %v2321
        %v4346 = vunpack.c.h.b16 %v2321
        %v4347 = vunpack.c.l.b16 %v2322
        %v4348 = vunpack.c.h.b16 %v2322
        %v4349 = vunpack.c.l.b16 %v2323
        %v4350 = vunpack.c.h.b16 %v2323
        %v4351 = vunpack.c.l.b16 %v2324
        %v4352 = vunpack.c.h.b16 %v2324
        %v4353 = vunpack.c.l.b16 %v2325
        %v4354 = vunpack.c.h.b16 %v2325
        %v4355 = vunpack.c.l.b16 %v2326
        %v4356 = vunpack.c.h.b16 %v2326
        %v4357 = vunpack.c.l.b16 %v2327
        %v4358 = vunpack.c.h.b16 %v2327
        %v4359 = vunpack.c.l.b16 %v2328
        %v4360 = vunpack.c.h.b16 %v2328
        %v4361 = vunpack.c.l.b16 %v2329
        %v4362 = vunpack.c.h.b16 %v2329
        %v4363 = vunpack.c.l.b16 %v2330
        %v4364 = vunpack.c.h.b16 %v2330
        %v4365 = vunpack.c.l.b16 %v2331
        %v4366 = vunpack.c.h.b16 %v2331
        %v4367 = vunpack.c.l.b16 %v2332
        %v4368 = vunpack.c.h.b16 %v2332
        %v4369 = vunpack.c.l.b16 %v2333
        %v4370 = vunpack.c.h.b16 %v2333
        %v4371 = vunpack.c.l.b16 %v2334
        %v4372 = vunpack.c.h.b16 %v2334
        %v4373 = vunpack.c.l.b16 %v2335
        %v4374 = vunpack.c.h.b16 %v2335
        %v4375 = vunpack.c.l.b16 %v2336
        %v4376 = vunpack.c.h.b16 %v2336
        %v4377 = vunpack.c.l.b16 %v2337
        %v4378 = vunpack.c.h.b16 %v2337
        %v4379 = vunpack.c.l.b16 %v2338
        %v4380 = vunpack.c.h.b16 %v2338
        %v4381 = vunpack.c.l.b16 %v2339
        %v4382 = vunpack.c.h.b16 %v2339
        %v4383 = vunpack.c.l.b16 %v2340
        %v4384 = vunpack.c.h.b16 %v2340
        %v4385 = vunpack.c.l.b16 %v2341
        %v4386 = vunpack.c.h.b16 %v2341
        %v4387 = vunpack.c.l.b16 %v2342
        %v4388 = vunpack.c.h.b16 %v2342
        %v4389 = vunpack.c.l.b16 %v2343
        %v4390 = vunpack.c.h.b16 %v2343
        %v4391 = vunpack.c.l.b16 %v2344
        %v4392 = vunpack.c.h.b16 %v2344
        %v4393 = vunpack.c.l.b16 %v2345
        %v4394 = vunpack.c.h.b16 %v2345
        %v4395 = vunpack.c.l.b16 %v2346
        %v4396 = vunpack.c.h.b16 %v2346
        %v4397 = vunpack.c.l.b16 %v2347
        %v4398 = vunpack.c.h.b16 %v2347
        %v4399 = vunpack.c.l.b16 %v2348
        %v4400 = vunpack.c.h.b16 %v2348
        %v4401 = vunpack.c.l.b16 %v2349
        %v4402 = vunpack.c.h.b16 %v2349
        %v4403 = vunpack.c.l.b16 %v2350
        %v4404 = vunpack.c.h.b16 %v2350
        %v4405 = vunpack.c.l.b16 %v2351
        %v4406 = vunpack.c.h.b16 %v2351
        %v4407 = vunpack.c.l.b16 %v2352
        %v4408 = vunpack.c.h.b16 %v2352
        %v4409 = vunpack.c.l.b16 %v2353
        %v4410 = vunpack.c.h.b16 %v2353
        %v4411 = vunpack.c.l.b16 %v2354
        %v4412 = vunpack.c.h.b16 %v2354
        %v4413 = vunpack.c.l.b16 %v2355
        %v4414 = vunpack.c.h.b16 %v2355
        %v4415 = vunpack.c.l.b16 %v2356
        %v4416 = vunpack.c.h.b16 %v2356
        %v4417 = vunpack.c.l.b16 %v2357
        %v4418 = vunpack.c.h.b16 %v2357
        %v4419 = vunpack.c.l.b16 %v2358
        %v4420 = vunpack.c.h.b16 %v2358
        %v4421 = vunpack.c.l.b16 %v2359
        %v4422 = vunpack.c.h.b16 %v2359
        %v4423 = vunpack.c.l.b16 %v2360
        %v4424 = vunpack.c.h.b16 %v2360
        %v4425 = vunpack.c.l.b16 %v2361
        %v4426 = vunpack.c.h.b16 %v2361
        %v4427 = vunpack.c.l.b16 %v2362
        %v4428 = vunpack.c.h.b16 %v2362
        %v4429 = vunpack.c.l.b16 %v2363
        %v4430 = vunpack.c.h.b16 %v2363
        %v4431 = vunpack.c.l.b16 %v2364
        %v4432 = vunpack.c.h.b16 %v2364
        %v4433 = vunpack.c.l.b16 %v2365
        %v4434 = vunpack.c.h.b16 %v2365
        %v4435 = vunpack.c.l.b16 %v2366
        %v4436 = vunpack.c.h.b16 %v2366
        %v4437 = vunpack.c.l.b16 %v2367
        %v4438 = vunpack.c.h.b16 %v2367
        %v4439 = vunpack.c.l.b16 %v2368
        %v4440 = vunpack.c.h.b16 %v2368
        %v4441 = vunpack.c.l.b16 %v2369
        %v4442 = vunpack.c.h.b16 %v2369
        %v4443 = vunpack.c.l.b16 %v2370
        %v4444 = vunpack.c.h.b16 %v2370
        %v4445 = vunpack.c.l.b16 %v2371
        %v4446 = vunpack.c.h.b16 %v2371
        %v4447 = vunpack.c.l.b16 %v2372
        %v4448 = vunpack.c.h.b16 %v2372
        %v4449 = vunpack.c.l.b16 %v2373
        %v4450 = vunpack.c.h.b16 %v2373
        %v4451 = vunpack.c.l.b16 %v2374
        %v4452 = vunpack.c.h.b16 %v2374
        %v4453 = vunpack.c.l.b16 %v2375
        %v4454 = vunpack.c.h.b16 %v2375
        %v4455 = vunpack.c.l.b16 %v2376
        %v4456 = vunpack.c.h.b16 %v2376
        %v4457 = vunpack.c.l.b16 %v2377
        %v4458 = vunpack.c.h.b16 %v2377
        %v4459 = vunpack.c.l.b16 %v2378
        %v4460 = vunpack.c.h.b16 %v2378
        %v4461 = vunpack.c.l.b16 %v2379
        %v4462 = vunpack.c.h.b16 %v2379
        %v4463 = vunpack.c.l.b16 %v2380
        %v4464 = vunpack.c.h.b16 %v2380
        %v4465 = vunpack.c.l.b16 %v2381
        %v4466 = vunpack.c.h.b16 %v2381
        %v4467 = vunpack.c.l.b16 %v2382
        %v4468 = vunpack.c.h.b16 %v2382
        %v4469 = vunpack.c.l.b16 %v2383
        %v4470 = vunpack.c.h.b16 %v2383
        %v4471 = vunpack.c.l.b16 %v2384
        %v4472 = vunpack.c.h.b16 %v2384
        %v4473 = vunpack.c.l.b16 %v2385
        %v4474 = vunpack.c.h.b16 %v2385
        %v4475 = vunpack.c.l.b16 %v2386
        %v4476 = vunpack.c.h.b16 %v2386
        %v4477 = vunpack.c.l.b16 %v2387
        %v4478 = vunpack.c.h.b16 %v2387
        %v4479 = vunpack.c.l.b16 %v2388
        %v4480 = vunpack.c.h.b16 %v2388
        %v4481 = vunpack.c.l.b16 %v2389
        %v4482 = vunpack.c.h.b16 %v2389
        %v4483 = vunpack.c.l.b16 %v2390
        %v4484 = vunpack.c.h.b16 %v2390
        %v4485 = vunpack.c.l.b16 %v2391
        %v4486 = vunpack.c.h.b16 %v2391
        %v4487 = vunpack.c.l.b16 %v2392
        %v4488 = vunpack.c.h.b16 %v2392
        %v4489 = vunpack.c.l.b16 %v2393
        %v4490 = vunpack.c.h.b16 %v2393
        %v4491 = vunpack.c.l.b16 %v2394
        %v4492 = vunpack.c.h.b16 %v2394
        %v4493 = vunpack.c.l.b16 %v2395
        %v4494 = vunpack.c.h.b16 %v2395
        %v4495 = vunpack.c.l.b16 %v2396
        %v4496 = vunpack.c.h.b16 %v2396
        %v4497 = vunpack.c.l.b16 %v2397
        %v4498 = vunpack.c.h.b16 %v2397
        %v4499 = vunpack.c.l.b16 %v2398
        %v4500 = vunpack.c.h.b16 %v2398
        %v4501 = vunpack.c.l.b16 %v2399
        %v4502 = vunpack.c.h.b16 %v2399
        %v4503 = vunpack.c.l.b16 %v2400
        %v4504 = vunpack.c.h.b16 %v2400
        %v4505 = vunpack.c.l.b16 %v2401
        %v4506 = vunpack.c.h.b16 %v2401
        %v4507 = vunpack.c.l.b16 %v2402
        %v4508 = vunpack.c.h.b16 %v2402
        %v4509 = vunpack.c.l.b16 %v2403
        %v4510 = vunpack.c.h.b16 %v2403
        %v4511 = vunpack.c.l.b16 %v2404
        %v4512 = vunpack.c.h.b16 %v2404
        %v4513 = vunpack.c.l.b16 %v2405
        %v4514 = vunpack.c.h.b16 %v2405
        %v4515 = vunpack.c.l.b16 %v2406
        %v4516 = vunpack.c.h.b16 %v2406
        %v4517 = vunpack.c.l.b16 %v2407
        %v4518 = vunpack.c.h.b16 %v2407
        %v4519 = vunpack.c.l.b16 %v2408
        %v4520 = vunpack.c.h.b16 %v2408
        %v4521 = vunpack.c.l.b16 %v2409
        %v4522 = vunpack.c.h.b16 %v2409
        %v4523 = vunpack.c.l.b16 %v2410
        %v4524 = vunpack.c.h.b16 %v2410
        %v4525 = vunpack.c.l.b16 %v2411
        %v4526 = vunpack.c.h.b16 %v2411
        %v4527 = vunpack.c.l.b16 %v2412
        %v4528 = vunpack.c.h.b16 %v2412
        %v4529 = vunpack.c.l.b16 %v2413
        %v4530 = vunpack.c.h.b16 %v2413
        %v4531 = vunpack.c.l.b16 %v2414
        %v4532 = vunpack.c.h.b16 %v2414
        %v4533 = vunpack.c.l.b16 %v2415
        %v4534 = vunpack.c.h.b16 %v2415
        %v4535 = vunpack.c.l.b16 %v2416
        %v4536 = vunpack.c.h.b16 %v2416
        %v4537 = vunpack.c.l.b16 %v2417
        %v4538 = vunpack.c.h.b16 %v2417
        %v4539 = vunpack.c.l.b16 %v2418
        %v4540 = vunpack.c.h.b16 %v2418
        %v4541 = vunpack.c.l.b16 %v2419
        %v4542 = vunpack.c.h.b16 %v2419
        %v4543 = vunpack.c.l.b16 %v2420
        %v4544 = vunpack.c.h.b16 %v2420
        %v4545 = vunpack.c.l.b16 %v2421
        %v4546 = vunpack.c.h.b16 %v2421
        %v4547 = vunpack.c.l.b16 %v2422
        %v4548 = vunpack.c.h.b16 %v2422
        %v4549 = vpack.c.b16 %v3201, %v3197
        %v4550 = vpack.c.b16 %v3202, %v3198
        %v4551 = vpack.c.b16 %v3203, %v3199
        %v4552 = vpack.c.b16 %v3204, %v3200
        %v4553 = vpack.c.b16 %v3209, %v3205
        %v4554 = vpack.c.b16 %v3210, %v3206
        %v4555 = vpack.c.b16 %v3211, %v3207
        %v4556 = vpack.c.b16 %v3212, %v3208
        %v4557 = vpack.c.b16 %v3217, %v3213
        %v4558 = vpack.c.b16 %v3218, %v3214
        %v4559 = vpack.c.b16 %v3219, %v3215
        %v4560 = vpack.c.b16 %v3220, %v3216
        %v4561 = vpack.c.b16 %v3225, %v3221
        %v4562 = vpack.c.b16 %v3226, %v3222
        %v4563 = vpack.c.b16 %v3227, %v3223
        %v4564 = vpack.c.b16 %v3228, %v3224
        %v4565 = vpack.c.b16 %v3233, %v3229
        %v4566 = vpack.c.b16 %v3234, %v3230
        %v4567 = vpack.c.b16 %v3235, %v3231
        %v4568 = vpack.c.b16 %v3236, %v3232
        %v4569 = vpack.c.b16 %v3241, %v3237
        %v4570 = vpack.c.b16 %v3242, %v3238
        %v4571 = vpack.c.b16 %v3243, %v3239
        %v4572 = vpack.c.b16 %v3244, %v3240
        %v4573 = vpack.c.b16 %v3249, %v3245
        %v4574 = vpack.c.b16 %v3250, %v3246
        %v4575 = vpack.c.b16 %v3251, %v3247
        %v4576 = vpack.c.b16 %v3252, %v3248
        %v4577 = vpack.c.b16 %v3257, %v3253
        %v4578 = vpack.c.b16 %v3258, %v3254
        %v4579 = vpack.c.b16 %v3259, %v3255
        %v4580 = vpack.c.b16 %v3260, %v3256
        %v4581 = vpack.c.b16 %v3265, %v3261
        %v4582 = vpack.c.b16 %v3266, %v3262
        %v4583 = vpack.c.b16 %v3267, %v3263
        %v4584 = vpack.c.b16 %v3268, %v3264
        %v4585 = vpack.c.b16 %v3273, %v3269
        %v4586 = vpack.c.b16 %v3274, %v3270
        %v4587 = vpack.c.b16 %v3275, %v3271
        %v4588 = vpack.c.b16 %v3276, %v3272
        %v4589 = vpack.c.b16 %v3281, %v3277
        %v4590 = vpack.c.b16 %v3282, %v3278
        %v4591 = vpack.c.b16 %v3283, %v3279
        %v4592 = vpack.c.b16 %v3284, %v3280
        %v4593 = vpack.c.b16 %v3289, %v3285
        %v4594 = vpack.c.b16 %v3290, %v3286
        %v4595 = vpack.c.b16 %v3291, %v3287
        %v4596 = vpack.c.b16 %v3292, %v3288
        %v4597 = vpack.c.b16 %v3297, %v3293
        %v4598 = vpack.c.b16 %v3298, %v3294
        %v4599 = vpack.c.b16 %v3299, %v3295
        %v4600 = vpack.c.b16 %v3300, %v3296
        %v4601 = vpack.c.b16 %v3305, %v3301
        %v4602 = vpack.c.b16 %v3306, %v3302
        %v4603 = vpack.c.b16 %v3307, %v3303
        %v4604 = vpack.c.b16 %v3308, %v3304
        %v4605 = vpack.c.b16 %v3313, %v3309
        %v4606 = vpack.c.b16 %v3314, %v3310
        %v4607 = vpack.c.b16 %v3315, %v3311
        %v4608 = vpack.c.b16 %v3316, %v3312
        %v4609 = vpack.c.b16 %v3321, %v3317
        %v4610 = vpack.c.b16 %v3322, %v3318
        %v4611 = vpack.c.b16 %v3323, %v3319
        %v4612 = vpack.c.b16 %v3324, %v3320
        %v4613 = vpack.c.b16 %v3329, %v3325
        %v4614 = vpack.c.b16 %v3330, %v3326
        %v4615 = vpack.c.b16 %v3331, %v3327
        %v4616 = vpack.c.b16 %v3332, %v3328
        %v4617 = vpack.c.b16 %v3337, %v3333
        %v4618 = vpack.c.b16 %v3338, %v3334
        %v4619 = vpack.c.b16 %v3339, %v3335
        %v4620 = vpack.c.b16 %v3340, %v3336
        %v4621 = vpack.c.b16 %v3345, %v3341
        %v4622 = vpack.c.b16 %v3346, %v3342
        %v4623 = vpack.c.b16 %v3347, %v3343
        %v4624 = vpack.c.b16 %v3348, %v3344
        %v4625 = vpack.c.b16 %v3353, %v3349
        %v4626 = vpack.c.b16 %v3354, %v3350
        %v4627 = vpack.c.b16 %v3355, %v3351
        %v4628 = vpack.c.b16 %v3356, %v3352
        %v4629 = vpack.c.b16 %v3361, %v3357
        %v4630 = vpack.c.b16 %v3362, %v3358
        %v4631 = vpack.c.b16 %v3363, %v3359
        %v4632 = vpack.c.b16 %v3364, %v3360
        %v4633 = vpack.c.b16 %v3369, %v3365
        %v4634 = vpack.c.b16 %v3370, %v3366
        %v4635 = vpack.c.b16 %v3371, %v3367
        %v4636 = vpack.c.b16 %v3372, %v3368
        %v4637 = vpack.c.b16 %v3377, %v3373
        %v4638 = vpack.c.b16 %v3378, %v3374
        %v4639 = vpack.c.b16 %v3379, %v3375
        %v4640 = vpack.c.b16 %v3380, %v3376
        %v4641 = vpack.c.b16 %v3385, %v3381
        %v4642 = vpack.c.b16 %v3386, %v3382
        %v4643 = vpack.c.b16 %v3387, %v3383
        %v4644 = vpack.c.b16 %v3388, %v3384
        %v4645 = vpack.c.b16 %v3393, %v3389
        %v4646 = vpack.c.b16 %v3394, %v3390
        %v4647 = vpack.c.b16 %v3395, %v3391
        %v4648 = vpack.c.b16 %v3396, %v3392
        %v4649 = vpack.c.b16 %v3401, %v3397
        %v4650 = vpack.c.b16 %v3402, %v3398
        %v4651 = vpack.c.b16 %v3403, %v3399
        %v4652 = vpack.c.b16 %v3404, %v3400
        %v4653 = vpack.c.b16 %v3409, %v3405
        %v4654 = vpack.c.b16 %v3410, %v3406
        %v4655 = vpack.c.b16 %v3411, %v3407
        %v4656 = vpack.c.b16 %v3412, %v3408
        %v4657 = vpack.c.b16 %v3417, %v3413
        %v4658 = vpack.c.b16 %v3418, %v3414
        %v4659 = vpack.c.b16 %v3419, %v3415
        %v4660 = vpack.c.b16 %v3420, %v3416
        %v4661 = vpack.c.b16 %v3425, %v3421
        %v4662 = vpack.c.b16 %v3426, %v3422
        %v4663 = vpack.c.b16 %v3427, %v3423
        %v4664 = vpack.c.b16 %v3428, %v3424
        %v4665 = vpack.c.b16 %v3433, %v3429
        %v4666 = vpack.c.b16 %v3434, %v3430
        %v4667 = vpack.c.b16 %v3435, %v3431
        %v4668 = vpack.c.b16 %v3436, %v3432
        %v4669 = vpack.c.b16 %v3441, %v3437
        %v4670 = vpack.c.b16 %v3442, %v3438
        %v4671 = vpack.c.b16 %v3443, %v3439
        %v4672 = vpack.c.b16 %v3444, %v3440
        %v4673 = vpack.c.b16 %v3449, %v3445
        %v4674 = vpack.c.b16 %v3450, %v3446
        %v4675 = vpack.c.b16 %v3451, %v3447
        %v4676 = vpack.c.b16 %v3452, %v3448
        %v4677 = vpack.c.b16 %v3457, %v3453
        %v4678 = vpack.c.b16 %v3458, %v3454
        %v4679 = vpack.c.b16 %v3459, %v3455
        %v4680 = vpack.c.b16 %v3460, %v3456
        %v4681 = vpack.c.b16 %v3465, %v3461
        %v4682 = vpack.c.b16 %v3466, %v3462
        %v4683 = vpack.c.b16 %v3467, %v3463
        %v4684 = vpack.c.b16 %v3468, %v3464
        %v4685 = vpack.c.b16 %v3473, %v3469
        %v4686 = vpack.c.b16 %v3474, %v3470
        %v4687 = vpack.c.b16 %v3475, %v3471
        %v4688 = vpack.c.b16 %v3476, %v3472
        %v4689 = vpack.c.b16 %v3481, %v3477
        %v4690 = vpack.c.b16 %v3482, %v3478
        %v4691 = vpack.c.b16 %v3483, %v3479
        %v4692 = vpack.c.b16 %v3484, %v3480
        %v4693 = vpack.c.b16 %v3489, %v3485
        %v4694 = vpack.c.b16 %v3490, %v3486
        %v4695 = vpack.c.b16 %v3491, %v3487
        %v4696 = vpack.c.b16 %v3492, %v3488
        %v4697 = vpack.c.b16 %v3497, %v3493
        %v4698 = vpack.c.b16 %v3498, %v3494
        %v4699 = vpack.c.b16 %v3499, %v3495
        %v4700 = vpack.c.b16 %v3500, %v3496
        %v4701 = vpack.c.b16 %v3505, %v3501
        %v4702 = vpack.c.b16 %v3506, %v3502
        %v4703 = vpack.c.b16 %v3507, %v3503
        %v4704 = vpack.c.b16 %v3508, %v3504
        %v4705 = vpack.c.b16 %v3513, %v3509
        %v4706 = vpack.c.b16 %v3514, %v3510
        %v4707 = vpack.c.b16 %v3515, %v3511
        %v4708 = vpack.c.b16 %v3516, %v3512
        %v4709 = vpack.c.b16 %v3521, %v3517
        %v4710 = vpack.c.b16 %v3522, %v3518
        %v4711 = vpack.c.b16 %v3523, %v3519
        %v4712 = vpack.c.b16 %v3524, %v3520
        %v4713 = vpack.c.b16 %v3529, %v3525
        %v4714 = vpack.c.b16 %v3530, %v3526
        %v4715 = vpack.c.b16 %v3531, %v3527
        %v4716 = vpack.c.b16 %v3532, %v3528
        %v4717 = vpack.c.b16 %v3537, %v3533
        %v4718 = vpack.c.b16 %v3538, %v3534
        %v4719 = vpack.c.b16 %v3539, %v3535
        %v4720 = vpack.c.b16 %v3540, %v3536
        %v4721 = vpack.c.b16 %v3545, %v3541
        %v4722 = vpack.c.b16 %v3546, %v3542
        %v4723 = vpack.c.b16 %v3547, %v3543
        %v4724 = vpack.c.b16 %v3548, %v3544
        %v4725 = vpack.c.b16 %v3553, %v3549
        %v4726 = vpack.c.b16 %v3554, %v3550
        %v4727 = vpack.c.b16 %v3555, %v3551
        %v4728 = vpack.c.b16 %v3556, %v3552
        %v4729 = vpack.c.b16 %v3561, %v3557
        %v4730 = vpack.c.b16 %v3562, %v3558
        %v4731 = vpack.c.b16 %v3563, %v3559
        %v4732 = vpack.c.b16 %v3564, %v3560
        %v4733 = vpack.c.b16 %v3569, %v3565
        %v4734 = vpack.c.b16 %v3570, %v3566
        %v4735 = vpack.c.b16 %v3571, %v3567
        %v4736 = vpack.c.b16 %v3572, %v3568
        %v4737 = vpack.c.b16 %v3577, %v3573
        %v4738 = vpack.c.b16 %v3578, %v3574
        %v4739 = vpack.c.b16 %v3579, %v3575
        %v4740 = vpack.c.b16 %v3580, %v3576
        %v4741 = vpack.c.b16 %v3585, %v3581
        %v4742 = vpack.c.b16 %v3586, %v3582
        %v4743 = vpack.c.b16 %v3587, %v3583
        %v4744 = vpack.c.b16 %v3588, %v3584
        %v4745 = vpack.c.b16 %v3593, %v3589
        %v4746 = vpack.c.b16 %v3594, %v3590
        %v4747 = vpack.c.b16 %v3595, %v3591
        %v4748 = vpack.c.b16 %v3596, %v3592
        %v4749 = vpack.c.b16 %v3601, %v3597
        %v4750 = vpack.c.b16 %v3602, %v3598
        %v4751 = vpack.c.b16 %v3603, %v3599
        %v4752 = vpack.c.b16 %v3604, %v3600
        %v4753 = vpack.c.b16 %v3609, %v3605
        %v4754 = vpack.c.b16 %v3610, %v3606
        %v4755 = vpack.c.b16 %v3611, %v3607
        %v4756 = vpack.c.b16 %v3612, %v3608
        %v4757 = vpack.c.b16 %v3617, %v3613
        %v4758 = vpack.c.b16 %v3618, %v3614
        %v4759 = vpack.c.b16 %v3619, %v3615
        %v4760 = vpack.c.b16 %v3620, %v3616
        %v4761 = vpack.c.b16 %v3625, %v3621
        %v4762 = vpack.c.b16 %v3626, %v3622
        %v4763 = vpack.c.b16 %v3627, %v3623
        %v4764 = vpack.c.b16 %v3628, %v3624
        %v4765 = vpack.c.b16 %v3633, %v3629
        %v4766 = vpack.c.b16 %v3634, %v3630
        %v4767 = vpack.c.b16 %v3635, %v3631
        %v4768 = vpack.c.b16 %v3636, %v3632
        %v4769 = vpack.c.b16 %v3641, %v3637
        %v4770 = vpack.c.b16 %v3642, %v3638
        %v4771 = vpack.c.b16 %v3643, %v3639
        %v4772 = vpack.c.b16 %v3644, %v3640
        %v4773 = vpack.c.b16 %v3649, %v3645
        %v4774 = vpack.c.b16 %v3650, %v3646
        %v4775 = vpack.c.b16 %v3651, %v3647
        %v4776 = vpack.c.b16 %v3652, %v3648
        %v4777 = vpack.c.b16 %v3657, %v3653
        %v4778 = vpack.c.b16 %v3658, %v3654
        %v4779 = vpack.c.b16 %v3659, %v3655
        %v4780 = vpack.c.b16 %v3660, %v3656
        %v4781 = vpack.c.b16 %v3665, %v3661
        %v4782 = vpack.c.b16 %v3666, %v3662
        %v4783 = vpack.c.b16 %v3667, %v3663
        %v4784 = vpack.c.b16 %v3668, %v3664
        %v4785 = vpack.c.b16 %v3673, %v3669
        %v4786 = vpack.c.b16 %v3674, %v3670
        %v4787 = vpack.c.b16 %v3675, %v3671
        %v4788 = vpack.c.b16 %v3676, %v3672
        %v4789 = vpack.c.b16 %v3681, %v3677
        %v4790 = vpack.c.b16 %v3682, %v3678
        %v4791 = vpack.c.b16 %v3683, %v3679
        %v4792 = vpack.c.b16 %v3684, %v3680
        %v4793 = vpack.c.b16 %v3689, %v3685
        %v4794 = vpack.c.b16 %v3690, %v3686
        %v4795 = vpack.c.b16 %v3691, %v3687
        %v4796 = vpack.c.b16 %v3692, %v3688
        %v4797 = vpack.c.b16 %v3697, %v3693
        %v4798 = vpack.c.b16 %v3698, %v3694
        %v4799 = vpack.c.b16 %v3699, %v3695
        %v4800 = vpack.c.b16 %v3700, %v3696
        %v4801 = vpack.c.b16 %v3705, %v3701
        %v4802 = vpack.c.b16 %v3706, %v3702
        %v4803 = vpack.c.b16 %v3707, %v3703
        %v4804 = vpack.c.b16 %v3708, %v3704
        %v4805 = vpack.c.b16 %v3713, %v3709
        %v4806 = vpack.c.b16 %v3714, %v3710
        %v4807 = vpack.c.b16 %v3715, %v3711
        %v4808 = vpack.c.b16 %v3716, %v3712
        %v4809 = vpack.c.b16 %v3721, %v3717
        %v4810 = vpack.c.b16 %v3722, %v3718
        %v4811 = vpack.c.b16 %v3723, %v3719
        %v4812 = vpack.c.b16 %v3724, %v3720
        %v4813 = vpack.c.b16 %v3729, %v3725
        %v4814 = vpack.c.b16 %v3730, %v3726
        %v4815 = vpack.c.b16 %v3731, %v3727
        %v4816 = vpack.c.b16 %v3732, %v3728
        %v4817 = vpack.c.b16 %v3737, %v3733
        %v4818 = vpack.c.b16 %v3738, %v3734
        %v4819 = vpack.c.b16 %v3739, %v3735
        %v4820 = vpack.c.b16 %v3740, %v3736
        %v4821 = vpack.c.b16 %v3745, %v3741
        %v4822 = vpack.c.b16 %v3746, %v3742
        %v4823 = vpack.c.b16 %v3747, %v3743
        %v4824 = vpack.c.b16 %v3748, %v3744
        %v4825 = vpack.c.b16 %v3753, %v3749
        %v4826 = vpack.c.b16 %v3754, %v3750
        %v4827 = vpack.c.b16 %v3755, %v3751
        %v4828 = vpack.c.b16 %v3756, %v3752
        %v4829 = vpack.c.b16 %v3761, %v3757
        %v4830 = vpack.c.b16 %v3762, %v3758
        %v4831 = vpack.c.b16 %v3763, %v3759
        %v4832 = vpack.c.b16 %v3764, %v3760
        %v4833 = vpack.c.b16 %v3769, %v3765
        %v4834 = vpack.c.b16 %v3770, %v3766
        %v4835 = vpack.c.b16 %v3771, %v3767
        %v4836 = vpack.c.b16 %v3772, %v3768
        %v4837 = vpack.c.b16 %v3777, %v3773
        %v4838 = vpack.c.b16 %v3778, %v3774
        %v4839 = vpack.c.b16 %v3779, %v3775
        %v4840 = vpack.c.b16 %v3780, %v3776
        %v4841 = vpack.c.b16 %v3785, %v3781
        %v4842 = vpack.c.b16 %v3786, %v3782
        %v4843 = vpack.c.b16 %v3787, %v3783
        %v4844 = vpack.c.b16 %v3788, %v3784
        %v4845 = vpack.c.b16 %v3793, %v3789
        %v4846 = vpack.c.b16 %v3794, %v3790
        %v4847 = vpack.c.b16 %v3795, %v3791
        %v4848 = vpack.c.b16 %v3796, %v3792
        %v4849 = vpack.c.b16 %v3801, %v3797
        %v4850 = vpack.c.b16 %v3802, %v3798
        %v4851 = vpack.c.b16 %v3803, %v3799
        %v4852 = vpack.c.b16 %v3804, %v3800
        %v4853 = vpack.c.b16 %v3809, %v3805
        %v4854 = vpack.c.b16 %v3810, %v3806
        %v4855 = vpack.c.b16 %v3811, %v3807
        %v4856 = vpack.c.b16 %v3812, %v3808
        %v4857 = vpack.c.b16 %v3817, %v3813
        %v4858 = vpack.c.b16 %v3818, %v3814
        %v4859 = vpack.c.b16 %v3819, %v3815
        %v4860 = vpack.c.b16 %v3820, %v3816
        %v4861 = vpack.c.b16 %v3825, %v3821
        %v4862 = vpack.c.b16 %v3826, %v3822
        %v4863 = vpack.c.b16 %v3827, %v3823
        %v4864 = vpack.c.b16 %v3828, %v3824
        %v4865 = vpack.c.b16 %v3833, %v3829
        %v4866 = vpack.c.b16 %v3834, %v3830
        %v4867 = vpack.c.b16 %v3835, %v3831
        %v4868 = vpack.c.b16 %v3836, %v3832
        %v4869 = vpack.c.b16 %v3841, %v3837
        %v4870 = vpack.c.b16 %v3842, %v3838
        %v4871 = vpack.c.b16 %v3843, %v3839
        %v4872 = vpack.c.b16 %v3844, %v3840
        %v4873 = vpack.c.b16 %v3849, %v3845
        %v4874 = vpack.c.b16 %v3850, %v3846
        %v4875 = vpack.c.b16 %v3851, %v3847
        %v4876 = vpack.c.b16 %v3852, %v3848
        %v4877 = vpack.c.b16 %v3857, %v3853
        %v4878 = vpack.c.b16 %v3858, %v3854
        %v4879 = vpack.c.b16 %v3859, %v3855
        %v4880 = vpack.c.b16 %v3860, %v3856
        %v4881 = vpack.c.b16 %v3865, %v3861
        %v4882 = vpack.c.b16 %v3866, %v3862
        %v4883 = vpack.c.b16 %v3867, %v3863
        %v4884 = vpack.c.b16 %v3868, %v3864
        %v4885 = vpack.c.b16 %v3873, %v3869
        %v4886 = vpack.c.b16 %v3874, %v3870
        %v4887 = vpack.c.b16 %v3875, %v3871
        %v4888 = vpack.c.b16 %v3876, %v3872
        %v4889 = vpack.c.b16 %v3881, %v3877
        %v4890 = vpack.c.b16 %v3882, %v3878
        %v4891 = vpack.c.b16 %v3883, %v3879
        %v4892 = vpack.c.b16 %v3884, %v3880
        %v4893 = vpack.c.b16 %v3889, %v3885
        %v4894 = vpack.c.b16 %v3890, %v3886
        %v4895 = vpack.c.b16 %v3891, %v3887
        %v4896 = vpack.c.b16 %v3892, %v3888
        %v4897 = vpack.c.b16 %v3897, %v3893
        %v4898 = vpack.c.b16 %v3898, %v3894
        %v4899 = vpack.c.b16 %v3899, %v3895
        %v4900 = vpack.c.b16 %v3900, %v3896
        %v4901 = vpack.c.b16 %v3905, %v3901
        %v4902 = vpack.c.b16 %v3906, %v3902
        %v4903 = vpack.c.b16 %v3907, %v3903
        %v4904 = vpack.c.b16 %v3908, %v3904
        %v4905 = vpack.c.b16 %v3913, %v3909
        %v4906 = vpack.c.b16 %v3914, %v3910
        %v4907 = vpack.c.b16 %v3915, %v3911
        %v4908 = vpack.c.b16 %v3916, %v3912
        %v4909 = vpack.c.b16 %v3921, %v3917
        %v4910 = vpack.c.b16 %v3922, %v3918
        %v4911 = vpack.c.b16 %v3923, %v3919
        %v4912 = vpack.c.b16 %v3924, %v3920
        %v4913 = vpack.c.b16 %v3929, %v3925
        %v4914 = vpack.c.b16 %v3930, %v3926
        %v4915 = vpack.c.b16 %v3931, %v3927
        %v4916 = vpack.c.b16 %v3932, %v3928
        %v4917 = vpack.c.b16 %v3937, %v3933
        %v4918 = vpack.c.b16 %v3938, %v3934
        %v4919 = vpack.c.b16 %v3939, %v3935
        %v4920 = vpack.c.b16 %v3940, %v3936
        %v4921 = vpack.c.b16 %v3945, %v3941
        %v4922 = vpack.c.b16 %v3946, %v3942
        %v4923 = vpack.c.b16 %v3947, %v3943
        %v4924 = vpack.c.b16 %v3948, %v3944
        %v4925 = vpack.c.b16 %v3953, %v3949
        %v4926 = vpack.c.b16 %v3954, %v3950
        %v4927 = vpack.c.b16 %v3955, %v3951
        %v4928 = vpack.c.b16 %v3956, %v3952
        %v4929 = vpack.c.b16 %v3961, %v3957
        %v4930 = vpack.c.b16 %v3962, %v3958
        %v4931 = vpack.c.b16 %v3963, %v3959
        %v4932 = vpack.c.b16 %v3964, %v3960
        %v4933 = vpack.c.b16 %v3969, %v3965
        %v4934 = vpack.c.b16 %v3970, %v3966
        %v4935 = vpack.c.b16 %v3971, %v3967
        %v4936 = vpack.c.b16 %v3972, %v3968
        %v4937 = vpack.c.b16 %v3977, %v3973
        %v4938 = vpack.c.b16 %v3978, %v3974
        %v4939 = vpack.c.b16 %v3979, %v3975
        %v4940 = vpack.c.b16 %v3980, %v3976
        %v4941 = vpack.c.b16 %v3985, %v3981
        %v4942 = vpack.c.b16 %v3986, %v3982
        %v4943 = vpack.c.b16 %v3987, %v3983
        %v4944 = vpack.c.b16 %v3988, %v3984
        %v4945 = vpack.c.b16 %v3993, %v3989
        %v4946 = vpack.c.b16 %v3994, %v3990
        %v4947 = vpack.c.b16 %v3995, %v3991
        %v4948 = vpack.c.b16 %v3996, %v3992
        %v4949 = vpack.c.b16 %v4001, %v3997
        %v4950 = vpack.c.b16 %v4002, %v3998
        %v4951 = vpack.c.b16 %v4003, %v3999
        %v4952 = vpack.c.b16 %v4004, %v4000
        %v4953 = vpack.c.b16 %v4009, %v4005
        %v4954 = vpack.c.b16 %v4010, %v4006
        %v4955 = vpack.c.b16 %v4011, %v4007
        %v4956 = vpack.c.b16 %v4012, %v4008
        %v4957 = vpack.c.b16 %v4017, %v4013
        %v4958 = vpack.c.b16 %v4018, %v4014
        %v4959 = vpack.c.b16 %v4019, %v4015
        %v4960 = vpack.c.b16 %v4020, %v4016
        %v4961 = vpack.c.b16 %v4025, %v4021
        %v4962 = vpack.c.b16 %v4026, %v4022
        %v4963 = vpack.c.b16 %v4027, %v4023
        %v4964 = vpack.c.b16 %v4028, %v4024
        %v4965 = vpack.c.b16 %v4033, %v4029
        %v4966 = vpack.c.b16 %v4034, %v4030
        %v4967 = vpack.c.b16 %v4035, %v4031
        %v4968 = vpack.c.b16 %v4036, %v4032
        %v4969 = vpack.c.b16 %v4041, %v4037
        %v4970 = vpack.c.b16 %v4042, %v4038
        %v4971 = vpack.c.b16 %v4043, %v4039
        %v4972 = vpack.c.b16 %v4044, %v4040
        %v4973 = vpack.c.b16 %v4049, %v4045
        %v4974 = vpack.c.b16 %v4050, %v4046
        %v4975 = vpack.c.b16 %v4051, %v4047
        %v4976 = vpack.c.b16 %v4052, %v4048
        %v4977 = vpack.c.b16 %v4057, %v4053
        %v4978 = vpack.c.b16 %v4058, %v4054
        %v4979 = vpack.c.b16 %v4059, %v4055
        %v4980 = vpack.c.b16 %v4060, %v4056
        %v4981 = vpack.c.b16 %v4065, %v4061
        %v4982 = vpack.c.b16 %v4066, %v4062
        %v4983 = vpack.c.b16 %v4067, %v4063
        %v4984 = vpack.c.b16 %v4068, %v4064
        %v4985 = vpack.c.b16 %v4073, %v4069
        %v4986 = vpack.c.b16 %v4074, %v4070
        %v4987 = vpack.c.b16 %v4075, %v4071
        %v4988 = vpack.c.b16 %v4076, %v4072
        %v4989 = vpack.c.b16 %v4081, %v4077
        %v4990 = vpack.c.b16 %v4082, %v4078
        %v4991 = vpack.c.b16 %v4083, %v4079
        %v4992 = vpack.c.b16 %v4084, %v4080
        %v4993 = vpack.c.b16 %v4089, %v4085
        %v4994 = vpack.c.b16 %v4090, %v4086
        %v4995 = vpack.c.b16 %v4091, %v4087
        %v4996 = vpack.c.b16 %v4092, %v4088
        %v4997 = vpack.c.b16 %v4097, %v4093
        %v4998 = vpack.c.b16 %v4098, %v4094
        %v4999 = vpack.c.b16 %v4099, %v4095
        %v5000 = vpack.c.b16 %v4100, %v4096
        %v5001 = vpack.c.b16 %v4105, %v4101
        %v5002 = vpack.c.b16 %v4106, %v4102
        %v5003 = vpack.c.b16 %v4107, %v4103
        %v5004 = vpack.c.b16 %v4108, %v4104
        %v5005 = vpack.c.b16 %v4113, %v4109
        %v5006 = vpack.c.b16 %v4114, %v4110
        %v5007 = vpack.c.b16 %v4115, %v4111
        %v5008 = vpack.c.b16 %v4116, %v4112
        %v5009 = vpack.c.b16 %v4121, %v4117
        %v5010 = vpack.c.b16 %v4122, %v4118
        %v5011 = vpack.c.b16 %v4123, %v4119
        %v5012 = vpack.c.b16 %v4124, %v4120
        %v5013 = vpack.c.b16 %v4129, %v4125
        %v5014 = vpack.c.b16 %v4130, %v4126
        %v5015 = vpack.c.b16 %v4131, %v4127
        %v5016 = vpack.c.b16 %v4132, %v4128
        %v5017 = vpack.c.b16 %v4137, %v4133
        %v5018 = vpack.c.b16 %v4138, %v4134
        %v5019 = vpack.c.b16 %v4139, %v4135
        %v5020 = vpack.c.b16 %v4140, %v4136
        %v5021 = vpack.c.b16 %v4145, %v4141
        %v5022 = vpack.c.b16 %v4146, %v4142
        %v5023 = vpack.c.b16 %v4147, %v4143
        %v5024 = vpack.c.b16 %v4148, %v4144
        %v5025 = vpack.c.b16 %v4153, %v4149
        %v5026 = vpack.c.b16 %v4154, %v4150
        %v5027 = vpack.c.b16 %v4155, %v4151
        %v5028 = vpack.c.b16 %v4156, %v4152
        %v5029 = vpack.c.b16 %v4161, %v4157
        %v5030 = vpack.c.b16 %v4162, %v4158
        %v5031 = vpack.c.b16 %v4163, %v4159
        %v5032 = vpack.c.b16 %v4164, %v4160
        %v5033 = vpack.c.b16 %v4169, %v4165
        %v5034 = vpack.c.b16 %v4170, %v4166
        %v5035 = vpack.c.b16 %v4171, %v4167
        %v5036 = vpack.c.b16 %v4172, %v4168
        %v5037 = vpack.c.b16 %v4177, %v4173
        %v5038 = vpack.c.b16 %v4178, %v4174
        %v5039 = vpack.c.b16 %v4179, %v4175
        %v5040 = vpack.c.b16 %v4180, %v4176
        %v5041 = vpack.c.b16 %v4185, %v4181
        %v5042 = vpack.c.b16 %v4186, %v4182
        %v5043 = vpack.c.b16 %v4187, %v4183
        %v5044 = vpack.c.b16 %v4188, %v4184
        %v5045 = vpack.c.b16 %v4193, %v4189
        %v5046 = vpack.c.b16 %v4194, %v4190
        %v5047 = vpack.c.b16 %v4195, %v4191
        %v5048 = vpack.c.b16 %v4196, %v4192
        %v5049 = vpack.c.b16 %v4201, %v4197
        %v5050 = vpack.c.b16 %v4202, %v4198
        %v5051 = vpack.c.b16 %v4203, %v4199
        %v5052 = vpack.c.b16 %v4204, %v4200
        %v5053 = vpack.c.b16 %v4209, %v4205
        %v5054 = vpack.c.b16 %v4210, %v4206
        %v5055 = vpack.c.b16 %v4211, %v4207
        %v5056 = vpack.c.b16 %v4212, %v4208
        %v5057 = vpack.c.b16 %v4217, %v4213
        %v5058 = vpack.c.b16 %v4218, %v4214
        %v5059 = vpack.c.b16 %v4219, %v4215
        %v5060 = vpack.c.b16 %v4220, %v4216
        %v5061 = vpack.c.b16 %v4225, %v4221
        %v5062 = vpack.c.b16 %v4226, %v4222
        %v5063 = vpack.c.b16 %v4227, %v4223
        %v5064 = vpack.c.b16 %v4228, %v4224
        %v5065 = vpack.c.b16 %v4233, %v4229
        %v5066 = vpack.c.b16 %v4234, %v4230
        %v5067 = vpack.c.b16 %v4235, %v4231
        %v5068 = vpack.c.b16 %v4236, %v4232
        %v5069 = vpack.c.b16 %v4241, %v4237
        %v5070 = vpack.c.b16 %v4242, %v4238
        %v5071 = vpack.c.b16 %v4243, %v4239
        %v5072 = vpack.c.b16 %v4244, %v4240
        %v5073 = vpack.c.b16 %v4249, %v4245
        %v5074 = vpack.c.b16 %v4250, %v4246
        %v5075 = vpack.c.b16 %v4251, %v4247
        %v5076 = vpack.c.b16 %v4252, %v4248
        %v5077 = vpack.c.b16 %v4257, %v4253
        %v5078 = vpack.c.b16 %v4258, %v4254
        %v5079 = vpack.c.b16 %v4259, %v4255
        %v5080 = vpack.c.b16 %v4260, %v4256
        %v5081 = vpack.c.b16 %v4265, %v4261
        %v5082 = vpack.c.b16 %v4266, %v4262
        %v5083 = vpack.c.b16 %v4267, %v4263
        %v5084 = vpack.c.b16 %v4268, %v4264
        %v5085 = vpack.c.b16 %v4273, %v4269
        %v5086 = vpack.c.b16 %v4274, %v4270
        %v5087 = vpack.c.b16 %v4275, %v4271
        %v5088 = vpack.c.b16 %v4276, %v4272
        %v5089 = vpack.c.b16 %v4281, %v4277
        %v5090 = vpack.c.b16 %v4282, %v4278
        %v5091 = vpack.c.b16 %v4283, %v4279
        %v5092 = vpack.c.b16 %v4284, %v4280
        %v5093 = vpack.c.b16 %v4289, %v4285
        %v5094 = vpack.c.b16 %v4290, %v4286
        %v5095 = vpack.c.b16 %v4291, %v4287
        %v5096 = vpack.c.b16 %v4292, %v4288
        %v5097 = vpack.c.b16 %v4297, %v4293
        %v5098 = vpack.c.b16 %v4298, %v4294
        %v5099 = vpack.c.b16 %v4299, %v4295
        %v5100 = vpack.c.b16 %v4300, %v4296
        %v5101 = vpack.c.b16 %v4305, %v4301
        %v5102 = vpack.c.b16 %v4306, %v4302
        %v5103 = vpack.c.b16 %v4307, %v4303
        %v5104 = vpack.c.b16 %v4308, %v4304
        %v5105 = vpack.c.b16 %v4313, %v4309
        %v5106 = vpack.c.b16 %v4314, %v4310
        %v5107 = vpack.c.b16 %v4315, %v4311
        %v5108 = vpack.c.b16 %v4316, %v4312
        %v5109 = vpack.c.b16 %v4321, %v4317
        %v5110 = vpack.c.b16 %v4322, %v4318
        %v5111 = vpack.c.b16 %v4323, %v4319
        %v5112 = vpack.c.b16 %v4324, %v4320
        %v5113 = vpack.c.b16 %v4329, %v4325
        %v5114 = vpack.c.b16 %v4330, %v4326
        %v5115 = vpack.c.b16 %v4331, %v4327
        %v5116 = vpack.c.b16 %v4332, %v4328
        %v5117 = vpack.c.b16 %v4337, %v4333
        %v5118 = vpack.c.b16 %v4338, %v4334
        %v5119 = vpack.c.b16 %v4339, %v4335
        %v5120 = vpack.c.b16 %v4340, %v4336
        %v5121 = vpack.c.b16 %v4345, %v4341
        %v5122 = vpack.c.b16 %v4346, %v4342
        %v5123 = vpack.c.b16 %v4347, %v4343
        %v5124 = vpack.c.b16 %v4348, %v4344
        %v5125 = vpack.c.b16 %v4353, %v4349
        %v5126 = vpack.c.b16 %v4354, %v4350
        %v5127 = vpack.c.b16 %v4355, %v4351
        %v5128 = vpack.c.b16 %v4356, %v4352
        %v5129 = vpack.c.b16 %v4361, %v4357
        %v5130 = vpack.c.b16 %v4362, %v4358
        %v5131 = vpack.c.b16 %v4363, %v4359
        %v5132 = vpack.c.b16 %v4364, %v4360
        %v5133 = vpack.c.b16 %v4369, %v4365
        %v5134 = vpack.c.b16 %v4370, %v4366
        %v5135 = vpack.c.b16 %v4371, %v4367
        %v5136 = vpack.c.b16 %v4372, %v4368
        %v5137 = vpack.c.b16 %v4377, %v4373
        %v5138 = vpack.c.b16 %v4378, %v4374
        %v5139 = vpack.c.b16 %v4379, %v4375
        %v5140 = vpack.c.b16 %v4380, %v4376
        %v5141 = vpack.c.b16 %v4385, %v4381
        %v5142 = vpack.c.b16 %v4386, %v4382
        %v5143 = vpack.c.b16 %v4387, %v4383
        %v5144 = vpack.c.b16 %v4388, %v4384
        %v5145 = vpack.c.b16 %v4393, %v4389
        %v5146 = vpack.c.b16 %v4394, %v4390
        %v5147 = vpack.c.b16 %v4395, %v4391
        %v5148 = vpack.c.b16 %v4396, %v4392
        %v5149 = vpack.c.b16 %v4401, %v4397
        %v5150 = vpack.c.b16 %v4402, %v4398
        %v5151 = vpack.c.b16 %v4403, %v4399
        %v5152 = vpack.c.b16 %v4404, %v4400
        %v5153 = vpack.c.b16 %v4409, %v4405
        %v5154 = vpack.c.b16 %v4410, %v4406
        %v5155 = vpack.c.b16 %v4411, %v4407
        %v5156 = vpack.c.b16 %v4412, %v4408
        %v5157 = vpack.c.b16 %v4417, %v4413
        %v5158 = vpack.c.b16 %v4418, %v4414
        %v5159 = vpack.c.b16 %v4419, %v4415
        %v5160 = vpack.c.b16 %v4420, %v4416
        %v5161 = vpack.c.b16 %v4425, %v4421
        %v5162 = vpack.c.b16 %v4426, %v4422
        %v5163 = vpack.c.b16 %v4427, %v4423
        %v5164 = vpack.c.b16 %v4428, %v4424
        %v5165 = vpack.c.b16 %v4433, %v4429
        %v5166 = vpack.c.b16 %v4434, %v4430
        %v5167 = vpack.c.b16 %v4435, %v4431
        %v5168 = vpack.c.b16 %v4436, %v4432
        %v5169 = vpack.c.b16 %v4441, %v4437
        %v5170 = vpack.c.b16 %v4442, %v4438
        %v5171 = vpack.c.b16 %v4443, %v4439
        %v5172 = vpack.c.b16 %v4444, %v4440
        %v5173 = vpack.c.b16 %v4449, %v4445
        %v5174 = vpack.c.b16 %v4450, %v4446
        %v5175 = vpack.c.b16 %v4451, %v4447
        %v5176 = vpack.c.b16 %v4452, %v4448
        %v5177 = vpack.c.b16 %v4457, %v4453
        %v5178 = vpack.c.b16 %v4458, %v4454
        %v5179 = vpack.c.b16 %v4459, %v4455
        %v5180 = vpack.c.b16 %v4460, %v4456
        %v5181 = vpack.c.b16 %v4465, %v4461
        %v5182 = vpack.c.b16 %v4466, %v4462
        %v5183 = vpack.c.b16 %v4467, %v4463
        %v5184 = vpack.c.b16 %v4468, %v4464
        %v5185 = vpack.c.b16 %v4473, %v4469
        %v5186 = vpack.c.b16 %v4474, %v4470
        %v5187 = vpack.c.b16 %v4475, %v4471
        %v5188 = vpack.c.b16 %v4476, %v4472
        %v5189 = vpack.c.b16 %v4481, %v4477
        %v5190 = vpack.c.b16 %v4482, %v4478
        %v5191 = vpack.c.b16 %v4483, %v4479
        %v5192 = vpack.c.b16 %v4484, %v4480
        %v5193 = vpack.c.b16 %v4489, %v4485
        %v5194 = vpack.c.b16 %v4490, %v4486
        %v5195 = vpack.c.b16 %v4491, %v4487
        %v5196 = vpack.c.b16 %v4492, %v4488
        %v5197 = vpack.c.b16 %v4497, %v4493
        %v5198 = vpack.c.b16 %v4498, %v4494
        %v5199 = vpack.c.b16 %v4499, %v4495
        %v5200 = vpack.c.b16 %v4500, %v4496
        %v5201 = vpack.c.b16 %v4505, %v4501
        %v5202 = vpack.c.b16 %v4506, %v4502
        %v5203 = vpack.c.b16 %v4507, %v4503
        %v5204 = vpack.c.b16 %v4508, %v4504
        %v5205 = vpack.c.b16 %v4513, %v4509
        %v5206 = vpack.c.b16 %v4514, %v4510
        %v5207 = vpack.c.b16 %v4515, %v4511
        %v5208 = vpack.c.b16 %v4516, %v4512
        %v5209 = vpack.c.b16 %v4521, %v4517
        %v5210 = vpack.c.b16 %v4522, %v4518
        %v5211 = vpack.c.b16 %v4523, %v4519
        %v5212 = vpack.c.b16 %v4524, %v4520
        %v5213 = vpack.c.b16 %v4529, %v4525
        %v5214 = vpack.c.b16 %v4530, %v4526
        %v5215 = vpack.c.b16 %v4531, %v4527
        %v5216 = vpack.c.b16 %v4532, %v4528
        %v5217 = vpack.c.b16 %v4537, %v4533
        %v5218 = vpack.c.b16 %v4538, %v4534
        %v5219 = vpack.c.b16 %v4539, %v4535
        %v5220 = vpack.c.b16 %v4540, %v4536
        %v5221 = vpack.c.b16 %v4545, %v4541
        %v5222 = vpack.c.b16 %v4546, %v4542
        %v5223 = vpack.c.b16 %v4547, %v4543
        %v5224 = vpack.c.b16 %v4548, %v4544
        %vm5901 = vcmask 130048
        %v5903 = vsel %vm5901, %v2499, 0
        %5905 = vmatprep.subr.bf16.mxu0 %v4578
        %5906 = vmatpush1.bf16.msra.mxu0 %v4577
        %5907 = vmatprep.subr.bf16.mxu0 %v4574
        %5908 = vmatpush1.bf16.msra.mxu0 %v4573
        %5909 = vmatprep.subr.bf16.mxu0 %v4570
        %5910 = vmatpush1.bf16.msra.mxu0 %v4569
        %5911 = vmatprep.subr.bf16.mxu0 %v4566
        %5912 = vmatpush1.bf16.msra.mxu0 %v4565
        %5913 = vmatprep.subr.bf16.mxu0 %v4562
        %5914 = vmatpush1.bf16.msra.mxu0 %v4561
        %5915 = vmatprep.subr.bf16.mxu0 %v4558
        %5916 = vmatpush1.bf16.msra.mxu0 %v4557
        %5917 = vmatprep.subr.bf16.mxu0 %v4554
        %5918 = vmatpush1.bf16.msra.mxu0 %v4553
        %5919 = vmatprep.subr.bf16.mxu0 %v4550
        %5920 = vmatpush1.bf16.msra.mxu0 %v4549
        %5921 = vmatprep.subr.bf16.mxu0 %v4610
        %5922 = vmatpush2.bf16.msra.mxu0 %v4609
        %5923 = vmatprep.subr.bf16.mxu0 %v4606
        %5924 = vmatpush2.bf16.msra.mxu0 %v4605
        %5925 = vmatprep.subr.bf16.mxu0 %v4602
        %5926 = vmatpush2.bf16.msra.mxu0 %v4601
        %5927 = vmatprep.subr.bf16.mxu0 %v4598
        %5928 = vmatpush2.bf16.msra.mxu0 %v4597
        %5929 = vmatprep.subr.bf16.mxu0 %v4594
        %5930 = vmatpush2.bf16.msra.mxu0 %v4593
        %5931 = vmatprep.subr.bf16.mxu0 %v4590
        %5932 = vmatpush2.bf16.msra.mxu0 %v4589
        %5933 = vmatprep.subr.bf16.mxu0 %v4586
        %5934 = vmatpush2.bf16.msra.mxu0 %v4585
        %5935 = vmatprep.subr.bf16.mxu0 %v4582
        %5936 = vmatpush2.bf16.msra.mxu0 %v4581
        %5937 = vmatprep.mubr.bf16.mxu0 %v2479
        %5938 = vmatmul.mubr.bf16.gmra.mxu0 %v2478
        %v5939 = vpop.f32.mrf.mxu0
        %v5940 = vadd.f32 %v2428, %v5939
        %v5941 = vpop.f32.mrf.mxu0
        %v5942 = vadd.f32 %v2432, %v5941
        %v5943 = vpop.f32.mrf.mxu0
        %v5944 = vpop.f32.mrf.mxu0
        %5945 = vdwg.mxu0
        %5946 = vmatprep.subr.bf16.mxu0 %v4642
        %5947 = vmatpush1.bf16.msra.mxu0 %v4641
        %5948 = vmatprep.subr.bf16.mxu0 %v4638
        %5949 = vmatpush1.bf16.msra.mxu0 %v4637
        %5950 = vmatprep.subr.bf16.mxu0 %v4634
        %5951 = vmatpush1.bf16.msra.mxu0 %v4633
        %5952 = vmatprep.subr.bf16.mxu0 %v4630
        %5953 = vmatpush1.bf16.msra.mxu0 %v4629
        %5954 = vmatprep.subr.bf16.mxu0 %v4626
        %5955 = vmatpush1.bf16.msra.mxu0 %v4625
        %5956 = vmatprep.subr.bf16.mxu0 %v4622
        %5957 = vmatpush1.bf16.msra.mxu0 %v4621
        %5958 = vmatprep.subr.bf16.mxu0 %v4618
        %5959 = vmatpush1.bf16.msra.mxu0 %v4617
        %5960 = vmatprep.subr.bf16.mxu0 %v4614
        %5961 = vmatpush1.bf16.msra.mxu0 %v4613
        %5962 = vmatprep.subr.bf16.mxu0 %v4674
        %5963 = vmatpush2.bf16.msra.mxu0 %v4673
        %5964 = vmatprep.subr.bf16.mxu0 %v4670
        %5965 = vmatpush2.bf16.msra.mxu0 %v4669
        %5966 = vmatprep.subr.bf16.mxu0 %v4666
        %5967 = vmatpush2.bf16.msra.mxu0 %v4665
        %5968 = vmatprep.subr.bf16.mxu0 %v4662
        %5969 = vmatpush2.bf16.msra.mxu0 %v4661
        %5970 = vmatprep.subr.bf16.mxu0 %v4658
        %5971 = vmatpush2.bf16.msra.mxu0 %v4657
        %5972 = vmatprep.subr.bf16.mxu0 %v4654
        %5973 = vmatpush2.bf16.msra.mxu0 %v4653
        %5974 = vmatprep.subr.bf16.mxu0 %v4650
        %5975 = vmatpush2.bf16.msra.mxu0 %v4649
        %5976 = vmatprep.subr.bf16.mxu0 %v4646
        %5977 = vmatpush2.bf16.msra.mxu0 %v4645
        %5978 = vmatprep.mubr.bf16.mxu0 %v2481
        %5979 = vmatmul.mubr.bf16.gmra.mxu0 %v2480
        %v5980 = vpop.f32.mrf.mxu0
        %v5981 = vadd.f32 %v5940, %v5980
        %v5982 = vpop.f32.mrf.mxu0
        %v5983 = vadd.f32 %v5942, %v5982
        %v5984 = vpop.f32.mrf.mxu0
        %v5985 = vpop.f32.mrf.mxu0
        %5986 = vdwg.mxu0
        %5987 = vmatprep.subr.bf16.mxu0 %v4706
        %5988 = vmatpush1.bf16.msra.mxu0 %v4705
        %5989 = vmatprep.subr.bf16.mxu0 %v4702
        %5990 = vmatpush1.bf16.msra.mxu0 %v4701
        %5991 = vmatprep.subr.bf16.mxu0 %v4698
        %5992 = vmatpush1.bf16.msra.mxu0 %v4697
        %5993 = vmatprep.subr.bf16.mxu0 %v4694
        %5994 = vmatpush1.bf16.msra.mxu0 %v4693
        %5995 = vmatprep.subr.bf16.mxu0 %v4690
        %5996 = vmatpush1.bf16.msra.mxu0 %v4689
        %5997 = vmatprep.subr.bf16.mxu0 %v4686
        %5998 = vmatpush1.bf16.msra.mxu0 %v4685
        %5999 = vmatprep.subr.bf16.mxu0 %v4682
        %6000 = vmatpush1.bf16.msra.mxu0 %v4681
        %6001 = vmatprep.subr.bf16.mxu0 %v4678
        %6002 = vmatpush1.bf16.msra.mxu0 %v4677
        %6003 = vmatprep.subr.bf16.mxu0 %v4738
        %6004 = vmatpush2.bf16.msra.mxu0 %v4737
        %6005 = vmatprep.subr.bf16.mxu0 %v4734
        %6006 = vmatpush2.bf16.msra.mxu0 %v4733
        %6007 = vmatprep.subr.bf16.mxu0 %v4730
        %6008 = vmatpush2.bf16.msra.mxu0 %v4729
        %6009 = vmatprep.subr.bf16.mxu0 %v4726
        %6010 = vmatpush2.bf16.msra.mxu0 %v4725
        %6011 = vmatprep.subr.bf16.mxu0 %v4722
        %6012 = vmatpush2.bf16.msra.mxu0 %v4721
        %6013 = vmatprep.subr.bf16.mxu0 %v4718
        %6014 = vmatpush2.bf16.msra.mxu0 %v4717
        %6015 = vmatprep.subr.bf16.mxu0 %v4714
        %6016 = vmatpush2.bf16.msra.mxu0 %v4713
        %6017 = vmatprep.subr.bf16.mxu0 %v4710
        %6018 = vmatpush2.bf16.msra.mxu0 %v4709
        %6019 = vmatprep.mubr.bf16.mxu0 %v2483
        %6020 = vmatmul.mubr.bf16.gmra.mxu0 %v2482
        %v6021 = vpop.f32.mrf.mxu0
        %v6022 = vadd.f32 %v5981, %v6021
        %v6023 = vpop.f32.mrf.mxu0
        %v6024 = vadd.f32 %v5983, %v6023
        %v6025 = vpop.f32.mrf.mxu0
        %v6026 = vpop.f32.mrf.mxu0
        %6027 = vdwg.mxu0
        %6028 = vmatprep.subr.bf16.mxu0 %v4770
        %6029 = vmatpush1.bf16.msra.mxu0 %v4769
        %6030 = vmatprep.subr.bf16.mxu0 %v4766
        %6031 = vmatpush1.bf16.msra.mxu0 %v4765
        %6032 = vmatprep.subr.bf16.mxu0 %v4762
        %6033 = vmatpush1.bf16.msra.mxu0 %v4761
        %6034 = vmatprep.subr.bf16.mxu0 %v4758
        %6035 = vmatpush1.bf16.msra.mxu0 %v4757
        %6036 = vmatprep.subr.bf16.mxu0 %v4754
        %6037 = vmatpush1.bf16.msra.mxu0 %v4753
        %6038 = vmatprep.subr.bf16.mxu0 %v4750
        %6039 = vmatpush1.bf16.msra.mxu0 %v4749
        %6040 = vmatprep.subr.bf16.mxu0 %v4746
        %6041 = vmatpush1.bf16.msra.mxu0 %v4745
        %6042 = vmatprep.subr.bf16.mxu0 %v4742
        %6043 = vmatpush1.bf16.msra.mxu0 %v4741
        %6044 = vmatprep.subr.bf16.mxu0 %v4802
        %6045 = vmatpush2.bf16.msra.mxu0 %v4801
        %6046 = vmatprep.subr.bf16.mxu0 %v4798
        %6047 = vmatpush2.bf16.msra.mxu0 %v4797
        %6048 = vmatprep.subr.bf16.mxu0 %v4794
        %6049 = vmatpush2.bf16.msra.mxu0 %v4793
        %6050 = vmatprep.subr.bf16.mxu0 %v4790
        %6051 = vmatpush2.bf16.msra.mxu0 %v4789
        %6052 = vmatprep.subr.bf16.mxu0 %v4786
        %6053 = vmatpush2.bf16.msra.mxu0 %v4785
        %6054 = vmatprep.subr.bf16.mxu0 %v4782
        %6055 = vmatpush2.bf16.msra.mxu0 %v4781
        %6056 = vmatprep.subr.bf16.mxu0 %v4778
        %6057 = vmatpush2.bf16.msra.mxu0 %v4777
        %6058 = vmatprep.subr.bf16.mxu0 %v4774
        %6059 = vmatpush2.bf16.msra.mxu0 %v4773
        %6060 = vmatprep.mubr.bf16.mxu0 %v2485
        %6061 = vmatmul.mubr.bf16.gmra.mxu0 %v2484
        %v6062 = vpop.f32.mrf.mxu0
        %v6063 = vadd.f32 %v6022, %v6062
        %v6064 = vpop.f32.mrf.mxu0
        %v6065 = vadd.f32 %v6024, %v6064
        %v6066 = vpop.f32.mrf.mxu0
        %v6067 = vpop.f32.mrf.mxu0
        %6068 = vdwg.mxu0
        %6069 = vmatprep.subr.bf16.mxu0 %v4834
        %6070 = vmatpush1.bf16.msra.mxu0 %v4833
        %6071 = vmatprep.subr.bf16.mxu0 %v4830
        %6072 = vmatpush1.bf16.msra.mxu0 %v4829
        %6073 = vmatprep.subr.bf16.mxu0 %v4826
        %6074 = vmatpush1.bf16.msra.mxu0 %v4825
        %6075 = vmatprep.subr.bf16.mxu0 %v4822
        %6076 = vmatpush1.bf16.msra.mxu0 %v4821
        %6077 = vmatprep.subr.bf16.mxu0 %v4818
        %6078 = vmatpush1.bf16.msra.mxu0 %v4817
        %6079 = vmatprep.subr.bf16.mxu0 %v4814
        %6080 = vmatpush1.bf16.msra.mxu0 %v4813
        %6081 = vmatprep.subr.bf16.mxu0 %v4810
        %6082 = vmatpush1.bf16.msra.mxu0 %v4809
        %6083 = vmatprep.subr.bf16.mxu0 %v4806
        %6084 = vmatpush1.bf16.msra.mxu0 %v4805
        %6085 = vmatprep.subr.bf16.mxu0 %v4866
        %6086 = vmatpush2.bf16.msra.mxu0 %v4865
        %6087 = vmatprep.subr.bf16.mxu0 %v4862
        %6088 = vmatpush2.bf16.msra.mxu0 %v4861
        %6089 = vmatprep.subr.bf16.mxu0 %v4858
        %6090 = vmatpush2.bf16.msra.mxu0 %v4857
        %6091 = vmatprep.subr.bf16.mxu0 %v4854
        %6092 = vmatpush2.bf16.msra.mxu0 %v4853
        %6093 = vmatprep.subr.bf16.mxu0 %v4850
        %6094 = vmatpush2.bf16.msra.mxu0 %v4849
        %6095 = vmatprep.subr.bf16.mxu0 %v4846
        %6096 = vmatpush2.bf16.msra.mxu0 %v4845
        %6097 = vmatprep.subr.bf16.mxu0 %v4842
        %6098 = vmatpush2.bf16.msra.mxu0 %v4841
        %6099 = vmatprep.subr.bf16.mxu0 %v4838
        %6100 = vmatpush2.bf16.msra.mxu0 %v4837
        %6101 = vmatprep.mubr.bf16.mxu0 %v2487
        %6102 = vmatmul.mubr.bf16.gmra.mxu0 %v2486
        %v6103 = vpop.f32.mrf.mxu0
        %v6104 = vadd.f32 %v6063, %v6103
        %v6105 = vpop.f32.mrf.mxu0
        %v6106 = vadd.f32 %v6065, %v6105
        %v6107 = vpop.f32.mrf.mxu0
        %v6108 = vpop.f32.mrf.mxu0
        %6109 = vdwg.mxu0
        %6110 = vmatprep.subr.bf16.mxu0 %v4898
        %6111 = vmatpush1.bf16.msra.mxu0 %v4897
        %6112 = vmatprep.subr.bf16.mxu0 %v4894
        %6113 = vmatpush1.bf16.msra.mxu0 %v4893
        %6114 = vmatprep.subr.bf16.mxu0 %v4890
        %6115 = vmatpush1.bf16.msra.mxu0 %v4889
        %6116 = vmatprep.subr.bf16.mxu0 %v4886
        %6117 = vmatpush1.bf16.msra.mxu0 %v4885
        %6118 = vmatprep.subr.bf16.mxu0 %v4882
        %6119 = vmatpush1.bf16.msra.mxu0 %v4881
        %6120 = vmatprep.subr.bf16.mxu0 %v4878
        %6121 = vmatpush1.bf16.msra.mxu0 %v4877
        %6122 = vmatprep.subr.bf16.mxu0 %v4874
        %6123 = vmatpush1.bf16.msra.mxu0 %v4873
        %6124 = vmatprep.subr.bf16.mxu0 %v4870
        %6125 = vmatpush1.bf16.msra.mxu0 %v4869
        %6126 = vmatprep.subr.bf16.mxu0 %v4930
        %6127 = vmatpush2.bf16.msra.mxu0 %v4929
        %6128 = vmatprep.subr.bf16.mxu0 %v4926
        %6129 = vmatpush2.bf16.msra.mxu0 %v4925
        %6130 = vmatprep.subr.bf16.mxu0 %v4922
        %6131 = vmatpush2.bf16.msra.mxu0 %v4921
        %6132 = vmatprep.subr.bf16.mxu0 %v4918
        %6133 = vmatpush2.bf16.msra.mxu0 %v4917
        %6134 = vmatprep.subr.bf16.mxu0 %v4914
        %6135 = vmatpush2.bf16.msra.mxu0 %v4913
        %6136 = vmatprep.subr.bf16.mxu0 %v4910
        %6137 = vmatpush2.bf16.msra.mxu0 %v4909
        %6138 = vmatprep.subr.bf16.mxu0 %v4906
        %6139 = vmatpush2.bf16.msra.mxu0 %v4905
        %6140 = vmatprep.subr.bf16.mxu0 %v4902
        %6141 = vmatpush2.bf16.msra.mxu0 %v4901
        %6142 = vmatprep.mubr.bf16.mxu0 %v2489
        %6143 = vmatmul.mubr.bf16.gmra.mxu0 %v2488
        %v6144 = vpop.f32.mrf.mxu0
        %v6145 = vadd.f32 %v6104, %v6144
        %v6146 = vpop.f32.mrf.mxu0
        %v6147 = vadd.f32 %v6106, %v6146
        %v6148 = vpop.f32.mrf.mxu0
        %v6149 = vpop.f32.mrf.mxu0
        %6150 = vdwg.mxu0
        %6151 = vmatprep.subr.bf16.mxu0 %v4962
        %6152 = vmatpush1.bf16.msra.mxu0 %v4961
        %6153 = vmatprep.subr.bf16.mxu0 %v4958
        %6154 = vmatpush1.bf16.msra.mxu0 %v4957
        %6155 = vmatprep.subr.bf16.mxu0 %v4954
        %6156 = vmatpush1.bf16.msra.mxu0 %v4953
        %6157 = vmatprep.subr.bf16.mxu0 %v4950
        %6158 = vmatpush1.bf16.msra.mxu0 %v4949
        %6159 = vmatprep.subr.bf16.mxu0 %v4946
        %6160 = vmatpush1.bf16.msra.mxu0 %v4945
        %6161 = vmatprep.subr.bf16.mxu0 %v4942
        %6162 = vmatpush1.bf16.msra.mxu0 %v4941
        %6163 = vmatprep.subr.bf16.mxu0 %v4938
        %6164 = vmatpush1.bf16.msra.mxu0 %v4937
        %6165 = vmatprep.subr.bf16.mxu0 %v4934
        %6166 = vmatpush1.bf16.msra.mxu0 %v4933
        %6167 = vmatprep.subr.bf16.mxu0 %v4994
        %6168 = vmatpush2.bf16.msra.mxu0 %v4993
        %6169 = vmatprep.subr.bf16.mxu0 %v4990
        %6170 = vmatpush2.bf16.msra.mxu0 %v4989
        %6171 = vmatprep.subr.bf16.mxu0 %v4986
        %6172 = vmatpush2.bf16.msra.mxu0 %v4985
        %6173 = vmatprep.subr.bf16.mxu0 %v4982
        %6174 = vmatpush2.bf16.msra.mxu0 %v4981
        %6175 = vmatprep.subr.bf16.mxu0 %v4978
        %6176 = vmatpush2.bf16.msra.mxu0 %v4977
        %6177 = vmatprep.subr.bf16.mxu0 %v4974
        %6178 = vmatpush2.bf16.msra.mxu0 %v4973
        %6179 = vmatprep.subr.bf16.mxu0 %v4970
        %6180 = vmatpush2.bf16.msra.mxu0 %v4969
        %6181 = vmatprep.subr.bf16.mxu0 %v4966
        %6182 = vmatpush2.bf16.msra.mxu0 %v4965
        %6183 = vmatprep.mubr.bf16.mxu0 %v2491
        %6184 = vmatmul.mubr.bf16.gmra.mxu0 %v2490
        %v6185 = vpop.f32.mrf.mxu0
        %v6186 = vadd.f32 %v6145, %v6185
        %v6187 = vpop.f32.mrf.mxu0
        %v6188 = vadd.f32 %v6147, %v6187
        %v6189 = vpop.f32.mrf.mxu0
        %v6190 = vpop.f32.mrf.mxu0
        %6191 = vdwg.mxu0
        %6192 = vmatprep.subr.bf16.mxu0 %v5026
        %6193 = vmatpush1.bf16.msra.mxu0 %v5025
        %6194 = vmatprep.subr.bf16.mxu0 %v5022
        %6195 = vmatpush1.bf16.msra.mxu0 %v5021
        %6196 = vmatprep.subr.bf16.mxu0 %v5018
        %6197 = vmatpush1.bf16.msra.mxu0 %v5017
        %6198 = vmatprep.subr.bf16.mxu0 %v5014
        %6199 = vmatpush1.bf16.msra.mxu0 %v5013
        %6200 = vmatprep.subr.bf16.mxu0 %v5010
        %6201 = vmatpush1.bf16.msra.mxu0 %v5009
        %6202 = vmatprep.subr.bf16.mxu0 %v5006
        %6203 = vmatpush1.bf16.msra.mxu0 %v5005
        %6204 = vmatprep.subr.bf16.mxu0 %v5002
        %6205 = vmatpush1.bf16.msra.mxu0 %v5001
        %6206 = vmatprep.subr.bf16.mxu0 %v4998
        %6207 = vmatpush1.bf16.msra.mxu0 %v4997
        %6208 = vmatprep.subr.bf16.mxu0 %v5058
        %6209 = vmatpush2.bf16.msra.mxu0 %v5057
        %6210 = vmatprep.subr.bf16.mxu0 %v5054
        %6211 = vmatpush2.bf16.msra.mxu0 %v5053
        %6212 = vmatprep.subr.bf16.mxu0 %v5050
        %6213 = vmatpush2.bf16.msra.mxu0 %v5049
        %6214 = vmatprep.subr.bf16.mxu0 %v5046
        %6215 = vmatpush2.bf16.msra.mxu0 %v5045
        %6216 = vmatprep.subr.bf16.mxu0 %v5042
        %6217 = vmatpush2.bf16.msra.mxu0 %v5041
        %6218 = vmatprep.subr.bf16.mxu0 %v5038
        %6219 = vmatpush2.bf16.msra.mxu0 %v5037
        %6220 = vmatprep.subr.bf16.mxu0 %v5034
        %6221 = vmatpush2.bf16.msra.mxu0 %v5033
        %6222 = vmatprep.subr.bf16.mxu0 %v5030
        %6223 = vmatpush2.bf16.msra.mxu0 %v5029
        %6224 = vmatprep.mubr.bf16.mxu0 %v2493
        %6225 = vmatmul.mubr.bf16.gmra.mxu0 %v2492
        %v6226 = vpop.f32.mrf.mxu0
        %v6227 = vadd.f32 %v6186, %v6226
        %v6228 = vpop.f32.mrf.mxu0
        %v6229 = vadd.f32 %v6188, %v6228
        %v6230 = vpop.f32.mrf.mxu0
        %v6231 = vpop.f32.mrf.mxu0
        %6232 = vdwg.mxu0
        %6233 = vmatprep.subr.bf16.mxu0 %v5090
        %6234 = vmatpush1.bf16.msra.mxu0 %v5089
        %6235 = vmatprep.subr.bf16.mxu0 %v5086
        %6236 = vmatpush1.bf16.msra.mxu0 %v5085
        %6237 = vmatprep.subr.bf16.mxu0 %v5082
        %6238 = vmatpush1.bf16.msra.mxu0 %v5081
        %6239 = vmatprep.subr.bf16.mxu0 %v5078
        %6240 = vmatpush1.bf16.msra.mxu0 %v5077
        %6241 = vmatprep.subr.bf16.mxu0 %v5074
        %6242 = vmatpush1.bf16.msra.mxu0 %v5073
        %6243 = vmatprep.subr.bf16.mxu0 %v5070
        %6244 = vmatpush1.bf16.msra.mxu0 %v5069
        %6245 = vmatprep.subr.bf16.mxu0 %v5066
        %6246 = vmatpush1.bf16.msra.mxu0 %v5065
        %6247 = vmatprep.subr.bf16.mxu0 %v5062
        %6248 = vmatpush1.bf16.msra.mxu0 %v5061
        %6249 = vmatprep.subr.bf16.mxu0 %v5122
        %6250 = vmatpush2.bf16.msra.mxu0 %v5121
        %6251 = vmatprep.subr.bf16.mxu0 %v5118
        %6252 = vmatpush2.bf16.msra.mxu0 %v5117
        %6253 = vmatprep.subr.bf16.mxu0 %v5114
        %6254 = vmatpush2.bf16.msra.mxu0 %v5113
        %6255 = vmatprep.subr.bf16.mxu0 %v5110
        %6256 = vmatpush2.bf16.msra.mxu0 %v5109
        %6257 = vmatprep.subr.bf16.mxu0 %v5106
        %6258 = vmatpush2.bf16.msra.mxu0 %v5105
        %6259 = vmatprep.subr.bf16.mxu0 %v5102
        %6260 = vmatpush2.bf16.msra.mxu0 %v5101
        %6261 = vmatprep.subr.bf16.mxu0 %v5098
        %6262 = vmatpush2.bf16.msra.mxu0 %v5097
        %6263 = vmatprep.subr.bf16.mxu0 %v5094
        %6264 = vmatpush2.bf16.msra.mxu0 %v5093
        %6265 = vmatprep.mubr.bf16.mxu0 %v2495
        %6266 = vmatmul.mubr.bf16.gmra.mxu0 %v2494
        %v6267 = vpop.f32.mrf.mxu0
        %v6268 = vadd.f32 %v6227, %v6267
        %v6269 = vpop.f32.mrf.mxu0
        %v6270 = vadd.f32 %v6229, %v6269
        %v6271 = vpop.f32.mrf.mxu0
        %v6272 = vpop.f32.mrf.mxu0
        %6273 = vdwg.mxu0
        %6274 = vmatprep.subr.bf16.mxu0 %v5154
        %6275 = vmatpush1.bf16.msra.mxu0 %v5153
        %6276 = vmatprep.subr.bf16.mxu0 %v5150
        %6277 = vmatpush1.bf16.msra.mxu0 %v5149
        %6278 = vmatprep.subr.bf16.mxu0 %v5146
        %6279 = vmatpush1.bf16.msra.mxu0 %v5145
        %6280 = vmatprep.subr.bf16.mxu0 %v5142
        %6281 = vmatpush1.bf16.msra.mxu0 %v5141
        %6282 = vmatprep.subr.bf16.mxu0 %v5138
        %6283 = vmatpush1.bf16.msra.mxu0 %v5137
        %6284 = vmatprep.subr.bf16.mxu0 %v5134
        %6285 = vmatpush1.bf16.msra.mxu0 %v5133
        %6286 = vmatprep.subr.bf16.mxu0 %v5130
        %6287 = vmatpush1.bf16.msra.mxu0 %v5129
        %6288 = vmatprep.subr.bf16.mxu0 %v5126
        %6289 = vmatpush1.bf16.msra.mxu0 %v5125
        %6290 = vmatprep.subr.bf16.mxu0 %v5186
        %6291 = vmatpush2.bf16.msra.mxu0 %v5185
        %6292 = vmatprep.subr.bf16.mxu0 %v5182
        %6293 = vmatpush2.bf16.msra.mxu0 %v5181
        %6294 = vmatprep.subr.bf16.mxu0 %v5178
        %6295 = vmatpush2.bf16.msra.mxu0 %v5177
        %6296 = vmatprep.subr.bf16.mxu0 %v5174
        %6297 = vmatpush2.bf16.msra.mxu0 %v5173
        %6298 = vmatprep.subr.bf16.mxu0 %v5170
        %6299 = vmatpush2.bf16.msra.mxu0 %v5169
        %6300 = vmatprep.subr.bf16.mxu0 %v5166
        %6301 = vmatpush2.bf16.msra.mxu0 %v5165
        %6302 = vmatprep.subr.bf16.mxu0 %v5162
        %6303 = vmatpush2.bf16.msra.mxu0 %v5161
        %6304 = vmatprep.subr.bf16.mxu0 %v5158
        %6305 = vmatpush2.bf16.msra.mxu0 %v5157
        %6306 = vmatprep.mubr.bf16.mxu0 %v2497
        %6307 = vmatmul.mubr.bf16.gmra.mxu0 %v2496
        %v6308 = vpop.f32.mrf.mxu0
        %v6309 = vadd.f32 %v6268, %v6308
        %v6310 = vpop.f32.mrf.mxu0
        %v6311 = vadd.f32 %v6270, %v6310
        %v6312 = vpop.f32.mrf.mxu0
        %v6313 = vpop.f32.mrf.mxu0
        %6314 = vdwg.mxu0
        %6315 = vmatprep.subr.bf16.mxu0 %v5218
        %6316 = vmatpush1.bf16.msra.mxu0 %v5217
        %6317 = vmatprep.subr.bf16.mxu0 %v5214
        %6318 = vmatpush1.bf16.msra.mxu0 %v5213
        %6319 = vmatprep.subr.bf16.mxu0 %v5210
        %6320 = vmatpush1.bf16.msra.mxu0 %v5209
        %6321 = vmatprep.subr.bf16.mxu0 %v5206
        %6322 = vmatpush1.bf16.msra.mxu0 %v5205
        %6323 = vmatprep.subr.bf16.mxu0 %v5202
        %6324 = vmatpush1.bf16.msra.mxu0 %v5201
        %6325 = vmatprep.subr.bf16.mxu0 %v5198
        %6326 = vmatpush1.bf16.msra.mxu0 %v5197
        %6327 = vmatprep.subr.bf16.mxu0 %v5194
        %6328 = vmatpush1.bf16.msra.mxu0 %v5193
        %6329 = vmatprep.subr.bf16.mxu0 %v5190
        %6330 = vmatpush1.bf16.msra.mxu0 %v5189
        %6331 = vmatprep.subr.bf16.mxu0 0
        %6332 = vmatpush2.bf16.msra.mxu0 0
        %6333 = vmatprep.subr.bf16.mxu0 0
        %6334 = vmatpush2.bf16.msra.mxu0 0
        %6335 = vmatprep.subr.bf16.mxu0 0
        %6336 = vmatpush2.bf16.msra.mxu0 0
        %6337 = vmatprep.subr.bf16.mxu0 0
        %6338 = vmatpush2.bf16.msra.mxu0 0
        %6339 = vmatprep.subr.bf16.mxu0 0
        %6340 = vmatpush2.bf16.msra.mxu0 0
        %6341 = vmatprep.subr.bf16.mxu0 0
        %6342 = vmatpush2.bf16.msra.mxu0 0
        %6343 = vmatprep.subr.bf16.mxu0 0
        %6344 = vmatpush2.bf16.msra.mxu0 0
        %6345 = vmatprep.subr.bf16.mxu0 %v5222
        %6346 = vmatpush2.bf16.msra.mxu0 %v5221
        %6347 = vmatprep.mubr.bf16.mxu0 %v5903
        %6348 = vmatmul.mubr.bf16.gmra.mxu0 %v2498
        %v6349 = vpop.f32.mrf.mxu0
        %v6350 = vadd.f32 %v6309, %v6349
        %v6351 = vpop.f32.mrf.mxu0
        %v6352 = vadd.f32 %v6311, %v6351
        %v6353 = vpop.f32.mrf.mxu0
        %v6354 = vpop.f32.mrf.mxu0
        %6355 = vdwg.mxu0
        %6356 = vmatprep.subr.bf16.mxu0 %v4580
        %6357 = vmatpush1.bf16.msra.mxu0 %v4579
        %6358 = vmatprep.subr.bf16.mxu0 %v4576
        %6359 = vmatpush1.bf16.msra.mxu0 %v4575
        %6360 = vmatprep.subr.bf16.mxu0 %v4572
        %6361 = vmatpush1.bf16.msra.mxu0 %v4571
        %6362 = vmatprep.subr.bf16.mxu0 %v4568
        %6363 = vmatpush1.bf16.msra.mxu0 %v4567
        %6364 = vmatprep.subr.bf16.mxu0 %v4564
        %6365 = vmatpush1.bf16.msra.mxu0 %v4563
        %6366 = vmatprep.subr.bf16.mxu0 %v4560
        %6367 = vmatpush1.bf16.msra.mxu0 %v4559
        %6368 = vmatprep.subr.bf16.mxu0 %v4556
        %6369 = vmatpush1.bf16.msra.mxu0 %v4555
        %6370 = vmatprep.subr.bf16.mxu0 %v4552
        %6371 = vmatpush1.bf16.msra.mxu0 %v4551
        %6372 = vmatprep.subr.bf16.mxu0 %v4612
        %6373 = vmatpush2.bf16.msra.mxu0 %v4611
        %6374 = vmatprep.subr.bf16.mxu0 %v4608
        %6375 = vmatpush2.bf16.msra.mxu0 %v4607
        %6376 = vmatprep.subr.bf16.mxu0 %v4604
        %6377 = vmatpush2.bf16.msra.mxu0 %v4603
        %6378 = vmatprep.subr.bf16.mxu0 %v4600
        %6379 = vmatpush2.bf16.msra.mxu0 %v4599
        %6380 = vmatprep.subr.bf16.mxu0 %v4596
        %6381 = vmatpush2.bf16.msra.mxu0 %v4595
        %6382 = vmatprep.subr.bf16.mxu0 %v4592
        %6383 = vmatpush2.bf16.msra.mxu0 %v4591
        %6384 = vmatprep.subr.bf16.mxu0 %v4588
        %6385 = vmatpush2.bf16.msra.mxu0 %v4587
        %6386 = vmatprep.subr.bf16.mxu0 %v4584
        %6387 = vmatpush2.bf16.msra.mxu0 %v4583
        %6388 = vmatprep.mubr.bf16.mxu0 %v2479
        %6389 = vmatmul.mubr.bf16.gmra.mxu0 %v2478
        %v6390 = vpop.f32.mrf.mxu0
        %v6391 = vadd.f32 %v2436, %v6390
        %v6392 = vpop.f32.mrf.mxu0
        %v6393 = vadd.f32 %v2440, %v6392
        %v6394 = vpop.f32.mrf.mxu0
        %v6395 = vpop.f32.mrf.mxu0
        %6396 = vdwg.mxu0
        %6397 = vmatprep.subr.bf16.mxu0 %v4644
        %6398 = vmatpush1.bf16.msra.mxu0 %v4643
        %6399 = vmatprep.subr.bf16.mxu0 %v4640
        %6400 = vmatpush1.bf16.msra.mxu0 %v4639
        %6401 = vmatprep.subr.bf16.mxu0 %v4636
        %6402 = vmatpush1.bf16.msra.mxu0 %v4635
        %6403 = vmatprep.subr.bf16.mxu0 %v4632
        %6404 = vmatpush1.bf16.msra.mxu0 %v4631
        %6405 = vmatprep.subr.bf16.mxu0 %v4628
        %6406 = vmatpush1.bf16.msra.mxu0 %v4627
        %6407 = vmatprep.subr.bf16.mxu0 %v4624
        %6408 = vmatpush1.bf16.msra.mxu0 %v4623
        %6409 = vmatprep.subr.bf16.mxu0 %v4620
        %6410 = vmatpush1.bf16.msra.mxu0 %v4619
        %6411 = vmatprep.subr.bf16.mxu0 %v4616
        %6412 = vmatpush1.bf16.msra.mxu0 %v4615
        %6413 = vmatprep.subr.bf16.mxu0 %v4676
        %6414 = vmatpush2.bf16.msra.mxu0 %v4675
        %6415 = vmatprep.subr.bf16.mxu0 %v4672
        %6416 = vmatpush2.bf16.msra.mxu0 %v4671
        %6417 = vmatprep.subr.bf16.mxu0 %v4668
        %6418 = vmatpush2.bf16.msra.mxu0 %v4667
        %6419 = vmatprep.subr.bf16.mxu0 %v4664
        %6420 = vmatpush2.bf16.msra.mxu0 %v4663
        %6421 = vmatprep.subr.bf16.mxu0 %v4660
        %6422 = vmatpush2.bf16.msra.mxu0 %v4659
        %6423 = vmatprep.subr.bf16.mxu0 %v4656
        %6424 = vmatpush2.bf16.msra.mxu0 %v4655
        %6425 = vmatprep.subr.bf16.mxu0 %v4652
        %6426 = vmatpush2.bf16.msra.mxu0 %v4651
        %6427 = vmatprep.subr.bf16.mxu0 %v4648
        %6428 = vmatpush2.bf16.msra.mxu0 %v4647
        %6429 = vmatprep.mubr.bf16.mxu0 %v2481
        %6430 = vmatmul.mubr.bf16.gmra.mxu0 %v2480
        %v6431 = vpop.f32.mrf.mxu0
        %v6432 = vadd.f32 %v6391, %v6431
        %v6433 = vpop.f32.mrf.mxu0
        %v6434 = vadd.f32 %v6393, %v6433
        %v6435 = vpop.f32.mrf.mxu0
        %v6436 = vpop.f32.mrf.mxu0
        %6437 = vdwg.mxu0
        %6438 = vmatprep.subr.bf16.mxu0 %v4708
        %6439 = vmatpush1.bf16.msra.mxu0 %v4707
        %6440 = vmatprep.subr.bf16.mxu0 %v4704
        %6441 = vmatpush1.bf16.msra.mxu0 %v4703
        %6442 = vmatprep.subr.bf16.mxu0 %v4700
        %6443 = vmatpush1.bf16.msra.mxu0 %v4699
        %6444 = vmatprep.subr.bf16.mxu0 %v4696
        %6445 = vmatpush1.bf16.msra.mxu0 %v4695
        %6446 = vmatprep.subr.bf16.mxu0 %v4692
        %6447 = vmatpush1.bf16.msra.mxu0 %v4691
        %6448 = vmatprep.subr.bf16.mxu0 %v4688
        %6449 = vmatpush1.bf16.msra.mxu0 %v4687
        %6450 = vmatprep.subr.bf16.mxu0 %v4684
        %6451 = vmatpush1.bf16.msra.mxu0 %v4683
        %6452 = vmatprep.subr.bf16.mxu0 %v4680
        %6453 = vmatpush1.bf16.msra.mxu0 %v4679
        %6454 = vmatprep.subr.bf16.mxu0 %v4740
        %6455 = vmatpush2.bf16.msra.mxu0 %v4739
        %6456 = vmatprep.subr.bf16.mxu0 %v4736
        %6457 = vmatpush2.bf16.msra.mxu0 %v4735
        %6458 = vmatprep.subr.bf16.mxu0 %v4732
        %6459 = vmatpush2.bf16.msra.mxu0 %v4731
        %6460 = vmatprep.subr.bf16.mxu0 %v4728
        %6461 = vmatpush2.bf16.msra.mxu0 %v4727
        %6462 = vmatprep.subr.bf16.mxu0 %v4724
        %6463 = vmatpush2.bf16.msra.mxu0 %v4723
        %6464 = vmatprep.subr.bf16.mxu0 %v4720
        %6465 = vmatpush2.bf16.msra.mxu0 %v4719
        %6466 = vmatprep.subr.bf16.mxu0 %v4716
        %6467 = vmatpush2.bf16.msra.mxu0 %v4715
        %6468 = vmatprep.subr.bf16.mxu0 %v4712
        %6469 = vmatpush2.bf16.msra.mxu0 %v4711
        %6470 = vmatprep.mubr.bf16.mxu0 %v2483
        %6471 = vmatmul.mubr.bf16.gmra.mxu0 %v2482
        %v6472 = vpop.f32.mrf.mxu0
        %v6473 = vadd.f32 %v6432, %v6472
        %v6474 = vpop.f32.mrf.mxu0
        %v6475 = vadd.f32 %v6434, %v6474
        %v6476 = vpop.f32.mrf.mxu0
        %v6477 = vpop.f32.mrf.mxu0
        %6478 = vdwg.mxu0
        %6479 = vmatprep.subr.bf16.mxu0 %v4772
        %6480 = vmatpush1.bf16.msra.mxu0 %v4771
        %6481 = vmatprep.subr.bf16.mxu0 %v4768
        %6482 = vmatpush1.bf16.msra.mxu0 %v4767
        %6483 = vmatprep.subr.bf16.mxu0 %v4764
        %6484 = vmatpush1.bf16.msra.mxu0 %v4763
        %6485 = vmatprep.subr.bf16.mxu0 %v4760
        %6486 = vmatpush1.bf16.msra.mxu0 %v4759
        %6487 = vmatprep.subr.bf16.mxu0 %v4756
        %6488 = vmatpush1.bf16.msra.mxu0 %v4755
        %6489 = vmatprep.subr.bf16.mxu0 %v4752
        %6490 = vmatpush1.bf16.msra.mxu0 %v4751
        %6491 = vmatprep.subr.bf16.mxu0 %v4748
        %6492 = vmatpush1.bf16.msra.mxu0 %v4747
        %6493 = vmatprep.subr.bf16.mxu0 %v4744
        %6494 = vmatpush1.bf16.msra.mxu0 %v4743
        %6495 = vmatprep.subr.bf16.mxu0 %v4804
        %6496 = vmatpush2.bf16.msra.mxu0 %v4803
        %6497 = vmatprep.subr.bf16.mxu0 %v4800
        %6498 = vmatpush2.bf16.msra.mxu0 %v4799
        %6499 = vmatprep.subr.bf16.mxu0 %v4796
        %6500 = vmatpush2.bf16.msra.mxu0 %v4795
        %6501 = vmatprep.subr.bf16.mxu0 %v4792
        %6502 = vmatpush2.bf16.msra.mxu0 %v4791
        %6503 = vmatprep.subr.bf16.mxu0 %v4788
        %6504 = vmatpush2.bf16.msra.mxu0 %v4787
        %6505 = vmatprep.subr.bf16.mxu0 %v4784
        %6506 = vmatpush2.bf16.msra.mxu0 %v4783
        %6507 = vmatprep.subr.bf16.mxu0 %v4780
        %6508 = vmatpush2.bf16.msra.mxu0 %v4779
        %6509 = vmatprep.subr.bf16.mxu0 %v4776
        %6510 = vmatpush2.bf16.msra.mxu0 %v4775
        %6511 = vmatprep.mubr.bf16.mxu0 %v2485
        %6512 = vmatmul.mubr.bf16.gmra.mxu0 %v2484
        %v6513 = vpop.f32.mrf.mxu0
        %v6514 = vadd.f32 %v6473, %v6513
        %v6515 = vpop.f32.mrf.mxu0
        %v6516 = vadd.f32 %v6475, %v6515
        %v6517 = vpop.f32.mrf.mxu0
        %v6518 = vpop.f32.mrf.mxu0
        %6519 = vdwg.mxu0
        %6520 = vmatprep.subr.bf16.mxu0 %v4836
        %6521 = vmatpush1.bf16.msra.mxu0 %v4835
        %6522 = vmatprep.subr.bf16.mxu0 %v4832
        %6523 = vmatpush1.bf16.msra.mxu0 %v4831
        %6524 = vmatprep.subr.bf16.mxu0 %v4828
        %6525 = vmatpush1.bf16.msra.mxu0 %v4827
        %6526 = vmatprep.subr.bf16.mxu0 %v4824
        %6527 = vmatpush1.bf16.msra.mxu0 %v4823
        %6528 = vmatprep.subr.bf16.mxu0 %v4820
        %6529 = vmatpush1.bf16.msra.mxu0 %v4819
        %6530 = vmatprep.subr.bf16.mxu0 %v4816
        %6531 = vmatpush1.bf16.msra.mxu0 %v4815
        %6532 = vmatprep.subr.bf16.mxu0 %v4812
        %6533 = vmatpush1.bf16.msra.mxu0 %v4811
        %6534 = vmatprep.subr.bf16.mxu0 %v4808
        %6535 = vmatpush1.bf16.msra.mxu0 %v4807
        %6536 = vmatprep.subr.bf16.mxu0 %v4868
        %6537 = vmatpush2.bf16.msra.mxu0 %v4867
        %6538 = vmatprep.subr.bf16.mxu0 %v4864
        %6539 = vmatpush2.bf16.msra.mxu0 %v4863
        %6540 = vmatprep.subr.bf16.mxu0 %v4860
        %6541 = vmatpush2.bf16.msra.mxu0 %v4859
        %6542 = vmatprep.subr.bf16.mxu0 %v4856
        %6543 = vmatpush2.bf16.msra.mxu0 %v4855
        %6544 = vmatprep.subr.bf16.mxu0 %v4852
        %6545 = vmatpush2.bf16.msra.mxu0 %v4851
        %6546 = vmatprep.subr.bf16.mxu0 %v4848
        %6547 = vmatpush2.bf16.msra.mxu0 %v4847
        %6548 = vmatprep.subr.bf16.mxu0 %v4844
        %6549 = vmatpush2.bf16.msra.mxu0 %v4843
        %6550 = vmatprep.subr.bf16.mxu0 %v4840
        %6551 = vmatpush2.bf16.msra.mxu0 %v4839
        %6552 = vmatprep.mubr.bf16.mxu0 %v2487
        %6553 = vmatmul.mubr.bf16.gmra.mxu0 %v2486
        %v6554 = vpop.f32.mrf.mxu0
        %v6555 = vadd.f32 %v6514, %v6554
        %v6556 = vpop.f32.mrf.mxu0
        %v6557 = vadd.f32 %v6516, %v6556
        %v6558 = vpop.f32.mrf.mxu0
        %v6559 = vpop.f32.mrf.mxu0
        %6560 = vdwg.mxu0
        %6561 = vmatprep.subr.bf16.mxu0 %v4900
        %6562 = vmatpush1.bf16.msra.mxu0 %v4899
        %6563 = vmatprep.subr.bf16.mxu0 %v4896
        %6564 = vmatpush1.bf16.msra.mxu0 %v4895
        %6565 = vmatprep.subr.bf16.mxu0 %v4892
        %6566 = vmatpush1.bf16.msra.mxu0 %v4891
        %6567 = vmatprep.subr.bf16.mxu0 %v4888
        %6568 = vmatpush1.bf16.msra.mxu0 %v4887
        %6569 = vmatprep.subr.bf16.mxu0 %v4884
        %6570 = vmatpush1.bf16.msra.mxu0 %v4883
        %6571 = vmatprep.subr.bf16.mxu0 %v4880
        %6572 = vmatpush1.bf16.msra.mxu0 %v4879
        %6573 = vmatprep.subr.bf16.mxu0 %v4876
        %6574 = vmatpush1.bf16.msra.mxu0 %v4875
        %6575 = vmatprep.subr.bf16.mxu0 %v4872
        %6576 = vmatpush1.bf16.msra.mxu0 %v4871
        %6577 = vmatprep.subr.bf16.mxu0 %v4932
        %6578 = vmatpush2.bf16.msra.mxu0 %v4931
        %6579 = vmatprep.subr.bf16.mxu0 %v4928
        %6580 = vmatpush2.bf16.msra.mxu0 %v4927
        %6581 = vmatprep.subr.bf16.mxu0 %v4924
        %6582 = vmatpush2.bf16.msra.mxu0 %v4923
        %6583 = vmatprep.subr.bf16.mxu0 %v4920
        %6584 = vmatpush2.bf16.msra.mxu0 %v4919
        %6585 = vmatprep.subr.bf16.mxu0 %v4916
        %6586 = vmatpush2.bf16.msra.mxu0 %v4915
        %6587 = vmatprep.subr.bf16.mxu0 %v4912
        %6588 = vmatpush2.bf16.msra.mxu0 %v4911
        %6589 = vmatprep.subr.bf16.mxu0 %v4908
        %6590 = vmatpush2.bf16.msra.mxu0 %v4907
        %6591 = vmatprep.subr.bf16.mxu0 %v4904
        %6592 = vmatpush2.bf16.msra.mxu0 %v4903
        %6593 = vmatprep.mubr.bf16.mxu0 %v2489
        %6594 = vmatmul.mubr.bf16.gmra.mxu0 %v2488
        %v6595 = vpop.f32.mrf.mxu0
        %v6596 = vadd.f32 %v6555, %v6595
        %v6597 = vpop.f32.mrf.mxu0
        %v6598 = vadd.f32 %v6557, %v6597
        %v6599 = vpop.f32.mrf.mxu0
        %v6600 = vpop.f32.mrf.mxu0
        %6601 = vdwg.mxu0
        %6602 = vmatprep.subr.bf16.mxu0 %v4964
        %6603 = vmatpush1.bf16.msra.mxu0 %v4963
        %6604 = vmatprep.subr.bf16.mxu0 %v4960
        %6605 = vmatpush1.bf16.msra.mxu0 %v4959
        %6606 = vmatprep.subr.bf16.mxu0 %v4956
        %6607 = vmatpush1.bf16.msra.mxu0 %v4955
        %6608 = vmatprep.subr.bf16.mxu0 %v4952
        %6609 = vmatpush1.bf16.msra.mxu0 %v4951
        %6610 = vmatprep.subr.bf16.mxu0 %v4948
        %6611 = vmatpush1.bf16.msra.mxu0 %v4947
        %6612 = vmatprep.subr.bf16.mxu0 %v4944
        %6613 = vmatpush1.bf16.msra.mxu0 %v4943
        %6614 = vmatprep.subr.bf16.mxu0 %v4940
        %6615 = vmatpush1.bf16.msra.mxu0 %v4939
        %6616 = vmatprep.subr.bf16.mxu0 %v4936
        %6617 = vmatpush1.bf16.msra.mxu0 %v4935
        %6618 = vmatprep.subr.bf16.mxu0 %v4996
        %6619 = vmatpush2.bf16.msra.mxu0 %v4995
        %6620 = vmatprep.subr.bf16.mxu0 %v4992
        %6621 = vmatpush2.bf16.msra.mxu0 %v4991
        %6622 = vmatprep.subr.bf16.mxu0 %v4988
        %6623 = vmatpush2.bf16.msra.mxu0 %v4987
        %6624 = vmatprep.subr.bf16.mxu0 %v4984
        %6625 = vmatpush2.bf16.msra.mxu0 %v4983
        %6626 = vmatprep.subr.bf16.mxu0 %v4980
        %6627 = vmatpush2.bf16.msra.mxu0 %v4979
        %6628 = vmatprep.subr.bf16.mxu0 %v4976
        %6629 = vmatpush2.bf16.msra.mxu0 %v4975
        %6630 = vmatprep.subr.bf16.mxu0 %v4972
        %6631 = vmatpush2.bf16.msra.mxu0 %v4971
        %6632 = vmatprep.subr.bf16.mxu0 %v4968
        %6633 = vmatpush2.bf16.msra.mxu0 %v4967
        %6634 = vmatprep.mubr.bf16.mxu0 %v2491
        %6635 = vmatmul.mubr.bf16.gmra.mxu0 %v2490
        %v6636 = vpop.f32.mrf.mxu0
        %v6637 = vadd.f32 %v6596, %v6636
        %v6638 = vpop.f32.mrf.mxu0
        %v6639 = vadd.f32 %v6598, %v6638
        %v6640 = vpop.f32.mrf.mxu0
        %v6641 = vpop.f32.mrf.mxu0
        %6642 = vdwg.mxu0
        %6643 = vmatprep.subr.bf16.mxu0 %v5028
        %6644 = vmatpush1.bf16.msra.mxu0 %v5027
        %6645 = vmatprep.subr.bf16.mxu0 %v5024
        %6646 = vmatpush1.bf16.msra.mxu0 %v5023
        %6647 = vmatprep.subr.bf16.mxu0 %v5020
        %6648 = vmatpush1.bf16.msra.mxu0 %v5019
        %6649 = vmatprep.subr.bf16.mxu0 %v5016
        %6650 = vmatpush1.bf16.msra.mxu0 %v5015
        %6651 = vmatprep.subr.bf16.mxu0 %v5012
        %6652 = vmatpush1.bf16.msra.mxu0 %v5011
        %6653 = vmatprep.subr.bf16.mxu0 %v5008
        %6654 = vmatpush1.bf16.msra.mxu0 %v5007
        %6655 = vmatprep.subr.bf16.mxu0 %v5004
        %6656 = vmatpush1.bf16.msra.mxu0 %v5003
        %6657 = vmatprep.subr.bf16.mxu0 %v5000
        %6658 = vmatpush1.bf16.msra.mxu0 %v4999
        %6659 = vmatprep.subr.bf16.mxu0 %v5060
        %6660 = vmatpush2.bf16.msra.mxu0 %v5059
        %6661 = vmatprep.subr.bf16.mxu0 %v5056
        %6662 = vmatpush2.bf16.msra.mxu0 %v5055
        %6663 = vmatprep.subr.bf16.mxu0 %v5052
        %6664 = vmatpush2.bf16.msra.mxu0 %v5051
        %6665 = vmatprep.subr.bf16.mxu0 %v5048
        %6666 = vmatpush2.bf16.msra.mxu0 %v5047
        %6667 = vmatprep.subr.bf16.mxu0 %v5044
        %6668 = vmatpush2.bf16.msra.mxu0 %v5043
        %6669 = vmatprep.subr.bf16.mxu0 %v5040
        %6670 = vmatpush2.bf16.msra.mxu0 %v5039
        %6671 = vmatprep.subr.bf16.mxu0 %v5036
        %6672 = vmatpush2.bf16.msra.mxu0 %v5035
        %6673 = vmatprep.subr.bf16.mxu0 %v5032
        %6674 = vmatpush2.bf16.msra.mxu0 %v5031
        %6675 = vmatprep.mubr.bf16.mxu0 %v2493
        %6676 = vmatmul.mubr.bf16.gmra.mxu0 %v2492
        %v6677 = vpop.f32.mrf.mxu0
        %v6678 = vadd.f32 %v6637, %v6677
        %v6679 = vpop.f32.mrf.mxu0
        %v6680 = vadd.f32 %v6639, %v6679
        %v6681 = vpop.f32.mrf.mxu0
        %v6682 = vpop.f32.mrf.mxu0
        %6683 = vdwg.mxu0
        %6684 = vmatprep.subr.bf16.mxu0 %v5092
        %6685 = vmatpush1.bf16.msra.mxu0 %v5091
        %6686 = vmatprep.subr.bf16.mxu0 %v5088
        %6687 = vmatpush1.bf16.msra.mxu0 %v5087
        %6688 = vmatprep.subr.bf16.mxu0 %v5084
        %6689 = vmatpush1.bf16.msra.mxu0 %v5083
        %6690 = vmatprep.subr.bf16.mxu0 %v5080
        %6691 = vmatpush1.bf16.msra.mxu0 %v5079
        %6692 = vmatprep.subr.bf16.mxu0 %v5076
        %6693 = vmatpush1.bf16.msra.mxu0 %v5075
        %6694 = vmatprep.subr.bf16.mxu0 %v5072
        %6695 = vmatpush1.bf16.msra.mxu0 %v5071
        %6696 = vmatprep.subr.bf16.mxu0 %v5068
        %6697 = vmatpush1.bf16.msra.mxu0 %v5067
        %6698 = vmatprep.subr.bf16.mxu0 %v5064
        %6699 = vmatpush1.bf16.msra.mxu0 %v5063
        %6700 = vmatprep.subr.bf16.mxu0 %v5124
        %6701 = vmatpush2.bf16.msra.mxu0 %v5123
        %6702 = vmatprep.subr.bf16.mxu0 %v5120
        %6703 = vmatpush2.bf16.msra.mxu0 %v5119
        %6704 = vmatprep.subr.bf16.mxu0 %v5116
        %6705 = vmatpush2.bf16.msra.mxu0 %v5115
        %6706 = vmatprep.subr.bf16.mxu0 %v5112
        %6707 = vmatpush2.bf16.msra.mxu0 %v5111
        %6708 = vmatprep.subr.bf16.mxu0 %v5108
        %6709 = vmatpush2.bf16.msra.mxu0 %v5107
        %6710 = vmatprep.subr.bf16.mxu0 %v5104
        %6711 = vmatpush2.bf16.msra.mxu0 %v5103
        %6712 = vmatprep.subr.bf16.mxu0 %v5100
        %6713 = vmatpush2.bf16.msra.mxu0 %v5099
        %6714 = vmatprep.subr.bf16.mxu0 %v5096
        %6715 = vmatpush2.bf16.msra.mxu0 %v5095
        %6716 = vmatprep.mubr.bf16.mxu0 %v2495
        %6717 = vmatmul.mubr.bf16.gmra.mxu0 %v2494
        %v6718 = vpop.f32.mrf.mxu0
        %v6719 = vadd.f32 %v6678, %v6718
        %v6720 = vpop.f32.mrf.mxu0
        %v6721 = vadd.f32 %v6680, %v6720
        %v6722 = vpop.f32.mrf.mxu0
        %v6723 = vpop.f32.mrf.mxu0
        %6724 = vdwg.mxu0
        %6725 = vmatprep.subr.bf16.mxu0 %v5156
        %6726 = vmatpush1.bf16.msra.mxu0 %v5155
        %6727 = vmatprep.subr.bf16.mxu0 %v5152
        %6728 = vmatpush1.bf16.msra.mxu0 %v5151
        %6729 = vmatprep.subr.bf16.mxu0 %v5148
        %6730 = vmatpush1.bf16.msra.mxu0 %v5147
        %6731 = vmatprep.subr.bf16.mxu0 %v5144
        %6732 = vmatpush1.bf16.msra.mxu0 %v5143
        %6733 = vmatprep.subr.bf16.mxu0 %v5140
        %6734 = vmatpush1.bf16.msra.mxu0 %v5139
        %6735 = vmatprep.subr.bf16.mxu0 %v5136
        %6736 = vmatpush1.bf16.msra.mxu0 %v5135
        %6737 = vmatprep.subr.bf16.mxu0 %v5132
        %6738 = vmatpush1.bf16.msra.mxu0 %v5131
        %6739 = vmatprep.subr.bf16.mxu0 %v5128
        %6740 = vmatpush1.bf16.msra.mxu0 %v5127
        %6741 = vmatprep.subr.bf16.mxu0 %v5188
        %6742 = vmatpush2.bf16.msra.mxu0 %v5187
        %6743 = vmatprep.subr.bf16.mxu0 %v5184
        %6744 = vmatpush2.bf16.msra.mxu0 %v5183
        %6745 = vmatprep.subr.bf16.mxu0 %v5180
        %6746 = vmatpush2.bf16.msra.mxu0 %v5179
        %6747 = vmatprep.subr.bf16.mxu0 %v5176
        %6748 = vmatpush2.bf16.msra.mxu0 %v5175
        %6749 = vmatprep.subr.bf16.mxu0 %v5172
        %6750 = vmatpush2.bf16.msra.mxu0 %v5171
        %6751 = vmatprep.subr.bf16.mxu0 %v5168
        %6752 = vmatpush2.bf16.msra.mxu0 %v5167
        %6753 = vmatprep.subr.bf16.mxu0 %v5164
        %6754 = vmatpush2.bf16.msra.mxu0 %v5163
        %6755 = vmatprep.subr.bf16.mxu0 %v5160
        %6756 = vmatpush2.bf16.msra.mxu0 %v5159
        %6757 = vmatprep.mubr.bf16.mxu0 %v2497
        %6758 = vmatmul.mubr.bf16.gmra.mxu0 %v2496
        %v6759 = vpop.f32.mrf.mxu0
        %v6760 = vadd.f32 %v6719, %v6759
        %v6761 = vpop.f32.mrf.mxu0
        %v6762 = vadd.f32 %v6721, %v6761
        %v6763 = vpop.f32.mrf.mxu0
        %v6764 = vpop.f32.mrf.mxu0
        %6765 = vdwg.mxu0
        %6766 = vmatprep.subr.bf16.mxu0 %v5220
        %6767 = vmatpush1.bf16.msra.mxu0 %v5219
        %6768 = vmatprep.subr.bf16.mxu0 %v5216
        %6769 = vmatpush1.bf16.msra.mxu0 %v5215
        %6770 = vmatprep.subr.bf16.mxu0 %v5212
        %6771 = vmatpush1.bf16.msra.mxu0 %v5211
        %6772 = vmatprep.subr.bf16.mxu0 %v5208
        %6773 = vmatpush1.bf16.msra.mxu0 %v5207
        %6774 = vmatprep.subr.bf16.mxu0 %v5204
        %6775 = vmatpush1.bf16.msra.mxu0 %v5203
        %6776 = vmatprep.subr.bf16.mxu0 %v5200
        %6777 = vmatpush1.bf16.msra.mxu0 %v5199
        %6778 = vmatprep.subr.bf16.mxu0 %v5196
        %6779 = vmatpush1.bf16.msra.mxu0 %v5195
        %6780 = vmatprep.subr.bf16.mxu0 %v5192
        %6781 = vmatpush1.bf16.msra.mxu0 %v5191
        %6782 = vmatprep.subr.bf16.mxu0 0
        %6783 = vmatpush2.bf16.msra.mxu0 0
        %6784 = vmatprep.subr.bf16.mxu0 0
        %6785 = vmatpush2.bf16.msra.mxu0 0
        %6786 = vmatprep.subr.bf16.mxu0 0
        %6787 = vmatpush2.bf16.msra.mxu0 0
        %6788 = vmatprep.subr.bf16.mxu0 0
        %6789 = vmatpush2.bf16.msra.mxu0 0
        %6790 = vmatprep.subr.bf16.mxu0 0
        %6791 = vmatpush2.bf16.msra.mxu0 0
        %6792 = vmatprep.subr.bf16.mxu0 0
        %6793 = vmatpush2.bf16.msra.mxu0 0
        %6794 = vmatprep.subr.bf16.mxu0 0
        %6795 = vmatpush2.bf16.msra.mxu0 0
        %6796 = vmatprep.subr.bf16.mxu0 %v5224
        %6797 = vmatpush2.bf16.msra.mxu0 %v5223
        %6798 = vmatprep.mubr.bf16.mxu0 %v5903
        %6799 = vmatmul.mubr.bf16.gmra.mxu0 %v2498
        %v6800 = vpop.f32.mrf.mxu0
        %v6801 = vadd.f32 %v6760, %v6800
        %v6802 = vpop.f32.mrf.mxu0
        %v6803 = vadd.f32 %v6762, %v6802
        %v6804 = vpop.f32.mrf.mxu0
        %v6805 = vpop.f32.mrf.mxu0
        %6806 = vdwg.mxu0
        %vm6807 = vcmp.gt.f32.partialorder %v6350, 0.0
        %vm6808 = vcmp.gt.f32.partialorder %v6352, 0.0
        %vm6809 = vcmp.gt.f32.partialorder %v6801, 0.0
        %vm6810 = vcmp.gt.f32.partialorder %v6803, 0.0
        %v6811 = vmul.f32 %v6350, 0.01
        %v6812 = vmul.f32 %v6352, 0.01
        %v6813 = vmul.f32 %v6801, 0.01
        %v6814 = vmul.f32 %v6803, 0.01
        %v6815 = vsel %vm6807, %v6350, %v6811
        %v6816 = vsel %vm6808, %v6352, %v6812
        %v6817 = vsel %vm6809, %v6801, %v6813
        %v6818 = vsel %vm6810, %v6803, %v6814
        %v6819 = vld [vmem:[#allocation2] sm:$0xff]
        %v6820 = vpack.c.bf16 %v6815, %v6815
        %v6821 = vpack.c.bf16 %v6816, %v6816
        %v6822 = vpack.c.bf16 %v6817, %v6817
        %v6823 = vpack.c.bf16 %v6818, %v6818
        %v6824 = vld [vmem:[%s1728] sm:$0xf]
        %v6825 = vld [vmem:[%s1728 + $0x4] sm:$0xf]
        %v6826 = vld [vmem:[%s1728 + $0x8] sm:$0xf]
        %v6827 = vld [vmem:[%s1728 + $0xc] sm:$0xf]
        %v6828 = vld [vmem:[%s1728 + $0x10] sm:$0xf]
        %v6829 = vld [vmem:[%s1728 + $0x14] sm:$0xf]
        %v6830 = vld [vmem:[%s1728 + $0x18] sm:$0xf]
        %v6831 = vld [vmem:[%s1728 + $0x1c] sm:$0xf]
        %v6832 = vld [vmem:[%s1728 + $0x20] sm:$0xf]
        %v6833 = vld [vmem:[%s1728 + $0x24] sm:$0xf]
        %v6834 = vld [vmem:[%s1728 + $0x28] sm:$0xf]
        %v6835 = vld [vmem:[%s1728 + $0x2c] sm:$0xf]
        %v6836 = vld [vmem:[%s1728 + $0x30] sm:$0xf]
        %v6837 = vld [vmem:[%s1728 + $0x34] sm:$0xf]
        %v6838 = vld [vmem:[%s1728 + $0x38] sm:$0xf]
        %v6839 = vld [vmem:[%s1728 + $0x3c] sm:$0xf]
        %v6840 = vld [vmem:[%s1728 + $0x40] sm:$0xf]
        %v6841 = vld [vmem:[%s1728 + $0x44] sm:$0xf]
        %v6842 = vld [vmem:[%s1728 + $0x48] sm:$0xf]
        %v6843 = vld [vmem:[%s1728 + $0x4c] sm:$0xf]
        %v6844 = vld [vmem:[%s1728 + $0x50] sm:$0xf]
        %v6845 = vld [vmem:[%s1728 + $0x54] sm:$0xf]
        %v6846 = vld [vmem:[%s1728 + $0x58] sm:$0xf]
        %v6847 = vld [vmem:[%s1728 + $0x5c] sm:$0xf]
        %v6848 = vld [vmem:[%s1728 + $0x60] sm:$0xf]
        %v6849 = vld [vmem:[%s1728 + $0x64] sm:$0xf]
        %v6850 = vld [vmem:[%s1728 + $0x68] sm:$0xf]
        %v6851 = vld [vmem:[%s1728 + $0x6c] sm:$0xf]
        %v6852 = vld [vmem:[%s1728 + $0x70] sm:$0xf]
        %v6853 = vld [vmem:[%s1728 + $0x74] sm:$0xf]
        %v6854 = vld [vmem:[%s1728 + $0x78] sm:$0xf]
        %v6855 = vld [vmem:[%s1728 + $0x7c] sm:$0xf]
        %v6856 = vld [vmem:[%s1728 + $0x80] sm:$0xf]
        %v6857 = vld [vmem:[%s1728 + $0x84] sm:$0xf]
        %v6858 = vld [vmem:[%s1728 + $0x88] sm:$0xf]
        %v6859 = vld [vmem:[%s1728 + $0x8c] sm:$0xf]
        %v6860 = vld [vmem:[%s1728 + $0x90] sm:$0xf]
        %v6861 = vld [vmem:[%s1728 + $0x94] sm:$0xf]
        %v6862 = vld [vmem:[%s1728 + $0x98] sm:$0xf]
        %v6863 = vld [vmem:[%s1728 + $0x9c] sm:$0xf]
        %v6864 = vld [vmem:[%s1728 + $0xa0] sm:$0xf]
        %v6865 = vld [vmem:[%s1728 + $0xa4] sm:$0xf]
        %v6866 = vld [vmem:[%s1728 + $0xa8] sm:$0xf]
        %v6867 = vld [vmem:[%s1728 + $0xac] sm:$0xf]
        %v6868 = vld [vmem:[%s1728 + $0xb0] sm:$0xf]
        %v6869 = vld [vmem:[%s1728 + $0xb4] sm:$0xf]
        %v6870 = vld [vmem:[%s1728 + $0xb8] sm:$0xf]
        %v6871 = vld [vmem:[%s1728 + $0xbc] sm:$0xf]
        %v6872 = vld [vmem:[%s1728 + $0xc0] sm:$0xf]
        %v6873 = vld [vmem:[%s1728 + $0xc4] sm:$0xf]
        %v6874 = vld [vmem:[%s1728 + $0xc8] sm:$0xf]
        %v6875 = vld [vmem:[%s1728 + $0xcc] sm:$0xf]
        %v6876 = vld [vmem:[%s1728 + $0xd0] sm:$0xf]
        %v6877 = vld [vmem:[%s1728 + $0xd4] sm:$0xf]
        %v6878 = vld [vmem:[%s1728 + $0xd8] sm:$0xf]
        %v6879 = vld [vmem:[%s1728 + $0xdc] sm:$0xf]
        %v6880 = vld [vmem:[%s1728 + $0xe0] sm:$0xf]
        %v6881 = vld [vmem:[%s1728 + $0xe4] sm:$0xf]
        %v6882 = vld [vmem:[%s1728 + $0xe8] sm:$0xf]
        %v6883 = vld [vmem:[%s1728 + $0xec] sm:$0xf]
        %v6884 = vld [vmem:[%s1728 + $0xf0] sm:$0xf]
        %v6885 = vld [vmem:[%s1728 + $0xf4] sm:$0xf]
        %v6886 = vld [vmem:[%s1728 + $0xf8] sm:$0xf]
        %v6887 = vld [vmem:[%s1728 + $0xfc] sm:$0xf]
        %v6952 = vunpack.c.l.b16 %v6824
        %v6953 = vunpack.c.l.b16 %v6825
        %v6954 = vunpack.c.l.b16 %v6826
        %v6955 = vunpack.c.l.b16 %v6827
        %v6956 = vunpack.c.l.b16 %v6828
        %v6957 = vunpack.c.l.b16 %v6829
        %v6958 = vunpack.c.l.b16 %v6830
        %v6959 = vunpack.c.l.b16 %v6831
        %v6960 = vunpack.c.l.b16 %v6832
        %v6961 = vunpack.c.l.b16 %v6833
        %v6962 = vunpack.c.l.b16 %v6834
        %v6963 = vunpack.c.l.b16 %v6835
        %v6964 = vunpack.c.l.b16 %v6836
        %v6965 = vunpack.c.l.b16 %v6837
        %v6966 = vunpack.c.l.b16 %v6838
        %v6967 = vunpack.c.l.b16 %v6839
        %v6968 = vunpack.c.l.b16 %v6840
        %v6969 = vunpack.c.l.b16 %v6841
        %v6970 = vunpack.c.l.b16 %v6842
        %v6971 = vunpack.c.l.b16 %v6843
        %v6972 = vunpack.c.l.b16 %v6844
        %v6973 = vunpack.c.l.b16 %v6845
        %v6974 = vunpack.c.l.b16 %v6846
        %v6975 = vunpack.c.l.b16 %v6847
        %v6976 = vunpack.c.l.b16 %v6848
        %v6977 = vunpack.c.l.b16 %v6849
        %v6978 = vunpack.c.l.b16 %v6850
        %v6979 = vunpack.c.l.b16 %v6851
        %v6980 = vunpack.c.l.b16 %v6852
        %v6981 = vunpack.c.l.b16 %v6853
        %v6982 = vunpack.c.l.b16 %v6854
        %v6983 = vunpack.c.l.b16 %v6855
        %v6984 = vunpack.c.l.b16 %v6856
        %v6985 = vunpack.c.l.b16 %v6857
        %v6986 = vunpack.c.l.b16 %v6858
        %v6987 = vunpack.c.l.b16 %v6859
        %v6988 = vunpack.c.l.b16 %v6860
        %v6989 = vunpack.c.l.b16 %v6861
        %v6990 = vunpack.c.l.b16 %v6862
        %v6991 = vunpack.c.l.b16 %v6863
        %v6992 = vunpack.c.l.b16 %v6864
        %v6993 = vunpack.c.l.b16 %v6865
        %v6994 = vunpack.c.l.b16 %v6866
        %v6995 = vunpack.c.l.b16 %v6867
        %v6996 = vunpack.c.l.b16 %v6868
        %v6997 = vunpack.c.l.b16 %v6869
        %v6998 = vunpack.c.l.b16 %v6870
        %v6999 = vunpack.c.l.b16 %v6871
        %v7000 = vunpack.c.l.b16 %v6872
        %v7001 = vunpack.c.l.b16 %v6873
        %v7002 = vunpack.c.l.b16 %v6874
        %v7003 = vunpack.c.l.b16 %v6875
        %v7004 = vunpack.c.l.b16 %v6876
        %v7005 = vunpack.c.l.b16 %v6877
        %v7006 = vunpack.c.l.b16 %v6878
        %v7007 = vunpack.c.l.b16 %v6879
        %v7008 = vunpack.c.l.b16 %v6880
        %v7009 = vunpack.c.l.b16 %v6881
        %v7010 = vunpack.c.l.b16 %v6882
        %v7011 = vunpack.c.l.b16 %v6883
        %v7012 = vunpack.c.l.b16 %v6884
        %v7013 = vunpack.c.l.b16 %v6885
        %v7014 = vunpack.c.l.b16 %v6886
        %v7015 = vunpack.c.l.b16 %v6887
        %v7016 = vpack.c.b16 %v6953, %v6952
        %v7017 = vpack.c.b16 %v6955, %v6954
        %v7018 = vpack.c.b16 %v6957, %v6956
        %v7019 = vpack.c.b16 %v6959, %v6958
        %v7020 = vpack.c.b16 %v6961, %v6960
        %v7021 = vpack.c.b16 %v6963, %v6962
        %v7022 = vpack.c.b16 %v6965, %v6964
        %v7023 = vpack.c.b16 %v6967, %v6966
        %v7024 = vpack.c.b16 %v6969, %v6968
        %v7025 = vpack.c.b16 %v6971, %v6970
        %v7026 = vpack.c.b16 %v6973, %v6972
        %v7027 = vpack.c.b16 %v6975, %v6974
        %v7028 = vpack.c.b16 %v6977, %v6976
        %v7029 = vpack.c.b16 %v6979, %v6978
        %v7030 = vpack.c.b16 %v6981, %v6980
        %v7031 = vpack.c.b16 %v6983, %v6982
        %v7032 = vpack.c.b16 %v6985, %v6984
        %v7033 = vpack.c.b16 %v6987, %v6986
        %v7034 = vpack.c.b16 %v6989, %v6988
        %v7035 = vpack.c.b16 %v6991, %v6990
        %v7036 = vpack.c.b16 %v6993, %v6992
        %v7037 = vpack.c.b16 %v6995, %v6994
        %v7038 = vpack.c.b16 %v6997, %v6996
        %v7039 = vpack.c.b16 %v6999, %v6998
        %v7040 = vpack.c.b16 %v7001, %v7000
        %v7041 = vpack.c.b16 %v7003, %v7002
        %v7042 = vpack.c.b16 %v7005, %v7004
        %v7043 = vpack.c.b16 %v7007, %v7006
        %v7044 = vpack.c.b16 %v7009, %v7008
        %v7045 = vpack.c.b16 %v7011, %v7010
        %v7046 = vpack.c.b16 %v7013, %v7012
        %v7047 = vpack.c.b16 %v7015, %v7014
        %7080 = vmatprep.subr.bf16.mxu0 0
        %7081 = vmatpush1.bf16.msra.mxu0 %v7023
        %7082 = vmatprep.subr.bf16.mxu0 0
        %7083 = vmatpush1.bf16.msra.mxu0 %v7022
        %7084 = vmatprep.subr.bf16.mxu0 0
        %7085 = vmatpush1.bf16.msra.mxu0 %v7021
        %7086 = vmatprep.subr.bf16.mxu0 0
        %7087 = vmatpush1.bf16.msra.mxu0 %v7020
        %7088 = vmatprep.subr.bf16.mxu0 0
        %7089 = vmatpush1.bf16.msra.mxu0 %v7019
        %7090 = vmatprep.subr.bf16.mxu0 0
        %7091 = vmatpush1.bf16.msra.mxu0 %v7018
        %7092 = vmatprep.subr.bf16.mxu0 0
        %7093 = vmatpush1.bf16.msra.mxu0 %v7017
        %7094 = vmatprep.subr.bf16.mxu0 0
        %7095 = vmatpush1.bf16.msra.mxu0 %v7016
        %7096 = vmatprep.subr.bf16.mxu0 0
        %7097 = vmatpush2.bf16.msra.mxu0 %v7031
        %7098 = vmatprep.subr.bf16.mxu0 0
        %7099 = vmatpush2.bf16.msra.mxu0 %v7030
        %7100 = vmatprep.subr.bf16.mxu0 0
        %7101 = vmatpush2.bf16.msra.mxu0 %v7029
        %7102 = vmatprep.subr.bf16.mxu0 0
        %7103 = vmatpush2.bf16.msra.mxu0 %v7028
        %7104 = vmatprep.subr.bf16.mxu0 0
        %7105 = vmatpush2.bf16.msra.mxu0 %v7027
        %7106 = vmatprep.subr.bf16.mxu0 0
        %7107 = vmatpush2.bf16.msra.mxu0 %v7026
        %7108 = vmatprep.subr.bf16.mxu0 0
        %7109 = vmatpush2.bf16.msra.mxu0 %v7025
        %7110 = vmatprep.subr.bf16.mxu0 0
        %7111 = vmatpush2.bf16.msra.mxu0 %v7024
        %7112 = vmatprep.mubr.bf16.mxu0 %v6821
        %7113 = vmatmul.mubr.bf16.gmra.mxu0 %v6820
        %v7114 = vpop.f32.mrf.mxu0
        %v7115 = vadd.f32 0.0, %v7114
        %v7116 = vpop.f32.mrf.mxu0
        %v7117 = vpop.f32.mrf.mxu0
        %v7118 = vpop.f32.mrf.mxu0
        %7119 = vdwg.mxu0
        %7120 = vmatprep.subr.bf16.mxu0 0
        %7121 = vmatpush1.bf16.msra.mxu0 %v7039
        %7122 = vmatprep.subr.bf16.mxu0 0
        %7123 = vmatpush1.bf16.msra.mxu0 %v7038
        %7124 = vmatprep.subr.bf16.mxu0 0
        %7125 = vmatpush1.bf16.msra.mxu0 %v7037
        %7126 = vmatprep.subr.bf16.mxu0 0
        %7127 = vmatpush1.bf16.msra.mxu0 %v7036
        %7128 = vmatprep.subr.bf16.mxu0 0
        %7129 = vmatpush1.bf16.msra.mxu0 %v7035
        %7130 = vmatprep.subr.bf16.mxu0 0
        %7131 = vmatpush1.bf16.msra.mxu0 %v7034
        %7132 = vmatprep.subr.bf16.mxu0 0
        %7133 = vmatpush1.bf16.msra.mxu0 %v7033
        %7134 = vmatprep.subr.bf16.mxu0 0
        %7135 = vmatpush1.bf16.msra.mxu0 %v7032
        %7136 = vmatprep.subr.bf16.mxu0 0
        %7137 = vmatpush2.bf16.msra.mxu0 %v7047
        %7138 = vmatprep.subr.bf16.mxu0 0
        %7139 = vmatpush2.bf16.msra.mxu0 %v7046
        %7140 = vmatprep.subr.bf16.mxu0 0
        %7141 = vmatpush2.bf16.msra.mxu0 %v7045
        %7142 = vmatprep.subr.bf16.mxu0 0
        %7143 = vmatpush2.bf16.msra.mxu0 %v7044
        %7144 = vmatprep.subr.bf16.mxu0 0
        %7145 = vmatpush2.bf16.msra.mxu0 %v7043
        %7146 = vmatprep.subr.bf16.mxu0 0
        %7147 = vmatpush2.bf16.msra.mxu0 %v7042
        %7148 = vmatprep.subr.bf16.mxu0 0
        %7149 = vmatpush2.bf16.msra.mxu0 %v7041
        %7150 = vmatprep.subr.bf16.mxu0 0
        %7151 = vmatpush2.bf16.msra.mxu0 %v7040
        %7152 = vmatprep.mubr.bf16.mxu0 %v6823
        %7153 = vmatmul.mubr.bf16.gmra.mxu0 %v6822
        %v7154 = vpop.f32.mrf.mxu0
        %v7155 = vadd.f32 %v7115, %v7154
        %v7156 = vpop.f32.mrf.mxu0
        %v7157 = vpop.f32.mrf.mxu0
        %v7158 = vpop.f32.mrf.mxu0
        %7159 = vdwg.mxu0
        %v7160 = vadd.f32 %v6819, %v7155
        %7161 = vst [vmem:[#allocation2] sm:$0xff] %v7160
        %p7162 = scmp.eq.s32.totalorder %s20, 3
        // Predicated region
        $region84: #{net_forward.5} parent=74 // pred_check
          %p7163 = pneg %p7162
        $region85: #{net_forward.5} parent=74 // pred_check_branch
          %7165 = sbr.rel (%p7163) target = $region87
        $region86: #{net_forward.5} parent=74 // pred_region
          %v7166 = vld [vmem:[#allocation2] sm:$0xff]
          %v7167 = vld [vmem:[%s4] sm:$0x1]
          %v7169 = vlaneseq
          %v7170 = vshrl.u32 %v7169, 7
          %v7171 = vsub.s32 0, %v7170
          %v7172 = vrot.slane %v7167, %v7171
          %v7174 = vadd.f32 %v7166, %v7172
          %vm7175 = vcmp.gt.f32.partialorder %v7174, 0.0
          %v7176 = vmul.f32 %v7174, 0.01
          %v7177 = vsel %vm7175, %v7174, %v7176
          %v7178 = vpack.c.bf16 %v7177, %v7177
          %v7179 = vld [vmem:[%s5] sm:$0xf]
          %v7180 = vld [vmem:[%s5 + $0x4] sm:$0xf]
          %v7181 = vld [vmem:[%s5 + $0x8] sm:$0xf]
          %v7182 = vld [vmem:[%s5 + $0xc] sm:$0xf]
          %v7183 = vld [vmem:[%s5 + $0x10] sm:$0xf]
          %v7184 = vld [vmem:[%s5 + $0x14] sm:$0xf]
          %v7185 = vld [vmem:[%s5 + $0x18] sm:$0xf]
          %v7186 = vld [vmem:[%s5 + $0x1c] sm:$0xf]
          %v7187 = vld [vmem:[%s5 + $0x20] sm:$0xf]
          %v7188 = vld [vmem:[%s5 + $0x24] sm:$0xf]
          %v7189 = vld [vmem:[%s5 + $0x28] sm:$0xf]
          %v7190 = vld [vmem:[%s5 + $0x2c] sm:$0xf]
          %v7191 = vld [vmem:[%s5 + $0x30] sm:$0xf]
          %v7192 = vld [vmem:[%s5 + $0x34] sm:$0xf]
          %v7193 = vld [vmem:[%s5 + $0x38] sm:$0xf]
          %v7194 = vld [vmem:[%s5 + $0x3c] sm:$0xf]
          %v7195 = vld [vmem:[%s6] sm:$0x1]
          %v7197 = vlaneseq
          %v7198 = vshrl.u32 %v7197, 7
          %v7199 = vsub.s32 0, %v7198
          %v7200 = vrot.slane %v7195, %v7199
          %v7218 = vunpack.c.l.b16 %v7179
          %v7219 = vunpack.c.l.b16 %v7180
          %v7220 = vunpack.c.l.b16 %v7181
          %v7221 = vunpack.c.l.b16 %v7182
          %v7222 = vunpack.c.l.b16 %v7183
          %v7223 = vunpack.c.l.b16 %v7184
          %v7224 = vunpack.c.l.b16 %v7185
          %v7225 = vunpack.c.l.b16 %v7186
          %v7226 = vunpack.c.l.b16 %v7187
          %v7227 = vunpack.c.l.b16 %v7188
          %v7228 = vunpack.c.l.b16 %v7189
          %v7229 = vunpack.c.l.b16 %v7190
          %v7230 = vunpack.c.l.b16 %v7191
          %v7231 = vunpack.c.l.b16 %v7192
          %v7232 = vunpack.c.l.b16 %v7193
          %v7233 = vunpack.c.l.b16 %v7194
          %v7234 = vpack.c.b16 %v7219, %v7218
          %v7235 = vpack.c.b16 %v7221, %v7220
          %v7236 = vpack.c.b16 %v7223, %v7222
          %v7237 = vpack.c.b16 %v7225, %v7224
          %v7238 = vpack.c.b16 %v7227, %v7226
          %v7239 = vpack.c.b16 %v7229, %v7228
          %v7240 = vpack.c.b16 %v7231, %v7230
          %v7241 = vpack.c.b16 %v7233, %v7232
          %7250 = vmatprep.subr.bf16.mxu0 0
          %7251 = vmatpush1.bf16.msra.mxu0 %v7241
          %7252 = vmatprep.subr.bf16.mxu0 0
          %7253 = vmatpush1.bf16.msra.mxu0 %v7240
          %7254 = vmatprep.subr.bf16.mxu0 0
          %7255 = vmatpush1.bf16.msra.mxu0 %v7239
          %7256 = vmatprep.subr.bf16.mxu0 0
          %7257 = vmatpush1.bf16.msra.mxu0 %v7238
          %7258 = vmatprep.subr.bf16.mxu0 0
          %7259 = vmatpush1.bf16.msra.mxu0 %v7237
          %7260 = vmatprep.subr.bf16.mxu0 0
          %7261 = vmatpush1.bf16.msra.mxu0 %v7236
          %7262 = vmatprep.subr.bf16.mxu0 0
          %7263 = vmatpush1.bf16.msra.mxu0 %v7235
          %7264 = vmatprep.subr.bf16.mxu0 0
          %7265 = vmatpush1.bf16.msra.mxu0 %v7234
          %7266 = vmatprep.subr.bf16.mxu0 0
          %7267 = vmatpush2.bf16.msra.mxu0 0
          %7268 = vmatprep.subr.bf16.mxu0 0
          %7269 = vmatpush2.bf16.msra.mxu0 0
          %7270 = vmatprep.subr.bf16.mxu0 0
          %7271 = vmatpush2.bf16.msra.mxu0 0
          %7272 = vmatprep.subr.bf16.mxu0 0
          %7273 = vmatpush2.bf16.msra.mxu0 0
          %7274 = vmatprep.subr.bf16.mxu0 0
          %7275 = vmatpush2.bf16.msra.mxu0 0
          %7276 = vmatprep.subr.bf16.mxu0 0
          %7277 = vmatpush2.bf16.msra.mxu0 0
          %7278 = vmatprep.subr.bf16.mxu0 0
          %7279 = vmatpush2.bf16.msra.mxu0 0
          %7280 = vmatprep.subr.bf16.mxu0 0
          %7281 = vmatpush2.bf16.msra.mxu0 0
          %7282 = vmatprep.mubr.bf16.mxu0 0
          %7283 = vmatmul.mubr.bf16.gmra.mxu0 %v7178
          %v7284 = vpop.f32.mrf.mxu0
          %v7285 = vadd.f32 %v7200, %v7284
          %v7286 = vpop.f32.mrf.mxu0
          %v7287 = vpop.f32.mrf.mxu0
          %v7288 = vpop.f32.mrf.mxu0
          %7289 = vdwg.mxu0
          %vm7290 = vcmp.gt.f32.partialorder %v7285, 0.0
          %v7291 = vmul.f32 %v7285, 0.01
          %v7292 = vsel %vm7290, %v7285, %v7291
          %v7293 = vpack.c.bf16 %v7292, %v7292
          %v7294 = vld [vmem:[%s7] sm:$0xf]
          %v7295 = vld [vmem:[%s7 + $0x4] sm:$0xf]
          %v7296 = vld [vmem:[%s7 + $0x8] sm:$0xf]
          %v7297 = vld [vmem:[%s7 + $0xc] sm:$0xf]
          %v7298 = vld [vmem:[%s7 + $0x10] sm:$0xf]
          %v7299 = vld [vmem:[%s7 + $0x14] sm:$0xf]
          %v7300 = vld [vmem:[%s7 + $0x18] sm:$0xf]
          %v7301 = vld [vmem:[%s7 + $0x1c] sm:$0xf]
          %v7302 = vld [vmem:[%s7 + $0x20] sm:$0xf]
          %v7303 = vld [vmem:[%s7 + $0x24] sm:$0xf]
          %v7304 = vld [vmem:[%s7 + $0x28] sm:$0xf]
          %v7305 = vld [vmem:[%s7 + $0x2c] sm:$0xf]
          %v7306 = vld [vmem:[%s7 + $0x30] sm:$0xf]
          %v7307 = vld [vmem:[%s7 + $0x34] sm:$0xf]
          %v7308 = vld [vmem:[%s7 + $0x38] sm:$0xf]
          %v7309 = vld [vmem:[%s7 + $0x3c] sm:$0xf]
          %v7310 = vld [vmem:[%s8] sm:$0x1]
          %v7312 = vlaneseq
          %v7313 = vshrl.u32 %v7312, 7
          %v7314 = vsub.s32 0, %v7313
          %v7315 = vrot.slane %v7310, %v7314
          %v7333 = vunpack.c.l.b16 %v7294
          %v7334 = vunpack.c.l.b16 %v7295
          %v7335 = vunpack.c.l.b16 %v7296
          %v7336 = vunpack.c.l.b16 %v7297
          %v7337 = vunpack.c.l.b16 %v7298
          %v7338 = vunpack.c.l.b16 %v7299
          %v7339 = vunpack.c.l.b16 %v7300
          %v7340 = vunpack.c.l.b16 %v7301
          %v7341 = vunpack.c.l.b16 %v7302
          %v7342 = vunpack.c.l.b16 %v7303
          %v7343 = vunpack.c.l.b16 %v7304
          %v7344 = vunpack.c.l.b16 %v7305
          %v7345 = vunpack.c.l.b16 %v7306
          %v7346 = vunpack.c.l.b16 %v7307
          %v7347 = vunpack.c.l.b16 %v7308
          %v7348 = vunpack.c.l.b16 %v7309
          %v7349 = vpack.c.b16 %v7334, %v7333
          %v7350 = vpack.c.b16 %v7336, %v7335
          %v7351 = vpack.c.b16 %v7338, %v7337
          %v7352 = vpack.c.b16 %v7340, %v7339
          %v7353 = vpack.c.b16 %v7342, %v7341
          %v7354 = vpack.c.b16 %v7344, %v7343
          %v7355 = vpack.c.b16 %v7346, %v7345
          %v7356 = vpack.c.b16 %v7348, %v7347
          %7365 = vmatprep.subr.bf16.mxu0 0
          %7366 = vmatpush1.bf16.msra.mxu0 %v7356
          %7367 = vmatprep.subr.bf16.mxu0 0
          %7368 = vmatpush1.bf16.msra.mxu0 %v7355
          %7369 = vmatprep.subr.bf16.mxu0 0
          %7370 = vmatpush1.bf16.msra.mxu0 %v7354
          %7371 = vmatprep.subr.bf16.mxu0 0
          %7372 = vmatpush1.bf16.msra.mxu0 %v7353
          %7373 = vmatprep.subr.bf16.mxu0 0
          %7374 = vmatpush1.bf16.msra.mxu0 %v7352
          %7375 = vmatprep.subr.bf16.mxu0 0
          %7376 = vmatpush1.bf16.msra.mxu0 %v7351
          %7377 = vmatprep.subr.bf16.mxu0 0
          %7378 = vmatpush1.bf16.msra.mxu0 %v7350
          %7379 = vmatprep.subr.bf16.mxu0 0
          %7380 = vmatpush1.bf16.msra.mxu0 %v7349
          %7381 = vmatprep.subr.bf16.mxu0 0
          %7382 = vmatpush2.bf16.msra.mxu0 0
          %7383 = vmatprep.subr.bf16.mxu0 0
          %7384 = vmatpush2.bf16.msra.mxu0 0
          %7385 = vmatprep.subr.bf16.mxu0 0
          %7386 = vmatpush2.bf16.msra.mxu0 0
          %7387 = vmatprep.subr.bf16.mxu0 0
          %7388 = vmatpush2.bf16.msra.mxu0 0
          %7389 = vmatprep.subr.bf16.mxu0 0
          %7390 = vmatpush2.bf16.msra.mxu0 0
          %7391 = vmatprep.subr.bf16.mxu0 0
          %7392 = vmatpush2.bf16.msra.mxu0 0
          %7393 = vmatprep.subr.bf16.mxu0 0
          %7394 = vmatpush2.bf16.msra.mxu0 0
          %7395 = vmatprep.subr.bf16.mxu0 0
          %7396 = vmatpush2.bf16.msra.mxu0 0
          %7397 = vmatprep.mubr.bf16.mxu0 0
          %7398 = vmatmul.mubr.bf16.gmra.mxu0 %v7293
          %v7399 = vpop.f32.mrf.mxu0
          %v7400 = vadd.f32 %v7315, %v7399
          %v7401 = vpop.f32.mrf.mxu0
          %v7402 = vpop.f32.mrf.mxu0
          %v7403 = vpop.f32.mrf.mxu0
          %7404 = vdwg.mxu0
          %7405 = vst [vmem:[%s9] sm:$0xff] %v7400
        $region87: #{net_forward.5} parent=74 // pred_fallthru
          _
        // Predicated region
        $region88: #{net_forward.5} parent=74 // pred_check
          %p7406 = pneg %p237
        $region89: #{net_forward.5} parent=74 // pred_check_branch
          %7408 = sbr.rel (%p7406) target = $region91
        $region90: #{net_forward.5} parent=74 // pred_region
          _
        $region91: #{net_forward.5} parent=74 // pred_fallthru
          _
        // Predicated region
        $region92: #{net_forward.5} parent=74 // pred_check
          %p7409 = pneg %p237
        $region93: #{net_forward.5} parent=74 // pred_check_branch
          %7411 = sbr.rel (%p7409) target = $region95
        $region94: #{net_forward.5} parent=74 // pred_region
          _
        $region95: #{net_forward.5} parent=74 // pred_fallthru
          _
      $region75: #{net_forward.5} parent=5 // pred_fallthru
        _
      %p7412 = scmp.le.s32.totalorder 2, %s15
      // Predicated region
      $region96: #{net_forward.5} parent=5 // pred_check
        %p7413 = pneg %p7412
      $region97: #{net_forward.5} parent=5 // pred_check_branch
        %7415 = sbr.rel (%p7413) target = $region99
      $region98: #{net_forward.5} parent=5 // pred_region
        %s7416 = ssub.s32 %s15, 2
      $region99: #{net_forward.5} parent=5 // pred_fallthru
        _
    $region6: #{net_forward.5} parent=1 // loop_footer
      %s19 = sadd.s32 1, %s15
    $region7: #{net_forward.5} parent=1 // loop_footer_branch
      %14 = sbr.rel target = $region3
    $region8: #{net_forward.5} parent=1 // loop_exit
      _

</llo_original>
